<compile_context>
chip_gen: v6e
topology: v6e:2x2x1
jax: 0.10.0
libtpu: 0.0.40
codegen_flags: <defaults>
</compile_context>

<pallas_src>
import functools

import numpy as np
import jax
import jax.numpy as jnp
from jax.experimental import pallas as pl
from jax.experimental.pallas import tpu as pltpu

VMEM_SPEC = pl.BlockSpec(memory_space=pltpu.MemorySpace.VMEM)
ANY_SPEC = pl.BlockSpec(memory_space=pl.ANY)
HI = jax.lax.Precision.HIGHEST

# Layers whose (large) packed weight stacks stay in HBM and are prefetched into
# VMEM scratch by in-kernel async copies (layers 3 and 4 hold ~90% of the bytes).
PREFETCH_LAYERS = (3, 4)


# ----------------------------------------------------------------------------
# Fused Pallas kernel: 6x st_gcn + SAN projection, everything VMEM-resident
# ----------------------------------------------------------------------------
def fused_discriminator_kernel(*refs, layer_meta, prefetch):
    """refs = (x0, direction, [B_l, W_l, bias_l] * L, out, pf_bufs..., sem).

    x0        : (R0, C0)        f32 input rows (n, t, v) x [label_emb, x] channels
    direction : (1, latent)     f32 normalized fcn_w
    per layer l:
      B_l     : (Kp, R_out, R_in) f32 block-diagonal mixing I_NT (x) A_eff[k]^T with
                downsample rows pre-selected; last partition is the residual
                row-selection matrix when the layer has a residual branch.
      W_l     : (Kp, Cin, Cout)   bf16 per-partition 1x1 weights, centre temporal
                tap folded (residual partition = Wr^T, unfolded).
      bias_l  : (R_out, Cout)     f32 full per-row bias (gcn bias routed through
                tcn + adjacency row sums, tcn bias, residual bias).
    out       : (1, N)          f32 lane-dense validity
    """
    n_layers = len(layer_meta)
    x_ref, d_ref = refs[0], refs[1]
    lrefs = refs[2:2 + 3 * n_layers]
    o_ref = refs[2 + 3 * n_layers]
    scratch = refs[3 + 3 * n_layers:]
    pf_bufs = {l: scratch[j] for j, l in enumerate(prefetch)}

    # Issue all weight prefetch DMAs up-front (HBM -> VMEM scratch); they run
    # while the earlier, smaller layers compute, instead of serializing the
    # whole parameter fetch before the first matmul.
    copies = {}
    if prefetch:
        sem = scratch[len(prefetch)]
        for j, l in enumerate(prefetch):
            cp = pltpu.make_async_copy(lrefs[3 * l + 1], pf_bufs[l], sem.at[j])
            cp.start()
            copies[l] = cp

    act = x_ref[...]                                    # (R, C) f32, lives in vregs/VMEM
    for l, (kp, res_identity) in enumerate(layer_meta):
        b_ref, bias_ref = lrefs[3 * l], lrefs[3 * l + 2]
        if l in copies:
            copies[l].wait()
            w_ref = pf_bufs[l]
        else:
            w_ref = lrefs[3 * l + 1]

        act_b = act.astype(jnp.bfloat16)                # bf16 MXU operands, f32 accum
        z = bias_ref[...]                               # (R_out, Cout) f32
        for k in range(kp):
            # 1x1 conv for partition k (centre temporal tap folded host-side);
            # whole-R LHS keeps the MXU M-dim maximal (no per-(n,t) splitting).
            y = jnp.dot(act_b, w_ref[k], preferred_element_type=jnp.float32)
            if res_identity and k == kp - 1:            # residual w/o downsample: B == I
                z = z + y
            else:
                # tiny (<=16-deep) block-diagonal mix: keep it exact, cost is nil
                z = z + jnp.dot(b_ref[k], y, precision=HI,
                                preferred_element_type=jnp.float32)
        act = jnp.maximum(z, 0.2 * z)                   # LeakyReLU(0.2), single vmax
        # TODO(synk): at large R stage `act` through a VMEM scratch per layer to
        # bound vreg live ranges across the unrolled layer chain.

    # SAN projection, lane-dense (1, N): out[0, n] = sum_c act[n, c] * dir[0, c]
    o_ref[...] = jax.lax.dot_general(d_ref[...], act, (((1,), (1,)), ((), ())),
                                     precision=HI, preferred_element_type=jnp.float32)


# ----------------------------------------------------------------------------
# One-time host-side packing (numpy) + forward-builder
# ----------------------------------------------------------------------------
def pack_discriminator(params, N, T):
    """Fold centre temporal tap + residual into per-partition (Cin, Cout) weights,
    build block-diagonal mixing matrices, precompute per-row biases, cast the big
    weights to bf16.  Runs once, outside the per-call path."""
    if T != 1:
        # TODO(synk): for T > 1 the +-1 temporal taps need shifted matmuls in-kernel;
        # the module's own flatten (view(N,-1) vs (1, latent) direction) forces T == 1.
        raise ValueError("This Discriminator forward only type-checks for T == 1.")
    NT = N * T
    I_nt = np.eye(NT, dtype=np.float32)

    w = np.asarray(params["fcn_w"], np.float32)
    direction = w / np.maximum(np.linalg.norm(w, axis=1, keepdims=True), 1e-12)
    latent = int(direction.shape[1])

    kernel_inputs = [jnp.asarray(direction, jnp.float32)]
    layer_meta, w_shapes = [], []

    V = int(np.asarray(params["A"][params["cfgs"][0]["lvl"]]).shape[1])
    last_cout = None
    for i, cfg in enumerate(params["cfgs"]):
        p = params["layers"][i]
        A_eff = (np.asarray(params["A"][cfg["lvl"]], np.float32)
                 * np.asarray(params["edge_importance"][i], np.float32))
        K, V_in, _ = A_eff.shape
        assert V_in == V, "graph level / vertex count mismatch"

        Wg = np.asarray(p["Wg"], np.float32)
        Cout = int(np.asarray(p["bt"]).shape[0])
        Cin = int(Wg.shape[1])
        Wg = Wg.reshape(K, Cout, Cin)
        bg = np.asarray(p["bg"], np.float32).reshape(K, Cout)
        bt = np.asarray(p["bt"], np.float32)
        Wt1T = np.asarray(p["Wt"], np.float32)[:, :, 1].T            # (Cout, Cout)

        keep = np.asarray(params["keeps"][cfg["lvl"]]) if cfg["dw_s"] else None
        V_out = int(keep.shape[0]) if keep is not None else V_in

        Ws, Bs = [], []
        bias_v = np.tile(bt[None, :], (V_out, 1))                    # (V_out, Cout)
        for k in range(K):
            Ws.append(Wg[k].T @ Wt1T)                                # (Cin, Cout)
            ATk = A_eff[k].T                                         # (V_in, V_in)
            AT_sel = ATk[keep, :] if keep is not None else ATk       # (V_out, V_in)
            Bs.append(np.kron(I_nt, AT_sel))                         # (NT*V_out, NT*V_in)
            bias_v = bias_v + AT_sel.sum(1, keepdims=True) * (bg[k] @ Wt1T)[None, :]

        has_res = p["Wr"] is not None
        res_identity = False
        if has_res:
            Ws.append(np.asarray(p["Wr"], np.float32).T)             # (Cin, Cout)
            sel = keep if keep is not None else np.arange(V_in)
            S = np.zeros((V_out, V_in), np.float32)
            S[np.arange(V_out), sel] = 1.0
            Bs.append(np.kron(I_nt, S))
            bias_v = bias_v + np.asarray(p["br"], np.float32)[None, :]
            res_identity = keep is None                              # B == I -> skip its matmul

        W_stack = np.stack(Ws)                                       # (Kp, Cin, Cout)
        B_stack = np.stack(Bs).astype(np.float32)                    # (Kp, NT*V_out, NT*V_in)
        bias_rows = np.tile(bias_v, (NT, 1)).astype(np.float32)      # (NT*V_out, Cout)

        kernel_inputs += [jnp.asarray(B_stack, jnp.float32),
                          jnp.asarray(W_stack, jnp.bfloat16),        # halve HBM bytes
                          jnp.asarray(bias_rows, jnp.float32)]
        layer_meta.append((len(Ws), res_identity))
        w_shapes.append(tuple(int(s) for s in W_stack.shape))
        V = V_out
        last_cout = Cout

    if T * V != 1 or last_cout != latent:
        raise ValueError("Final T*V*Cout must equal latent for the SAN flatten/projection.")
    return kernel_inputs, tuple(layer_meta), w_shapes


def make_discriminator_forward(params, N, T, prefetch_layers=PREFETCH_LAYERS):
    kernel_inputs, layer_meta, w_shapes = pack_discriminator(params, N, T)
    n_layers = len(layer_meta)
    prefetch = tuple(l for l in prefetch_layers if 0 <= l < n_layers)

    in_specs = [VMEM_SPEC, VMEM_SPEC]
    for l in range(n_layers):
        in_specs += [VMEM_SPEC, ANY_SPEC if l in prefetch else VMEM_SPEC, VMEM_SPEC]
    scratch_shapes = [pltpu.VMEM(w_shapes[l], jnp.bfloat16) for l in prefetch]
    if prefetch:
        scratch_shapes.append(pltpu.SemaphoreType.DMA((len(prefetch),)))

    call = pl.pallas_call(
        functools.partial(fused_discriminator_kernel,
                          layer_meta=layer_meta, prefetch=prefetch),
        out_shape=jax.ShapeDtypeStruct((1, N), jnp.float32),
        in_specs=in_specs,
        out_specs=VMEM_SPEC,
        scratch_shapes=scratch_shapes,
    )
    # TODO(synk): for large N add a batch grid axis (dimension_semantics=('parallel',),
    # constant index_maps on the weights) to use the 2nd TensorCore on v7x and bound
    # VMEM; at N=2 the per-step grid overhead would dominate, so stay gridless.

    label_emb = jnp.asarray(params["label_emb"], jnp.float32)
    n_classes = int(label_emb.shape[1])

    @jax.jit
    def forward(x, labels):
        n, C, t, V0 = x.shape
        emb = label_emb[labels]                                             # (N, n_classes)
        # NCHW -> (R, C) rows ordered (n, t, v); torch.cat((c, x), 1) => channels [emb, x]
        x_rows = jnp.transpose(x, (0, 2, 3, 1)).reshape(n * t * V0, C)
        c_rows = jnp.broadcast_to(emb[:, None, None, :],
                                  (n, t, V0, n_classes)).reshape(n * t * V0, n_classes)
        h0 = jnp.concatenate([c_rows, x_rows], axis=1)
        return call(h0, *kernel_inputs)[0, :]

    return forward


def run_discriminator(forward_fn, x, labels, flg_train=False):
    validity = forward_fn(x, labels)
    if flg_train:
        # .detach() only affects autograd; forward values of 'fun' and 'dir' are identical.
        return dict(fun=validity, dir=validity)
    return validity


# ----------------------------------------------------------------------------
# Pure-JAX f32 reference (mirrors the PyTorch NCHW computation) for validation
# ----------------------------------------------------------------------------
def ref_st_gcn(x, A_eff, p, keep):
    N, Cin, T, V = x.shape
    K = A_eff.shape[0]
    Cout = int(p["bt"].shape[0])
    y = jnp.einsum("oc,nctv->notv", p["Wg"], x, precision=HI) + p["bg"][None, :, None, None]
    y = y.reshape(N, K, Cout, T, V)
    z = jnp.einsum("nkctv,kvw->nctw", y, A_eff, precision=HI)
    zp = jnp.pad(z, ((0, 0), (0, 0), (1, 1), (0, 0)))
    out = p["bt"][None, :, None, None]
    for j in range(3):
        out = out + jnp.einsum("oi,nitv->notv", p["Wt"][:, :, j], zp[:, :, j:j + T, :],
                               precision=HI)
    if p["Wr"] is not None:
        out = out + jnp.einsum("oi,nitv->notv", p["Wr"], x, precision=HI) \
                  + p["br"][None, :, None, None]
    out = jnp.where(out >= 0, out, 0.2 * out)
    if keep is not None:
        out = out[:, :, :, keep]
    return out


def reference_forward(params, x, labels):
    N, C, T, V = x.shape
    emb = params["label_emb"][labels]
    c = jnp.broadcast_to(emb[:, :, None, None], (N, emb.shape[1], T, V))
    x = jnp.concatenate([c, x], axis=1)
    for i, cfg in enumerate(params["cfgs"]):
        A_eff = params["A"][cfg["lvl"]] * params["edge_importance"][i]
        keep = params["keeps"][cfg["lvl"]] if cfg["dw_s"] else None
        x = ref_st_gcn(x, A_eff, params["layers"][i], keep)
    h = x.reshape(N, -1)
    w = params["fcn_w"]
    d = w / jnp.maximum(jnp.linalg.norm(w, axis=1, keepdims=True), 1e-12)
    return jnp.sum(h * d, axis=1)


# ----------------------------------------------------------------------------
# Synthetic graph hierarchy + deterministic parameter init
# ----------------------------------------------------------------------------
def make_graph():
    """Synthetic replacement for graph_ntu: 4 levels with 8 -> 4 -> 2 -> 1 vertices,
    2 adjacency partitions per level (self connections + normalized ring)."""
    Vs = [8, 4, 2, 1]
    As = []
    for Vl in Vs:
        ident = np.eye(Vl, dtype=np.float32)
        ring = np.zeros((Vl, Vl), np.float32)
        if Vl > 1:
            for v in range(Vl):
                ring[v, (v + 1) % Vl] += 0.5
                ring[v, (v - 1) % Vl] += 0.5
        else:
            ring[0, 0] = 1.0
        As.append(np.stack([ident, ring]))            # (K=2, Vl, Vl)
    # graph.map[l][:, 1] -> which vertices of level l-1 survive at level l
    keeps = [np.arange(0, Vs[l - 1], Vs[l - 1] // Vs[l]) for l in range(1, 4)]
    return As, keeps


def spectral_normalize(w):
    """nn.utils.spectral_norm at forward time: divide by the largest singular value
    of the (out, -1)-reshaped weight (computed exactly instead of power iteration)."""
    wm = np.asarray(w).reshape(w.shape[0], -1)
    sigma = np.linalg.svd(wm, compute_uv=False)[0]
    return (w / jnp.float32(sigma)).astype(jnp.float32)


def init_params(key, in_channels, n_classes, latent, As, keeps, cfgs):
    params = {"A": [jnp.asarray(A) for A in As], "keeps": keeps, "cfgs": cfgs}
    key, k_emb, k_fcn = jax.random.split(key, 3)
    params["label_emb"] = jax.random.normal(k_emb, (n_classes, n_classes), jnp.float32)
    params["fcn_w"] = jax.random.normal(k_fcn, (1, latent), jnp.float32)
    # edge_importance initialized to ones (as in the module)
    params["edge_importance"] = [jnp.ones_like(params["A"][c["lvl"]]) for c in cfgs]

    layers = []
    for c in cfgs:
        K = As[c["lvl"]].shape[0]
        cin, cout = c["cin"], c["cout"]
        key, kg, kbg, kt, kbt, kr, kbr = jax.random.split(key, 7)
        Wg = (jax.random.normal(kg, (K * cout, cin)) / np.sqrt(cin)).astype(jnp.float32)
        bg = (0.1 * jax.random.normal(kbg, (K * cout,))).astype(jnp.float32)
        Wt = (jax.random.normal(kt, (cout, cout, 3)) / np.sqrt(3 * cout)).astype(jnp.float32)
        Wt = spectral_normalize(Wt)
        bt = (0.1 * jax.random.normal(kbt, (cout,))).astype(jnp.float32)
        if c["residual"]:
            Wr = (jax.random.normal(kr, (cout, cin)) / np.sqrt(cin)).astype(jnp.float32)
            Wr = spectral_normalize(Wr)
            br = (0.1 * jax.random.normal(kbr, (cout,))).astype(jnp.float32)
        else:
            Wr, br = None, None
        layers.append(dict(Wg=Wg, bg=bg, Wt=Wt, bt=bt, Wr=Wr, br=br))
    params["layers"] = layers
    return params


# ----------------------------------------------------------------------------
if __name__ == "__main__":
    N, in_channels, n_classes, latent = 2, 3, 4, 16
    T = 1  # required by the module's own final flatten/broadcast (see header note)

    As, keeps = make_graph()
    V0 = As[0].shape[1]

    cfgs = [
        dict(cin=in_channels + n_classes, cout=32,     lvl=0, dw_s=True,  residual=False),
        dict(cin=32,                      cout=64,     lvl=1, dw_s=False, residual=True),
        dict(cin=64,                      cout=128,    lvl=1, dw_s=True,  residual=True),
        dict(cin=128,                     cout=256,    lvl=2, dw_s=False, residual=True),
        dict(cin=256,                     cout=512,    lvl=2, dw_s=True,  residual=True),
        dict(cin=512,                     cout=latent, lvl=3, dw_s=False, residual=True),
    ]

    key = jax.random.PRNGKey(0)
    key, kx, kl, kp = jax.random.split(key, 4)
    # x is NCHW-like: (N, C, T, V)
    x = jax.random.normal(kx, (N, in_channels, T, V0), jnp.float32)
    labels = jax.random.randint(kl, (N,), 0, n_classes)
    params = init_params(kp, in_channels, n_classes, latent, As, keeps, cfgs)

    forward_fn = make_discriminator_forward(params, N, T)   # one-time packing + jit
    validity = run_discriminator(forward_fn, x, labels, flg_train=False)
    validity = jax.block_until_ready(validity)

    # validate against a pure-JAX f32 reference of the same forward pass
    # (tolerance sized for the bf16-weight / bf16-activation MXU path across 6 layers)
    ref = jax.block_until_ready(reference_forward(params, x, labels))
    np.testing.assert_allclose(np.asarray(validity), np.asarray(ref), rtol=3e-2, atol=3e-2)

    print("KERNEL_OK")
</pallas_src>

<mosaic_0001>
module attributes {stable_mosaic.version = 11 : i64} {
  func.func @fused_discriminator_kernel(%arg0: memref<16x7xf32, #tpu.memory_space<vmem>>, %arg1: memref<1x16xf32, #tpu.memory_space<vmem>>, %arg2: memref<2x8x16xf32, #tpu.memory_space<vmem>>, %arg3: memref<2x7x32xbf16, #tpu.memory_space<vmem>>, %arg4: memref<8x32xf32, #tpu.memory_space<vmem>>, %arg5: memref<3x8x8xf32, #tpu.memory_space<vmem>>, %arg6: memref<3x32x64xbf16, #tpu.memory_space<vmem>>, %arg7: memref<8x64xf32, #tpu.memory_space<vmem>>, %arg8: memref<3x4x8xf32, #tpu.memory_space<vmem>>, %arg9: memref<3x64x128xbf16, #tpu.memory_space<vmem>>, %arg10: memref<4x128xf32, #tpu.memory_space<vmem>>, %arg11: memref<3x4x4xf32, #tpu.memory_space<vmem>>, %arg12: memref<3x128x256xbf16, #tpu.memory_space<any>>, %arg13: memref<4x256xf32, #tpu.memory_space<vmem>>, %arg14: memref<3x2x4xf32, #tpu.memory_space<vmem>>, %arg15: memref<3x256x512xbf16, #tpu.memory_space<any>>, %arg16: memref<2x512xf32, #tpu.memory_space<vmem>>, %arg17: memref<3x2x2xf32, #tpu.memory_space<vmem>>, %arg18: memref<3x512x16xbf16, #tpu.memory_space<vmem>>, %arg19: memref<2x16xf32, #tpu.memory_space<vmem>>, %arg20: memref<1x2xf32, #tpu.memory_space<vmem>>, %arg21: memref<3x128x256xbf16, #tpu.memory_space<vmem>>, %arg22: memref<3x256x512xbf16, #tpu.memory_space<vmem>>, %arg23: memref<2x!tpu.dma_semaphore, #tpu.memory_space<semaphore_mem>>) attributes {dimension_semantics = [], scalar_prefetch = 0 : i64, scratch_operands = 3 : i64, tpu.core_type = #tpu.core_type<tc>} {
    %c0_i32 = arith.constant 0 : i32
    %0 = tpu.memref_slice %arg23[%c0_i32] : memref<2x!tpu.dma_semaphore, #tpu.memory_space<semaphore_mem>> -> memref<1x!tpu.dma_semaphore, #tpu.memory_space<semaphore_mem>>
    %1 = tpu.memref_squeeze %0 : memref<1x!tpu.dma_semaphore, #tpu.memory_space<semaphore_mem>> -> memref<!tpu.dma_semaphore, #tpu.memory_space<semaphore_mem>>
    tpu.enqueue_dma source(%arg12 : memref<3x128x256xbf16, #tpu.memory_space<any>>) target(%arg21 : memref<3x128x256xbf16, #tpu.memory_space<vmem>>) target_semaphore(%1 : memref<!tpu.dma_semaphore, #tpu.memory_space<semaphore_mem>>)
    %c1_i32 = arith.constant 1 : i32
    %2 = tpu.memref_slice %arg23[%c1_i32] : memref<2x!tpu.dma_semaphore, #tpu.memory_space<semaphore_mem>> -> memref<1x!tpu.dma_semaphore, #tpu.memory_space<semaphore_mem>>
    %3 = tpu.memref_squeeze %2 : memref<1x!tpu.dma_semaphore, #tpu.memory_space<semaphore_mem>> -> memref<!tpu.dma_semaphore, #tpu.memory_space<semaphore_mem>>
    tpu.enqueue_dma source(%arg15 : memref<3x256x512xbf16, #tpu.memory_space<any>>) target(%arg22 : memref<3x256x512xbf16, #tpu.memory_space<vmem>>) target_semaphore(%3 : memref<!tpu.dma_semaphore, #tpu.memory_space<semaphore_mem>>)
    %c0 = arith.constant 0 : index
    %c0_0 = arith.constant 0 : index
    %4 = vector.load %arg0[%c0, %c0_0] : memref<16x7xf32, #tpu.memory_space<vmem>>, vector<16x7xf32>
    %5 = arith.truncf %4 : vector<16x7xf32> to vector<16x7xbf16>
    %c0_1 = arith.constant 0 : index
    %c0_2 = arith.constant 0 : index
    %6 = vector.load %arg4[%c0_1, %c0_2] : memref<8x32xf32, #tpu.memory_space<vmem>>, vector<8x32xf32>
    %c0_3 = arith.constant 0 : index
    %c0_4 = arith.constant 0 : index
    %c0_5 = arith.constant 0 : index
    %7 = vector.load %arg3[%c0_3, %c0_4, %c0_5] : memref<2x7x32xbf16, #tpu.memory_space<vmem>>, vector<1x7x32xbf16>
    %8 = vector.shape_cast %7 : vector<1x7x32xbf16> to vector<7x32xbf16>
    %cst = arith.constant dense<0.000000e+00> : vector<16x32xf32>
    %9 = tpu.matmul %5, %8, %cst {dimension_numbers = #tpu.dot_dimension_numbers<[1], [0], [0], [1], [0, 0, 1, 1], [], []>} : vector<16x7xbf16>, vector<7x32xbf16>, vector<16x32xf32> -> vector<16x32xf32>
    %c0_6 = arith.constant 0 : index
    %c0_7 = arith.constant 0 : index
    %c0_8 = arith.constant 0 : index
    %10 = vector.load %arg2[%c0_6, %c0_7, %c0_8] : memref<2x8x16xf32, #tpu.memory_space<vmem>>, vector<1x8x16xf32>
    %11 = vector.shape_cast %10 : vector<1x8x16xf32> to vector<8x16xf32>
    %cst_9 = arith.constant dense<0.000000e+00> : vector<8x32xf32>
    %12 = tpu.matmul %11, %9, %cst_9 {dimension_numbers = #tpu.dot_dimension_numbers<[1], [0], [0], [1], [0, 0, 1, 1], [], []>, precision = #tpu.contract_precision<fp32>} : vector<8x16xf32>, vector<16x32xf32>, vector<8x32xf32> -> vector<8x32xf32>
    %13 = arith.addf %6, %12 : vector<8x32xf32>
    %c1 = arith.constant 1 : index
    %c0_10 = arith.constant 0 : index
    %c0_11 = arith.constant 0 : index
    %14 = vector.load %arg3[%c1, %c0_10, %c0_11] : memref<2x7x32xbf16, #tpu.memory_space<vmem>>, vector<1x7x32xbf16>
    %15 = vector.shape_cast %14 : vector<1x7x32xbf16> to vector<7x32xbf16>
    %cst_12 = arith.constant dense<0.000000e+00> : vector<16x32xf32>
    %16 = tpu.matmul %5, %15, %cst_12 {dimension_numbers = #tpu.dot_dimension_numbers<[1], [0], [0], [1], [0, 0, 1, 1], [], []>} : vector<16x7xbf16>, vector<7x32xbf16>, vector<16x32xf32> -> vector<16x32xf32>
    %c1_13 = arith.constant 1 : index
    %c0_14 = arith.constant 0 : index
    %c0_15 = arith.constant 0 : index
    %17 = vector.load %arg2[%c1_13, %c0_14, %c0_15] : memref<2x8x16xf32, #tpu.memory_space<vmem>>, vector<1x8x16xf32>
    %18 = vector.shape_cast %17 : vector<1x8x16xf32> to vector<8x16xf32>
    %cst_16 = arith.constant dense<0.000000e+00> : vector<8x32xf32>
    %19 = tpu.matmul %18, %16, %cst_16 {dimension_numbers = #tpu.dot_dimension_numbers<[1], [0], [0], [1], [0, 0, 1, 1], [], []>, precision = #tpu.contract_precision<fp32>} : vector<8x16xf32>, vector<16x32xf32>, vector<8x32xf32> -> vector<8x32xf32>
    %20 = arith.addf %13, %19 : vector<8x32xf32>
    %cst_17 = arith.constant 2.000000e-01 : f32
    %21 = vector.broadcast %cst_17 : f32 to vector<8x32xf32>
    %22 = arith.mulf %21, %20 : vector<8x32xf32>
    %23 = arith.maximumf %20, %22 : vector<8x32xf32>
    %24 = arith.truncf %23 : vector<8x32xf32> to vector<8x32xbf16>
    %c0_18 = arith.constant 0 : index
    %c0_19 = arith.constant 0 : index
    %25 = vector.load %arg7[%c0_18, %c0_19] : memref<8x64xf32, #tpu.memory_space<vmem>>, vector<8x64xf32>
    %c0_20 = arith.constant 0 : index
    %c0_21 = arith.constant 0 : index
    %c0_22 = arith.constant 0 : index
    %26 = vector.load %arg6[%c0_20, %c0_21, %c0_22] : memref<3x32x64xbf16, #tpu.memory_space<vmem>>, vector<1x32x64xbf16>
    %27 = vector.shape_cast %26 : vector<1x32x64xbf16> to vector<32x64xbf16>
    %cst_23 = arith.constant dense<0.000000e+00> : vector<8x64xf32>
    %28 = tpu.matmul %24, %27, %cst_23 {dimension_numbers = #tpu.dot_dimension_numbers<[1], [0], [0], [1], [0, 0, 1, 1], [], []>} : vector<8x32xbf16>, vector<32x64xbf16>, vector<8x64xf32> -> vector<8x64xf32>
    %c0_24 = arith.constant 0 : index
    %c0_25 = arith.constant 0 : index
    %c0_26 = arith.constant 0 : index
    %29 = vector.load %arg5[%c0_24, %c0_25, %c0_26] : memref<3x8x8xf32, #tpu.memory_space<vmem>>, vector<1x8x8xf32>
    %30 = vector.shape_cast %29 : vector<1x8x8xf32> to vector<8x8xf32>
    %cst_27 = arith.constant dense<0.000000e+00> : vector<8x64xf32>
    %31 = tpu.matmul %30, %28, %cst_27 {dimension_numbers = #tpu.dot_dimension_numbers<[1], [0], [0], [1], [0, 0, 1, 1], [], []>, precision = #tpu.contract_precision<fp32>} : vector<8x8xf32>, vector<8x64xf32>, vector<8x64xf32> -> vector<8x64xf32>
    %32 = arith.addf %25, %31 : vector<8x64xf32>
    %c1_28 = arith.constant 1 : index
    %c0_29 = arith.constant 0 : index
    %c0_30 = arith.constant 0 : index
    %33 = vector.load %arg6[%c1_28, %c0_29, %c0_30] : memref<3x32x64xbf16, #tpu.memory_space<vmem>>, vector<1x32x64xbf16>
    %34 = vector.shape_cast %33 : vector<1x32x64xbf16> to vector<32x64xbf16>
    %cst_31 = arith.constant dense<0.000000e+00> : vector<8x64xf32>
    %35 = tpu.matmul %24, %34, %cst_31 {dimension_numbers = #tpu.dot_dimension_numbers<[1], [0], [0], [1], [0, 0, 1, 1], [], []>} : vector<8x32xbf16>, vector<32x64xbf16>, vector<8x64xf32> -> vector<8x64xf32>
    %c1_32 = arith.constant 1 : index
    %c0_33 = arith.constant 0 : index
    %c0_34 = arith.constant 0 : index
    %36 = vector.load %arg5[%c1_32, %c0_33, %c0_34] : memref<3x8x8xf32, #tpu.memory_space<vmem>>, vector<1x8x8xf32>
    %37 = vector.shape_cast %36 : vector<1x8x8xf32> to vector<8x8xf32>
    %cst_35 = arith.constant dense<0.000000e+00> : vector<8x64xf32>
    %38 = tpu.matmul %37, %35, %cst_35 {dimension_numbers = #tpu.dot_dimension_numbers<[1], [0], [0], [1], [0, 0, 1, 1], [], []>, precision = #tpu.contract_precision<fp32>} : vector<8x8xf32>, vector<8x64xf32>, vector<8x64xf32> -> vector<8x64xf32>
    %39 = arith.addf %32, %38 : vector<8x64xf32>
    %c2 = arith.constant 2 : index
    %c0_36 = arith.constant 0 : index
    %c0_37 = arith.constant 0 : index
    %40 = vector.load %arg6[%c2, %c0_36, %c0_37] : memref<3x32x64xbf16, #tpu.memory_space<vmem>>, vector<1x32x64xbf16>
    %41 = vector.shape_cast %40 : vector<1x32x64xbf16> to vector<32x64xbf16>
    %cst_38 = arith.constant dense<0.000000e+00> : vector<8x64xf32>
    %42 = tpu.matmul %24, %41, %cst_38 {dimension_numbers = #tpu.dot_dimension_numbers<[1], [0], [0], [1], [0, 0, 1, 1], [], []>} : vector<8x32xbf16>, vector<32x64xbf16>, vector<8x64xf32> -> vector<8x64xf32>
    %43 = arith.addf %39, %42 : vector<8x64xf32>
    %cst_39 = arith.constant 2.000000e-01 : f32
    %44 = vector.broadcast %cst_39 : f32 to vector<8x64xf32>
    %45 = arith.mulf %44, %43 : vector<8x64xf32>
    %46 = arith.maximumf %43, %45 : vector<8x64xf32>
    %47 = arith.truncf %46 : vector<8x64xf32> to vector<8x64xbf16>
    %c0_40 = arith.constant 0 : index
    %c0_41 = arith.constant 0 : index
    %48 = vector.load %arg10[%c0_40, %c0_41] : memref<4x128xf32, #tpu.memory_space<vmem>>, vector<4x128xf32>
    %c0_42 = arith.constant 0 : index
    %c0_43 = arith.constant 0 : index
    %c0_44 = arith.constant 0 : index
    %49 = vector.load %arg9[%c0_42, %c0_43, %c0_44] : memref<3x64x128xbf16, #tpu.memory_space<vmem>>, vector<1x64x128xbf16>
    %50 = vector.shape_cast %49 : vector<1x64x128xbf16> to vector<64x128xbf16>
    %cst_45 = arith.constant dense<0.000000e+00> : vector<8x128xf32>
    %51 = tpu.matmul %47, %50, %cst_45 {dimension_numbers = #tpu.dot_dimension_numbers<[1], [0], [0], [1], [0, 0, 1, 1], [], []>} : vector<8x64xbf16>, vector<64x128xbf16>, vector<8x128xf32> -> vector<8x128xf32>
    %c0_46 = arith.constant 0 : index
    %c0_47 = arith.constant 0 : index
    %c0_48 = arith.constant 0 : index
    %52 = vector.load %arg8[%c0_46, %c0_47, %c0_48] : memref<3x4x8xf32, #tpu.memory_space<vmem>>, vector<1x4x8xf32>
    %53 = vector.shape_cast %52 : vector<1x4x8xf32> to vector<4x8xf32>
    %cst_49 = arith.constant dense<0.000000e+00> : vector<4x128xf32>
    %54 = tpu.matmul %53, %51, %cst_49 {dimension_numbers = #tpu.dot_dimension_numbers<[1], [0], [0], [1], [0, 0, 1, 1], [], []>, precision = #tpu.contract_precision<fp32>} : vector<4x8xf32>, vector<8x128xf32>, vector<4x128xf32> -> vector<4x128xf32>
    %55 = arith.addf %48, %54 : vector<4x128xf32>
    %c1_50 = arith.constant 1 : index
    %c0_51 = arith.constant 0 : index
    %c0_52 = arith.constant 0 : index
    %56 = vector.load %arg9[%c1_50, %c0_51, %c0_52] : memref<3x64x128xbf16, #tpu.memory_space<vmem>>, vector<1x64x128xbf16>
    %57 = vector.shape_cast %56 : vector<1x64x128xbf16> to vector<64x128xbf16>
    %cst_53 = arith.constant dense<0.000000e+00> : vector<8x128xf32>
    %58 = tpu.matmul %47, %57, %cst_53 {dimension_numbers = #tpu.dot_dimension_numbers<[1], [0], [0], [1], [0, 0, 1, 1], [], []>} : vector<8x64xbf16>, vector<64x128xbf16>, vector<8x128xf32> -> vector<8x128xf32>
    %c1_54 = arith.constant 1 : index
    %c0_55 = arith.constant 0 : index
    %c0_56 = arith.constant 0 : index
    %59 = vector.load %arg8[%c1_54, %c0_55, %c0_56] : memref<3x4x8xf32, #tpu.memory_space<vmem>>, vector<1x4x8xf32>
    %60 = vector.shape_cast %59 : vector<1x4x8xf32> to vector<4x8xf32>
    %cst_57 = arith.constant dense<0.000000e+00> : vector<4x128xf32>
    %61 = tpu.matmul %60, %58, %cst_57 {dimension_numbers = #tpu.dot_dimension_numbers<[1], [0], [0], [1], [0, 0, 1, 1], [], []>, precision = #tpu.contract_precision<fp32>} : vector<4x8xf32>, vector<8x128xf32>, vector<4x128xf32> -> vector<4x128xf32>
    %62 = arith.addf %55, %61 : vector<4x128xf32>
    %c2_58 = arith.constant 2 : index
    %c0_59 = arith.constant 0 : index
    %c0_60 = arith.constant 0 : index
    %63 = vector.load %arg9[%c2_58, %c0_59, %c0_60] : memref<3x64x128xbf16, #tpu.memory_space<vmem>>, vector<1x64x128xbf16>
    %64 = vector.shape_cast %63 : vector<1x64x128xbf16> to vector<64x128xbf16>
    %cst_61 = arith.constant dense<0.000000e+00> : vector<8x128xf32>
    %65 = tpu.matmul %47, %64, %cst_61 {dimension_numbers = #tpu.dot_dimension_numbers<[1], [0], [0], [1], [0, 0, 1, 1], [], []>} : vector<8x64xbf16>, vector<64x128xbf16>, vector<8x128xf32> -> vector<8x128xf32>
    %c2_62 = arith.constant 2 : index
    %c0_63 = arith.constant 0 : index
    %c0_64 = arith.constant 0 : index
    %66 = vector.load %arg8[%c2_62, %c0_63, %c0_64] : memref<3x4x8xf32, #tpu.memory_space<vmem>>, vector<1x4x8xf32>
    %67 = vector.shape_cast %66 : vector<1x4x8xf32> to vector<4x8xf32>
    %cst_65 = arith.constant dense<0.000000e+00> : vector<4x128xf32>
    %68 = tpu.matmul %67, %65, %cst_65 {dimension_numbers = #tpu.dot_dimension_numbers<[1], [0], [0], [1], [0, 0, 1, 1], [], []>, precision = #tpu.contract_precision<fp32>} : vector<4x8xf32>, vector<8x128xf32>, vector<4x128xf32> -> vector<4x128xf32>
    %69 = arith.addf %62, %68 : vector<4x128xf32>
    %cst_66 = arith.constant 2.000000e-01 : f32
    %70 = vector.broadcast %cst_66 : f32 to vector<4x128xf32>
    %71 = arith.mulf %70, %69 : vector<4x128xf32>
    %72 = arith.maximumf %69, %71 : vector<4x128xf32>
    %c0_i32_67 = arith.constant 0 : i32
    %73 = tpu.memref_slice %arg23[%c0_i32_67] : memref<2x!tpu.dma_semaphore, #tpu.memory_space<semaphore_mem>> -> memref<1x!tpu.dma_semaphore, #tpu.memory_space<semaphore_mem>>
    %74 = tpu.memref_squeeze %73 : memref<1x!tpu.dma_semaphore, #tpu.memory_space<semaphore_mem>> -> memref<!tpu.dma_semaphore, #tpu.memory_space<semaphore_mem>>
    tpu.wait_dma2 semaphore(%74 : memref<!tpu.dma_semaphore, #tpu.memory_space<semaphore_mem>>) src(%arg12 : memref<3x128x256xbf16, #tpu.memory_space<any>>) dst(%arg21 : memref<3x128x256xbf16, #tpu.memory_space<vmem>>)
    %75 = arith.truncf %72 : vector<4x128xf32> to vector<4x128xbf16>
    %c0_68 = arith.constant 0 : index
    %c0_69 = arith.constant 0 : index
    %76 = vector.load %arg13[%c0_68, %c0_69] : memref<4x256xf32, #tpu.memory_space<vmem>>, vector<4x256xf32>
    %c0_70 = arith.constant 0 : index
    %c0_71 = arith.constant 0 : index
    %c0_72 = arith.constant 0 : index
    %77 = vector.load %arg21[%c0_70, %c0_71, %c0_72] : memref<3x128x256xbf16, #tpu.memory_space<vmem>>, vector<1x128x256xbf16>
    %78 = vector.shape_cast %77 : vector<1x128x256xbf16> to vector<128x256xbf16>
    %cst_73 = arith.constant dense<0.000000e+00> : vector<4x256xf32>
    %79 = tpu.matmul %75, %78, %cst_73 {dimension_numbers = #tpu.dot_dimension_numbers<[1], [0], [0], [1], [0, 0, 1, 1], [], []>} : vector<4x128xbf16>, vector<128x256xbf16>, vector<4x256xf32> -> vector<4x256xf32>
    %c0_74 = arith.constant 0 : index
    %c0_75 = arith.constant 0 : index
    %c0_76 = arith.constant 0 : index
    %80 = vector.load %arg11[%c0_74, %c0_75, %c0_76] : memref<3x4x4xf32, #tpu.memory_space<vmem>>, vector<1x4x4xf32>
    %81 = vector.shape_cast %80 : vector<1x4x4xf32> to vector<4x4xf32>
    %cst_77 = arith.constant dense<0.000000e+00> : vector<4x256xf32>
    %82 = tpu.matmul %81, %79, %cst_77 {dimension_numbers = #tpu.dot_dimension_numbers<[1], [0], [0], [1], [0, 0, 1, 1], [], []>, precision = #tpu.contract_precision<fp32>} : vector<4x4xf32>, vector<4x256xf32>, vector<4x256xf32> -> vector<4x256xf32>
    %83 = arith.addf %76, %82 : vector<4x256xf32>
    %c1_78 = arith.constant 1 : index
    %c0_79 = arith.constant 0 : index
    %c0_80 = arith.constant 0 : index
    %84 = vector.load %arg21[%c1_78, %c0_79, %c0_80] : memref<3x128x256xbf16, #tpu.memory_space<vmem>>, vector<1x128x256xbf16>
    %85 = vector.shape_cast %84 : vector<1x128x256xbf16> to vector<128x256xbf16>
    %cst_81 = arith.constant dense<0.000000e+00> : vector<4x256xf32>
    %86 = tpu.matmul %75, %85, %cst_81 {dimension_numbers = #tpu.dot_dimension_numbers<[1], [0], [0], [1], [0, 0, 1, 1], [], []>} : vector<4x128xbf16>, vector<128x256xbf16>, vector<4x256xf32> -> vector<4x256xf32>
    %c1_82 = arith.constant 1 : index
    %c0_83 = arith.constant 0 : index
    %c0_84 = arith.constant 0 : index
    %87 = vector.load %arg11[%c1_82, %c0_83, %c0_84] : memref<3x4x4xf32, #tpu.memory_space<vmem>>, vector<1x4x4xf32>
    %88 = vector.shape_cast %87 : vector<1x4x4xf32> to vector<4x4xf32>
    %cst_85 = arith.constant dense<0.000000e+00> : vector<4x256xf32>
    %89 = tpu.matmul %88, %86, %cst_85 {dimension_numbers = #tpu.dot_dimension_numbers<[1], [0], [0], [1], [0, 0, 1, 1], [], []>, precision = #tpu.contract_precision<fp32>} : vector<4x4xf32>, vector<4x256xf32>, vector<4x256xf32> -> vector<4x256xf32>
    %90 = arith.addf %83, %89 : vector<4x256xf32>
    %c2_86 = arith.constant 2 : index
    %c0_87 = arith.constant 0 : index
    %c0_88 = arith.constant 0 : index
    %91 = vector.load %arg21[%c2_86, %c0_87, %c0_88] : memref<3x128x256xbf16, #tpu.memory_space<vmem>>, vector<1x128x256xbf16>
    %92 = vector.shape_cast %91 : vector<1x128x256xbf16> to vector<128x256xbf16>
    %cst_89 = arith.constant dense<0.000000e+00> : vector<4x256xf32>
    %93 = tpu.matmul %75, %92, %cst_89 {dimension_numbers = #tpu.dot_dimension_numbers<[1], [0], [0], [1], [0, 0, 1, 1], [], []>} : vector<4x128xbf16>, vector<128x256xbf16>, vector<4x256xf32> -> vector<4x256xf32>
    %94 = arith.addf %90, %93 : vector<4x256xf32>
    %cst_90 = arith.constant 2.000000e-01 : f32
    %95 = vector.broadcast %cst_90 : f32 to vector<4x256xf32>
    %96 = arith.mulf %95, %94 : vector<4x256xf32>
    %97 = arith.maximumf %94, %96 : vector<4x256xf32>
    %c1_i32_91 = arith.constant 1 : i32
    %98 = tpu.memref_slice %arg23[%c1_i32_91] : memref<2x!tpu.dma_semaphore, #tpu.memory_space<semaphore_mem>> -> memref<1x!tpu.dma_semaphore, #tpu.memory_space<semaphore_mem>>
    %99 = tpu.memref_squeeze %98 : memref<1x!tpu.dma_semaphore, #tpu.memory_space<semaphore_mem>> -> memref<!tpu.dma_semaphore, #tpu.memory_space<semaphore_mem>>
    tpu.wait_dma2 semaphore(%99 : memref<!tpu.dma_semaphore, #tpu.memory_space<semaphore_mem>>) src(%arg15 : memref<3x256x512xbf16, #tpu.memory_space<any>>) dst(%arg22 : memref<3x256x512xbf16, #tpu.memory_space<vmem>>)
    %100 = arith.truncf %97 : vector<4x256xf32> to vector<4x256xbf16>
    %c0_92 = arith.constant 0 : index
    %c0_93 = arith.constant 0 : index
    %101 = vector.load %arg16[%c0_92, %c0_93] : memref<2x512xf32, #tpu.memory_space<vmem>>, vector<2x512xf32>
    %c0_94 = arith.constant 0 : index
    %c0_95 = arith.constant 0 : index
    %c0_96 = arith.constant 0 : index
    %102 = vector.load %arg22[%c0_94, %c0_95, %c0_96] : memref<3x256x512xbf16, #tpu.memory_space<vmem>>, vector<1x256x512xbf16>
    %103 = vector.shape_cast %102 : vector<1x256x512xbf16> to vector<256x512xbf16>
    %cst_97 = arith.constant dense<0.000000e+00> : vector<4x512xf32>
    %104 = tpu.matmul %100, %103, %cst_97 {dimension_numbers = #tpu.dot_dimension_numbers<[1], [0], [0], [1], [0, 0, 1, 1], [], []>} : vector<4x256xbf16>, vector<256x512xbf16>, vector<4x512xf32> -> vector<4x512xf32>
    %c0_98 = arith.constant 0 : index
    %c0_99 = arith.constant 0 : index
    %c0_100 = arith.constant 0 : index
    %105 = vector.load %arg14[%c0_98, %c0_99, %c0_100] : memref<3x2x4xf32, #tpu.memory_space<vmem>>, vector<1x2x4xf32>
    %106 = vector.shape_cast %105 : vector<1x2x4xf32> to vector<2x4xf32>
    %cst_101 = arith.constant dense<0.000000e+00> : vector<2x512xf32>
    %107 = tpu.matmul %106, %104, %cst_101 {dimension_numbers = #tpu.dot_dimension_numbers<[1], [0], [0], [1], [0, 0, 1, 1], [], []>, precision = #tpu.contract_precision<fp32>} : vector<2x4xf32>, vector<4x512xf32>, vector<2x512xf32> -> vector<2x512xf32>
    %108 = arith.addf %101, %107 : vector<2x512xf32>
    %c1_102 = arith.constant 1 : index
    %c0_103 = arith.constant 0 : index
    %c0_104 = arith.constant 0 : index
    %109 = vector.load %arg22[%c1_102, %c0_103, %c0_104] : memref<3x256x512xbf16, #tpu.memory_space<vmem>>, vector<1x256x512xbf16>
    %110 = vector.shape_cast %109 : vector<1x256x512xbf16> to vector<256x512xbf16>
    %cst_105 = arith.constant dense<0.000000e+00> : vector<4x512xf32>
    %111 = tpu.matmul %100, %110, %cst_105 {dimension_numbers = #tpu.dot_dimension_numbers<[1], [0], [0], [1], [0, 0, 1, 1], [], []>} : vector<4x256xbf16>, vector<256x512xbf16>, vector<4x512xf32> -> vector<4x512xf32>
    %c1_106 = arith.constant 1 : index
    %c0_107 = arith.constant 0 : index
    %c0_108 = arith.constant 0 : index
    %112 = vector.load %arg14[%c1_106, %c0_107, %c0_108] : memref<3x2x4xf32, #tpu.memory_space<vmem>>, vector<1x2x4xf32>
    %113 = vector.shape_cast %112 : vector<1x2x4xf32> to vector<2x4xf32>
    %cst_109 = arith.constant dense<0.000000e+00> : vector<2x512xf32>
    %114 = tpu.matmul %113, %111, %cst_109 {dimension_numbers = #tpu.dot_dimension_numbers<[1], [0], [0], [1], [0, 0, 1, 1], [], []>, precision = #tpu.contract_precision<fp32>} : vector<2x4xf32>, vector<4x512xf32>, vector<2x512xf32> -> vector<2x512xf32>
    %115 = arith.addf %108, %114 : vector<2x512xf32>
    %c2_110 = arith.constant 2 : index
    %c0_111 = arith.constant 0 : index
    %c0_112 = arith.constant 0 : index
    %116 = vector.load %arg22[%c2_110, %c0_111, %c0_112] : memref<3x256x512xbf16, #tpu.memory_space<vmem>>, vector<1x256x512xbf16>
    %117 = vector.shape_cast %116 : vector<1x256x512xbf16> to vector<256x512xbf16>
    %cst_113 = arith.constant dense<0.000000e+00> : vector<4x512xf32>
    %118 = tpu.matmul %100, %117, %cst_113 {dimension_numbers = #tpu.dot_dimension_numbers<[1], [0], [0], [1], [0, 0, 1, 1], [], []>} : vector<4x256xbf16>, vector<256x512xbf16>, vector<4x512xf32> -> vector<4x512xf32>
    %c2_114 = arith.constant 2 : index
    %c0_115 = arith.constant 0 : index
    %c0_116 = arith.constant 0 : index
    %119 = vector.load %arg14[%c2_114, %c0_115, %c0_116] : memref<3x2x4xf32, #tpu.memory_space<vmem>>, vector<1x2x4xf32>
    %120 = vector.shape_cast %119 : vector<1x2x4xf32> to vector<2x4xf32>
    %cst_117 = arith.constant dense<0.000000e+00> : vector<2x512xf32>
    %121 = tpu.matmul %120, %118, %cst_117 {dimension_numbers = #tpu.dot_dimension_numbers<[1], [0], [0], [1], [0, 0, 1, 1], [], []>, precision = #tpu.contract_precision<fp32>} : vector<2x4xf32>, vector<4x512xf32>, vector<2x512xf32> -> vector<2x512xf32>
    %122 = arith.addf %115, %121 : vector<2x512xf32>
    %cst_118 = arith.constant 2.000000e-01 : f32
    %123 = vector.broadcast %cst_118 : f32 to vector<2x512xf32>
    %124 = arith.mulf %123, %122 : vector<2x512xf32>
    %125 = arith.maximumf %122, %124 : vector<2x512xf32>
    %126 = arith.truncf %125 : vector<2x512xf32> to vector<2x512xbf16>
    %c0_119 = arith.constant 0 : index
    %c0_120 = arith.constant 0 : index
    %127 = vector.load %arg19[%c0_119, %c0_120] : memref<2x16xf32, #tpu.memory_space<vmem>>, vector<2x16xf32>
    %c0_121 = arith.constant 0 : index
    %c0_122 = arith.constant 0 : index
    %c0_123 = arith.constant 0 : index
    %128 = vector.load %arg18[%c0_121, %c0_122, %c0_123] : memref<3x512x16xbf16, #tpu.memory_space<vmem>>, vector<1x512x16xbf16>
    %129 = vector.shape_cast %128 : vector<1x512x16xbf16> to vector<512x16xbf16>
    %cst_124 = arith.constant dense<0.000000e+00> : vector<2x16xf32>
    %130 = tpu.matmul %126, %129, %cst_124 {dimension_numbers = #tpu.dot_dimension_numbers<[1], [0], [0], [1], [0, 0, 1, 1], [], []>} : vector<2x512xbf16>, vector<512x16xbf16>, vector<2x16xf32> -> vector<2x16xf32>
    %c0_125 = arith.constant 0 : index
    %c0_126 = arith.constant 0 : index
    %c0_127 = arith.constant 0 : index
    %131 = vector.load %arg17[%c0_125, %c0_126, %c0_127] : memref<3x2x2xf32, #tpu.memory_space<vmem>>, vector<1x2x2xf32>
    %132 = vector.shape_cast %131 : vector<1x2x2xf32> to vector<2x2xf32>
    %cst_128 = arith.constant dense<0.000000e+00> : vector<2x16xf32>
    %133 = tpu.matmul %132, %130, %cst_128 {dimension_numbers = #tpu.dot_dimension_numbers<[1], [0], [0], [1], [0, 0, 1, 1], [], []>, precision = #tpu.contract_precision<fp32>} : vector<2x2xf32>, vector<2x16xf32>, vector<2x16xf32> -> vector<2x16xf32>
    %134 = arith.addf %127, %133 : vector<2x16xf32>
    %c1_129 = arith.constant 1 : index
    %c0_130 = arith.constant 0 : index
    %c0_131 = arith.constant 0 : index
    %135 = vector.load %arg18[%c1_129, %c0_130, %c0_131] : memref<3x512x16xbf16, #tpu.memory_space<vmem>>, vector<1x512x16xbf16>
    %136 = vector.shape_cast %135 : vector<1x512x16xbf16> to vector<512x16xbf16>
    %cst_132 = arith.constant dense<0.000000e+00> : vector<2x16xf32>
    %137 = tpu.matmul %126, %136, %cst_132 {dimension_numbers = #tpu.dot_dimension_numbers<[1], [0], [0], [1], [0, 0, 1, 1], [], []>} : vector<2x512xbf16>, vector<512x16xbf16>, vector<2x16xf32> -> vector<2x16xf32>
    %c1_133 = arith.constant 1 : index
    %c0_134 = arith.constant 0 : index
    %c0_135 = arith.constant 0 : index
    %138 = vector.load %arg17[%c1_133, %c0_134, %c0_135] : memref<3x2x2xf32, #tpu.memory_space<vmem>>, vector<1x2x2xf32>
    %139 = vector.shape_cast %138 : vector<1x2x2xf32> to vector<2x2xf32>
    %cst_136 = arith.constant dense<0.000000e+00> : vector<2x16xf32>
    %140 = tpu.matmul %139, %137, %cst_136 {dimension_numbers = #tpu.dot_dimension_numbers<[1], [0], [0], [1], [0, 0, 1, 1], [], []>, precision = #tpu.contract_precision<fp32>} : vector<2x2xf32>, vector<2x16xf32>, vector<2x16xf32> -> vector<2x16xf32>
    %141 = arith.addf %134, %140 : vector<2x16xf32>
    %c2_137 = arith.constant 2 : index
    %c0_138 = arith.constant 0 : index
    %c0_139 = arith.constant 0 : index
    %142 = vector.load %arg18[%c2_137, %c0_138, %c0_139] : memref<3x512x16xbf16, #tpu.memory_space<vmem>>, vector<1x512x16xbf16>
    %143 = vector.shape_cast %142 : vector<1x512x16xbf16> to vector<512x16xbf16>
    %cst_140 = arith.constant dense<0.000000e+00> : vector<2x16xf32>
    %144 = tpu.matmul %126, %143, %cst_140 {dimension_numbers = #tpu.dot_dimension_numbers<[1], [0], [0], [1], [0, 0, 1, 1], [], []>} : vector<2x512xbf16>, vector<512x16xbf16>, vector<2x16xf32> -> vector<2x16xf32>
    %145 = arith.addf %141, %144 : vector<2x16xf32>
    %cst_141 = arith.constant 2.000000e-01 : f32
    %146 = vector.broadcast %cst_141 : f32 to vector<2x16xf32>
    %147 = arith.mulf %146, %145 : vector<2x16xf32>
    %148 = arith.maximumf %145, %147 : vector<2x16xf32>
    %c0_142 = arith.constant 0 : index
    %c0_143 = arith.constant 0 : index
    %149 = vector.load %arg1[%c0_142, %c0_143] : memref<1x16xf32, #tpu.memory_space<vmem>>, vector<1x16xf32>
    %cst_144 = arith.constant dense<0.000000e+00> : vector<1x2xf32>
    %150 = tpu.matmul %149, %148, %cst_144 {dimension_numbers = #tpu.dot_dimension_numbers<[1], [1], [0], [0], [0, 0, 1, 0], [], []>, precision = #tpu.contract_precision<fp32>} : vector<1x16xf32>, vector<2x16xf32>, vector<1x2xf32> -> vector<1x2xf32>
    %c0_145 = arith.constant 0 : index
    %c0_146 = arith.constant 0 : index
    %151 = vector.load %arg20[%c0_145, %c0_146] : memref<1x2xf32, #tpu.memory_space<vmem>>, vector<1x2xf32>
    tpu.vector_store %arg20[%c0_145, %c0_146], %150 {strides = array<i32>} : memref<1x2xf32, #tpu.memory_space<vmem>>, vector<1x2xf32>,
    return
  }
}

</mosaic_0001>

<llo_original>
// kernel: forward.1
$region0: #{forward.1}
  #allocation0 [shape = 'u32[]', space=smem, size = 0x4, offset = 0x4, fixed_abs, tag = 'smem constant byte address 0x4 - core index']
  #allocation1 [shape = 'u32[144,128]{1,0:T(1,128)}', space=vmem, size = 0x12000, scoped, tag = 'internal scratch']
  #allocation2 [shape = 'bf16[3,128,256]{2,1,0:T(8,128)(2,1)}', space=vmem, size = 0x30000, scoped, tag = 'scratch operand']
  #allocation3 [shape = 'bf16[3,256,512]{2,1,0:T(8,128)(2,1)}', space=vmem, size = 0xc0000, scoped, tag = 'scratch operand']
  #allocation4 [shape = 's32[2]{0}', space=sflag, size = 0x8, scoped, tag = 'scratch operand']
  #allocation24 [shape = 's32[]', space=sflag, size = 0x4, offset = 0, fixed_abs, tag = 'sflag constant byte address 0x0 - dummy sync flag']
  #allocation25 [shape = 's32[]', space=sflag, size = 0x4, offset = 0, fixed_abs, tag = 'sflag constant byte address 0x0 - dummy sync flag']
  #allocation26 [shape = 'u32[]', space=smem, size = 0x4, offset = 0x44, fixed_abs, tag = 'smem constant byte address 0x44 - assertion arg 0']
  #allocation27 [shape = 'u32[]', space=smem, size = 0x4, offset = 0x48, fixed_abs, tag = 'smem constant byte address 0x48 - assertion arg 1']
  #allocation28 [shape = 's32[]', space=sflag, size = 0x4, offset = 0, fixed_abs, tag = 'sflag constant byte address 0x0 - dummy sync flag']
  #allocation29 [shape = 's32[]', space=sflag, size = 0x4, offset = 0, fixed_abs, tag = 'sflag constant byte address 0x0 - dummy sync flag']
  %s0 = inlined_call_operand.vmem [shape: f32[16,7], index: 0, kind: input, shape index: {}]
  %s1 = inlined_call_operand.hbm [shape: f32[1,16], index: 1, kind: input, shape index: {}]
  %s2 = inlined_call_operand.vmem [shape: f32[2,8,16], index: 2, kind: input, shape index: {}]
  %s3 = inlined_call_operand.hbm [shape: bf16[2,7,32], index: 3, kind: input, shape index: {}]
  %s4 = inlined_call_operand.hbm [shape: f32[8,32], index: 4, kind: input, shape index: {}]
  %s5 = inlined_call_operand.vmem [shape: f32[3,8,8], index: 5, kind: input, shape index: {}]
  %s6 = inlined_call_operand.hbm [shape: bf16[3,32,64], index: 6, kind: input, shape index: {}]
  %s7 = inlined_call_operand.hbm [shape: f32[8,64], index: 7, kind: input, shape index: {}]
  %s8 = inlined_call_operand.hbm [shape: f32[3,4,8], index: 8, kind: input, shape index: {}]
  %s9 = inlined_call_operand.vmem [shape: bf16[3,64,128], index: 9, kind: input, shape index: {}]
  %s10 = inlined_call_operand.hbm [shape: f32[4,128], index: 10, kind: input, shape index: {}]
  %s11 = inlined_call_operand.hbm [shape: f32[3,4,4], index: 11, kind: input, shape index: {}]
  %s12 = inlined_call_operand.hbm [shape: bf16[3,128,256], index: 12, kind: input, shape index: {}]
  %s13 = inlined_call_operand.hbm [shape: f32[4,256], index: 13, kind: input, shape index: {}]
  %s14 = inlined_call_operand.hbm [shape: f32[3,2,4], index: 14, kind: input, shape index: {}]
  %s15 = inlined_call_operand.hbm [shape: bf16[3,256,512], index: 15, kind: input, shape index: {}]
  %s16 = inlined_call_operand.vmem [shape: f32[2,512], index: 16, kind: input, shape index: {}]
  %s17 = inlined_call_operand.vmem [shape: f32[3,2,2], index: 17, kind: input, shape index: {}]
  %s18 = inlined_call_operand.hbm [shape: bf16[3,512,16], index: 18, kind: input, shape index: {}]
  %s19 = inlined_call_operand.vmem [shape: f32[2,16], index: 19, kind: input, shape index: {}]
  %s20 = inlined_call_operand.hbm [shape: f32[1,2], index: 20, kind: output, shape index: {}]
  %s21 = sld [smem:[#allocation0]]
  $region134: #{forward.1} parent=0
    _
  %s23 = ssub.s32 1, %s21
  %s24 = scalar_select 0, %s23, %s21
  $region1: #{forward.1} parent=0
    #allocation5 [shape = 'u8[512]{0}', space=vmem, size = 0x400, scoped, tag = 'input window, operand 1, single buffered']
    #allocation6 [shape = 's32[1]{0}', space=sflag, size = 0x4, scoped, tag = 'scoped memory for forward.1']
    #allocation7 [shape = 's32[1]{0}', space=sflag, size = 0x4, scoped, tag = 'scoped memory for forward.1']
    #allocation8 [shape = 'u8[4096]{0}', space=vmem, size = 0x1000, scoped, tag = 'input window, operand 3, single buffered']
    #allocation9 [shape = 's32[1]{0}', space=sflag, size = 0x4, scoped, tag = 'scoped memory for forward.1']
    #allocation10 [shape = 'u8[4096]{0}', space=vmem, size = 0x1000, scoped, tag = 'input window, operand 4, single buffered']
    #allocation11 [shape = 'u8[24576]{0}', space=vmem, size = 0x6000, scoped, tag = 'input window, operand 6, single buffered']
    #allocation12 [shape = 's32[1]{0}', space=sflag, size = 0x4, scoped, tag = 'scoped memory for forward.1']
    #allocation13 [shape = 'u8[4096]{0}', space=vmem, size = 0x1000, scoped, tag = 'input window, operand 7, single buffered']
    #allocation14 [shape = 'u8[6144]{0}', space=vmem, size = 0x1800, scoped, tag = 'input window, operand 8, single buffered']
    #allocation15 [shape = 's32[1]{0}', space=sflag, size = 0x4, scoped, tag = 'scoped memory for forward.1']
    #allocation16 [shape = 'u8[2048]{0}', space=vmem, size = 0x800, scoped, tag = 'input window, operand 10, single buffered']
    #allocation17 [shape = 'u8[6144]{0}', space=vmem, size = 0x1800, scoped, tag = 'input window, operand 11, single buffered']
    #allocation18 [shape = 's32[1]{0}', space=sflag, size = 0x4, scoped, tag = 'scoped memory for forward.1']
    #allocation19 [shape = 'u8[4096]{0}', space=vmem, size = 0x1000, scoped, tag = 'input window, operand 13, single buffered']
    #allocation20 [shape = 'u8[3072]{0}', space=vmem, size = 0xc00, scoped, tag = 'input window, operand 14, single buffered']
    #allocation21 [shape = 's32[1]{0}', space=sflag, size = 0x4, scoped, tag = 'scoped memory for forward.1']
    #allocation22 [shape = 'u8[393216]{0}', space=vmem, size = 0x60000, scoped, tag = 'input window, operand 18, single buffered']
    #allocation23 [shape = 'u8[512]{0}', space=vmem, size = 0x400, scoped, tag = 'output window, operand 0, single buffered']
    %25 = vsyncpa [#allocation6], 0
    %26 = vsyncpa [#allocation9], 0
    %27 = vsyncpa [#allocation12], 0
    %28 = vsyncpa [#allocation15], 0
    %29 = vsyncpa [#allocation18], 0
    %30 = vsyncpa [#allocation21], 0
    %31 = vsyncpa [#allocation7], 0
    // Predicated region
    $region2: #{forward.1} parent=1 // pred_check
      _
    $region3: #{forward.1} parent=1 // pred_check_branch
      %33 = sbr.rel (0) target = $region5
    $region4: #{forward.1} parent=1 // pred_region
      _
    $region5: #{forward.1} parent=1 // pred_fallthru
      _
    // Predicated region
    $region6: #{forward.1} parent=1 // pred_check
      _
    $region7: #{forward.1} parent=1 // pred_check_branch
      %35 = sbr.rel (0) target = $region9
    $region8: #{forward.1} parent=1 // pred_region
      %s37 = ssub.s32 16, 16
      %38 = vsyncadd [#allocation6], %s37
      %s40 = sshll.u32 [#allocation5], 4
      %s41 = int_to_ptr.vmem [resolvable:$true] %s40
      %43 = dma.hbm_to_vmem [thread:$0]  %s1, 16, %s41, [#allocation6]
    $region9: #{forward.1} parent=1 // pred_fallthru
      _
    // Predicated region
    $region10: #{forward.1} parent=1 // pred_check
      _
    $region11: #{forward.1} parent=1 // pred_check_branch
      %45 = sbr.rel (0) target = $region13
    $region12: #{forward.1} parent=1 // pred_region
      _
    $region13: #{forward.1} parent=1 // pred_fallthru
      _
    // Predicated region
    $region14: #{forward.1} parent=1 // pred_check
      _
    $region15: #{forward.1} parent=1 // pred_check_branch
      %47 = sbr.rel (0) target = $region17
    $region16: #{forward.1} parent=1 // pred_region
      %s49 = ssub.s32 128, 128
      %50 = vsyncadd [#allocation9], %s49
      %s51 = sshll.u32 [#allocation8], 4
      %s52 = int_to_ptr.vmem [resolvable:$true] %s51
      %57 = dma.hbm_to_vmem [thread:$0]  %s3, 128, %s52, [#allocation9], 64, 64, 4
    $region17: #{forward.1} parent=1 // pred_fallthru
      _
    // Predicated region
    $region18: #{forward.1} parent=1 // pred_check
      _
    $region19: #{forward.1} parent=1 // pred_check_branch
      %59 = sbr.rel (0) target = $region21
    $region20: #{forward.1} parent=1 // pred_region
      %s61 = ssub.s32 128, 128
      %62 = vsyncadd [#allocation9], %s61
      %s64 = sshll.u32 [#allocation10], 4
      %s65 = int_to_ptr.vmem [resolvable:$true] %s64
      %67 = dma.hbm_to_vmem [thread:$0]  %s4, 128, %s65, [#allocation9]
    $region21: #{forward.1} parent=1 // pred_fallthru
      _
    // Predicated region
    $region22: #{forward.1} parent=1 // pred_check
      _
    $region23: #{forward.1} parent=1 // pred_check_branch
      %69 = sbr.rel (0) target = $region25
    $region24: #{forward.1} parent=1 // pred_region
      _
    $region25: #{forward.1} parent=1 // pred_fallthru
      _
    // Predicated region
    $region26: #{forward.1} parent=1 // pred_check
      _
    $region27: #{forward.1} parent=1 // pred_check_branch
      %71 = sbr.rel (0) target = $region29
    $region28: #{forward.1} parent=1 // pred_region
      %s73 = ssub.s32 768, 768
      %74 = vsyncadd [#allocation12], %s73
      %s75 = sshll.u32 [#allocation11], 4
      %s76 = int_to_ptr.vmem [resolvable:$true] %s75
      %81 = dma.hbm_to_vmem [thread:$0]  %s6, 768, %s76, [#allocation12], 64, 64, 4
    $region29: #{forward.1} parent=1 // pred_fallthru
      _
    // Predicated region
    $region30: #{forward.1} parent=1 // pred_check
      _
    $region31: #{forward.1} parent=1 // pred_check_branch
      %83 = sbr.rel (0) target = $region33
    $region32: #{forward.1} parent=1 // pred_region
      %s85 = ssub.s32 128, 128
      %86 = vsyncadd [#allocation12], %s85
      %s88 = sshll.u32 [#allocation13], 4
      %s89 = int_to_ptr.vmem [resolvable:$true] %s88
      %91 = dma.hbm_to_vmem [thread:$0]  %s7, 128, %s89, [#allocation12]
    $region33: #{forward.1} parent=1 // pred_fallthru
      _
    // Predicated region
    $region34: #{forward.1} parent=1 // pred_check
      _
    $region35: #{forward.1} parent=1 // pred_check_branch
      %93 = sbr.rel (0) target = $region37
    $region36: #{forward.1} parent=1 // pred_region
      %s95 = ssub.s32 192, 192
      %96 = vsyncadd [#allocation15], %s95
      %s97 = sshll.u32 [#allocation14], 4
      %s98 = int_to_ptr.vmem [resolvable:$true] %s97
      %103 = dma.hbm_to_vmem [thread:$0]  %s8, 192, %s98, [#allocation15], 64, 64, 4
    $region37: #{forward.1} parent=1 // pred_fallthru
      _
    // Predicated region
    $region38: #{forward.1} parent=1 // pred_check
      _
    $region39: #{forward.1} parent=1 // pred_check_branch
      %105 = sbr.rel (0) target = $region41
    $region40: #{forward.1} parent=1 // pred_region
      _
    $region41: #{forward.1} parent=1 // pred_fallthru
      _
    // Predicated region
    $region42: #{forward.1} parent=1 // pred_check
      _
    $region43: #{forward.1} parent=1 // pred_check_branch
      %107 = sbr.rel (0) target = $region45
    $region44: #{forward.1} parent=1 // pred_region
      %s109 = ssub.s32 64, 64
      %110 = vsyncadd [#allocation15], %s109
      %s112 = sshll.u32 [#allocation16], 4
      %s113 = int_to_ptr.vmem [resolvable:$true] %s112
      %115 = dma.hbm_to_vmem [thread:$0]  %s10, 64, %s113, [#allocation15]
    $region45: #{forward.1} parent=1 // pred_fallthru
      _
    // Predicated region
    $region46: #{forward.1} parent=1 // pred_check
      _
    $region47: #{forward.1} parent=1 // pred_check_branch
      %117 = sbr.rel (0) target = $region49
    $region48: #{forward.1} parent=1 // pred_region
      %s119 = ssub.s32 192, 192
      %120 = vsyncadd [#allocation18], %s119
      %s121 = sshll.u32 [#allocation17], 4
      %s122 = int_to_ptr.vmem [resolvable:$true] %s121
      %127 = dma.hbm_to_vmem [thread:$0]  %s11, 192, %s122, [#allocation18], 64, 64, 4
    $region49: #{forward.1} parent=1 // pred_fallthru
      _
    // Predicated region
    $region50: #{forward.1} parent=1 // pred_check
      _
    $region51: #{forward.1} parent=1 // pred_check_branch
      %129 = sbr.rel (0) target = $region53
    $region52: #{forward.1} parent=1 // pred_region
      %s131 = ssub.s32 128, 128
      %132 = vsyncadd [#allocation18], %s131
      %s134 = sshll.u32 [#allocation19], 4
      %s135 = int_to_ptr.vmem [resolvable:$true] %s134
      %137 = dma.hbm_to_vmem [thread:$0]  %s13, 128, %s135, [#allocation18]
    $region53: #{forward.1} parent=1 // pred_fallthru
      _
    // Predicated region
    $region54: #{forward.1} parent=1 // pred_check
      _
    $region55: #{forward.1} parent=1 // pred_check_branch
      %139 = sbr.rel (0) target = $region57
    $region56: #{forward.1} parent=1 // pred_region
      %s141 = ssub.s32 96, 96
      %142 = vsyncadd [#allocation21], %s141
      %s143 = sshll.u32 [#allocation20], 4
      %s144 = int_to_ptr.vmem [resolvable:$true] %s143
      %149 = dma.hbm_to_vmem [thread:$0]  %s14, 96, %s144, [#allocation21], 32, 32, 2
    $region57: #{forward.1} parent=1 // pred_fallthru
      _
    // Predicated region
    $region58: #{forward.1} parent=1 // pred_check
      _
    $region59: #{forward.1} parent=1 // pred_check_branch
      %151 = sbr.rel (0) target = $region61
    $region60: #{forward.1} parent=1 // pred_region
      _
    $region61: #{forward.1} parent=1 // pred_fallthru
      _
    // Predicated region
    $region62: #{forward.1} parent=1 // pred_check
      _
    $region63: #{forward.1} parent=1 // pred_check_branch
      %153 = sbr.rel (0) target = $region65
    $region64: #{forward.1} parent=1 // pred_region
      _
    $region65: #{forward.1} parent=1 // pred_fallthru
      _
    // Predicated region
    $region66: #{forward.1} parent=1 // pred_check
      _
    $region67: #{forward.1} parent=1 // pred_check_branch
      %155 = sbr.rel (0) target = $region69
    $region68: #{forward.1} parent=1 // pred_region
      %s157 = ssub.s32 12288, 12288
      %158 = vsyncadd [#allocation21], %s157
      %s159 = sshll.u32 [#allocation22], 4
      %s160 = int_to_ptr.vmem [resolvable:$true] %s159
      %165 = dma.hbm_to_vmem [thread:$0]  %s18, 12288, %s160, [#allocation21], 64, 64, 4
    $region69: #{forward.1} parent=1 // pred_fallthru
      _
    // Predicated region
    $region70: #{forward.1} parent=1 // pred_check
      _
    $region71: #{forward.1} parent=1 // pred_check_branch
      %167 = sbr.rel (0) target = $region73
    $region72: #{forward.1} parent=1 // pred_region
      _
    $region73: #{forward.1} parent=1 // pred_fallthru
      _
    // Predicated region
    $region74: #{forward.1} parent=1 // pred_check
      _
    $region75: #{forward.1} parent=1 // pred_check_branch
      %169 = sbr.rel (0) target = $region77
    $region76: #{forward.1} parent=1 // pred_region
      %170 = dma.done [#allocation6], 16
    $region77: #{forward.1} parent=1 // pred_fallthru
      _
    // Predicated region
    $region78: #{forward.1} parent=1 // pred_check
      _
    $region79: #{forward.1} parent=1 // pred_check_branch
      %172 = sbr.rel (0) target = $region81
    $region80: #{forward.1} parent=1 // pred_region
      %173 = dma.done [#allocation9], 128
    $region81: #{forward.1} parent=1 // pred_fallthru
      _
    // Predicated region
    $region82: #{forward.1} parent=1 // pred_check
      _
    $region83: #{forward.1} parent=1 // pred_check_branch
      %175 = sbr.rel (0) target = $region85
    $region84: #{forward.1} parent=1 // pred_region
      %176 = dma.done [#allocation9], 128
    $region85: #{forward.1} parent=1 // pred_fallthru
      _
    // Predicated region
    $region86: #{forward.1} parent=1 // pred_check
      _
    $region87: #{forward.1} parent=1 // pred_check_branch
      %178 = sbr.rel (0) target = $region89
    $region88: #{forward.1} parent=1 // pred_region
      %179 = dma.done [#allocation12], 768
    $region89: #{forward.1} parent=1 // pred_fallthru
      _
    // Predicated region
    $region90: #{forward.1} parent=1 // pred_check
      _
    $region91: #{forward.1} parent=1 // pred_check_branch
      %181 = sbr.rel (0) target = $region93
    $region92: #{forward.1} parent=1 // pred_region
      %182 = dma.done [#allocation12], 128
    $region93: #{forward.1} parent=1 // pred_fallthru
      _
    // Predicated region
    $region94: #{forward.1} parent=1 // pred_check
      _
    $region95: #{forward.1} parent=1 // pred_check_branch
      %184 = sbr.rel (0) target = $region97
    $region96: #{forward.1} parent=1 // pred_region
      %185 = dma.done [#allocation15], 192
    $region97: #{forward.1} parent=1 // pred_fallthru
      _
    // Predicated region
    $region98: #{forward.1} parent=1 // pred_check
      _
    $region99: #{forward.1} parent=1 // pred_check_branch
      %187 = sbr.rel (0) target = $region101
    $region100: #{forward.1} parent=1 // pred_region
      %188 = dma.done [#allocation15], 64
    $region101: #{forward.1} parent=1 // pred_fallthru
      _
    // Predicated region
    $region102: #{forward.1} parent=1 // pred_check
      _
    $region103: #{forward.1} parent=1 // pred_check_branch
      %190 = sbr.rel (0) target = $region105
    $region104: #{forward.1} parent=1 // pred_region
      %191 = dma.done [#allocation18], 192
    $region105: #{forward.1} parent=1 // pred_fallthru
      _
    // Predicated region
    $region106: #{forward.1} parent=1 // pred_check
      _
    $region107: #{forward.1} parent=1 // pred_check_branch
      %193 = sbr.rel (0) target = $region109
    $region108: #{forward.1} parent=1 // pred_region
      %194 = dma.done [#allocation18], 128
    $region109: #{forward.1} parent=1 // pred_fallthru
      _
    // Predicated region
    $region110: #{forward.1} parent=1 // pred_check
      _
    $region111: #{forward.1} parent=1 // pred_check_branch
      %196 = sbr.rel (0) target = $region113
    $region112: #{forward.1} parent=1 // pred_region
      %197 = dma.done [#allocation21], 96
    $region113: #{forward.1} parent=1 // pred_fallthru
      _
    // Predicated region
    $region114: #{forward.1} parent=1 // pred_check
      _
    $region115: #{forward.1} parent=1 // pred_check_branch
      %199 = sbr.rel (0) target = $region117
    $region116: #{forward.1} parent=1 // pred_region
      %200 = dma.done [#allocation21], 12288
    $region117: #{forward.1} parent=1 // pred_fallthru
      _
    // Predicated region
    $region118: #{forward.1} parent=1 // pred_check
      _
    $region119: #{forward.1} parent=1 // pred_check_branch
      %203 = sbr.rel target = $region121
    $region120: #{forward.1} parent=1 // pred_region
      %204 = sst [smem:[#allocation26]] [#allocation25]
      %205 = sst [smem:[#allocation27]] [#allocation24]
    $region121: #{forward.1} parent=1 // pred_fallthru
      _
    %207 = shalt.err (0)
    %s209 = sshll.u32 [#allocation2], 4
    %s210 = int_to_ptr.vmem [resolvable:$true] %s209
    %212 = dma.hbm_to_vmem [thread:$0]  %s12, 6144, %s210, [#allocation4]
    %s213 = scalar_lea.sflag [#allocation4], 1
    // Predicated region
    $region122: #{forward.1} parent=1 // pred_check
      _
    $region123: #{forward.1} parent=1 // pred_check_branch
      %215 = sbr.rel target = $region125
    $region124: #{forward.1} parent=1 // pred_region
      %216 = sst [smem:[#allocation26]] [#allocation29]
      %217 = sst [smem:[#allocation27]] [#allocation28]
    $region125: #{forward.1} parent=1 // pred_fallthru
      _
    %219 = shalt.err (0)
    %s221 = sshll.u32 [#allocation3], 4
    %s222 = int_to_ptr.vmem [resolvable:$true] %s221
    %224 = dma.hbm_to_vmem [thread:$0]  %s15, 24576, %s222, %s213
    %v225 = vld [vmem:[%s0] sm:$0xff]
    %v226 = vld [vmem:[%s0 + $0x8] sm:$0xff]
    %v227 = vpack.c.bf16 %v226, %v225
    %v228 = vld [vmem:[#allocation10] sm:$0xff]
    %v229 = vld [vmem:[#allocation8] sm:$0xf]
    %vm230 = vcmask 56320
    %v232 = vsel %vm230, %v227, 0
    %vm234 = vcmask 1042432
    %vm235 = vcmask 1043456
    %v236 = vsel %vm234, 4294967295, 65535
    %v237 = vsel %vm235, %v236, 0
    %v239 = vand.u32 %v229, %v237
    %241 = vmatprep.subr.bf16.mxu0 0
    %242 = vmatpush1.bf16.msra.mxu0 0
    %243 = vmatprep.subr.bf16.mxu0 0
    %244 = vmatpush1.bf16.msra.mxu0 0
    %245 = vmatprep.subr.bf16.mxu0 0
    %246 = vmatpush1.bf16.msra.mxu0 0
    %247 = vmatprep.subr.bf16.mxu0 0
    %248 = vmatpush1.bf16.msra.mxu0 0
    %249 = vmatprep.subr.bf16.mxu0 0
    %250 = vmatpush1.bf16.msra.mxu0 0
    %251 = vmatprep.subr.bf16.mxu0 0
    %252 = vmatpush1.bf16.msra.mxu0 0
    %253 = vmatprep.subr.bf16.mxu0 0
    %254 = vmatpush1.bf16.msra.mxu0 0
    %255 = vmatprep.subr.bf16.mxu0 0
    %256 = vmatpush1.bf16.msra.mxu0 %v239
    %257 = vmatprep.subr.bf16.mxu0 0
    %258 = vmatpush2.bf16.msra.mxu0 0
    %259 = vmatprep.subr.bf16.mxu0 0
    %260 = vmatpush2.bf16.msra.mxu0 0
    %261 = vmatprep.subr.bf16.mxu0 0
    %262 = vmatpush2.bf16.msra.mxu0 0
    %263 = vmatprep.subr.bf16.mxu0 0
    %264 = vmatpush2.bf16.msra.mxu0 0
    %265 = vmatprep.subr.bf16.mxu0 0
    %266 = vmatpush2.bf16.msra.mxu0 0
    %267 = vmatprep.subr.bf16.mxu0 0
    %268 = vmatpush2.bf16.msra.mxu0 0
    %269 = vmatprep.subr.bf16.mxu0 0
    %270 = vmatpush2.bf16.msra.mxu0 0
    %271 = vmatprep.subr.bf16.mxu0 0
    %272 = vmatpush2.bf16.msra.mxu0 0
    %273 = vmatprep.mubr.bf16.mxu0 0
    %274 = vmatmul.mubr.bf16.gmra.mxu0 %v232
    %v275 = vpop.f32.mrf.mxu0
    %v276 = vadd.f32 0.0, %v275
    %v277 = vpop.f32.mrf.mxu0
    %v278 = vpop.f32.mrf.mxu0
    %v279 = vadd.f32 0.0, %v278
    %v280 = vpop.f32.mrf.mxu0
    %281 = vdwg.mxu0
    %v282 = vld [vmem:[%s2] sm:$0xff]
    %vm283 = vcmask 130048
    %v285 = vsel %vm283, %v282, 0
    %287 = vmatprep.subr.mxu0 0.0
    %288 = vmatpush1.msra.mxu0 0.0
    %289 = vmatprep.subr.mxu0 0.0
    %290 = vmatpush1.msra.mxu0 0.0
    %291 = vmatprep.subr.mxu0 0.0
    %292 = vmatpush1.msra.mxu0 0.0
    %293 = vmatprep.subr.mxu0 0.0
    %294 = vmatpush1.msra.mxu0 0.0
    %295 = vmatprep.subr.mxu0 0.0
    %296 = vmatpush1.msra.mxu0 0.0
    %297 = vmatprep.subr.mxu0 0.0
    %298 = vmatpush1.msra.mxu0 0.0
    %299 = vmatprep.subr.mxu0 0.0
    %300 = vmatpush1.msra.mxu0 0.0
    %301 = vmatprep.subr.mxu0 0.0
    %302 = vmatpush1.msra.mxu0 0.0
    %303 = vmatprep.subr.mxu0 0.0
    %304 = vmatpush1.msra.mxu0 0.0
    %305 = vmatprep.subr.mxu0 0.0
    %306 = vmatpush1.msra.mxu0 0.0
    %307 = vmatprep.subr.mxu0 0.0
    %308 = vmatpush1.msra.mxu0 0.0
    %309 = vmatprep.subr.mxu0 0.0
    %310 = vmatpush1.msra.mxu0 0.0
    %311 = vmatprep.subr.mxu0 0.0
    %312 = vmatpush1.msra.mxu0 0.0
    %313 = vmatprep.subr.mxu0 0.0
    %314 = vmatpush1.msra.mxu0 0.0
    %315 = vmatprep.subr.mxu0 0.0
    %v316 = vand.u32 %v279, 4294901760
    %317 = vmatpush1.msra.mxu0 %v316
    %318 = vmatprep.subr.mxu0 0.0
    %v319 = vand.u32 %v276, 4294901760
    %320 = vmatpush1.msra.mxu0 %v319
    %321 = vmatprep.subr.mxu0 0.0
    %322 = vmatpush2.msra.mxu0 0.0
    %323 = vmatprep.subr.mxu0 0.0
    %324 = vmatpush2.msra.mxu0 0.0
    %325 = vmatprep.subr.mxu0 0.0
    %326 = vmatpush2.msra.mxu0 0.0
    %327 = vmatprep.subr.mxu0 0.0
    %328 = vmatpush2.msra.mxu0 0.0
    %329 = vmatprep.subr.mxu0 0.0
    %330 = vmatpush2.msra.mxu0 0.0
    %331 = vmatprep.subr.mxu0 0.0
    %332 = vmatpush2.msra.mxu0 0.0
    %333 = vmatprep.subr.mxu0 0.0
    %334 = vmatpush2.msra.mxu0 0.0
    %335 = vmatprep.subr.mxu0 0.0
    %336 = vmatpush2.msra.mxu0 0.0
    %337 = vmatprep.subr.mxu0 0.0
    %338 = vmatpush2.msra.mxu0 0.0
    %339 = vmatprep.subr.mxu0 0.0
    %340 = vmatpush2.msra.mxu0 0.0
    %341 = vmatprep.subr.mxu0 0.0
    %342 = vmatpush2.msra.mxu0 0.0
    %343 = vmatprep.subr.mxu0 0.0
    %344 = vmatpush2.msra.mxu0 0.0
    %345 = vmatprep.subr.mxu0 0.0
    %346 = vmatpush2.msra.mxu0 0.0
    %347 = vmatprep.subr.mxu0 0.0
    %348 = vmatpush2.msra.mxu0 0.0
    %349 = vmatprep.subr.mxu0 0.0
    %350 = vmatpush2.msra.mxu0 0.0
    %351 = vmatprep.subr.mxu0 0.0
    %352 = vmatpush2.msra.mxu0 0.0
    %353 = vmatprep.mubr.f32.mxu0 0.0
    %v354 = vand.u32 %v285, 4294901760
    %v355 = vsub.f32 %v285, %v354
    %v356 = vand.u32 %v355, 4294901760
    %v357 = vsub.f32 %v355, %v356
    %v358 = vand.u32 %v357, 4294901760
    %359 = vmatmul.mubr.f32.gmra.mxu0 %v358
    %v360 = vpop.f32.mrf.mxu0
    %v361 = vadd.f32 0.0, %v360
    %v362 = vpop.f32.mrf.mxu0
    %363 = vdwg.mxu0
    %364 = vmatprep.subr.mxu0 0.0
    %365 = vmatpush1.msra.mxu0 0.0
    %366 = vmatprep.subr.mxu0 0.0
    %367 = vmatpush1.msra.mxu0 0.0
    %368 = vmatprep.subr.mxu0 0.0
    %369 = vmatpush1.msra.mxu0 0.0
    %370 = vmatprep.subr.mxu0 0.0
    %371 = vmatpush1.msra.mxu0 0.0
    %372 = vmatprep.subr.mxu0 0.0
    %373 = vmatpush1.msra.mxu0 0.0
    %374 = vmatprep.subr.mxu0 0.0
    %375 = vmatpush1.msra.mxu0 0.0
    %376 = vmatprep.subr.mxu0 0.0
    %377 = vmatpush1.msra.mxu0 0.0
    %378 = vmatprep.subr.mxu0 0.0
    %379 = vmatpush1.msra.mxu0 0.0
    %380 = vmatprep.subr.mxu0 0.0
    %381 = vmatpush1.msra.mxu0 0.0
    %382 = vmatprep.subr.mxu0 0.0
    %383 = vmatpush1.msra.mxu0 0.0
    %384 = vmatprep.subr.mxu0 0.0
    %385 = vmatpush1.msra.mxu0 0.0
    %386 = vmatprep.subr.mxu0 0.0
    %387 = vmatpush1.msra.mxu0 0.0
    %388 = vmatprep.subr.mxu0 0.0
    %389 = vmatpush1.msra.mxu0 0.0
    %390 = vmatprep.subr.mxu0 0.0
    %391 = vmatpush1.msra.mxu0 0.0
    %392 = vmatprep.subr.mxu0 0.0
    %v393 = vand.u32 %v279, 4294901760
    %v394 = vsub.f32 %v279, %v393
    %v395 = vand.u32 %v394, 4294901760
    %v396 = vsub.f32 %v394, %v395
    %v397 = vand.u32 %v396, 4294901760
    %398 = vmatpush1.msra.mxu0 %v397
    %399 = vmatprep.subr.mxu0 0.0
    %v400 = vand.u32 %v276, 4294901760
    %v401 = vsub.f32 %v276, %v400
    %v402 = vand.u32 %v401, 4294901760
    %v403 = vsub.f32 %v401, %v402
    %v404 = vand.u32 %v403, 4294901760
    %405 = vmatpush1.msra.mxu0 %v404
    %406 = vmatprep.subr.mxu0 0.0
    %407 = vmatpush2.msra.mxu0 0.0
    %408 = vmatprep.subr.mxu0 0.0
    %409 = vmatpush2.msra.mxu0 0.0
    %410 = vmatprep.subr.mxu0 0.0
    %411 = vmatpush2.msra.mxu0 0.0
    %412 = vmatprep.subr.mxu0 0.0
    %413 = vmatpush2.msra.mxu0 0.0
    %414 = vmatprep.subr.mxu0 0.0
    %415 = vmatpush2.msra.mxu0 0.0
    %416 = vmatprep.subr.mxu0 0.0
    %417 = vmatpush2.msra.mxu0 0.0
    %418 = vmatprep.subr.mxu0 0.0
    %419 = vmatpush2.msra.mxu0 0.0
    %420 = vmatprep.subr.mxu0 0.0
    %421 = vmatpush2.msra.mxu0 0.0
    %422 = vmatprep.subr.mxu0 0.0
    %423 = vmatpush2.msra.mxu0 0.0
    %424 = vmatprep.subr.mxu0 0.0
    %425 = vmatpush2.msra.mxu0 0.0
    %426 = vmatprep.subr.mxu0 0.0
    %427 = vmatpush2.msra.mxu0 0.0
    %428 = vmatprep.subr.mxu0 0.0
    %429 = vmatpush2.msra.mxu0 0.0
    %430 = vmatprep.subr.mxu0 0.0
    %431 = vmatpush2.msra.mxu0 0.0
    %432 = vmatprep.subr.mxu0 0.0
    %433 = vmatpush2.msra.mxu0 0.0
    %434 = vmatprep.subr.mxu0 0.0
    %435 = vmatpush2.msra.mxu0 0.0
    %436 = vmatprep.subr.mxu0 0.0
    %437 = vmatpush2.msra.mxu0 0.0
    %438 = vmatprep.mubr.f32.mxu0 0.0
    %v439 = vand.u32 %v285, 4294901760
    %440 = vmatmul.mubr.f32.gmra.mxu0 %v439
    %v441 = vpop.f32.mrf.mxu0
    %v442 = vadd.f32 %v361, %v441
    %v443 = vpop.f32.mrf.mxu0
    %444 = vdwg.mxu0
    %445 = vmatprep.subr.mxu0 0.0
    %446 = vmatpush1.msra.mxu0 0.0
    %447 = vmatprep.subr.mxu0 0.0
    %448 = vmatpush1.msra.mxu0 0.0
    %449 = vmatprep.subr.mxu0 0.0
    %450 = vmatpush1.msra.mxu0 0.0
    %451 = vmatprep.subr.mxu0 0.0
    %452 = vmatpush1.msra.mxu0 0.0
    %453 = vmatprep.subr.mxu0 0.0
    %454 = vmatpush1.msra.mxu0 0.0
    %455 = vmatprep.subr.mxu0 0.0
    %456 = vmatpush1.msra.mxu0 0.0
    %457 = vmatprep.subr.mxu0 0.0
    %458 = vmatpush1.msra.mxu0 0.0
    %459 = vmatprep.subr.mxu0 0.0
    %460 = vmatpush1.msra.mxu0 0.0
    %461 = vmatprep.subr.mxu0 0.0
    %462 = vmatpush1.msra.mxu0 0.0
    %463 = vmatprep.subr.mxu0 0.0
    %464 = vmatpush1.msra.mxu0 0.0
    %465 = vmatprep.subr.mxu0 0.0
    %466 = vmatpush1.msra.mxu0 0.0
    %467 = vmatprep.subr.mxu0 0.0
    %468 = vmatpush1.msra.mxu0 0.0
    %469 = vmatprep.subr.mxu0 0.0
    %470 = vmatpush1.msra.mxu0 0.0
    %471 = vmatprep.subr.mxu0 0.0
    %472 = vmatpush1.msra.mxu0 0.0
    %473 = vmatprep.subr.mxu0 0.0
    %v474 = vand.u32 %v279, 4294901760
    %v475 = vsub.f32 %v279, %v474
    %476 = vmatpush1.msra.mxu0 %v475
    %477 = vmatprep.subr.mxu0 0.0
    %v478 = vand.u32 %v276, 4294901760
    %v479 = vsub.f32 %v276, %v478
    %480 = vmatpush1.msra.mxu0 %v479
    %481 = vmatprep.subr.mxu0 0.0
    %482 = vmatpush2.msra.mxu0 0.0
    %483 = vmatprep.subr.mxu0 0.0
    %484 = vmatpush2.msra.mxu0 0.0
    %485 = vmatprep.subr.mxu0 0.0
    %486 = vmatpush2.msra.mxu0 0.0
    %487 = vmatprep.subr.mxu0 0.0
    %488 = vmatpush2.msra.mxu0 0.0
    %489 = vmatprep.subr.mxu0 0.0
    %490 = vmatpush2.msra.mxu0 0.0
    %491 = vmatprep.subr.mxu0 0.0
    %492 = vmatpush2.msra.mxu0 0.0
    %493 = vmatprep.subr.mxu0 0.0
    %494 = vmatpush2.msra.mxu0 0.0
    %495 = vmatprep.subr.mxu0 0.0
    %496 = vmatpush2.msra.mxu0 0.0
    %497 = vmatprep.subr.mxu0 0.0
    %498 = vmatpush2.msra.mxu0 0.0
    %499 = vmatprep.subr.mxu0 0.0
    %500 = vmatpush2.msra.mxu0 0.0
    %501 = vmatprep.subr.mxu0 0.0
    %502 = vmatpush2.msra.mxu0 0.0
    %503 = vmatprep.subr.mxu0 0.0
    %504 = vmatpush2.msra.mxu0 0.0
    %505 = vmatprep.subr.mxu0 0.0
    %506 = vmatpush2.msra.mxu0 0.0
    %507 = vmatprep.subr.mxu0 0.0
    %508 = vmatpush2.msra.mxu0 0.0
    %509 = vmatprep.subr.mxu0 0.0
    %510 = vmatpush2.msra.mxu0 0.0
    %511 = vmatprep.subr.mxu0 0.0
    %512 = vmatpush2.msra.mxu0 0.0
    %513 = vmatprep.mubr.f32.mxu0 0.0
    %v514 = vand.u32 %v285, 4294901760
    %v515 = vsub.f32 %v285, %v514
    %516 = vmatmul.mubr.f32.gmra.mxu0 %v515
    %v517 = vpop.f32.mrf.mxu0
    %v518 = vadd.f32 %v442, %v517
    %v519 = vpop.f32.mrf.mxu0
    %520 = vdwg.mxu0
    %521 = vmatprep.subr.mxu0 0.0
    %522 = vmatpush1.msra.mxu0 0.0
    %523 = vmatprep.subr.mxu0 0.0
    %524 = vmatpush1.msra.mxu0 0.0
    %525 = vmatprep.subr.mxu0 0.0
    %526 = vmatpush1.msra.mxu0 0.0
    %527 = vmatprep.subr.mxu0 0.0
    %528 = vmatpush1.msra.mxu0 0.0
    %529 = vmatprep.subr.mxu0 0.0
    %530 = vmatpush1.msra.mxu0 0.0
    %531 = vmatprep.subr.mxu0 0.0
    %532 = vmatpush1.msra.mxu0 0.0
    %533 = vmatprep.subr.mxu0 0.0
    %534 = vmatpush1.msra.mxu0 0.0
    %535 = vmatprep.subr.mxu0 0.0
    %536 = vmatpush1.msra.mxu0 0.0
    %537 = vmatprep.subr.mxu0 0.0
    %538 = vmatpush1.msra.mxu0 0.0
    %539 = vmatprep.subr.mxu0 0.0
    %540 = vmatpush1.msra.mxu0 0.0
    %541 = vmatprep.subr.mxu0 0.0
    %542 = vmatpush1.msra.mxu0 0.0
    %543 = vmatprep.subr.mxu0 0.0
    %544 = vmatpush1.msra.mxu0 0.0
    %545 = vmatprep.subr.mxu0 0.0
    %546 = vmatpush1.msra.mxu0 0.0
    %547 = vmatprep.subr.mxu0 0.0
    %548 = vmatpush1.msra.mxu0 0.0
    %549 = vmatprep.subr.mxu0 0.0
    %v550 = vand.u32 %v279, 4294901760
    %551 = vmatpush1.msra.mxu0 %v550
    %552 = vmatprep.subr.mxu0 0.0
    %v553 = vand.u32 %v276, 4294901760
    %554 = vmatpush1.msra.mxu0 %v553
    %555 = vmatprep.subr.mxu0 0.0
    %556 = vmatpush2.msra.mxu0 0.0
    %557 = vmatprep.subr.mxu0 0.0
    %558 = vmatpush2.msra.mxu0 0.0
    %559 = vmatprep.subr.mxu0 0.0
    %560 = vmatpush2.msra.mxu0 0.0
    %561 = vmatprep.subr.mxu0 0.0
    %562 = vmatpush2.msra.mxu0 0.0
    %563 = vmatprep.subr.mxu0 0.0
    %564 = vmatpush2.msra.mxu0 0.0
    %565 = vmatprep.subr.mxu0 0.0
    %566 = vmatpush2.msra.mxu0 0.0
    %567 = vmatprep.subr.mxu0 0.0
    %568 = vmatpush2.msra.mxu0 0.0
    %569 = vmatprep.subr.mxu0 0.0
    %570 = vmatpush2.msra.mxu0 0.0
    %571 = vmatprep.subr.mxu0 0.0
    %572 = vmatpush2.msra.mxu0 0.0
    %573 = vmatprep.subr.mxu0 0.0
    %574 = vmatpush2.msra.mxu0 0.0
    %575 = vmatprep.subr.mxu0 0.0
    %576 = vmatpush2.msra.mxu0 0.0
    %577 = vmatprep.subr.mxu0 0.0
    %578 = vmatpush2.msra.mxu0 0.0
    %579 = vmatprep.subr.mxu0 0.0
    %580 = vmatpush2.msra.mxu0 0.0
    %581 = vmatprep.subr.mxu0 0.0
    %582 = vmatpush2.msra.mxu0 0.0
    %583 = vmatprep.subr.mxu0 0.0
    %584 = vmatpush2.msra.mxu0 0.0
    %585 = vmatprep.subr.mxu0 0.0
    %586 = vmatpush2.msra.mxu0 0.0
    %587 = vmatprep.mubr.f32.mxu0 0.0
    %v588 = vand.u32 %v285, 4294901760
    %v589 = vsub.f32 %v285, %v588
    %v590 = vand.u32 %v589, 4294901760
    %591 = vmatmul.mubr.f32.gmra.mxu0 %v590
    %v592 = vpop.f32.mrf.mxu0
    %v593 = vadd.f32 %v518, %v592
    %v594 = vpop.f32.mrf.mxu0
    %595 = vdwg.mxu0
    %596 = vmatprep.subr.mxu0 0.0
    %597 = vmatpush1.msra.mxu0 0.0
    %598 = vmatprep.subr.mxu0 0.0
    %599 = vmatpush1.msra.mxu0 0.0
    %600 = vmatprep.subr.mxu0 0.0
    %601 = vmatpush1.msra.mxu0 0.0
    %602 = vmatprep.subr.mxu0 0.0
    %603 = vmatpush1.msra.mxu0 0.0
    %604 = vmatprep.subr.mxu0 0.0
    %605 = vmatpush1.msra.mxu0 0.0
    %606 = vmatprep.subr.mxu0 0.0
    %607 = vmatpush1.msra.mxu0 0.0
    %608 = vmatprep.subr.mxu0 0.0
    %609 = vmatpush1.msra.mxu0 0.0
    %610 = vmatprep.subr.mxu0 0.0
    %611 = vmatpush1.msra.mxu0 0.0
    %612 = vmatprep.subr.mxu0 0.0
    %613 = vmatpush1.msra.mxu0 0.0
    %614 = vmatprep.subr.mxu0 0.0
    %615 = vmatpush1.msra.mxu0 0.0
    %616 = vmatprep.subr.mxu0 0.0
    %617 = vmatpush1.msra.mxu0 0.0
    %618 = vmatprep.subr.mxu0 0.0
    %619 = vmatpush1.msra.mxu0 0.0
    %620 = vmatprep.subr.mxu0 0.0
    %621 = vmatpush1.msra.mxu0 0.0
    %622 = vmatprep.subr.mxu0 0.0
    %623 = vmatpush1.msra.mxu0 0.0
    %624 = vmatprep.subr.mxu0 0.0
    %v625 = vand.u32 %v279, 4294901760
    %v626 = vsub.f32 %v279, %v625
    %v627 = vand.u32 %v626, 4294901760
    %628 = vmatpush1.msra.mxu0 %v627
    %629 = vmatprep.subr.mxu0 0.0
    %v630 = vand.u32 %v276, 4294901760
    %v631 = vsub.f32 %v276, %v630
    %v632 = vand.u32 %v631, 4294901760
    %633 = vmatpush1.msra.mxu0 %v632
    %634 = vmatprep.subr.mxu0 0.0
    %635 = vmatpush2.msra.mxu0 0.0
    %636 = vmatprep.subr.mxu0 0.0
    %637 = vmatpush2.msra.mxu0 0.0
    %638 = vmatprep.subr.mxu0 0.0
    %639 = vmatpush2.msra.mxu0 0.0
    %640 = vmatprep.subr.mxu0 0.0
    %641 = vmatpush2.msra.mxu0 0.0
    %642 = vmatprep.subr.mxu0 0.0
    %643 = vmatpush2.msra.mxu0 0.0
    %644 = vmatprep.subr.mxu0 0.0
    %645 = vmatpush2.msra.mxu0 0.0
    %646 = vmatprep.subr.mxu0 0.0
    %647 = vmatpush2.msra.mxu0 0.0
    %648 = vmatprep.subr.mxu0 0.0
    %649 = vmatpush2.msra.mxu0 0.0
    %650 = vmatprep.subr.mxu0 0.0
    %651 = vmatpush2.msra.mxu0 0.0
    %652 = vmatprep.subr.mxu0 0.0
    %653 = vmatpush2.msra.mxu0 0.0
    %654 = vmatprep.subr.mxu0 0.0
    %655 = vmatpush2.msra.mxu0 0.0
    %656 = vmatprep.subr.mxu0 0.0
    %657 = vmatpush2.msra.mxu0 0.0
    %658 = vmatprep.subr.mxu0 0.0
    %659 = vmatpush2.msra.mxu0 0.0
    %660 = vmatprep.subr.mxu0 0.0
    %661 = vmatpush2.msra.mxu0 0.0
    %662 = vmatprep.subr.mxu0 0.0
    %663 = vmatpush2.msra.mxu0 0.0
    %664 = vmatprep.subr.mxu0 0.0
    %665 = vmatpush2.msra.mxu0 0.0
    %666 = vmatprep.mubr.f32.mxu0 0.0
    %v667 = vand.u32 %v285, 4294901760
    %668 = vmatmul.mubr.f32.gmra.mxu0 %v667
    %v669 = vpop.f32.mrf.mxu0
    %v670 = vadd.f32 %v593, %v669
    %v671 = vpop.f32.mrf.mxu0
    %672 = vdwg.mxu0
    %673 = vmatprep.subr.mxu0 0.0
    %674 = vmatpush1.msra.mxu0 0.0
    %675 = vmatprep.subr.mxu0 0.0
    %676 = vmatpush1.msra.mxu0 0.0
    %677 = vmatprep.subr.mxu0 0.0
    %678 = vmatpush1.msra.mxu0 0.0
    %679 = vmatprep.subr.mxu0 0.0
    %680 = vmatpush1.msra.mxu0 0.0
    %681 = vmatprep.subr.mxu0 0.0
    %682 = vmatpush1.msra.mxu0 0.0
    %683 = vmatprep.subr.mxu0 0.0
    %684 = vmatpush1.msra.mxu0 0.0
    %685 = vmatprep.subr.mxu0 0.0
    %686 = vmatpush1.msra.mxu0 0.0
    %687 = vmatprep.subr.mxu0 0.0
    %688 = vmatpush1.msra.mxu0 0.0
    %689 = vmatprep.subr.mxu0 0.0
    %690 = vmatpush1.msra.mxu0 0.0
    %691 = vmatprep.subr.mxu0 0.0
    %692 = vmatpush1.msra.mxu0 0.0
    %693 = vmatprep.subr.mxu0 0.0
    %694 = vmatpush1.msra.mxu0 0.0
    %695 = vmatprep.subr.mxu0 0.0
    %696 = vmatpush1.msra.mxu0 0.0
    %697 = vmatprep.subr.mxu0 0.0
    %698 = vmatpush1.msra.mxu0 0.0
    %699 = vmatprep.subr.mxu0 0.0
    %700 = vmatpush1.msra.mxu0 0.0
    %701 = vmatprep.subr.mxu0 0.0
    %v702 = vand.u32 %v279, 4294901760
    %703 = vmatpush1.msra.mxu0 %v702
    %704 = vmatprep.subr.mxu0 0.0
    %v705 = vand.u32 %v276, 4294901760
    %706 = vmatpush1.msra.mxu0 %v705
    %707 = vmatprep.subr.mxu0 0.0
    %708 = vmatpush2.msra.mxu0 0.0
    %709 = vmatprep.subr.mxu0 0.0
    %710 = vmatpush2.msra.mxu0 0.0
    %711 = vmatprep.subr.mxu0 0.0
    %712 = vmatpush2.msra.mxu0 0.0
    %713 = vmatprep.subr.mxu0 0.0
    %714 = vmatpush2.msra.mxu0 0.0
    %715 = vmatprep.subr.mxu0 0.0
    %716 = vmatpush2.msra.mxu0 0.0
    %717 = vmatprep.subr.mxu0 0.0
    %718 = vmatpush2.msra.mxu0 0.0
    %719 = vmatprep.subr.mxu0 0.0
    %720 = vmatpush2.msra.mxu0 0.0
    %721 = vmatprep.subr.mxu0 0.0
    %722 = vmatpush2.msra.mxu0 0.0
    %723 = vmatprep.subr.mxu0 0.0
    %724 = vmatpush2.msra.mxu0 0.0
    %725 = vmatprep.subr.mxu0 0.0
    %726 = vmatpush2.msra.mxu0 0.0
    %727 = vmatprep.subr.mxu0 0.0
    %728 = vmatpush2.msra.mxu0 0.0
    %729 = vmatprep.subr.mxu0 0.0
    %730 = vmatpush2.msra.mxu0 0.0
    %731 = vmatprep.subr.mxu0 0.0
    %732 = vmatpush2.msra.mxu0 0.0
    %733 = vmatprep.subr.mxu0 0.0
    %734 = vmatpush2.msra.mxu0 0.0
    %735 = vmatprep.subr.mxu0 0.0
    %736 = vmatpush2.msra.mxu0 0.0
    %737 = vmatprep.subr.mxu0 0.0
    %738 = vmatpush2.msra.mxu0 0.0
    %739 = vmatprep.mubr.f32.mxu0 0.0
    %v740 = vand.u32 %v285, 4294901760
    %741 = vmatmul.mubr.f32.gmra.mxu0 %v740
    %v742 = vpop.f32.mrf.mxu0
    %v743 = vadd.f32 %v670, %v742
    %v744 = vpop.f32.mrf.mxu0
    %745 = vdwg.mxu0
    %v746 = vadd.f32 %v228, %v743
    %s747 = scalar_lea.vmem [#allocation8], 4
    %v748 = vld [vmem:[%s747] sm:$0xf]
    %v750 = vand.u32 %v748, %v237
    %752 = vmatprep.subr.bf16.mxu0 0
    %753 = vmatpush1.bf16.msra.mxu0 0
    %754 = vmatprep.subr.bf16.mxu0 0
    %755 = vmatpush1.bf16.msra.mxu0 0
    %756 = vmatprep.subr.bf16.mxu0 0
    %757 = vmatpush1.bf16.msra.mxu0 0
    %758 = vmatprep.subr.bf16.mxu0 0
    %759 = vmatpush1.bf16.msra.mxu0 0
    %760 = vmatprep.subr.bf16.mxu0 0
    %761 = vmatpush1.bf16.msra.mxu0 0
    %762 = vmatprep.subr.bf16.mxu0 0
    %763 = vmatpush1.bf16.msra.mxu0 0
    %764 = vmatprep.subr.bf16.mxu0 0
    %765 = vmatpush1.bf16.msra.mxu0 0
    %766 = vmatprep.subr.bf16.mxu0 0
    %767 = vmatpush1.bf16.msra.mxu0 %v750
    %768 = vmatprep.subr.bf16.mxu0 0
    %769 = vmatpush2.bf16.msra.mxu0 0
    %770 = vmatprep.subr.bf16.mxu0 0
    %771 = vmatpush2.bf16.msra.mxu0 0
    %772 = vmatprep.subr.bf16.mxu0 0
    %773 = vmatpush2.bf16.msra.mxu0 0
    %774 = vmatprep.subr.bf16.mxu0 0
    %775 = vmatpush2.bf16.msra.mxu0 0
    %776 = vmatprep.subr.bf16.mxu0 0
    %777 = vmatpush2.bf16.msra.mxu0 0
    %778 = vmatprep.subr.bf16.mxu0 0
    %779 = vmatpush2.bf16.msra.mxu0 0
    %780 = vmatprep.subr.bf16.mxu0 0
    %781 = vmatpush2.bf16.msra.mxu0 0
    %782 = vmatprep.subr.bf16.mxu0 0
    %783 = vmatpush2.bf16.msra.mxu0 0
    %784 = vmatprep.mubr.bf16.mxu0 0
    %785 = vmatmul.mubr.bf16.gmra.mxu0 %v232
    %v786 = vpop.f32.mrf.mxu0
    %v787 = vadd.f32 0.0, %v786
    %v788 = vpop.f32.mrf.mxu0
    %v789 = vpop.f32.mrf.mxu0
    %v790 = vadd.f32 0.0, %v789
    %v791 = vpop.f32.mrf.mxu0
    %792 = vdwg.mxu0
    %s793 = scalar_lea.vmem %s2, 8
    %v794 = vld [vmem:[%s793] sm:$0xff]
    %v796 = vsel %vm283, %v794, 0
    %798 = vmatprep.subr.mxu0 0.0
    %799 = vmatpush1.msra.mxu0 0.0
    %800 = vmatprep.subr.mxu0 0.0
    %801 = vmatpush1.msra.mxu0 0.0
    %802 = vmatprep.subr.mxu0 0.0
    %803 = vmatpush1.msra.mxu0 0.0
    %804 = vmatprep.subr.mxu0 0.0
    %805 = vmatpush1.msra.mxu0 0.0
    %806 = vmatprep.subr.mxu0 0.0
    %807 = vmatpush1.msra.mxu0 0.0
    %808 = vmatprep.subr.mxu0 0.0
    %809 = vmatpush1.msra.mxu0 0.0
    %810 = vmatprep.subr.mxu0 0.0
    %811 = vmatpush1.msra.mxu0 0.0
    %812 = vmatprep.subr.mxu0 0.0
    %813 = vmatpush1.msra.mxu0 0.0
    %814 = vmatprep.subr.mxu0 0.0
    %815 = vmatpush1.msra.mxu0 0.0
    %816 = vmatprep.subr.mxu0 0.0
    %817 = vmatpush1.msra.mxu0 0.0
    %818 = vmatprep.subr.mxu0 0.0
    %819 = vmatpush1.msra.mxu0 0.0
    %820 = vmatprep.subr.mxu0 0.0
    %821 = vmatpush1.msra.mxu0 0.0
    %822 = vmatprep.subr.mxu0 0.0
    %823 = vmatpush1.msra.mxu0 0.0
    %824 = vmatprep.subr.mxu0 0.0
    %825 = vmatpush1.msra.mxu0 0.0
    %826 = vmatprep.subr.mxu0 0.0
    %v827 = vand.u32 %v790, 4294901760
    %828 = vmatpush1.msra.mxu0 %v827
    %829 = vmatprep.subr.mxu0 0.0
    %v830 = vand.u32 %v787, 4294901760
    %831 = vmatpush1.msra.mxu0 %v830
    %832 = vmatprep.subr.mxu0 0.0
    %833 = vmatpush2.msra.mxu0 0.0
    %834 = vmatprep.subr.mxu0 0.0
    %835 = vmatpush2.msra.mxu0 0.0
    %836 = vmatprep.subr.mxu0 0.0
    %837 = vmatpush2.msra.mxu0 0.0
    %838 = vmatprep.subr.mxu0 0.0
    %839 = vmatpush2.msra.mxu0 0.0
    %840 = vmatprep.subr.mxu0 0.0
    %841 = vmatpush2.msra.mxu0 0.0
    %842 = vmatprep.subr.mxu0 0.0
    %843 = vmatpush2.msra.mxu0 0.0
    %844 = vmatprep.subr.mxu0 0.0
    %845 = vmatpush2.msra.mxu0 0.0
    %846 = vmatprep.subr.mxu0 0.0
    %847 = vmatpush2.msra.mxu0 0.0
    %848 = vmatprep.subr.mxu0 0.0
    %849 = vmatpush2.msra.mxu0 0.0
    %850 = vmatprep.subr.mxu0 0.0
    %851 = vmatpush2.msra.mxu0 0.0
    %852 = vmatprep.subr.mxu0 0.0
    %853 = vmatpush2.msra.mxu0 0.0
    %854 = vmatprep.subr.mxu0 0.0
    %855 = vmatpush2.msra.mxu0 0.0
    %856 = vmatprep.subr.mxu0 0.0
    %857 = vmatpush2.msra.mxu0 0.0
    %858 = vmatprep.subr.mxu0 0.0
    %859 = vmatpush2.msra.mxu0 0.0
    %860 = vmatprep.subr.mxu0 0.0
    %861 = vmatpush2.msra.mxu0 0.0
    %862 = vmatprep.subr.mxu0 0.0
    %863 = vmatpush2.msra.mxu0 0.0
    %864 = vmatprep.mubr.f32.mxu0 0.0
    %v865 = vand.u32 %v796, 4294901760
    %v866 = vsub.f32 %v796, %v865
    %v867 = vand.u32 %v866, 4294901760
    %v868 = vsub.f32 %v866, %v867
    %v869 = vand.u32 %v868, 4294901760
    %870 = vmatmul.mubr.f32.gmra.mxu0 %v869
    %v871 = vpop.f32.mrf.mxu0
    %v872 = vadd.f32 0.0, %v871
    %v873 = vpop.f32.mrf.mxu0
    %874 = vdwg.mxu0
    %875 = vmatprep.subr.mxu0 0.0
    %876 = vmatpush1.msra.mxu0 0.0
    %877 = vmatprep.subr.mxu0 0.0
    %878 = vmatpush1.msra.mxu0 0.0
    %879 = vmatprep.subr.mxu0 0.0
    %880 = vmatpush1.msra.mxu0 0.0
    %881 = vmatprep.subr.mxu0 0.0
    %882 = vmatpush1.msra.mxu0 0.0
    %883 = vmatprep.subr.mxu0 0.0
    %884 = vmatpush1.msra.mxu0 0.0
    %885 = vmatprep.subr.mxu0 0.0
    %886 = vmatpush1.msra.mxu0 0.0
    %887 = vmatprep.subr.mxu0 0.0
    %888 = vmatpush1.msra.mxu0 0.0
    %889 = vmatprep.subr.mxu0 0.0
    %890 = vmatpush1.msra.mxu0 0.0
    %891 = vmatprep.subr.mxu0 0.0
    %892 = vmatpush1.msra.mxu0 0.0
    %893 = vmatprep.subr.mxu0 0.0
    %894 = vmatpush1.msra.mxu0 0.0
    %895 = vmatprep.subr.mxu0 0.0
    %896 = vmatpush1.msra.mxu0 0.0
    %897 = vmatprep.subr.mxu0 0.0
    %898 = vmatpush1.msra.mxu0 0.0
    %899 = vmatprep.subr.mxu0 0.0
    %900 = vmatpush1.msra.mxu0 0.0
    %901 = vmatprep.subr.mxu0 0.0
    %902 = vmatpush1.msra.mxu0 0.0
    %903 = vmatprep.subr.mxu0 0.0
    %v904 = vand.u32 %v790, 4294901760
    %v905 = vsub.f32 %v790, %v904
    %v906 = vand.u32 %v905, 4294901760
    %v907 = vsub.f32 %v905, %v906
    %v908 = vand.u32 %v907, 4294901760
    %909 = vmatpush1.msra.mxu0 %v908
    %910 = vmatprep.subr.mxu0 0.0
    %v911 = vand.u32 %v787, 4294901760
    %v912 = vsub.f32 %v787, %v911
    %v913 = vand.u32 %v912, 4294901760
    %v914 = vsub.f32 %v912, %v913
    %v915 = vand.u32 %v914, 4294901760
    %916 = vmatpush1.msra.mxu0 %v915
    %917 = vmatprep.subr.mxu0 0.0
    %918 = vmatpush2.msra.mxu0 0.0
    %919 = vmatprep.subr.mxu0 0.0
    %920 = vmatpush2.msra.mxu0 0.0
    %921 = vmatprep.subr.mxu0 0.0
    %922 = vmatpush2.msra.mxu0 0.0
    %923 = vmatprep.subr.mxu0 0.0
    %924 = vmatpush2.msra.mxu0 0.0
    %925 = vmatprep.subr.mxu0 0.0
    %926 = vmatpush2.msra.mxu0 0.0
    %927 = vmatprep.subr.mxu0 0.0
    %928 = vmatpush2.msra.mxu0 0.0
    %929 = vmatprep.subr.mxu0 0.0
    %930 = vmatpush2.msra.mxu0 0.0
    %931 = vmatprep.subr.mxu0 0.0
    %932 = vmatpush2.msra.mxu0 0.0
    %933 = vmatprep.subr.mxu0 0.0
    %934 = vmatpush2.msra.mxu0 0.0
    %935 = vmatprep.subr.mxu0 0.0
    %936 = vmatpush2.msra.mxu0 0.0
    %937 = vmatprep.subr.mxu0 0.0
    %938 = vmatpush2.msra.mxu0 0.0
    %939 = vmatprep.subr.mxu0 0.0
    %940 = vmatpush2.msra.mxu0 0.0
    %941 = vmatprep.subr.mxu0 0.0
    %942 = vmatpush2.msra.mxu0 0.0
    %943 = vmatprep.subr.mxu0 0.0
    %944 = vmatpush2.msra.mxu0 0.0
    %945 = vmatprep.subr.mxu0 0.0
    %946 = vmatpush2.msra.mxu0 0.0
    %947 = vmatprep.subr.mxu0 0.0
    %948 = vmatpush2.msra.mxu0 0.0
    %949 = vmatprep.mubr.f32.mxu0 0.0
    %v950 = vand.u32 %v796, 4294901760
    %951 = vmatmul.mubr.f32.gmra.mxu0 %v950
    %v952 = vpop.f32.mrf.mxu0
    %v953 = vadd.f32 %v872, %v952
    %v954 = vpop.f32.mrf.mxu0
    %955 = vdwg.mxu0
    %956 = vmatprep.subr.mxu0 0.0
    %957 = vmatpush1.msra.mxu0 0.0
    %958 = vmatprep.subr.mxu0 0.0
    %959 = vmatpush1.msra.mxu0 0.0
    %960 = vmatprep.subr.mxu0 0.0
    %961 = vmatpush1.msra.mxu0 0.0
    %962 = vmatprep.subr.mxu0 0.0
    %963 = vmatpush1.msra.mxu0 0.0
    %964 = vmatprep.subr.mxu0 0.0
    %965 = vmatpush1.msra.mxu0 0.0
    %966 = vmatprep.subr.mxu0 0.0
    %967 = vmatpush1.msra.mxu0 0.0
    %968 = vmatprep.subr.mxu0 0.0
    %969 = vmatpush1.msra.mxu0 0.0
    %970 = vmatprep.subr.mxu0 0.0
    %971 = vmatpush1.msra.mxu0 0.0
    %972 = vmatprep.subr.mxu0 0.0
    %973 = vmatpush1.msra.mxu0 0.0
    %974 = vmatprep.subr.mxu0 0.0
    %975 = vmatpush1.msra.mxu0 0.0
    %976 = vmatprep.subr.mxu0 0.0
    %977 = vmatpush1.msra.mxu0 0.0
    %978 = vmatprep.subr.mxu0 0.0
    %979 = vmatpush1.msra.mxu0 0.0
    %980 = vmatprep.subr.mxu0 0.0
    %981 = vmatpush1.msra.mxu0 0.0
    %982 = vmatprep.subr.mxu0 0.0
    %983 = vmatpush1.msra.mxu0 0.0
    %984 = vmatprep.subr.mxu0 0.0
    %v985 = vand.u32 %v790, 4294901760
    %v986 = vsub.f32 %v790, %v985
    %987 = vmatpush1.msra.mxu0 %v986
    %988 = vmatprep.subr.mxu0 0.0
    %v989 = vand.u32 %v787, 4294901760
    %v990 = vsub.f32 %v787, %v989
    %991 = vmatpush1.msra.mxu0 %v990
    %992 = vmatprep.subr.mxu0 0.0
    %993 = vmatpush2.msra.mxu0 0.0
    %994 = vmatprep.subr.mxu0 0.0
    %995 = vmatpush2.msra.mxu0 0.0
    %996 = vmatprep.subr.mxu0 0.0
    %997 = vmatpush2.msra.mxu0 0.0
    %998 = vmatprep.subr.mxu0 0.0
    %999 = vmatpush2.msra.mxu0 0.0
    %1000 = vmatprep.subr.mxu0 0.0
    %1001 = vmatpush2.msra.mxu0 0.0
    %1002 = vmatprep.subr.mxu0 0.0
    %1003 = vmatpush2.msra.mxu0 0.0
    %1004 = vmatprep.subr.mxu0 0.0
    %1005 = vmatpush2.msra.mxu0 0.0
    %1006 = vmatprep.subr.mxu0 0.0
    %1007 = vmatpush2.msra.mxu0 0.0
    %1008 = vmatprep.subr.mxu0 0.0
    %1009 = vmatpush2.msra.mxu0 0.0
    %1010 = vmatprep.subr.mxu0 0.0
    %1011 = vmatpush2.msra.mxu0 0.0
    %1012 = vmatprep.subr.mxu0 0.0
    %1013 = vmatpush2.msra.mxu0 0.0
    %1014 = vmatprep.subr.mxu0 0.0
    %1015 = vmatpush2.msra.mxu0 0.0
    %1016 = vmatprep.subr.mxu0 0.0
    %1017 = vmatpush2.msra.mxu0 0.0
    %1018 = vmatprep.subr.mxu0 0.0
    %1019 = vmatpush2.msra.mxu0 0.0
    %1020 = vmatprep.subr.mxu0 0.0
    %1021 = vmatpush2.msra.mxu0 0.0
    %1022 = vmatprep.subr.mxu0 0.0
    %1023 = vmatpush2.msra.mxu0 0.0
    %1024 = vmatprep.mubr.f32.mxu0 0.0
    %v1025 = vand.u32 %v796, 4294901760
    %v1026 = vsub.f32 %v796, %v1025
    %1027 = vmatmul.mubr.f32.gmra.mxu0 %v1026
    %v1028 = vpop.f32.mrf.mxu0
    %v1029 = vadd.f32 %v953, %v1028
    %v1030 = vpop.f32.mrf.mxu0
    %1031 = vdwg.mxu0
    %1032 = vmatprep.subr.mxu0 0.0
    %1033 = vmatpush1.msra.mxu0 0.0
    %1034 = vmatprep.subr.mxu0 0.0
    %1035 = vmatpush1.msra.mxu0 0.0
    %1036 = vmatprep.subr.mxu0 0.0
    %1037 = vmatpush1.msra.mxu0 0.0
    %1038 = vmatprep.subr.mxu0 0.0
    %1039 = vmatpush1.msra.mxu0 0.0
    %1040 = vmatprep.subr.mxu0 0.0
    %1041 = vmatpush1.msra.mxu0 0.0
    %1042 = vmatprep.subr.mxu0 0.0
    %1043 = vmatpush1.msra.mxu0 0.0
    %1044 = vmatprep.subr.mxu0 0.0
    %1045 = vmatpush1.msra.mxu0 0.0
    %1046 = vmatprep.subr.mxu0 0.0
    %1047 = vmatpush1.msra.mxu0 0.0
    %1048 = vmatprep.subr.mxu0 0.0
    %1049 = vmatpush1.msra.mxu0 0.0
    %1050 = vmatprep.subr.mxu0 0.0
    %1051 = vmatpush1.msra.mxu0 0.0
    %1052 = vmatprep.subr.mxu0 0.0
    %1053 = vmatpush1.msra.mxu0 0.0
    %1054 = vmatprep.subr.mxu0 0.0
    %1055 = vmatpush1.msra.mxu0 0.0
    %1056 = vmatprep.subr.mxu0 0.0
    %1057 = vmatpush1.msra.mxu0 0.0
    %1058 = vmatprep.subr.mxu0 0.0
    %1059 = vmatpush1.msra.mxu0 0.0
    %1060 = vmatprep.subr.mxu0 0.0
    %v1061 = vand.u32 %v790, 4294901760
    %1062 = vmatpush1.msra.mxu0 %v1061
    %1063 = vmatprep.subr.mxu0 0.0
    %v1064 = vand.u32 %v787, 4294901760
    %1065 = vmatpush1.msra.mxu0 %v1064
    %1066 = vmatprep.subr.mxu0 0.0
    %1067 = vmatpush2.msra.mxu0 0.0
    %1068 = vmatprep.subr.mxu0 0.0
    %1069 = vmatpush2.msra.mxu0 0.0
    %1070 = vmatprep.subr.mxu0 0.0
    %1071 = vmatpush2.msra.mxu0 0.0
    %1072 = vmatprep.subr.mxu0 0.0
    %1073 = vmatpush2.msra.mxu0 0.0
    %1074 = vmatprep.subr.mxu0 0.0
    %1075 = vmatpush2.msra.mxu0 0.0
    %1076 = vmatprep.subr.mxu0 0.0
    %1077 = vmatpush2.msra.mxu0 0.0
    %1078 = vmatprep.subr.mxu0 0.0
    %1079 = vmatpush2.msra.mxu0 0.0
    %1080 = vmatprep.subr.mxu0 0.0
    %1081 = vmatpush2.msra.mxu0 0.0
    %1082 = vmatprep.subr.mxu0 0.0
    %1083 = vmatpush2.msra.mxu0 0.0
    %1084 = vmatprep.subr.mxu0 0.0
    %1085 = vmatpush2.msra.mxu0 0.0
    %1086 = vmatprep.subr.mxu0 0.0
    %1087 = vmatpush2.msra.mxu0 0.0
    %1088 = vmatprep.subr.mxu0 0.0
    %1089 = vmatpush2.msra.mxu0 0.0
    %1090 = vmatprep.subr.mxu0 0.0
    %1091 = vmatpush2.msra.mxu0 0.0
    %1092 = vmatprep.subr.mxu0 0.0
    %1093 = vmatpush2.msra.mxu0 0.0
    %1094 = vmatprep.subr.mxu0 0.0
    %1095 = vmatpush2.msra.mxu0 0.0
    %1096 = vmatprep.subr.mxu0 0.0
    %1097 = vmatpush2.msra.mxu0 0.0
    %1098 = vmatprep.mubr.f32.mxu0 0.0
    %v1099 = vand.u32 %v796, 4294901760
    %v1100 = vsub.f32 %v796, %v1099
    %v1101 = vand.u32 %v1100, 4294901760
    %1102 = vmatmul.mubr.f32.gmra.mxu0 %v1101
    %v1103 = vpop.f32.mrf.mxu0
    %v1104 = vadd.f32 %v1029, %v1103
    %v1105 = vpop.f32.mrf.mxu0
    %1106 = vdwg.mxu0
    %1107 = vmatprep.subr.mxu0 0.0
    %1108 = vmatpush1.msra.mxu0 0.0
    %1109 = vmatprep.subr.mxu0 0.0
    %1110 = vmatpush1.msra.mxu0 0.0
    %1111 = vmatprep.subr.mxu0 0.0
    %1112 = vmatpush1.msra.mxu0 0.0
    %1113 = vmatprep.subr.mxu0 0.0
    %1114 = vmatpush1.msra.mxu0 0.0
    %1115 = vmatprep.subr.mxu0 0.0
    %1116 = vmatpush1.msra.mxu0 0.0
    %1117 = vmatprep.subr.mxu0 0.0
    %1118 = vmatpush1.msra.mxu0 0.0
    %1119 = vmatprep.subr.mxu0 0.0
    %1120 = vmatpush1.msra.mxu0 0.0
    %1121 = vmatprep.subr.mxu0 0.0
    %1122 = vmatpush1.msra.mxu0 0.0
    %1123 = vmatprep.subr.mxu0 0.0
    %1124 = vmatpush1.msra.mxu0 0.0
    %1125 = vmatprep.subr.mxu0 0.0
    %1126 = vmatpush1.msra.mxu0 0.0
    %1127 = vmatprep.subr.mxu0 0.0
    %1128 = vmatpush1.msra.mxu0 0.0
    %1129 = vmatprep.subr.mxu0 0.0
    %1130 = vmatpush1.msra.mxu0 0.0
    %1131 = vmatprep.subr.mxu0 0.0
    %1132 = vmatpush1.msra.mxu0 0.0
    %1133 = vmatprep.subr.mxu0 0.0
    %1134 = vmatpush1.msra.mxu0 0.0
    %1135 = vmatprep.subr.mxu0 0.0
    %v1136 = vand.u32 %v790, 4294901760
    %v1137 = vsub.f32 %v790, %v1136
    %v1138 = vand.u32 %v1137, 4294901760
    %1139 = vmatpush1.msra.mxu0 %v1138
    %1140 = vmatprep.subr.mxu0 0.0
    %v1141 = vand.u32 %v787, 4294901760
    %v1142 = vsub.f32 %v787, %v1141
    %v1143 = vand.u32 %v1142, 4294901760
    %1144 = vmatpush1.msra.mxu0 %v1143
    %1145 = vmatprep.subr.mxu0 0.0
    %1146 = vmatpush2.msra.mxu0 0.0
    %1147 = vmatprep.subr.mxu0 0.0
    %1148 = vmatpush2.msra.mxu0 0.0
    %1149 = vmatprep.subr.mxu0 0.0
    %1150 = vmatpush2.msra.mxu0 0.0
    %1151 = vmatprep.subr.mxu0 0.0
    %1152 = vmatpush2.msra.mxu0 0.0
    %1153 = vmatprep.subr.mxu0 0.0
    %1154 = vmatpush2.msra.mxu0 0.0
    %1155 = vmatprep.subr.mxu0 0.0
    %1156 = vmatpush2.msra.mxu0 0.0
    %1157 = vmatprep.subr.mxu0 0.0
    %1158 = vmatpush2.msra.mxu0 0.0
    %1159 = vmatprep.subr.mxu0 0.0
    %1160 = vmatpush2.msra.mxu0 0.0
    %1161 = vmatprep.subr.mxu0 0.0
    %1162 = vmatpush2.msra.mxu0 0.0
    %1163 = vmatprep.subr.mxu0 0.0
    %1164 = vmatpush2.msra.mxu0 0.0
    %1165 = vmatprep.subr.mxu0 0.0
    %1166 = vmatpush2.msra.mxu0 0.0
    %1167 = vmatprep.subr.mxu0 0.0
    %1168 = vmatpush2.msra.mxu0 0.0
    %1169 = vmatprep.subr.mxu0 0.0
    %1170 = vmatpush2.msra.mxu0 0.0
    %1171 = vmatprep.subr.mxu0 0.0
    %1172 = vmatpush2.msra.mxu0 0.0
    %1173 = vmatprep.subr.mxu0 0.0
    %1174 = vmatpush2.msra.mxu0 0.0
    %1175 = vmatprep.subr.mxu0 0.0
    %1176 = vmatpush2.msra.mxu0 0.0
    %1177 = vmatprep.mubr.f32.mxu0 0.0
    %v1178 = vand.u32 %v796, 4294901760
    %1179 = vmatmul.mubr.f32.gmra.mxu0 %v1178
    %v1180 = vpop.f32.mrf.mxu0
    %v1181 = vadd.f32 %v1104, %v1180
    %v1182 = vpop.f32.mrf.mxu0
    %1183 = vdwg.mxu0
    %1184 = vmatprep.subr.mxu0 0.0
    %1185 = vmatpush1.msra.mxu0 0.0
    %1186 = vmatprep.subr.mxu0 0.0
    %1187 = vmatpush1.msra.mxu0 0.0
    %1188 = vmatprep.subr.mxu0 0.0
    %1189 = vmatpush1.msra.mxu0 0.0
    %1190 = vmatprep.subr.mxu0 0.0
    %1191 = vmatpush1.msra.mxu0 0.0
    %1192 = vmatprep.subr.mxu0 0.0
    %1193 = vmatpush1.msra.mxu0 0.0
    %1194 = vmatprep.subr.mxu0 0.0
    %1195 = vmatpush1.msra.mxu0 0.0
    %1196 = vmatprep.subr.mxu0 0.0
    %1197 = vmatpush1.msra.mxu0 0.0
    %1198 = vmatprep.subr.mxu0 0.0
    %1199 = vmatpush1.msra.mxu0 0.0
    %1200 = vmatprep.subr.mxu0 0.0
    %1201 = vmatpush1.msra.mxu0 0.0
    %1202 = vmatprep.subr.mxu0 0.0
    %1203 = vmatpush1.msra.mxu0 0.0
    %1204 = vmatprep.subr.mxu0 0.0
    %1205 = vmatpush1.msra.mxu0 0.0
    %1206 = vmatprep.subr.mxu0 0.0
    %1207 = vmatpush1.msra.mxu0 0.0
    %1208 = vmatprep.subr.mxu0 0.0
    %1209 = vmatpush1.msra.mxu0 0.0
    %1210 = vmatprep.subr.mxu0 0.0
    %1211 = vmatpush1.msra.mxu0 0.0
    %1212 = vmatprep.subr.mxu0 0.0
    %v1213 = vand.u32 %v790, 4294901760
    %1214 = vmatpush1.msra.mxu0 %v1213
    %1215 = vmatprep.subr.mxu0 0.0
    %v1216 = vand.u32 %v787, 4294901760
    %1217 = vmatpush1.msra.mxu0 %v1216
    %1218 = vmatprep.subr.mxu0 0.0
    %1219 = vmatpush2.msra.mxu0 0.0
    %1220 = vmatprep.subr.mxu0 0.0
    %1221 = vmatpush2.msra.mxu0 0.0
    %1222 = vmatprep.subr.mxu0 0.0
    %1223 = vmatpush2.msra.mxu0 0.0
    %1224 = vmatprep.subr.mxu0 0.0
    %1225 = vmatpush2.msra.mxu0 0.0
    %1226 = vmatprep.subr.mxu0 0.0
    %1227 = vmatpush2.msra.mxu0 0.0
    %1228 = vmatprep.subr.mxu0 0.0
    %1229 = vmatpush2.msra.mxu0 0.0
    %1230 = vmatprep.subr.mxu0 0.0
    %1231 = vmatpush2.msra.mxu0 0.0
    %1232 = vmatprep.subr.mxu0 0.0
    %1233 = vmatpush2.msra.mxu0 0.0
    %1234 = vmatprep.subr.mxu0 0.0
    %1235 = vmatpush2.msra.mxu0 0.0
    %1236 = vmatprep.subr.mxu0 0.0
    %1237 = vmatpush2.msra.mxu0 0.0
    %1238 = vmatprep.subr.mxu0 0.0
    %1239 = vmatpush2.msra.mxu0 0.0
    %1240 = vmatprep.subr.mxu0 0.0
    %1241 = vmatpush2.msra.mxu0 0.0
    %1242 = vmatprep.subr.mxu0 0.0
    %1243 = vmatpush2.msra.mxu0 0.0
    %1244 = vmatprep.subr.mxu0 0.0
    %1245 = vmatpush2.msra.mxu0 0.0
    %1246 = vmatprep.subr.mxu0 0.0
    %1247 = vmatpush2.msra.mxu0 0.0
    %1248 = vmatprep.subr.mxu0 0.0
    %1249 = vmatpush2.msra.mxu0 0.0
    %1250 = vmatprep.mubr.f32.mxu0 0.0
    %v1251 = vand.u32 %v796, 4294901760
    %1252 = vmatmul.mubr.f32.gmra.mxu0 %v1251
    %v1253 = vpop.f32.mrf.mxu0
    %v1254 = vadd.f32 %v1181, %v1253
    %v1255 = vpop.f32.mrf.mxu0
    %1256 = vdwg.mxu0
    %v1257 = vadd.f32 %v746, %v1254
    %v1258 = vmul.f32 %v1257, 0.2
    %v1259 = vmax.f32 %v1257, %v1258
    %v1260 = vpack.c.bf16 %v1259, %v1259
    %v1261 = vld [vmem:[#allocation13] sm:$0xff]
    %v1262 = vld [vmem:[#allocation11] sm:$0xf]
    %v1263 = vld [vmem:[#allocation11 + $0x4] sm:$0xf]
    %v1264 = vld [vmem:[#allocation11 + $0x8] sm:$0xf]
    %v1265 = vld [vmem:[#allocation11 + $0xc] sm:$0xf]
    %v1270 = vunpack.c.l.b16 %v1262
    %v1271 = vunpack.c.l.b16 %v1263
    %v1272 = vunpack.c.l.b16 %v1264
    %v1273 = vunpack.c.l.b16 %v1265
    %v1274 = vpack.c.b16 %v1271, %v1270
    %v1275 = vpack.c.b16 %v1273, %v1272
    %vm1278 = vcmask 261120
    %v1280 = vsel %vm1278, %v1260, 0
    %1282 = vmatprep.subr.bf16.mxu0 0
    %1283 = vmatpush1.bf16.msra.mxu0 0
    %1284 = vmatprep.subr.bf16.mxu0 0
    %1285 = vmatpush1.bf16.msra.mxu0 0
    %1286 = vmatprep.subr.bf16.mxu0 0
    %1287 = vmatpush1.bf16.msra.mxu0 0
    %1288 = vmatprep.subr.bf16.mxu0 0
    %1289 = vmatpush1.bf16.msra.mxu0 0
    %1290 = vmatprep.subr.bf16.mxu0 0
    %1291 = vmatpush1.bf16.msra.mxu0 0
    %1292 = vmatprep.subr.bf16.mxu0 0
    %1293 = vmatpush1.bf16.msra.mxu0 0
    %1294 = vmatprep.subr.bf16.mxu0 0
    %1295 = vmatpush1.bf16.msra.mxu0 %v1275
    %1296 = vmatprep.subr.bf16.mxu0 0
    %1297 = vmatpush1.bf16.msra.mxu0 %v1274
    %1298 = vmatprep.subr.bf16.mxu0 0
    %1299 = vmatpush2.bf16.msra.mxu0 0
    %1300 = vmatprep.subr.bf16.mxu0 0
    %1301 = vmatpush2.bf16.msra.mxu0 0
    %1302 = vmatprep.subr.bf16.mxu0 0
    %1303 = vmatpush2.bf16.msra.mxu0 0
    %1304 = vmatprep.subr.bf16.mxu0 0
    %1305 = vmatpush2.bf16.msra.mxu0 0
    %1306 = vmatprep.subr.bf16.mxu0 0
    %1307 = vmatpush2.bf16.msra.mxu0 0
    %1308 = vmatprep.subr.bf16.mxu0 0
    %1309 = vmatpush2.bf16.msra.mxu0 0
    %1310 = vmatprep.subr.bf16.mxu0 0
    %1311 = vmatpush2.bf16.msra.mxu0 0
    %1312 = vmatprep.subr.bf16.mxu0 0
    %1313 = vmatpush2.bf16.msra.mxu0 0
    %1314 = vmatprep.mubr.bf16.mxu0 0
    %1315 = vmatmul.mubr.bf16.gmra.mxu0 %v1280
    %v1316 = vpop.f32.mrf.mxu0
    %v1317 = vadd.f32 0.0, %v1316
    %v1318 = vpop.f32.mrf.mxu0
    %v1319 = vpop.f32.mrf.mxu0
    %v1320 = vpop.f32.mrf.mxu0
    %1321 = vdwg.mxu0
    %v1322 = vld [vmem:[%s5] sm:$0xff]
    %vm1323 = vcmask 64512
    %v1325 = vsel %vm1323, %v1322, 0
    %1327 = vmatprep.subr.mxu0 0.0
    %1328 = vmatpush1.msra.mxu0 0.0
    %1329 = vmatprep.subr.mxu0 0.0
    %1330 = vmatpush1.msra.mxu0 0.0
    %1331 = vmatprep.subr.mxu0 0.0
    %1332 = vmatpush1.msra.mxu0 0.0
    %1333 = vmatprep.subr.mxu0 0.0
    %1334 = vmatpush1.msra.mxu0 0.0
    %1335 = vmatprep.subr.mxu0 0.0
    %1336 = vmatpush1.msra.mxu0 0.0
    %1337 = vmatprep.subr.mxu0 0.0
    %1338 = vmatpush1.msra.mxu0 0.0
    %1339 = vmatprep.subr.mxu0 0.0
    %1340 = vmatpush1.msra.mxu0 0.0
    %1341 = vmatprep.subr.mxu0 0.0
    %1342 = vmatpush1.msra.mxu0 0.0
    %1343 = vmatprep.subr.mxu0 0.0
    %1344 = vmatpush1.msra.mxu0 0.0
    %1345 = vmatprep.subr.mxu0 0.0
    %1346 = vmatpush1.msra.mxu0 0.0
    %1347 = vmatprep.subr.mxu0 0.0
    %1348 = vmatpush1.msra.mxu0 0.0
    %1349 = vmatprep.subr.mxu0 0.0
    %1350 = vmatpush1.msra.mxu0 0.0
    %1351 = vmatprep.subr.mxu0 0.0
    %1352 = vmatpush1.msra.mxu0 0.0
    %1353 = vmatprep.subr.mxu0 0.0
    %1354 = vmatpush1.msra.mxu0 0.0
    %1355 = vmatprep.subr.mxu0 0.0
    %1356 = vmatpush1.msra.mxu0 0.0
    %1357 = vmatprep.subr.mxu0 0.0
    %v1358 = vand.u32 %v1317, 4294901760
    %1359 = vmatpush1.msra.mxu0 %v1358
    %1360 = vmatprep.subr.mxu0 0.0
    %1361 = vmatpush2.msra.mxu0 0.0
    %1362 = vmatprep.subr.mxu0 0.0
    %1363 = vmatpush2.msra.mxu0 0.0
    %1364 = vmatprep.subr.mxu0 0.0
    %1365 = vmatpush2.msra.mxu0 0.0
    %1366 = vmatprep.subr.mxu0 0.0
    %1367 = vmatpush2.msra.mxu0 0.0
    %1368 = vmatprep.subr.mxu0 0.0
    %1369 = vmatpush2.msra.mxu0 0.0
    %1370 = vmatprep.subr.mxu0 0.0
    %1371 = vmatpush2.msra.mxu0 0.0
    %1372 = vmatprep.subr.mxu0 0.0
    %1373 = vmatpush2.msra.mxu0 0.0
    %1374 = vmatprep.subr.mxu0 0.0
    %1375 = vmatpush2.msra.mxu0 0.0
    %1376 = vmatprep.subr.mxu0 0.0
    %1377 = vmatpush2.msra.mxu0 0.0
    %1378 = vmatprep.subr.mxu0 0.0
    %1379 = vmatpush2.msra.mxu0 0.0
    %1380 = vmatprep.subr.mxu0 0.0
    %1381 = vmatpush2.msra.mxu0 0.0
    %1382 = vmatprep.subr.mxu0 0.0
    %1383 = vmatpush2.msra.mxu0 0.0
    %1384 = vmatprep.subr.mxu0 0.0
    %1385 = vmatpush2.msra.mxu0 0.0
    %1386 = vmatprep.subr.mxu0 0.0
    %1387 = vmatpush2.msra.mxu0 0.0
    %1388 = vmatprep.subr.mxu0 0.0
    %1389 = vmatpush2.msra.mxu0 0.0
    %1390 = vmatprep.subr.mxu0 0.0
    %1391 = vmatpush2.msra.mxu0 0.0
    %1392 = vmatprep.mubr.f32.mxu0 0.0
    %v1393 = vand.u32 %v1325, 4294901760
    %v1394 = vsub.f32 %v1325, %v1393
    %v1395 = vand.u32 %v1394, 4294901760
    %v1396 = vsub.f32 %v1394, %v1395
    %v1397 = vand.u32 %v1396, 4294901760
    %1398 = vmatmul.mubr.f32.gmra.mxu0 %v1397
    %v1399 = vpop.f32.mrf.mxu0
    %v1400 = vadd.f32 0.0, %v1399
    %v1401 = vpop.f32.mrf.mxu0
    %1402 = vdwg.mxu0
    %1403 = vmatprep.subr.mxu0 0.0
    %1404 = vmatpush1.msra.mxu0 0.0
    %1405 = vmatprep.subr.mxu0 0.0
    %1406 = vmatpush1.msra.mxu0 0.0
    %1407 = vmatprep.subr.mxu0 0.0
    %1408 = vmatpush1.msra.mxu0 0.0
    %1409 = vmatprep.subr.mxu0 0.0
    %1410 = vmatpush1.msra.mxu0 0.0
    %1411 = vmatprep.subr.mxu0 0.0
    %1412 = vmatpush1.msra.mxu0 0.0
    %1413 = vmatprep.subr.mxu0 0.0
    %1414 = vmatpush1.msra.mxu0 0.0
    %1415 = vmatprep.subr.mxu0 0.0
    %1416 = vmatpush1.msra.mxu0 0.0
    %1417 = vmatprep.subr.mxu0 0.0
    %1418 = vmatpush1.msra.mxu0 0.0
    %1419 = vmatprep.subr.mxu0 0.0
    %1420 = vmatpush1.msra.mxu0 0.0
    %1421 = vmatprep.subr.mxu0 0.0
    %1422 = vmatpush1.msra.mxu0 0.0
    %1423 = vmatprep.subr.mxu0 0.0
    %1424 = vmatpush1.msra.mxu0 0.0
    %1425 = vmatprep.subr.mxu0 0.0
    %1426 = vmatpush1.msra.mxu0 0.0
    %1427 = vmatprep.subr.mxu0 0.0
    %1428 = vmatpush1.msra.mxu0 0.0
    %1429 = vmatprep.subr.mxu0 0.0
    %1430 = vmatpush1.msra.mxu0 0.0
    %1431 = vmatprep.subr.mxu0 0.0
    %1432 = vmatpush1.msra.mxu0 0.0
    %1433 = vmatprep.subr.mxu0 0.0
    %v1434 = vand.u32 %v1317, 4294901760
    %v1435 = vsub.f32 %v1317, %v1434
    %v1436 = vand.u32 %v1435, 4294901760
    %v1437 = vsub.f32 %v1435, %v1436
    %v1438 = vand.u32 %v1437, 4294901760
    %1439 = vmatpush1.msra.mxu0 %v1438
    %1440 = vmatprep.subr.mxu0 0.0
    %1441 = vmatpush2.msra.mxu0 0.0
    %1442 = vmatprep.subr.mxu0 0.0
    %1443 = vmatpush2.msra.mxu0 0.0
    %1444 = vmatprep.subr.mxu0 0.0
    %1445 = vmatpush2.msra.mxu0 0.0
    %1446 = vmatprep.subr.mxu0 0.0
    %1447 = vmatpush2.msra.mxu0 0.0
    %1448 = vmatprep.subr.mxu0 0.0
    %1449 = vmatpush2.msra.mxu0 0.0
    %1450 = vmatprep.subr.mxu0 0.0
    %1451 = vmatpush2.msra.mxu0 0.0
    %1452 = vmatprep.subr.mxu0 0.0
    %1453 = vmatpush2.msra.mxu0 0.0
    %1454 = vmatprep.subr.mxu0 0.0
    %1455 = vmatpush2.msra.mxu0 0.0
    %1456 = vmatprep.subr.mxu0 0.0
    %1457 = vmatpush2.msra.mxu0 0.0
    %1458 = vmatprep.subr.mxu0 0.0
    %1459 = vmatpush2.msra.mxu0 0.0
    %1460 = vmatprep.subr.mxu0 0.0
    %1461 = vmatpush2.msra.mxu0 0.0
    %1462 = vmatprep.subr.mxu0 0.0
    %1463 = vmatpush2.msra.mxu0 0.0
    %1464 = vmatprep.subr.mxu0 0.0
    %1465 = vmatpush2.msra.mxu0 0.0
    %1466 = vmatprep.subr.mxu0 0.0
    %1467 = vmatpush2.msra.mxu0 0.0
    %1468 = vmatprep.subr.mxu0 0.0
    %1469 = vmatpush2.msra.mxu0 0.0
    %1470 = vmatprep.subr.mxu0 0.0
    %1471 = vmatpush2.msra.mxu0 0.0
    %1472 = vmatprep.mubr.f32.mxu0 0.0
    %v1473 = vand.u32 %v1325, 4294901760
    %1474 = vmatmul.mubr.f32.gmra.mxu0 %v1473
    %v1475 = vpop.f32.mrf.mxu0
    %v1476 = vadd.f32 %v1400, %v1475
    %v1477 = vpop.f32.mrf.mxu0
    %1478 = vdwg.mxu0
    %1479 = vmatprep.subr.mxu0 0.0
    %1480 = vmatpush1.msra.mxu0 0.0
    %1481 = vmatprep.subr.mxu0 0.0
    %1482 = vmatpush1.msra.mxu0 0.0
    %1483 = vmatprep.subr.mxu0 0.0
    %1484 = vmatpush1.msra.mxu0 0.0
    %1485 = vmatprep.subr.mxu0 0.0
    %1486 = vmatpush1.msra.mxu0 0.0
    %1487 = vmatprep.subr.mxu0 0.0
    %1488 = vmatpush1.msra.mxu0 0.0
    %1489 = vmatprep.subr.mxu0 0.0
    %1490 = vmatpush1.msra.mxu0 0.0
    %1491 = vmatprep.subr.mxu0 0.0
    %1492 = vmatpush1.msra.mxu0 0.0
    %1493 = vmatprep.subr.mxu0 0.0
    %1494 = vmatpush1.msra.mxu0 0.0
    %1495 = vmatprep.subr.mxu0 0.0
    %1496 = vmatpush1.msra.mxu0 0.0
    %1497 = vmatprep.subr.mxu0 0.0
    %1498 = vmatpush1.msra.mxu0 0.0
    %1499 = vmatprep.subr.mxu0 0.0
    %1500 = vmatpush1.msra.mxu0 0.0
    %1501 = vmatprep.subr.mxu0 0.0
    %1502 = vmatpush1.msra.mxu0 0.0
    %1503 = vmatprep.subr.mxu0 0.0
    %1504 = vmatpush1.msra.mxu0 0.0
    %1505 = vmatprep.subr.mxu0 0.0
    %1506 = vmatpush1.msra.mxu0 0.0
    %1507 = vmatprep.subr.mxu0 0.0
    %1508 = vmatpush1.msra.mxu0 0.0
    %1509 = vmatprep.subr.mxu0 0.0
    %v1510 = vand.u32 %v1317, 4294901760
    %v1511 = vsub.f32 %v1317, %v1510
    %1512 = vmatpush1.msra.mxu0 %v1511
    %1513 = vmatprep.subr.mxu0 0.0
    %1514 = vmatpush2.msra.mxu0 0.0
    %1515 = vmatprep.subr.mxu0 0.0
    %1516 = vmatpush2.msra.mxu0 0.0
    %1517 = vmatprep.subr.mxu0 0.0
    %1518 = vmatpush2.msra.mxu0 0.0
    %1519 = vmatprep.subr.mxu0 0.0
    %1520 = vmatpush2.msra.mxu0 0.0
    %1521 = vmatprep.subr.mxu0 0.0
    %1522 = vmatpush2.msra.mxu0 0.0
    %1523 = vmatprep.subr.mxu0 0.0
    %1524 = vmatpush2.msra.mxu0 0.0
    %1525 = vmatprep.subr.mxu0 0.0
    %1526 = vmatpush2.msra.mxu0 0.0
    %1527 = vmatprep.subr.mxu0 0.0
    %1528 = vmatpush2.msra.mxu0 0.0
    %1529 = vmatprep.subr.mxu0 0.0
    %1530 = vmatpush2.msra.mxu0 0.0
    %1531 = vmatprep.subr.mxu0 0.0
    %1532 = vmatpush2.msra.mxu0 0.0
    %1533 = vmatprep.subr.mxu0 0.0
    %1534 = vmatpush2.msra.mxu0 0.0
    %1535 = vmatprep.subr.mxu0 0.0
    %1536 = vmatpush2.msra.mxu0 0.0
    %1537 = vmatprep.subr.mxu0 0.0
    %1538 = vmatpush2.msra.mxu0 0.0
    %1539 = vmatprep.subr.mxu0 0.0
    %1540 = vmatpush2.msra.mxu0 0.0
    %1541 = vmatprep.subr.mxu0 0.0
    %1542 = vmatpush2.msra.mxu0 0.0
    %1543 = vmatprep.subr.mxu0 0.0
    %1544 = vmatpush2.msra.mxu0 0.0
    %1545 = vmatprep.mubr.f32.mxu0 0.0
    %v1546 = vand.u32 %v1325, 4294901760
    %v1547 = vsub.f32 %v1325, %v1546
    %1548 = vmatmul.mubr.f32.gmra.mxu0 %v1547
    %v1549 = vpop.f32.mrf.mxu0
    %v1550 = vadd.f32 %v1476, %v1549
    %v1551 = vpop.f32.mrf.mxu0
    %1552 = vdwg.mxu0
    %1553 = vmatprep.subr.mxu0 0.0
    %1554 = vmatpush1.msra.mxu0 0.0
    %1555 = vmatprep.subr.mxu0 0.0
    %1556 = vmatpush1.msra.mxu0 0.0
    %1557 = vmatprep.subr.mxu0 0.0
    %1558 = vmatpush1.msra.mxu0 0.0
    %1559 = vmatprep.subr.mxu0 0.0
    %1560 = vmatpush1.msra.mxu0 0.0
    %1561 = vmatprep.subr.mxu0 0.0
    %1562 = vmatpush1.msra.mxu0 0.0
    %1563 = vmatprep.subr.mxu0 0.0
    %1564 = vmatpush1.msra.mxu0 0.0
    %1565 = vmatprep.subr.mxu0 0.0
    %1566 = vmatpush1.msra.mxu0 0.0
    %1567 = vmatprep.subr.mxu0 0.0
    %1568 = vmatpush1.msra.mxu0 0.0
    %1569 = vmatprep.subr.mxu0 0.0
    %1570 = vmatpush1.msra.mxu0 0.0
    %1571 = vmatprep.subr.mxu0 0.0
    %1572 = vmatpush1.msra.mxu0 0.0
    %1573 = vmatprep.subr.mxu0 0.0
    %1574 = vmatpush1.msra.mxu0 0.0
    %1575 = vmatprep.subr.mxu0 0.0
    %1576 = vmatpush1.msra.mxu0 0.0
    %1577 = vmatprep.subr.mxu0 0.0
    %1578 = vmatpush1.msra.mxu0 0.0
    %1579 = vmatprep.subr.mxu0 0.0
    %1580 = vmatpush1.msra.mxu0 0.0
    %1581 = vmatprep.subr.mxu0 0.0
    %1582 = vmatpush1.msra.mxu0 0.0
    %1583 = vmatprep.subr.mxu0 0.0
    %v1584 = vand.u32 %v1317, 4294901760
    %1585 = vmatpush1.msra.mxu0 %v1584
    %1586 = vmatprep.subr.mxu0 0.0
    %1587 = vmatpush2.msra.mxu0 0.0
    %1588 = vmatprep.subr.mxu0 0.0
    %1589 = vmatpush2.msra.mxu0 0.0
    %1590 = vmatprep.subr.mxu0 0.0
    %1591 = vmatpush2.msra.mxu0 0.0
    %1592 = vmatprep.subr.mxu0 0.0
    %1593 = vmatpush2.msra.mxu0 0.0
    %1594 = vmatprep.subr.mxu0 0.0
    %1595 = vmatpush2.msra.mxu0 0.0
    %1596 = vmatprep.subr.mxu0 0.0
    %1597 = vmatpush2.msra.mxu0 0.0
    %1598 = vmatprep.subr.mxu0 0.0
    %1599 = vmatpush2.msra.mxu0 0.0
    %1600 = vmatprep.subr.mxu0 0.0
    %1601 = vmatpush2.msra.mxu0 0.0
    %1602 = vmatprep.subr.mxu0 0.0
    %1603 = vmatpush2.msra.mxu0 0.0
    %1604 = vmatprep.subr.mxu0 0.0
    %1605 = vmatpush2.msra.mxu0 0.0
    %1606 = vmatprep.subr.mxu0 0.0
    %1607 = vmatpush2.msra.mxu0 0.0
    %1608 = vmatprep.subr.mxu0 0.0
    %1609 = vmatpush2.msra.mxu0 0.0
    %1610 = vmatprep.subr.mxu0 0.0
    %1611 = vmatpush2.msra.mxu0 0.0
    %1612 = vmatprep.subr.mxu0 0.0
    %1613 = vmatpush2.msra.mxu0 0.0
    %1614 = vmatprep.subr.mxu0 0.0
    %1615 = vmatpush2.msra.mxu0 0.0
    %1616 = vmatprep.subr.mxu0 0.0
    %1617 = vmatpush2.msra.mxu0 0.0
    %1618 = vmatprep.mubr.f32.mxu0 0.0
    %v1619 = vand.u32 %v1325, 4294901760
    %v1620 = vsub.f32 %v1325, %v1619
    %v1621 = vand.u32 %v1620, 4294901760
    %1622 = vmatmul.mubr.f32.gmra.mxu0 %v1621
    %v1623 = vpop.f32.mrf.mxu0
    %v1624 = vadd.f32 %v1550, %v1623
    %v1625 = vpop.f32.mrf.mxu0
    %1626 = vdwg.mxu0
    %1627 = vmatprep.subr.mxu0 0.0
    %1628 = vmatpush1.msra.mxu0 0.0
    %1629 = vmatprep.subr.mxu0 0.0
    %1630 = vmatpush1.msra.mxu0 0.0
    %1631 = vmatprep.subr.mxu0 0.0
    %1632 = vmatpush1.msra.mxu0 0.0
    %1633 = vmatprep.subr.mxu0 0.0
    %1634 = vmatpush1.msra.mxu0 0.0
    %1635 = vmatprep.subr.mxu0 0.0
    %1636 = vmatpush1.msra.mxu0 0.0
    %1637 = vmatprep.subr.mxu0 0.0
    %1638 = vmatpush1.msra.mxu0 0.0
    %1639 = vmatprep.subr.mxu0 0.0
    %1640 = vmatpush1.msra.mxu0 0.0
    %1641 = vmatprep.subr.mxu0 0.0
    %1642 = vmatpush1.msra.mxu0 0.0
    %1643 = vmatprep.subr.mxu0 0.0
    %1644 = vmatpush1.msra.mxu0 0.0
    %1645 = vmatprep.subr.mxu0 0.0
    %1646 = vmatpush1.msra.mxu0 0.0
    %1647 = vmatprep.subr.mxu0 0.0
    %1648 = vmatpush1.msra.mxu0 0.0
    %1649 = vmatprep.subr.mxu0 0.0
    %1650 = vmatpush1.msra.mxu0 0.0
    %1651 = vmatprep.subr.mxu0 0.0
    %1652 = vmatpush1.msra.mxu0 0.0
    %1653 = vmatprep.subr.mxu0 0.0
    %1654 = vmatpush1.msra.mxu0 0.0
    %1655 = vmatprep.subr.mxu0 0.0
    %1656 = vmatpush1.msra.mxu0 0.0
    %1657 = vmatprep.subr.mxu0 0.0
    %v1658 = vand.u32 %v1317, 4294901760
    %v1659 = vsub.f32 %v1317, %v1658
    %v1660 = vand.u32 %v1659, 4294901760
    %1661 = vmatpush1.msra.mxu0 %v1660
    %1662 = vmatprep.subr.mxu0 0.0
    %1663 = vmatpush2.msra.mxu0 0.0
    %1664 = vmatprep.subr.mxu0 0.0
    %1665 = vmatpush2.msra.mxu0 0.0
    %1666 = vmatprep.subr.mxu0 0.0
    %1667 = vmatpush2.msra.mxu0 0.0
    %1668 = vmatprep.subr.mxu0 0.0
    %1669 = vmatpush2.msra.mxu0 0.0
    %1670 = vmatprep.subr.mxu0 0.0
    %1671 = vmatpush2.msra.mxu0 0.0
    %1672 = vmatprep.subr.mxu0 0.0
    %1673 = vmatpush2.msra.mxu0 0.0
    %1674 = vmatprep.subr.mxu0 0.0
    %1675 = vmatpush2.msra.mxu0 0.0
    %1676 = vmatprep.subr.mxu0 0.0
    %1677 = vmatpush2.msra.mxu0 0.0
    %1678 = vmatprep.subr.mxu0 0.0
    %1679 = vmatpush2.msra.mxu0 0.0
    %1680 = vmatprep.subr.mxu0 0.0
    %1681 = vmatpush2.msra.mxu0 0.0
    %1682 = vmatprep.subr.mxu0 0.0
    %1683 = vmatpush2.msra.mxu0 0.0
    %1684 = vmatprep.subr.mxu0 0.0
    %1685 = vmatpush2.msra.mxu0 0.0
    %1686 = vmatprep.subr.mxu0 0.0
    %1687 = vmatpush2.msra.mxu0 0.0
    %1688 = vmatprep.subr.mxu0 0.0
    %1689 = vmatpush2.msra.mxu0 0.0
    %1690 = vmatprep.subr.mxu0 0.0
    %1691 = vmatpush2.msra.mxu0 0.0
    %1692 = vmatprep.subr.mxu0 0.0
    %1693 = vmatpush2.msra.mxu0 0.0
    %1694 = vmatprep.mubr.f32.mxu0 0.0
    %v1695 = vand.u32 %v1325, 4294901760
    %1696 = vmatmul.mubr.f32.gmra.mxu0 %v1695
    %v1697 = vpop.f32.mrf.mxu0
    %v1698 = vadd.f32 %v1624, %v1697
    %v1699 = vpop.f32.mrf.mxu0
    %1700 = vdwg.mxu0
    %1701 = vmatprep.subr.mxu0 0.0
    %1702 = vmatpush1.msra.mxu0 0.0
    %1703 = vmatprep.subr.mxu0 0.0
    %1704 = vmatpush1.msra.mxu0 0.0
    %1705 = vmatprep.subr.mxu0 0.0
    %1706 = vmatpush1.msra.mxu0 0.0
    %1707 = vmatprep.subr.mxu0 0.0
    %1708 = vmatpush1.msra.mxu0 0.0
    %1709 = vmatprep.subr.mxu0 0.0
    %1710 = vmatpush1.msra.mxu0 0.0
    %1711 = vmatprep.subr.mxu0 0.0
    %1712 = vmatpush1.msra.mxu0 0.0
    %1713 = vmatprep.subr.mxu0 0.0
    %1714 = vmatpush1.msra.mxu0 0.0
    %1715 = vmatprep.subr.mxu0 0.0
    %1716 = vmatpush1.msra.mxu0 0.0
    %1717 = vmatprep.subr.mxu0 0.0
    %1718 = vmatpush1.msra.mxu0 0.0
    %1719 = vmatprep.subr.mxu0 0.0
    %1720 = vmatpush1.msra.mxu0 0.0
    %1721 = vmatprep.subr.mxu0 0.0
    %1722 = vmatpush1.msra.mxu0 0.0
    %1723 = vmatprep.subr.mxu0 0.0
    %1724 = vmatpush1.msra.mxu0 0.0
    %1725 = vmatprep.subr.mxu0 0.0
    %1726 = vmatpush1.msra.mxu0 0.0
    %1727 = vmatprep.subr.mxu0 0.0
    %1728 = vmatpush1.msra.mxu0 0.0
    %1729 = vmatprep.subr.mxu0 0.0
    %1730 = vmatpush1.msra.mxu0 0.0
    %1731 = vmatprep.subr.mxu0 0.0
    %v1732 = vand.u32 %v1317, 4294901760
    %1733 = vmatpush1.msra.mxu0 %v1732
    %1734 = vmatprep.subr.mxu0 0.0
    %1735 = vmatpush2.msra.mxu0 0.0
    %1736 = vmatprep.subr.mxu0 0.0
    %1737 = vmatpush2.msra.mxu0 0.0
    %1738 = vmatprep.subr.mxu0 0.0
    %1739 = vmatpush2.msra.mxu0 0.0
    %1740 = vmatprep.subr.mxu0 0.0
    %1741 = vmatpush2.msra.mxu0 0.0
    %1742 = vmatprep.subr.mxu0 0.0
    %1743 = vmatpush2.msra.mxu0 0.0
    %1744 = vmatprep.subr.mxu0 0.0
    %1745 = vmatpush2.msra.mxu0 0.0
    %1746 = vmatprep.subr.mxu0 0.0
    %1747 = vmatpush2.msra.mxu0 0.0
    %1748 = vmatprep.subr.mxu0 0.0
    %1749 = vmatpush2.msra.mxu0 0.0
    %1750 = vmatprep.subr.mxu0 0.0
    %1751 = vmatpush2.msra.mxu0 0.0
    %1752 = vmatprep.subr.mxu0 0.0
    %1753 = vmatpush2.msra.mxu0 0.0
    %1754 = vmatprep.subr.mxu0 0.0
    %1755 = vmatpush2.msra.mxu0 0.0
    %1756 = vmatprep.subr.mxu0 0.0
    %1757 = vmatpush2.msra.mxu0 0.0
    %1758 = vmatprep.subr.mxu0 0.0
    %1759 = vmatpush2.msra.mxu0 0.0
    %1760 = vmatprep.subr.mxu0 0.0
    %1761 = vmatpush2.msra.mxu0 0.0
    %1762 = vmatprep.subr.mxu0 0.0
    %1763 = vmatpush2.msra.mxu0 0.0
    %1764 = vmatprep.subr.mxu0 0.0
    %1765 = vmatpush2.msra.mxu0 0.0
    %1766 = vmatprep.mubr.f32.mxu0 0.0
    %v1767 = vand.u32 %v1325, 4294901760
    %1768 = vmatmul.mubr.f32.gmra.mxu0 %v1767
    %v1769 = vpop.f32.mrf.mxu0
    %v1770 = vadd.f32 %v1698, %v1769
    %v1771 = vpop.f32.mrf.mxu0
    %1772 = vdwg.mxu0
    %v1773 = vadd.f32 %v1261, %v1770
    %s1774 = scalar_lea.vmem [#allocation11], 16
    %v1775 = vld [vmem:[%s1774] sm:$0xf]
    %v1776 = vld [vmem:[%s1774 + $0x4] sm:$0xf]
    %v1777 = vld [vmem:[%s1774 + $0x8] sm:$0xf]
    %v1778 = vld [vmem:[%s1774 + $0xc] sm:$0xf]
    %v1783 = vunpack.c.l.b16 %v1775
    %v1784 = vunpack.c.l.b16 %v1776
    %v1785 = vunpack.c.l.b16 %v1777
    %v1786 = vunpack.c.l.b16 %v1778
    %v1787 = vpack.c.b16 %v1784, %v1783
    %v1788 = vpack.c.b16 %v1786, %v1785
    %1791 = vmatprep.subr.bf16.mxu0 0
    %1792 = vmatpush1.bf16.msra.mxu0 0
    %1793 = vmatprep.subr.bf16.mxu0 0
    %1794 = vmatpush1.bf16.msra.mxu0 0
    %1795 = vmatprep.subr.bf16.mxu0 0
    %1796 = vmatpush1.bf16.msra.mxu0 0
    %1797 = vmatprep.subr.bf16.mxu0 0
    %1798 = vmatpush1.bf16.msra.mxu0 0
    %1799 = vmatprep.subr.bf16.mxu0 0
    %1800 = vmatpush1.bf16.msra.mxu0 0
    %1801 = vmatprep.subr.bf16.mxu0 0
    %1802 = vmatpush1.bf16.msra.mxu0 0
    %1803 = vmatprep.subr.bf16.mxu0 0
    %1804 = vmatpush1.bf16.msra.mxu0 %v1788
    %1805 = vmatprep.subr.bf16.mxu0 0
    %1806 = vmatpush1.bf16.msra.mxu0 %v1787
    %1807 = vmatprep.subr.bf16.mxu0 0
    %1808 = vmatpush2.bf16.msra.mxu0 0
    %1809 = vmatprep.subr.bf16.mxu0 0
    %1810 = vmatpush2.bf16.msra.mxu0 0
    %1811 = vmatprep.subr.bf16.mxu0 0
    %1812 = vmatpush2.bf16.msra.mxu0 0
    %1813 = vmatprep.subr.bf16.mxu0 0
    %1814 = vmatpush2.bf16.msra.mxu0 0
    %1815 = vmatprep.subr.bf16.mxu0 0
    %1816 = vmatpush2.bf16.msra.mxu0 0
    %1817 = vmatprep.subr.bf16.mxu0 0
    %1818 = vmatpush2.bf16.msra.mxu0 0
    %1819 = vmatprep.subr.bf16.mxu0 0
    %1820 = vmatpush2.bf16.msra.mxu0 0
    %1821 = vmatprep.subr.bf16.mxu0 0
    %1822 = vmatpush2.bf16.msra.mxu0 0
    %1823 = vmatprep.mubr.bf16.mxu0 0
    %1824 = vmatmul.mubr.bf16.gmra.mxu0 %v1280
    %v1825 = vpop.f32.mrf.mxu0
    %v1826 = vadd.f32 0.0, %v1825
    %v1827 = vpop.f32.mrf.mxu0
    %v1828 = vpop.f32.mrf.mxu0
    %v1829 = vpop.f32.mrf.mxu0
    %1830 = vdwg.mxu0
    %s1831 = scalar_lea.vmem %s5, 8
    %v1832 = vld [vmem:[%s1831] sm:$0xff]
    %v1834 = vsel %vm1323, %v1832, 0
    %1836 = vmatprep.subr.mxu0 0.0
    %1837 = vmatpush1.msra.mxu0 0.0
    %1838 = vmatprep.subr.mxu0 0.0
    %1839 = vmatpush1.msra.mxu0 0.0
    %1840 = vmatprep.subr.mxu0 0.0
    %1841 = vmatpush1.msra.mxu0 0.0
    %1842 = vmatprep.subr.mxu0 0.0
    %1843 = vmatpush1.msra.mxu0 0.0
    %1844 = vmatprep.subr.mxu0 0.0
    %1845 = vmatpush1.msra.mxu0 0.0
    %1846 = vmatprep.subr.mxu0 0.0
    %1847 = vmatpush1.msra.mxu0 0.0
    %1848 = vmatprep.subr.mxu0 0.0
    %1849 = vmatpush1.msra.mxu0 0.0
    %1850 = vmatprep.subr.mxu0 0.0
    %1851 = vmatpush1.msra.mxu0 0.0
    %1852 = vmatprep.subr.mxu0 0.0
    %1853 = vmatpush1.msra.mxu0 0.0
    %1854 = vmatprep.subr.mxu0 0.0
    %1855 = vmatpush1.msra.mxu0 0.0
    %1856 = vmatprep.subr.mxu0 0.0
    %1857 = vmatpush1.msra.mxu0 0.0
    %1858 = vmatprep.subr.mxu0 0.0
    %1859 = vmatpush1.msra.mxu0 0.0
    %1860 = vmatprep.subr.mxu0 0.0
    %1861 = vmatpush1.msra.mxu0 0.0
    %1862 = vmatprep.subr.mxu0 0.0
    %1863 = vmatpush1.msra.mxu0 0.0
    %1864 = vmatprep.subr.mxu0 0.0
    %1865 = vmatpush1.msra.mxu0 0.0
    %1866 = vmatprep.subr.mxu0 0.0
    %v1867 = vand.u32 %v1826, 4294901760
    %1868 = vmatpush1.msra.mxu0 %v1867
    %1869 = vmatprep.subr.mxu0 0.0
    %1870 = vmatpush2.msra.mxu0 0.0
    %1871 = vmatprep.subr.mxu0 0.0
    %1872 = vmatpush2.msra.mxu0 0.0
    %1873 = vmatprep.subr.mxu0 0.0
    %1874 = vmatpush2.msra.mxu0 0.0
    %1875 = vmatprep.subr.mxu0 0.0
    %1876 = vmatpush2.msra.mxu0 0.0
    %1877 = vmatprep.subr.mxu0 0.0
    %1878 = vmatpush2.msra.mxu0 0.0
    %1879 = vmatprep.subr.mxu0 0.0
    %1880 = vmatpush2.msra.mxu0 0.0
    %1881 = vmatprep.subr.mxu0 0.0
    %1882 = vmatpush2.msra.mxu0 0.0
    %1883 = vmatprep.subr.mxu0 0.0
    %1884 = vmatpush2.msra.mxu0 0.0
    %1885 = vmatprep.subr.mxu0 0.0
    %1886 = vmatpush2.msra.mxu0 0.0
    %1887 = vmatprep.subr.mxu0 0.0
    %1888 = vmatpush2.msra.mxu0 0.0
    %1889 = vmatprep.subr.mxu0 0.0
    %1890 = vmatpush2.msra.mxu0 0.0
    %1891 = vmatprep.subr.mxu0 0.0
    %1892 = vmatpush2.msra.mxu0 0.0
    %1893 = vmatprep.subr.mxu0 0.0
    %1894 = vmatpush2.msra.mxu0 0.0
    %1895 = vmatprep.subr.mxu0 0.0
    %1896 = vmatpush2.msra.mxu0 0.0
    %1897 = vmatprep.subr.mxu0 0.0
    %1898 = vmatpush2.msra.mxu0 0.0
    %1899 = vmatprep.subr.mxu0 0.0
    %1900 = vmatpush2.msra.mxu0 0.0
    %1901 = vmatprep.mubr.f32.mxu0 0.0
    %v1902 = vand.u32 %v1834, 4294901760
    %v1903 = vsub.f32 %v1834, %v1902
    %v1904 = vand.u32 %v1903, 4294901760
    %v1905 = vsub.f32 %v1903, %v1904
    %v1906 = vand.u32 %v1905, 4294901760
    %1907 = vmatmul.mubr.f32.gmra.mxu0 %v1906
    %v1908 = vpop.f32.mrf.mxu0
    %v1909 = vadd.f32 0.0, %v1908
    %v1910 = vpop.f32.mrf.mxu0
    %1911 = vdwg.mxu0
    %1912 = vmatprep.subr.mxu0 0.0
    %1913 = vmatpush1.msra.mxu0 0.0
    %1914 = vmatprep.subr.mxu0 0.0
    %1915 = vmatpush1.msra.mxu0 0.0
    %1916 = vmatprep.subr.mxu0 0.0
    %1917 = vmatpush1.msra.mxu0 0.0
    %1918 = vmatprep.subr.mxu0 0.0
    %1919 = vmatpush1.msra.mxu0 0.0
    %1920 = vmatprep.subr.mxu0 0.0
    %1921 = vmatpush1.msra.mxu0 0.0
    %1922 = vmatprep.subr.mxu0 0.0
    %1923 = vmatpush1.msra.mxu0 0.0
    %1924 = vmatprep.subr.mxu0 0.0
    %1925 = vmatpush1.msra.mxu0 0.0
    %1926 = vmatprep.subr.mxu0 0.0
    %1927 = vmatpush1.msra.mxu0 0.0
    %1928 = vmatprep.subr.mxu0 0.0
    %1929 = vmatpush1.msra.mxu0 0.0
    %1930 = vmatprep.subr.mxu0 0.0
    %1931 = vmatpush1.msra.mxu0 0.0
    %1932 = vmatprep.subr.mxu0 0.0
    %1933 = vmatpush1.msra.mxu0 0.0
    %1934 = vmatprep.subr.mxu0 0.0
    %1935 = vmatpush1.msra.mxu0 0.0
    %1936 = vmatprep.subr.mxu0 0.0
    %1937 = vmatpush1.msra.mxu0 0.0
    %1938 = vmatprep.subr.mxu0 0.0
    %1939 = vmatpush1.msra.mxu0 0.0
    %1940 = vmatprep.subr.mxu0 0.0
    %1941 = vmatpush1.msra.mxu0 0.0
    %1942 = vmatprep.subr.mxu0 0.0
    %v1943 = vand.u32 %v1826, 4294901760
    %v1944 = vsub.f32 %v1826, %v1943
    %v1945 = vand.u32 %v1944, 4294901760
    %v1946 = vsub.f32 %v1944, %v1945
    %v1947 = vand.u32 %v1946, 4294901760
    %1948 = vmatpush1.msra.mxu0 %v1947
    %1949 = vmatprep.subr.mxu0 0.0
    %1950 = vmatpush2.msra.mxu0 0.0
    %1951 = vmatprep.subr.mxu0 0.0
    %1952 = vmatpush2.msra.mxu0 0.0
    %1953 = vmatprep.subr.mxu0 0.0
    %1954 = vmatpush2.msra.mxu0 0.0
    %1955 = vmatprep.subr.mxu0 0.0
    %1956 = vmatpush2.msra.mxu0 0.0
    %1957 = vmatprep.subr.mxu0 0.0
    %1958 = vmatpush2.msra.mxu0 0.0
    %1959 = vmatprep.subr.mxu0 0.0
    %1960 = vmatpush2.msra.mxu0 0.0
    %1961 = vmatprep.subr.mxu0 0.0
    %1962 = vmatpush2.msra.mxu0 0.0
    %1963 = vmatprep.subr.mxu0 0.0
    %1964 = vmatpush2.msra.mxu0 0.0
    %1965 = vmatprep.subr.mxu0 0.0
    %1966 = vmatpush2.msra.mxu0 0.0
    %1967 = vmatprep.subr.mxu0 0.0
    %1968 = vmatpush2.msra.mxu0 0.0
    %1969 = vmatprep.subr.mxu0 0.0
    %1970 = vmatpush2.msra.mxu0 0.0
    %1971 = vmatprep.subr.mxu0 0.0
    %1972 = vmatpush2.msra.mxu0 0.0
    %1973 = vmatprep.subr.mxu0 0.0
    %1974 = vmatpush2.msra.mxu0 0.0
    %1975 = vmatprep.subr.mxu0 0.0
    %1976 = vmatpush2.msra.mxu0 0.0
    %1977 = vmatprep.subr.mxu0 0.0
    %1978 = vmatpush2.msra.mxu0 0.0
    %1979 = vmatprep.subr.mxu0 0.0
    %1980 = vmatpush2.msra.mxu0 0.0
    %1981 = vmatprep.mubr.f32.mxu0 0.0
    %v1982 = vand.u32 %v1834, 4294901760
    %1983 = vmatmul.mubr.f32.gmra.mxu0 %v1982
    %v1984 = vpop.f32.mrf.mxu0
    %v1985 = vadd.f32 %v1909, %v1984
    %v1986 = vpop.f32.mrf.mxu0
    %1987 = vdwg.mxu0
    %1988 = vmatprep.subr.mxu0 0.0
    %1989 = vmatpush1.msra.mxu0 0.0
    %1990 = vmatprep.subr.mxu0 0.0
    %1991 = vmatpush1.msra.mxu0 0.0
    %1992 = vmatprep.subr.mxu0 0.0
    %1993 = vmatpush1.msra.mxu0 0.0
    %1994 = vmatprep.subr.mxu0 0.0
    %1995 = vmatpush1.msra.mxu0 0.0
    %1996 = vmatprep.subr.mxu0 0.0
    %1997 = vmatpush1.msra.mxu0 0.0
    %1998 = vmatprep.subr.mxu0 0.0
    %1999 = vmatpush1.msra.mxu0 0.0
    %2000 = vmatprep.subr.mxu0 0.0
    %2001 = vmatpush1.msra.mxu0 0.0
    %2002 = vmatprep.subr.mxu0 0.0
    %2003 = vmatpush1.msra.mxu0 0.0
    %2004 = vmatprep.subr.mxu0 0.0
    %2005 = vmatpush1.msra.mxu0 0.0
    %2006 = vmatprep.subr.mxu0 0.0
    %2007 = vmatpush1.msra.mxu0 0.0
    %2008 = vmatprep.subr.mxu0 0.0
    %2009 = vmatpush1.msra.mxu0 0.0
    %2010 = vmatprep.subr.mxu0 0.0
    %2011 = vmatpush1.msra.mxu0 0.0
    %2012 = vmatprep.subr.mxu0 0.0
    %2013 = vmatpush1.msra.mxu0 0.0
    %2014 = vmatprep.subr.mxu0 0.0
    %2015 = vmatpush1.msra.mxu0 0.0
    %2016 = vmatprep.subr.mxu0 0.0
    %2017 = vmatpush1.msra.mxu0 0.0
    %2018 = vmatprep.subr.mxu0 0.0
    %v2019 = vand.u32 %v1826, 4294901760
    %v2020 = vsub.f32 %v1826, %v2019
    %2021 = vmatpush1.msra.mxu0 %v2020
    %2022 = vmatprep.subr.mxu0 0.0
    %2023 = vmatpush2.msra.mxu0 0.0
    %2024 = vmatprep.subr.mxu0 0.0
    %2025 = vmatpush2.msra.mxu0 0.0
    %2026 = vmatprep.subr.mxu0 0.0
    %2027 = vmatpush2.msra.mxu0 0.0
    %2028 = vmatprep.subr.mxu0 0.0
    %2029 = vmatpush2.msra.mxu0 0.0
    %2030 = vmatprep.subr.mxu0 0.0
    %2031 = vmatpush2.msra.mxu0 0.0
    %2032 = vmatprep.subr.mxu0 0.0
    %2033 = vmatpush2.msra.mxu0 0.0
    %2034 = vmatprep.subr.mxu0 0.0
    %2035 = vmatpush2.msra.mxu0 0.0
    %2036 = vmatprep.subr.mxu0 0.0
    %2037 = vmatpush2.msra.mxu0 0.0
    %2038 = vmatprep.subr.mxu0 0.0
    %2039 = vmatpush2.msra.mxu0 0.0
    %2040 = vmatprep.subr.mxu0 0.0
    %2041 = vmatpush2.msra.mxu0 0.0
    %2042 = vmatprep.subr.mxu0 0.0
    %2043 = vmatpush2.msra.mxu0 0.0
    %2044 = vmatprep.subr.mxu0 0.0
    %2045 = vmatpush2.msra.mxu0 0.0
    %2046 = vmatprep.subr.mxu0 0.0
    %2047 = vmatpush2.msra.mxu0 0.0
    %2048 = vmatprep.subr.mxu0 0.0
    %2049 = vmatpush2.msra.mxu0 0.0
    %2050 = vmatprep.subr.mxu0 0.0
    %2051 = vmatpush2.msra.mxu0 0.0
    %2052 = vmatprep.subr.mxu0 0.0
    %2053 = vmatpush2.msra.mxu0 0.0
    %2054 = vmatprep.mubr.f32.mxu0 0.0
    %v2055 = vand.u32 %v1834, 4294901760
    %v2056 = vsub.f32 %v1834, %v2055
    %2057 = vmatmul.mubr.f32.gmra.mxu0 %v2056
    %v2058 = vpop.f32.mrf.mxu0
    %v2059 = vadd.f32 %v1985, %v2058
    %v2060 = vpop.f32.mrf.mxu0
    %2061 = vdwg.mxu0
    %2062 = vmatprep.subr.mxu0 0.0
    %2063 = vmatpush1.msra.mxu0 0.0
    %2064 = vmatprep.subr.mxu0 0.0
    %2065 = vmatpush1.msra.mxu0 0.0
    %2066 = vmatprep.subr.mxu0 0.0
    %2067 = vmatpush1.msra.mxu0 0.0
    %2068 = vmatprep.subr.mxu0 0.0
    %2069 = vmatpush1.msra.mxu0 0.0
    %2070 = vmatprep.subr.mxu0 0.0
    %2071 = vmatpush1.msra.mxu0 0.0
    %2072 = vmatprep.subr.mxu0 0.0
    %2073 = vmatpush1.msra.mxu0 0.0
    %2074 = vmatprep.subr.mxu0 0.0
    %2075 = vmatpush1.msra.mxu0 0.0
    %2076 = vmatprep.subr.mxu0 0.0
    %2077 = vmatpush1.msra.mxu0 0.0
    %2078 = vmatprep.subr.mxu0 0.0
    %2079 = vmatpush1.msra.mxu0 0.0
    %2080 = vmatprep.subr.mxu0 0.0
    %2081 = vmatpush1.msra.mxu0 0.0
    %2082 = vmatprep.subr.mxu0 0.0
    %2083 = vmatpush1.msra.mxu0 0.0
    %2084 = vmatprep.subr.mxu0 0.0
    %2085 = vmatpush1.msra.mxu0 0.0
    %2086 = vmatprep.subr.mxu0 0.0
    %2087 = vmatpush1.msra.mxu0 0.0
    %2088 = vmatprep.subr.mxu0 0.0
    %2089 = vmatpush1.msra.mxu0 0.0
    %2090 = vmatprep.subr.mxu0 0.0
    %2091 = vmatpush1.msra.mxu0 0.0
    %2092 = vmatprep.subr.mxu0 0.0
    %v2093 = vand.u32 %v1826, 4294901760
    %2094 = vmatpush1.msra.mxu0 %v2093
    %2095 = vmatprep.subr.mxu0 0.0
    %2096 = vmatpush2.msra.mxu0 0.0
    %2097 = vmatprep.subr.mxu0 0.0
    %2098 = vmatpush2.msra.mxu0 0.0
    %2099 = vmatprep.subr.mxu0 0.0
    %2100 = vmatpush2.msra.mxu0 0.0
    %2101 = vmatprep.subr.mxu0 0.0
    %2102 = vmatpush2.msra.mxu0 0.0
    %2103 = vmatprep.subr.mxu0 0.0
    %2104 = vmatpush2.msra.mxu0 0.0
    %2105 = vmatprep.subr.mxu0 0.0
    %2106 = vmatpush2.msra.mxu0 0.0
    %2107 = vmatprep.subr.mxu0 0.0
    %2108 = vmatpush2.msra.mxu0 0.0
    %2109 = vmatprep.subr.mxu0 0.0
    %2110 = vmatpush2.msra.mxu0 0.0
    %2111 = vmatprep.subr.mxu0 0.0
    %2112 = vmatpush2.msra.mxu0 0.0
    %2113 = vmatprep.subr.mxu0 0.0
    %2114 = vmatpush2.msra.mxu0 0.0
    %2115 = vmatprep.subr.mxu0 0.0
    %2116 = vmatpush2.msra.mxu0 0.0
    %2117 = vmatprep.subr.mxu0 0.0
    %2118 = vmatpush2.msra.mxu0 0.0
    %2119 = vmatprep.subr.mxu0 0.0
    %2120 = vmatpush2.msra.mxu0 0.0
    %2121 = vmatprep.subr.mxu0 0.0
    %2122 = vmatpush2.msra.mxu0 0.0
    %2123 = vmatprep.subr.mxu0 0.0
    %2124 = vmatpush2.msra.mxu0 0.0
    %2125 = vmatprep.subr.mxu0 0.0
    %2126 = vmatpush2.msra.mxu0 0.0
    %2127 = vmatprep.mubr.f32.mxu0 0.0
    %v2128 = vand.u32 %v1834, 4294901760
    %v2129 = vsub.f32 %v1834, %v2128
    %v2130 = vand.u32 %v2129, 4294901760
    %2131 = vmatmul.mubr.f32.gmra.mxu0 %v2130
    %v2132 = vpop.f32.mrf.mxu0
    %v2133 = vadd.f32 %v2059, %v2132
    %v2134 = vpop.f32.mrf.mxu0
    %2135 = vdwg.mxu0
    %2136 = vmatprep.subr.mxu0 0.0
    %2137 = vmatpush1.msra.mxu0 0.0
    %2138 = vmatprep.subr.mxu0 0.0
    %2139 = vmatpush1.msra.mxu0 0.0
    %2140 = vmatprep.subr.mxu0 0.0
    %2141 = vmatpush1.msra.mxu0 0.0
    %2142 = vmatprep.subr.mxu0 0.0
    %2143 = vmatpush1.msra.mxu0 0.0
    %2144 = vmatprep.subr.mxu0 0.0
    %2145 = vmatpush1.msra.mxu0 0.0
    %2146 = vmatprep.subr.mxu0 0.0
    %2147 = vmatpush1.msra.mxu0 0.0
    %2148 = vmatprep.subr.mxu0 0.0
    %2149 = vmatpush1.msra.mxu0 0.0
    %2150 = vmatprep.subr.mxu0 0.0
    %2151 = vmatpush1.msra.mxu0 0.0
    %2152 = vmatprep.subr.mxu0 0.0
    %2153 = vmatpush1.msra.mxu0 0.0
    %2154 = vmatprep.subr.mxu0 0.0
    %2155 = vmatpush1.msra.mxu0 0.0
    %2156 = vmatprep.subr.mxu0 0.0
    %2157 = vmatpush1.msra.mxu0 0.0
    %2158 = vmatprep.subr.mxu0 0.0
    %2159 = vmatpush1.msra.mxu0 0.0
    %2160 = vmatprep.subr.mxu0 0.0
    %2161 = vmatpush1.msra.mxu0 0.0
    %2162 = vmatprep.subr.mxu0 0.0
    %2163 = vmatpush1.msra.mxu0 0.0
    %2164 = vmatprep.subr.mxu0 0.0
    %2165 = vmatpush1.msra.mxu0 0.0
    %2166 = vmatprep.subr.mxu0 0.0
    %v2167 = vand.u32 %v1826, 4294901760
    %v2168 = vsub.f32 %v1826, %v2167
    %v2169 = vand.u32 %v2168, 4294901760
    %2170 = vmatpush1.msra.mxu0 %v2169
    %2171 = vmatprep.subr.mxu0 0.0
    %2172 = vmatpush2.msra.mxu0 0.0
    %2173 = vmatprep.subr.mxu0 0.0
    %2174 = vmatpush2.msra.mxu0 0.0
    %2175 = vmatprep.subr.mxu0 0.0
    %2176 = vmatpush2.msra.mxu0 0.0
    %2177 = vmatprep.subr.mxu0 0.0
    %2178 = vmatpush2.msra.mxu0 0.0
    %2179 = vmatprep.subr.mxu0 0.0
    %2180 = vmatpush2.msra.mxu0 0.0
    %2181 = vmatprep.subr.mxu0 0.0
    %2182 = vmatpush2.msra.mxu0 0.0
    %2183 = vmatprep.subr.mxu0 0.0
    %2184 = vmatpush2.msra.mxu0 0.0
    %2185 = vmatprep.subr.mxu0 0.0
    %2186 = vmatpush2.msra.mxu0 0.0
    %2187 = vmatprep.subr.mxu0 0.0
    %2188 = vmatpush2.msra.mxu0 0.0
    %2189 = vmatprep.subr.mxu0 0.0
    %2190 = vmatpush2.msra.mxu0 0.0
    %2191 = vmatprep.subr.mxu0 0.0
    %2192 = vmatpush2.msra.mxu0 0.0
    %2193 = vmatprep.subr.mxu0 0.0
    %2194 = vmatpush2.msra.mxu0 0.0
    %2195 = vmatprep.subr.mxu0 0.0
    %2196 = vmatpush2.msra.mxu0 0.0
    %2197 = vmatprep.subr.mxu0 0.0
    %2198 = vmatpush2.msra.mxu0 0.0
    %2199 = vmatprep.subr.mxu0 0.0
    %2200 = vmatpush2.msra.mxu0 0.0
    %2201 = vmatprep.subr.mxu0 0.0
    %2202 = vmatpush2.msra.mxu0 0.0
    %2203 = vmatprep.mubr.f32.mxu0 0.0
    %v2204 = vand.u32 %v1834, 4294901760
    %2205 = vmatmul.mubr.f32.gmra.mxu0 %v2204
    %v2206 = vpop.f32.mrf.mxu0
    %v2207 = vadd.f32 %v2133, %v2206
    %v2208 = vpop.f32.mrf.mxu0
    %2209 = vdwg.mxu0
    %2210 = vmatprep.subr.mxu0 0.0
    %2211 = vmatpush1.msra.mxu0 0.0
    %2212 = vmatprep.subr.mxu0 0.0
    %2213 = vmatpush1.msra.mxu0 0.0
    %2214 = vmatprep.subr.mxu0 0.0
    %2215 = vmatpush1.msra.mxu0 0.0
    %2216 = vmatprep.subr.mxu0 0.0
    %2217 = vmatpush1.msra.mxu0 0.0
    %2218 = vmatprep.subr.mxu0 0.0
    %2219 = vmatpush1.msra.mxu0 0.0
    %2220 = vmatprep.subr.mxu0 0.0
    %2221 = vmatpush1.msra.mxu0 0.0
    %2222 = vmatprep.subr.mxu0 0.0
    %2223 = vmatpush1.msra.mxu0 0.0
    %2224 = vmatprep.subr.mxu0 0.0
    %2225 = vmatpush1.msra.mxu0 0.0
    %2226 = vmatprep.subr.mxu0 0.0
    %2227 = vmatpush1.msra.mxu0 0.0
    %2228 = vmatprep.subr.mxu0 0.0
    %2229 = vmatpush1.msra.mxu0 0.0
    %2230 = vmatprep.subr.mxu0 0.0
    %2231 = vmatpush1.msra.mxu0 0.0
    %2232 = vmatprep.subr.mxu0 0.0
    %2233 = vmatpush1.msra.mxu0 0.0
    %2234 = vmatprep.subr.mxu0 0.0
    %2235 = vmatpush1.msra.mxu0 0.0
    %2236 = vmatprep.subr.mxu0 0.0
    %2237 = vmatpush1.msra.mxu0 0.0
    %2238 = vmatprep.subr.mxu0 0.0
    %2239 = vmatpush1.msra.mxu0 0.0
    %2240 = vmatprep.subr.mxu0 0.0
    %v2241 = vand.u32 %v1826, 4294901760
    %2242 = vmatpush1.msra.mxu0 %v2241
    %2243 = vmatprep.subr.mxu0 0.0
    %2244 = vmatpush2.msra.mxu0 0.0
    %2245 = vmatprep.subr.mxu0 0.0
    %2246 = vmatpush2.msra.mxu0 0.0
    %2247 = vmatprep.subr.mxu0 0.0
    %2248 = vmatpush2.msra.mxu0 0.0
    %2249 = vmatprep.subr.mxu0 0.0
    %2250 = vmatpush2.msra.mxu0 0.0
    %2251 = vmatprep.subr.mxu0 0.0
    %2252 = vmatpush2.msra.mxu0 0.0
    %2253 = vmatprep.subr.mxu0 0.0
    %2254 = vmatpush2.msra.mxu0 0.0
    %2255 = vmatprep.subr.mxu0 0.0
    %2256 = vmatpush2.msra.mxu0 0.0
    %2257 = vmatprep.subr.mxu0 0.0
    %2258 = vmatpush2.msra.mxu0 0.0
    %2259 = vmatprep.subr.mxu0 0.0
    %2260 = vmatpush2.msra.mxu0 0.0
    %2261 = vmatprep.subr.mxu0 0.0
    %2262 = vmatpush2.msra.mxu0 0.0
    %2263 = vmatprep.subr.mxu0 0.0
    %2264 = vmatpush2.msra.mxu0 0.0
    %2265 = vmatprep.subr.mxu0 0.0
    %2266 = vmatpush2.msra.mxu0 0.0
    %2267 = vmatprep.subr.mxu0 0.0
    %2268 = vmatpush2.msra.mxu0 0.0
    %2269 = vmatprep.subr.mxu0 0.0
    %2270 = vmatpush2.msra.mxu0 0.0
    %2271 = vmatprep.subr.mxu0 0.0
    %2272 = vmatpush2.msra.mxu0 0.0
    %2273 = vmatprep.subr.mxu0 0.0
    %2274 = vmatpush2.msra.mxu0 0.0
    %2275 = vmatprep.mubr.f32.mxu0 0.0
    %v2276 = vand.u32 %v1834, 4294901760
    %2277 = vmatmul.mubr.f32.gmra.mxu0 %v2276
    %v2278 = vpop.f32.mrf.mxu0
    %v2279 = vadd.f32 %v2207, %v2278
    %v2280 = vpop.f32.mrf.mxu0
    %2281 = vdwg.mxu0
    %v2282 = vadd.f32 %v1773, %v2279
    %s2283 = scalar_lea.vmem [#allocation11], 32
    %v2284 = vld [vmem:[%s2283] sm:$0xf]
    %v2285 = vld [vmem:[%s2283 + $0x4] sm:$0xf]
    %v2286 = vld [vmem:[%s2283 + $0x8] sm:$0xf]
    %v2287 = vld [vmem:[%s2283 + $0xc] sm:$0xf]
    %v2292 = vunpack.c.l.b16 %v2284
    %v2293 = vunpack.c.l.b16 %v2285
    %v2294 = vunpack.c.l.b16 %v2286
    %v2295 = vunpack.c.l.b16 %v2287
    %v2296 = vpack.c.b16 %v2293, %v2292
    %v2297 = vpack.c.b16 %v2295, %v2294
    %2300 = vmatprep.subr.bf16.mxu0 0
    %2301 = vmatpush1.bf16.msra.mxu0 0
    %2302 = vmatprep.subr.bf16.mxu0 0
    %2303 = vmatpush1.bf16.msra.mxu0 0
    %2304 = vmatprep.subr.bf16.mxu0 0
    %2305 = vmatpush1.bf16.msra.mxu0 0
    %2306 = vmatprep.subr.bf16.mxu0 0
    %2307 = vmatpush1.bf16.msra.mxu0 0
    %2308 = vmatprep.subr.bf16.mxu0 0
    %2309 = vmatpush1.bf16.msra.mxu0 0
    %2310 = vmatprep.subr.bf16.mxu0 0
    %2311 = vmatpush1.bf16.msra.mxu0 0
    %2312 = vmatprep.subr.bf16.mxu0 0
    %2313 = vmatpush1.bf16.msra.mxu0 %v2297
    %2314 = vmatprep.subr.bf16.mxu0 0
    %2315 = vmatpush1.bf16.msra.mxu0 %v2296
    %2316 = vmatprep.subr.bf16.mxu0 0
    %2317 = vmatpush2.bf16.msra.mxu0 0
    %2318 = vmatprep.subr.bf16.mxu0 0
    %2319 = vmatpush2.bf16.msra.mxu0 0
    %2320 = vmatprep.subr.bf16.mxu0 0
    %2321 = vmatpush2.bf16.msra.mxu0 0
    %2322 = vmatprep.subr.bf16.mxu0 0
    %2323 = vmatpush2.bf16.msra.mxu0 0
    %2324 = vmatprep.subr.bf16.mxu0 0
    %2325 = vmatpush2.bf16.msra.mxu0 0
    %2326 = vmatprep.subr.bf16.mxu0 0
    %2327 = vmatpush2.bf16.msra.mxu0 0
    %2328 = vmatprep.subr.bf16.mxu0 0
    %2329 = vmatpush2.bf16.msra.mxu0 0
    %2330 = vmatprep.subr.bf16.mxu0 0
    %2331 = vmatpush2.bf16.msra.mxu0 0
    %2332 = vmatprep.mubr.bf16.mxu0 0
    %2333 = vmatmul.mubr.bf16.gmra.mxu0 %v1280
    %v2334 = vpop.f32.mrf.mxu0
    %v2335 = vadd.f32 0.0, %v2334
    %v2336 = vpop.f32.mrf.mxu0
    %v2337 = vpop.f32.mrf.mxu0
    %v2338 = vpop.f32.mrf.mxu0
    %2339 = vdwg.mxu0
    %v2340 = vadd.f32 %v2282, %v2335
    %v2341 = vmul.f32 %v2340, 0.2
    %v2342 = vmax.f32 %v2340, %v2341
    %v2343 = vpack.c.bf16 %v2342, %v2342
    %v2344 = vld [vmem:[#allocation16] sm:$0xf]
    %v2345 = vld [vmem:[%s9] sm:$0xf]
    %v2346 = vld [vmem:[%s9 + $0x4] sm:$0xf]
    %v2347 = vld [vmem:[%s9 + $0x8] sm:$0xf]
    %v2348 = vld [vmem:[%s9 + $0xc] sm:$0xf]
    %v2349 = vld [vmem:[%s9 + $0x10] sm:$0xf]
    %v2350 = vld [vmem:[%s9 + $0x14] sm:$0xf]
    %v2351 = vld [vmem:[%s9 + $0x18] sm:$0xf]
    %v2352 = vld [vmem:[%s9 + $0x1c] sm:$0xf]
    %v2361 = vunpack.c.l.b16 %v2345
    %v2362 = vunpack.c.l.b16 %v2346
    %v2363 = vunpack.c.l.b16 %v2347
    %v2364 = vunpack.c.l.b16 %v2348
    %v2365 = vunpack.c.l.b16 %v2349
    %v2366 = vunpack.c.l.b16 %v2350
    %v2367 = vunpack.c.l.b16 %v2351
    %v2368 = vunpack.c.l.b16 %v2352
    %v2369 = vpack.c.b16 %v2362, %v2361
    %v2370 = vpack.c.b16 %v2364, %v2363
    %v2371 = vpack.c.b16 %v2366, %v2365
    %v2372 = vpack.c.b16 %v2368, %v2367
    %vm2377 = vcmask 523264
    %v2379 = vsel %vm2377, %v2343, 0
    %2381 = vmatprep.subr.bf16.mxu0 0
    %2382 = vmatpush1.bf16.msra.mxu0 0
    %2383 = vmatprep.subr.bf16.mxu0 0
    %2384 = vmatpush1.bf16.msra.mxu0 0
    %2385 = vmatprep.subr.bf16.mxu0 0
    %2386 = vmatpush1.bf16.msra.mxu0 0
    %2387 = vmatprep.subr.bf16.mxu0 0
    %2388 = vmatpush1.bf16.msra.mxu0 0
    %2389 = vmatprep.subr.bf16.mxu0 0
    %2390 = vmatpush1.bf16.msra.mxu0 %v2372
    %2391 = vmatprep.subr.bf16.mxu0 0
    %2392 = vmatpush1.bf16.msra.mxu0 %v2371
    %2393 = vmatprep.subr.bf16.mxu0 0
    %2394 = vmatpush1.bf16.msra.mxu0 %v2370
    %2395 = vmatprep.subr.bf16.mxu0 0
    %2396 = vmatpush1.bf16.msra.mxu0 %v2369
    %2397 = vmatprep.subr.bf16.mxu0 0
    %2398 = vmatpush2.bf16.msra.mxu0 0
    %2399 = vmatprep.subr.bf16.mxu0 0
    %2400 = vmatpush2.bf16.msra.mxu0 0
    %2401 = vmatprep.subr.bf16.mxu0 0
    %2402 = vmatpush2.bf16.msra.mxu0 0
    %2403 = vmatprep.subr.bf16.mxu0 0
    %2404 = vmatpush2.bf16.msra.mxu0 0
    %2405 = vmatprep.subr.bf16.mxu0 0
    %2406 = vmatpush2.bf16.msra.mxu0 0
    %2407 = vmatprep.subr.bf16.mxu0 0
    %2408 = vmatpush2.bf16.msra.mxu0 0
    %2409 = vmatprep.subr.bf16.mxu0 0
    %2410 = vmatpush2.bf16.msra.mxu0 0
    %2411 = vmatprep.subr.bf16.mxu0 0
    %2412 = vmatpush2.bf16.msra.mxu0 0
    %2413 = vmatprep.mubr.bf16.mxu0 0
    %2414 = vmatmul.mubr.bf16.gmra.mxu0 %v2379
    %v2415 = vpop.f32.mrf.mxu0
    %v2416 = vadd.f32 0.0, %v2415
    %v2417 = vpop.f32.mrf.mxu0
    %v2418 = vpop.f32.mrf.mxu0
    %v2419 = vpop.f32.mrf.mxu0
    %2420 = vdwg.mxu0
    %v2421 = vld [vmem:[#allocation14] sm:$0xf]
    %v2423 = vsel %vm1323, %v2421, 0
    %2425 = vmatprep.subr.mxu0 0.0
    %2426 = vmatpush1.msra.mxu0 0.0
    %2427 = vmatprep.subr.mxu0 0.0
    %2428 = vmatpush1.msra.mxu0 0.0
    %2429 = vmatprep.subr.mxu0 0.0
    %2430 = vmatpush1.msra.mxu0 0.0
    %2431 = vmatprep.subr.mxu0 0.0
    %2432 = vmatpush1.msra.mxu0 0.0
    %2433 = vmatprep.subr.mxu0 0.0
    %2434 = vmatpush1.msra.mxu0 0.0
    %2435 = vmatprep.subr.mxu0 0.0
    %2436 = vmatpush1.msra.mxu0 0.0
    %2437 = vmatprep.subr.mxu0 0.0
    %2438 = vmatpush1.msra.mxu0 0.0
    %2439 = vmatprep.subr.mxu0 0.0
    %2440 = vmatpush1.msra.mxu0 0.0
    %2441 = vmatprep.subr.mxu0 0.0
    %2442 = vmatpush1.msra.mxu0 0.0
    %2443 = vmatprep.subr.mxu0 0.0
    %2444 = vmatpush1.msra.mxu0 0.0
    %2445 = vmatprep.subr.mxu0 0.0
    %2446 = vmatpush1.msra.mxu0 0.0
    %2447 = vmatprep.subr.mxu0 0.0
    %2448 = vmatpush1.msra.mxu0 0.0
    %2449 = vmatprep.subr.mxu0 0.0
    %2450 = vmatpush1.msra.mxu0 0.0
    %2451 = vmatprep.subr.mxu0 0.0
    %2452 = vmatpush1.msra.mxu0 0.0
    %2453 = vmatprep.subr.mxu0 0.0
    %2454 = vmatpush1.msra.mxu0 0.0
    %2455 = vmatprep.subr.mxu0 0.0
    %v2456 = vand.u32 %v2416, 4294901760
    %2457 = vmatpush1.msra.mxu0 %v2456
    %2458 = vmatprep.subr.mxu0 0.0
    %2459 = vmatpush2.msra.mxu0 0.0
    %2460 = vmatprep.subr.mxu0 0.0
    %2461 = vmatpush2.msra.mxu0 0.0
    %2462 = vmatprep.subr.mxu0 0.0
    %2463 = vmatpush2.msra.mxu0 0.0
    %2464 = vmatprep.subr.mxu0 0.0
    %2465 = vmatpush2.msra.mxu0 0.0
    %2466 = vmatprep.subr.mxu0 0.0
    %2467 = vmatpush2.msra.mxu0 0.0
    %2468 = vmatprep.subr.mxu0 0.0
    %2469 = vmatpush2.msra.mxu0 0.0
    %2470 = vmatprep.subr.mxu0 0.0
    %2471 = vmatpush2.msra.mxu0 0.0
    %2472 = vmatprep.subr.mxu0 0.0
    %2473 = vmatpush2.msra.mxu0 0.0
    %2474 = vmatprep.subr.mxu0 0.0
    %2475 = vmatpush2.msra.mxu0 0.0
    %2476 = vmatprep.subr.mxu0 0.0
    %2477 = vmatpush2.msra.mxu0 0.0
    %2478 = vmatprep.subr.mxu0 0.0
    %2479 = vmatpush2.msra.mxu0 0.0
    %2480 = vmatprep.subr.mxu0 0.0
    %2481 = vmatpush2.msra.mxu0 0.0
    %2482 = vmatprep.subr.mxu0 0.0
    %2483 = vmatpush2.msra.mxu0 0.0
    %2484 = vmatprep.subr.mxu0 0.0
    %2485 = vmatpush2.msra.mxu0 0.0
    %2486 = vmatprep.subr.mxu0 0.0
    %2487 = vmatpush2.msra.mxu0 0.0
    %2488 = vmatprep.subr.mxu0 0.0
    %2489 = vmatpush2.msra.mxu0 0.0
    %2490 = vmatprep.mubr.f32.mxu0 0.0
    %v2491 = vand.u32 %v2423, 4294901760
    %v2492 = vsub.f32 %v2423, %v2491
    %v2493 = vand.u32 %v2492, 4294901760
    %v2494 = vsub.f32 %v2492, %v2493
    %v2495 = vand.u32 %v2494, 4294901760
    %2496 = vmatmul.mubr.f32.gmra.mxu0 %v2495
    %v2497 = vpop.f32.mrf.mxu0
    %v2498 = vadd.f32 0.0, %v2497
    %v2499 = vpop.f32.mrf.mxu0
    %2500 = vdwg.mxu0
    %2501 = vmatprep.subr.mxu0 0.0
    %2502 = vmatpush1.msra.mxu0 0.0
    %2503 = vmatprep.subr.mxu0 0.0
    %2504 = vmatpush1.msra.mxu0 0.0
    %2505 = vmatprep.subr.mxu0 0.0
    %2506 = vmatpush1.msra.mxu0 0.0
    %2507 = vmatprep.subr.mxu0 0.0
    %2508 = vmatpush1.msra.mxu0 0.0
    %2509 = vmatprep.subr.mxu0 0.0
    %2510 = vmatpush1.msra.mxu0 0.0
    %2511 = vmatprep.subr.mxu0 0.0
    %2512 = vmatpush1.msra.mxu0 0.0
    %2513 = vmatprep.subr.mxu0 0.0
    %2514 = vmatpush1.msra.mxu0 0.0
    %2515 = vmatprep.subr.mxu0 0.0
    %2516 = vmatpush1.msra.mxu0 0.0
    %2517 = vmatprep.subr.mxu0 0.0
    %2518 = vmatpush1.msra.mxu0 0.0
    %2519 = vmatprep.subr.mxu0 0.0
    %2520 = vmatpush1.msra.mxu0 0.0
    %2521 = vmatprep.subr.mxu0 0.0
    %2522 = vmatpush1.msra.mxu0 0.0
    %2523 = vmatprep.subr.mxu0 0.0
    %2524 = vmatpush1.msra.mxu0 0.0
    %2525 = vmatprep.subr.mxu0 0.0
    %2526 = vmatpush1.msra.mxu0 0.0
    %2527 = vmatprep.subr.mxu0 0.0
    %2528 = vmatpush1.msra.mxu0 0.0
    %2529 = vmatprep.subr.mxu0 0.0
    %2530 = vmatpush1.msra.mxu0 0.0
    %2531 = vmatprep.subr.mxu0 0.0
    %v2532 = vand.u32 %v2416, 4294901760
    %v2533 = vsub.f32 %v2416, %v2532
    %v2534 = vand.u32 %v2533, 4294901760
    %v2535 = vsub.f32 %v2533, %v2534
    %v2536 = vand.u32 %v2535, 4294901760
    %2537 = vmatpush1.msra.mxu0 %v2536
    %2538 = vmatprep.subr.mxu0 0.0
    %2539 = vmatpush2.msra.mxu0 0.0
    %2540 = vmatprep.subr.mxu0 0.0
    %2541 = vmatpush2.msra.mxu0 0.0
    %2542 = vmatprep.subr.mxu0 0.0
    %2543 = vmatpush2.msra.mxu0 0.0
    %2544 = vmatprep.subr.mxu0 0.0
    %2545 = vmatpush2.msra.mxu0 0.0
    %2546 = vmatprep.subr.mxu0 0.0
    %2547 = vmatpush2.msra.mxu0 0.0
    %2548 = vmatprep.subr.mxu0 0.0
    %2549 = vmatpush2.msra.mxu0 0.0
    %2550 = vmatprep.subr.mxu0 0.0
    %2551 = vmatpush2.msra.mxu0 0.0
    %2552 = vmatprep.subr.mxu0 0.0
    %2553 = vmatpush2.msra.mxu0 0.0
    %2554 = vmatprep.subr.mxu0 0.0
    %2555 = vmatpush2.msra.mxu0 0.0
    %2556 = vmatprep.subr.mxu0 0.0
    %2557 = vmatpush2.msra.mxu0 0.0
    %2558 = vmatprep.subr.mxu0 0.0
    %2559 = vmatpush2.msra.mxu0 0.0
    %2560 = vmatprep.subr.mxu0 0.0
    %2561 = vmatpush2.msra.mxu0 0.0
    %2562 = vmatprep.subr.mxu0 0.0
    %2563 = vmatpush2.msra.mxu0 0.0
    %2564 = vmatprep.subr.mxu0 0.0
    %2565 = vmatpush2.msra.mxu0 0.0
    %2566 = vmatprep.subr.mxu0 0.0
    %2567 = vmatpush2.msra.mxu0 0.0
    %2568 = vmatprep.subr.mxu0 0.0
    %2569 = vmatpush2.msra.mxu0 0.0
    %2570 = vmatprep.mubr.f32.mxu0 0.0
    %v2571 = vand.u32 %v2423, 4294901760
    %2572 = vmatmul.mubr.f32.gmra.mxu0 %v2571
    %v2573 = vpop.f32.mrf.mxu0
    %v2574 = vadd.f32 %v2498, %v2573
    %v2575 = vpop.f32.mrf.mxu0
    %2576 = vdwg.mxu0
    %2577 = vmatprep.subr.mxu0 0.0
    %2578 = vmatpush1.msra.mxu0 0.0
    %2579 = vmatprep.subr.mxu0 0.0
    %2580 = vmatpush1.msra.mxu0 0.0
    %2581 = vmatprep.subr.mxu0 0.0
    %2582 = vmatpush1.msra.mxu0 0.0
    %2583 = vmatprep.subr.mxu0 0.0
    %2584 = vmatpush1.msra.mxu0 0.0
    %2585 = vmatprep.subr.mxu0 0.0
    %2586 = vmatpush1.msra.mxu0 0.0
    %2587 = vmatprep.subr.mxu0 0.0
    %2588 = vmatpush1.msra.mxu0 0.0
    %2589 = vmatprep.subr.mxu0 0.0
    %2590 = vmatpush1.msra.mxu0 0.0
    %2591 = vmatprep.subr.mxu0 0.0
    %2592 = vmatpush1.msra.mxu0 0.0
    %2593 = vmatprep.subr.mxu0 0.0
    %2594 = vmatpush1.msra.mxu0 0.0
    %2595 = vmatprep.subr.mxu0 0.0
    %2596 = vmatpush1.msra.mxu0 0.0
    %2597 = vmatprep.subr.mxu0 0.0
    %2598 = vmatpush1.msra.mxu0 0.0
    %2599 = vmatprep.subr.mxu0 0.0
    %2600 = vmatpush1.msra.mxu0 0.0
    %2601 = vmatprep.subr.mxu0 0.0
    %2602 = vmatpush1.msra.mxu0 0.0
    %2603 = vmatprep.subr.mxu0 0.0
    %2604 = vmatpush1.msra.mxu0 0.0
    %2605 = vmatprep.subr.mxu0 0.0
    %2606 = vmatpush1.msra.mxu0 0.0
    %2607 = vmatprep.subr.mxu0 0.0
    %v2608 = vand.u32 %v2416, 4294901760
    %v2609 = vsub.f32 %v2416, %v2608
    %2610 = vmatpush1.msra.mxu0 %v2609
    %2611 = vmatprep.subr.mxu0 0.0
    %2612 = vmatpush2.msra.mxu0 0.0
    %2613 = vmatprep.subr.mxu0 0.0
    %2614 = vmatpush2.msra.mxu0 0.0
    %2615 = vmatprep.subr.mxu0 0.0
    %2616 = vmatpush2.msra.mxu0 0.0
    %2617 = vmatprep.subr.mxu0 0.0
    %2618 = vmatpush2.msra.mxu0 0.0
    %2619 = vmatprep.subr.mxu0 0.0
    %2620 = vmatpush2.msra.mxu0 0.0
    %2621 = vmatprep.subr.mxu0 0.0
    %2622 = vmatpush2.msra.mxu0 0.0
    %2623 = vmatprep.subr.mxu0 0.0
    %2624 = vmatpush2.msra.mxu0 0.0
    %2625 = vmatprep.subr.mxu0 0.0
    %2626 = vmatpush2.msra.mxu0 0.0
    %2627 = vmatprep.subr.mxu0 0.0
    %2628 = vmatpush2.msra.mxu0 0.0
    %2629 = vmatprep.subr.mxu0 0.0
    %2630 = vmatpush2.msra.mxu0 0.0
    %2631 = vmatprep.subr.mxu0 0.0
    %2632 = vmatpush2.msra.mxu0 0.0
    %2633 = vmatprep.subr.mxu0 0.0
    %2634 = vmatpush2.msra.mxu0 0.0
    %2635 = vmatprep.subr.mxu0 0.0
    %2636 = vmatpush2.msra.mxu0 0.0
    %2637 = vmatprep.subr.mxu0 0.0
    %2638 = vmatpush2.msra.mxu0 0.0
    %2639 = vmatprep.subr.mxu0 0.0
    %2640 = vmatpush2.msra.mxu0 0.0
    %2641 = vmatprep.subr.mxu0 0.0
    %2642 = vmatpush2.msra.mxu0 0.0
    %2643 = vmatprep.mubr.f32.mxu0 0.0
    %v2644 = vand.u32 %v2423, 4294901760
    %v2645 = vsub.f32 %v2423, %v2644
    %2646 = vmatmul.mubr.f32.gmra.mxu0 %v2645
    %v2647 = vpop.f32.mrf.mxu0
    %v2648 = vadd.f32 %v2574, %v2647
    %v2649 = vpop.f32.mrf.mxu0
    %2650 = vdwg.mxu0
    %2651 = vmatprep.subr.mxu0 0.0
    %2652 = vmatpush1.msra.mxu0 0.0
    %2653 = vmatprep.subr.mxu0 0.0
    %2654 = vmatpush1.msra.mxu0 0.0
    %2655 = vmatprep.subr.mxu0 0.0
    %2656 = vmatpush1.msra.mxu0 0.0
    %2657 = vmatprep.subr.mxu0 0.0
    %2658 = vmatpush1.msra.mxu0 0.0
    %2659 = vmatprep.subr.mxu0 0.0
    %2660 = vmatpush1.msra.mxu0 0.0
    %2661 = vmatprep.subr.mxu0 0.0
    %2662 = vmatpush1.msra.mxu0 0.0
    %2663 = vmatprep.subr.mxu0 0.0
    %2664 = vmatpush1.msra.mxu0 0.0
    %2665 = vmatprep.subr.mxu0 0.0
    %2666 = vmatpush1.msra.mxu0 0.0
    %2667 = vmatprep.subr.mxu0 0.0
    %2668 = vmatpush1.msra.mxu0 0.0
    %2669 = vmatprep.subr.mxu0 0.0
    %2670 = vmatpush1.msra.mxu0 0.0
    %2671 = vmatprep.subr.mxu0 0.0
    %2672 = vmatpush1.msra.mxu0 0.0
    %2673 = vmatprep.subr.mxu0 0.0
    %2674 = vmatpush1.msra.mxu0 0.0
    %2675 = vmatprep.subr.mxu0 0.0
    %2676 = vmatpush1.msra.mxu0 0.0
    %2677 = vmatprep.subr.mxu0 0.0
    %2678 = vmatpush1.msra.mxu0 0.0
    %2679 = vmatprep.subr.mxu0 0.0
    %2680 = vmatpush1.msra.mxu0 0.0
    %2681 = vmatprep.subr.mxu0 0.0
    %v2682 = vand.u32 %v2416, 4294901760
    %2683 = vmatpush1.msra.mxu0 %v2682
    %2684 = vmatprep.subr.mxu0 0.0
    %2685 = vmatpush2.msra.mxu0 0.0
    %2686 = vmatprep.subr.mxu0 0.0
    %2687 = vmatpush2.msra.mxu0 0.0
    %2688 = vmatprep.subr.mxu0 0.0
    %2689 = vmatpush2.msra.mxu0 0.0
    %2690 = vmatprep.subr.mxu0 0.0
    %2691 = vmatpush2.msra.mxu0 0.0
    %2692 = vmatprep.subr.mxu0 0.0
    %2693 = vmatpush2.msra.mxu0 0.0
    %2694 = vmatprep.subr.mxu0 0.0
    %2695 = vmatpush2.msra.mxu0 0.0
    %2696 = vmatprep.subr.mxu0 0.0
    %2697 = vmatpush2.msra.mxu0 0.0
    %2698 = vmatprep.subr.mxu0 0.0
    %2699 = vmatpush2.msra.mxu0 0.0
    %2700 = vmatprep.subr.mxu0 0.0
    %2701 = vmatpush2.msra.mxu0 0.0
    %2702 = vmatprep.subr.mxu0 0.0
    %2703 = vmatpush2.msra.mxu0 0.0
    %2704 = vmatprep.subr.mxu0 0.0
    %2705 = vmatpush2.msra.mxu0 0.0
    %2706 = vmatprep.subr.mxu0 0.0
    %2707 = vmatpush2.msra.mxu0 0.0
    %2708 = vmatprep.subr.mxu0 0.0
    %2709 = vmatpush2.msra.mxu0 0.0
    %2710 = vmatprep.subr.mxu0 0.0
    %2711 = vmatpush2.msra.mxu0 0.0
    %2712 = vmatprep.subr.mxu0 0.0
    %2713 = vmatpush2.msra.mxu0 0.0
    %2714 = vmatprep.subr.mxu0 0.0
    %2715 = vmatpush2.msra.mxu0 0.0
    %2716 = vmatprep.mubr.f32.mxu0 0.0
    %v2717 = vand.u32 %v2423, 4294901760
    %v2718 = vsub.f32 %v2423, %v2717
    %v2719 = vand.u32 %v2718, 4294901760
    %2720 = vmatmul.mubr.f32.gmra.mxu0 %v2719
    %v2721 = vpop.f32.mrf.mxu0
    %v2722 = vadd.f32 %v2648, %v2721
    %v2723 = vpop.f32.mrf.mxu0
    %2724 = vdwg.mxu0
    %2725 = vmatprep.subr.mxu0 0.0
    %2726 = vmatpush1.msra.mxu0 0.0
    %2727 = vmatprep.subr.mxu0 0.0
    %2728 = vmatpush1.msra.mxu0 0.0
    %2729 = vmatprep.subr.mxu0 0.0
    %2730 = vmatpush1.msra.mxu0 0.0
    %2731 = vmatprep.subr.mxu0 0.0
    %2732 = vmatpush1.msra.mxu0 0.0
    %2733 = vmatprep.subr.mxu0 0.0
    %2734 = vmatpush1.msra.mxu0 0.0
    %2735 = vmatprep.subr.mxu0 0.0
    %2736 = vmatpush1.msra.mxu0 0.0
    %2737 = vmatprep.subr.mxu0 0.0
    %2738 = vmatpush1.msra.mxu0 0.0
    %2739 = vmatprep.subr.mxu0 0.0
    %2740 = vmatpush1.msra.mxu0 0.0
    %2741 = vmatprep.subr.mxu0 0.0
    %2742 = vmatpush1.msra.mxu0 0.0
    %2743 = vmatprep.subr.mxu0 0.0
    %2744 = vmatpush1.msra.mxu0 0.0
    %2745 = vmatprep.subr.mxu0 0.0
    %2746 = vmatpush1.msra.mxu0 0.0
    %2747 = vmatprep.subr.mxu0 0.0
    %2748 = vmatpush1.msra.mxu0 0.0
    %2749 = vmatprep.subr.mxu0 0.0
    %2750 = vmatpush1.msra.mxu0 0.0
    %2751 = vmatprep.subr.mxu0 0.0
    %2752 = vmatpush1.msra.mxu0 0.0
    %2753 = vmatprep.subr.mxu0 0.0
    %2754 = vmatpush1.msra.mxu0 0.0
    %2755 = vmatprep.subr.mxu0 0.0
    %v2756 = vand.u32 %v2416, 4294901760
    %v2757 = vsub.f32 %v2416, %v2756
    %v2758 = vand.u32 %v2757, 4294901760
    %2759 = vmatpush1.msra.mxu0 %v2758
    %2760 = vmatprep.subr.mxu0 0.0
    %2761 = vmatpush2.msra.mxu0 0.0
    %2762 = vmatprep.subr.mxu0 0.0
    %2763 = vmatpush2.msra.mxu0 0.0
    %2764 = vmatprep.subr.mxu0 0.0
    %2765 = vmatpush2.msra.mxu0 0.0
    %2766 = vmatprep.subr.mxu0 0.0
    %2767 = vmatpush2.msra.mxu0 0.0
    %2768 = vmatprep.subr.mxu0 0.0
    %2769 = vmatpush2.msra.mxu0 0.0
    %2770 = vmatprep.subr.mxu0 0.0
    %2771 = vmatpush2.msra.mxu0 0.0
    %2772 = vmatprep.subr.mxu0 0.0
    %2773 = vmatpush2.msra.mxu0 0.0
    %2774 = vmatprep.subr.mxu0 0.0
    %2775 = vmatpush2.msra.mxu0 0.0
    %2776 = vmatprep.subr.mxu0 0.0
    %2777 = vmatpush2.msra.mxu0 0.0
    %2778 = vmatprep.subr.mxu0 0.0
    %2779 = vmatpush2.msra.mxu0 0.0
    %2780 = vmatprep.subr.mxu0 0.0
    %2781 = vmatpush2.msra.mxu0 0.0
    %2782 = vmatprep.subr.mxu0 0.0
    %2783 = vmatpush2.msra.mxu0 0.0
    %2784 = vmatprep.subr.mxu0 0.0
    %2785 = vmatpush2.msra.mxu0 0.0
    %2786 = vmatprep.subr.mxu0 0.0
    %2787 = vmatpush2.msra.mxu0 0.0
    %2788 = vmatprep.subr.mxu0 0.0
    %2789 = vmatpush2.msra.mxu0 0.0
    %2790 = vmatprep.subr.mxu0 0.0
    %2791 = vmatpush2.msra.mxu0 0.0
    %2792 = vmatprep.mubr.f32.mxu0 0.0
    %v2793 = vand.u32 %v2423, 4294901760
    %2794 = vmatmul.mubr.f32.gmra.mxu0 %v2793
    %v2795 = vpop.f32.mrf.mxu0
    %v2796 = vadd.f32 %v2722, %v2795
    %v2797 = vpop.f32.mrf.mxu0
    %2798 = vdwg.mxu0
    %2799 = vmatprep.subr.mxu0 0.0
    %2800 = vmatpush1.msra.mxu0 0.0
    %2801 = vmatprep.subr.mxu0 0.0
    %2802 = vmatpush1.msra.mxu0 0.0
    %2803 = vmatprep.subr.mxu0 0.0
    %2804 = vmatpush1.msra.mxu0 0.0
    %2805 = vmatprep.subr.mxu0 0.0
    %2806 = vmatpush1.msra.mxu0 0.0
    %2807 = vmatprep.subr.mxu0 0.0
    %2808 = vmatpush1.msra.mxu0 0.0
    %2809 = vmatprep.subr.mxu0 0.0
    %2810 = vmatpush1.msra.mxu0 0.0
    %2811 = vmatprep.subr.mxu0 0.0
    %2812 = vmatpush1.msra.mxu0 0.0
    %2813 = vmatprep.subr.mxu0 0.0
    %2814 = vmatpush1.msra.mxu0 0.0
    %2815 = vmatprep.subr.mxu0 0.0
    %2816 = vmatpush1.msra.mxu0 0.0
    %2817 = vmatprep.subr.mxu0 0.0
    %2818 = vmatpush1.msra.mxu0 0.0
    %2819 = vmatprep.subr.mxu0 0.0
    %2820 = vmatpush1.msra.mxu0 0.0
    %2821 = vmatprep.subr.mxu0 0.0
    %2822 = vmatpush1.msra.mxu0 0.0
    %2823 = vmatprep.subr.mxu0 0.0
    %2824 = vmatpush1.msra.mxu0 0.0
    %2825 = vmatprep.subr.mxu0 0.0
    %2826 = vmatpush1.msra.mxu0 0.0
    %2827 = vmatprep.subr.mxu0 0.0
    %2828 = vmatpush1.msra.mxu0 0.0
    %2829 = vmatprep.subr.mxu0 0.0
    %v2830 = vand.u32 %v2416, 4294901760
    %2831 = vmatpush1.msra.mxu0 %v2830
    %2832 = vmatprep.subr.mxu0 0.0
    %2833 = vmatpush2.msra.mxu0 0.0
    %2834 = vmatprep.subr.mxu0 0.0
    %2835 = vmatpush2.msra.mxu0 0.0
    %2836 = vmatprep.subr.mxu0 0.0
    %2837 = vmatpush2.msra.mxu0 0.0
    %2838 = vmatprep.subr.mxu0 0.0
    %2839 = vmatpush2.msra.mxu0 0.0
    %2840 = vmatprep.subr.mxu0 0.0
    %2841 = vmatpush2.msra.mxu0 0.0
    %2842 = vmatprep.subr.mxu0 0.0
    %2843 = vmatpush2.msra.mxu0 0.0
    %2844 = vmatprep.subr.mxu0 0.0
    %2845 = vmatpush2.msra.mxu0 0.0
    %2846 = vmatprep.subr.mxu0 0.0
    %2847 = vmatpush2.msra.mxu0 0.0
    %2848 = vmatprep.subr.mxu0 0.0
    %2849 = vmatpush2.msra.mxu0 0.0
    %2850 = vmatprep.subr.mxu0 0.0
    %2851 = vmatpush2.msra.mxu0 0.0
    %2852 = vmatprep.subr.mxu0 0.0
    %2853 = vmatpush2.msra.mxu0 0.0
    %2854 = vmatprep.subr.mxu0 0.0
    %2855 = vmatpush2.msra.mxu0 0.0
    %2856 = vmatprep.subr.mxu0 0.0
    %2857 = vmatpush2.msra.mxu0 0.0
    %2858 = vmatprep.subr.mxu0 0.0
    %2859 = vmatpush2.msra.mxu0 0.0
    %2860 = vmatprep.subr.mxu0 0.0
    %2861 = vmatpush2.msra.mxu0 0.0
    %2862 = vmatprep.subr.mxu0 0.0
    %2863 = vmatpush2.msra.mxu0 0.0
    %2864 = vmatprep.mubr.f32.mxu0 0.0
    %v2865 = vand.u32 %v2423, 4294901760
    %2866 = vmatmul.mubr.f32.gmra.mxu0 %v2865
    %v2867 = vpop.f32.mrf.mxu0
    %v2868 = vadd.f32 %v2796, %v2867
    %v2869 = vpop.f32.mrf.mxu0
    %2870 = vdwg.mxu0
    %v2871 = vadd.f32 %v2344, %v2868
    %s2872 = scalar_lea.vmem %s9, 32
    %v2873 = vld [vmem:[%s2872] sm:$0xf]
    %v2874 = vld [vmem:[%s2872 + $0x4] sm:$0xf]
    %v2875 = vld [vmem:[%s2872 + $0x8] sm:$0xf]
    %v2876 = vld [vmem:[%s2872 + $0xc] sm:$0xf]
    %v2877 = vld [vmem:[%s2872 + $0x10] sm:$0xf]
    %v2878 = vld [vmem:[%s2872 + $0x14] sm:$0xf]
    %v2879 = vld [vmem:[%s2872 + $0x18] sm:$0xf]
    %v2880 = vld [vmem:[%s2872 + $0x1c] sm:$0xf]
    %v2889 = vunpack.c.l.b16 %v2873
    %v2890 = vunpack.c.l.b16 %v2874
    %v2891 = vunpack.c.l.b16 %v2875
    %v2892 = vunpack.c.l.b16 %v2876
    %v2893 = vunpack.c.l.b16 %v2877
    %v2894 = vunpack.c.l.b16 %v2878
    %v2895 = vunpack.c.l.b16 %v2879
    %v2896 = vunpack.c.l.b16 %v2880
    %v2897 = vpack.c.b16 %v2890, %v2889
    %v2898 = vpack.c.b16 %v2892, %v2891
    %v2899 = vpack.c.b16 %v2894, %v2893
    %v2900 = vpack.c.b16 %v2896, %v2895
    %2905 = vmatprep.subr.bf16.mxu0 0
    %2906 = vmatpush1.bf16.msra.mxu0 0
    %2907 = vmatprep.subr.bf16.mxu0 0
    %2908 = vmatpush1.bf16.msra.mxu0 0
    %2909 = vmatprep.subr.bf16.mxu0 0
    %2910 = vmatpush1.bf16.msra.mxu0 0
    %2911 = vmatprep.subr.bf16.mxu0 0
    %2912 = vmatpush1.bf16.msra.mxu0 0
    %2913 = vmatprep.subr.bf16.mxu0 0
    %2914 = vmatpush1.bf16.msra.mxu0 %v2900
    %2915 = vmatprep.subr.bf16.mxu0 0
    %2916 = vmatpush1.bf16.msra.mxu0 %v2899
    %2917 = vmatprep.subr.bf16.mxu0 0
    %2918 = vmatpush1.bf16.msra.mxu0 %v2898
    %2919 = vmatprep.subr.bf16.mxu0 0
    %2920 = vmatpush1.bf16.msra.mxu0 %v2897
    %2921 = vmatprep.subr.bf16.mxu0 0
    %2922 = vmatpush2.bf16.msra.mxu0 0
    %2923 = vmatprep.subr.bf16.mxu0 0
    %2924 = vmatpush2.bf16.msra.mxu0 0
    %2925 = vmatprep.subr.bf16.mxu0 0
    %2926 = vmatpush2.bf16.msra.mxu0 0
    %2927 = vmatprep.subr.bf16.mxu0 0
    %2928 = vmatpush2.bf16.msra.mxu0 0
    %2929 = vmatprep.subr.bf16.mxu0 0
    %2930 = vmatpush2.bf16.msra.mxu0 0
    %2931 = vmatprep.subr.bf16.mxu0 0
    %2932 = vmatpush2.bf16.msra.mxu0 0
    %2933 = vmatprep.subr.bf16.mxu0 0
    %2934 = vmatpush2.bf16.msra.mxu0 0
    %2935 = vmatprep.subr.bf16.mxu0 0
    %2936 = vmatpush2.bf16.msra.mxu0 0
    %2937 = vmatprep.mubr.bf16.mxu0 0
    %2938 = vmatmul.mubr.bf16.gmra.mxu0 %v2379
    %v2939 = vpop.f32.mrf.mxu0
    %v2940 = vadd.f32 0.0, %v2939
    %v2941 = vpop.f32.mrf.mxu0
    %v2942 = vpop.f32.mrf.mxu0
    %v2943 = vpop.f32.mrf.mxu0
    %2944 = vdwg.mxu0
    %s2945 = scalar_lea.vmem [#allocation14], 4
    %v2946 = vld [vmem:[%s2945] sm:$0xf]
    %v2948 = vsel %vm1323, %v2946, 0
    %2950 = vmatprep.subr.mxu0 0.0
    %2951 = vmatpush1.msra.mxu0 0.0
    %2952 = vmatprep.subr.mxu0 0.0
    %2953 = vmatpush1.msra.mxu0 0.0
    %2954 = vmatprep.subr.mxu0 0.0
    %2955 = vmatpush1.msra.mxu0 0.0
    %2956 = vmatprep.subr.mxu0 0.0
    %2957 = vmatpush1.msra.mxu0 0.0
    %2958 = vmatprep.subr.mxu0 0.0
    %2959 = vmatpush1.msra.mxu0 0.0
    %2960 = vmatprep.subr.mxu0 0.0
    %2961 = vmatpush1.msra.mxu0 0.0
    %2962 = vmatprep.subr.mxu0 0.0
    %2963 = vmatpush1.msra.mxu0 0.0
    %2964 = vmatprep.subr.mxu0 0.0
    %2965 = vmatpush1.msra.mxu0 0.0
    %2966 = vmatprep.subr.mxu0 0.0
    %2967 = vmatpush1.msra.mxu0 0.0
    %2968 = vmatprep.subr.mxu0 0.0
    %2969 = vmatpush1.msra.mxu0 0.0
    %2970 = vmatprep.subr.mxu0 0.0
    %2971 = vmatpush1.msra.mxu0 0.0
    %2972 = vmatprep.subr.mxu0 0.0
    %2973 = vmatpush1.msra.mxu0 0.0
    %2974 = vmatprep.subr.mxu0 0.0
    %2975 = vmatpush1.msra.mxu0 0.0
    %2976 = vmatprep.subr.mxu0 0.0
    %2977 = vmatpush1.msra.mxu0 0.0
    %2978 = vmatprep.subr.mxu0 0.0
    %2979 = vmatpush1.msra.mxu0 0.0
    %2980 = vmatprep.subr.mxu0 0.0
    %v2981 = vand.u32 %v2940, 4294901760
    %2982 = vmatpush1.msra.mxu0 %v2981
    %2983 = vmatprep.subr.mxu0 0.0
    %2984 = vmatpush2.msra.mxu0 0.0
    %2985 = vmatprep.subr.mxu0 0.0
    %2986 = vmatpush2.msra.mxu0 0.0
    %2987 = vmatprep.subr.mxu0 0.0
    %2988 = vmatpush2.msra.mxu0 0.0
    %2989 = vmatprep.subr.mxu0 0.0
    %2990 = vmatpush2.msra.mxu0 0.0
    %2991 = vmatprep.subr.mxu0 0.0
    %2992 = vmatpush2.msra.mxu0 0.0
    %2993 = vmatprep.subr.mxu0 0.0
    %2994 = vmatpush2.msra.mxu0 0.0
    %2995 = vmatprep.subr.mxu0 0.0
    %2996 = vmatpush2.msra.mxu0 0.0
    %2997 = vmatprep.subr.mxu0 0.0
    %2998 = vmatpush2.msra.mxu0 0.0
    %2999 = vmatprep.subr.mxu0 0.0
    %3000 = vmatpush2.msra.mxu0 0.0
    %3001 = vmatprep.subr.mxu0 0.0
    %3002 = vmatpush2.msra.mxu0 0.0
    %3003 = vmatprep.subr.mxu0 0.0
    %3004 = vmatpush2.msra.mxu0 0.0
    %3005 = vmatprep.subr.mxu0 0.0
    %3006 = vmatpush2.msra.mxu0 0.0
    %3007 = vmatprep.subr.mxu0 0.0
    %3008 = vmatpush2.msra.mxu0 0.0
    %3009 = vmatprep.subr.mxu0 0.0
    %3010 = vmatpush2.msra.mxu0 0.0
    %3011 = vmatprep.subr.mxu0 0.0
    %3012 = vmatpush2.msra.mxu0 0.0
    %3013 = vmatprep.subr.mxu0 0.0
    %3014 = vmatpush2.msra.mxu0 0.0
    %3015 = vmatprep.mubr.f32.mxu0 0.0
    %v3016 = vand.u32 %v2948, 4294901760
    %v3017 = vsub.f32 %v2948, %v3016
    %v3018 = vand.u32 %v3017, 4294901760
    %v3019 = vsub.f32 %v3017, %v3018
    %v3020 = vand.u32 %v3019, 4294901760
    %3021 = vmatmul.mubr.f32.gmra.mxu0 %v3020
    %v3022 = vpop.f32.mrf.mxu0
    %v3023 = vadd.f32 0.0, %v3022
    %v3024 = vpop.f32.mrf.mxu0
    %3025 = vdwg.mxu0
    %3026 = vmatprep.subr.mxu0 0.0
    %3027 = vmatpush1.msra.mxu0 0.0
    %3028 = vmatprep.subr.mxu0 0.0
    %3029 = vmatpush1.msra.mxu0 0.0
    %3030 = vmatprep.subr.mxu0 0.0
    %3031 = vmatpush1.msra.mxu0 0.0
    %3032 = vmatprep.subr.mxu0 0.0
    %3033 = vmatpush1.msra.mxu0 0.0
    %3034 = vmatprep.subr.mxu0 0.0
    %3035 = vmatpush1.msra.mxu0 0.0
    %3036 = vmatprep.subr.mxu0 0.0
    %3037 = vmatpush1.msra.mxu0 0.0
    %3038 = vmatprep.subr.mxu0 0.0
    %3039 = vmatpush1.msra.mxu0 0.0
    %3040 = vmatprep.subr.mxu0 0.0
    %3041 = vmatpush1.msra.mxu0 0.0
    %3042 = vmatprep.subr.mxu0 0.0
    %3043 = vmatpush1.msra.mxu0 0.0
    %3044 = vmatprep.subr.mxu0 0.0
    %3045 = vmatpush1.msra.mxu0 0.0
    %3046 = vmatprep.subr.mxu0 0.0
    %3047 = vmatpush1.msra.mxu0 0.0
    %3048 = vmatprep.subr.mxu0 0.0
    %3049 = vmatpush1.msra.mxu0 0.0
    %3050 = vmatprep.subr.mxu0 0.0
    %3051 = vmatpush1.msra.mxu0 0.0
    %3052 = vmatprep.subr.mxu0 0.0
    %3053 = vmatpush1.msra.mxu0 0.0
    %3054 = vmatprep.subr.mxu0 0.0
    %3055 = vmatpush1.msra.mxu0 0.0
    %3056 = vmatprep.subr.mxu0 0.0
    %v3057 = vand.u32 %v2940, 4294901760
    %v3058 = vsub.f32 %v2940, %v3057
    %v3059 = vand.u32 %v3058, 4294901760
    %v3060 = vsub.f32 %v3058, %v3059
    %v3061 = vand.u32 %v3060, 4294901760
    %3062 = vmatpush1.msra.mxu0 %v3061
    %3063 = vmatprep.subr.mxu0 0.0
    %3064 = vmatpush2.msra.mxu0 0.0
    %3065 = vmatprep.subr.mxu0 0.0
    %3066 = vmatpush2.msra.mxu0 0.0
    %3067 = vmatprep.subr.mxu0 0.0
    %3068 = vmatpush2.msra.mxu0 0.0
    %3069 = vmatprep.subr.mxu0 0.0
    %3070 = vmatpush2.msra.mxu0 0.0
    %3071 = vmatprep.subr.mxu0 0.0
    %3072 = vmatpush2.msra.mxu0 0.0
    %3073 = vmatprep.subr.mxu0 0.0
    %3074 = vmatpush2.msra.mxu0 0.0
    %3075 = vmatprep.subr.mxu0 0.0
    %3076 = vmatpush2.msra.mxu0 0.0
    %3077 = vmatprep.subr.mxu0 0.0
    %3078 = vmatpush2.msra.mxu0 0.0
    %3079 = vmatprep.subr.mxu0 0.0
    %3080 = vmatpush2.msra.mxu0 0.0
    %3081 = vmatprep.subr.mxu0 0.0
    %3082 = vmatpush2.msra.mxu0 0.0
    %3083 = vmatprep.subr.mxu0 0.0
    %3084 = vmatpush2.msra.mxu0 0.0
    %3085 = vmatprep.subr.mxu0 0.0
    %3086 = vmatpush2.msra.mxu0 0.0
    %3087 = vmatprep.subr.mxu0 0.0
    %3088 = vmatpush2.msra.mxu0 0.0
    %3089 = vmatprep.subr.mxu0 0.0
    %3090 = vmatpush2.msra.mxu0 0.0
    %3091 = vmatprep.subr.mxu0 0.0
    %3092 = vmatpush2.msra.mxu0 0.0
    %3093 = vmatprep.subr.mxu0 0.0
    %3094 = vmatpush2.msra.mxu0 0.0
    %3095 = vmatprep.mubr.f32.mxu0 0.0
    %v3096 = vand.u32 %v2948, 4294901760
    %3097 = vmatmul.mubr.f32.gmra.mxu0 %v3096
    %v3098 = vpop.f32.mrf.mxu0
    %v3099 = vadd.f32 %v3023, %v3098
    %v3100 = vpop.f32.mrf.mxu0
    %3101 = vdwg.mxu0
    %3102 = vmatprep.subr.mxu0 0.0
    %3103 = vmatpush1.msra.mxu0 0.0
    %3104 = vmatprep.subr.mxu0 0.0
    %3105 = vmatpush1.msra.mxu0 0.0
    %3106 = vmatprep.subr.mxu0 0.0
    %3107 = vmatpush1.msra.mxu0 0.0
    %3108 = vmatprep.subr.mxu0 0.0
    %3109 = vmatpush1.msra.mxu0 0.0
    %3110 = vmatprep.subr.mxu0 0.0
    %3111 = vmatpush1.msra.mxu0 0.0
    %3112 = vmatprep.subr.mxu0 0.0
    %3113 = vmatpush1.msra.mxu0 0.0
    %3114 = vmatprep.subr.mxu0 0.0
    %3115 = vmatpush1.msra.mxu0 0.0
    %3116 = vmatprep.subr.mxu0 0.0
    %3117 = vmatpush1.msra.mxu0 0.0
    %3118 = vmatprep.subr.mxu0 0.0
    %3119 = vmatpush1.msra.mxu0 0.0
    %3120 = vmatprep.subr.mxu0 0.0
    %3121 = vmatpush1.msra.mxu0 0.0
    %3122 = vmatprep.subr.mxu0 0.0
    %3123 = vmatpush1.msra.mxu0 0.0
    %3124 = vmatprep.subr.mxu0 0.0
    %3125 = vmatpush1.msra.mxu0 0.0
    %3126 = vmatprep.subr.mxu0 0.0
    %3127 = vmatpush1.msra.mxu0 0.0
    %3128 = vmatprep.subr.mxu0 0.0
    %3129 = vmatpush1.msra.mxu0 0.0
    %3130 = vmatprep.subr.mxu0 0.0
    %3131 = vmatpush1.msra.mxu0 0.0
    %3132 = vmatprep.subr.mxu0 0.0
    %v3133 = vand.u32 %v2940, 4294901760
    %v3134 = vsub.f32 %v2940, %v3133
    %3135 = vmatpush1.msra.mxu0 %v3134
    %3136 = vmatprep.subr.mxu0 0.0
    %3137 = vmatpush2.msra.mxu0 0.0
    %3138 = vmatprep.subr.mxu0 0.0
    %3139 = vmatpush2.msra.mxu0 0.0
    %3140 = vmatprep.subr.mxu0 0.0
    %3141 = vmatpush2.msra.mxu0 0.0
    %3142 = vmatprep.subr.mxu0 0.0
    %3143 = vmatpush2.msra.mxu0 0.0
    %3144 = vmatprep.subr.mxu0 0.0
    %3145 = vmatpush2.msra.mxu0 0.0
    %3146 = vmatprep.subr.mxu0 0.0
    %3147 = vmatpush2.msra.mxu0 0.0
    %3148 = vmatprep.subr.mxu0 0.0
    %3149 = vmatpush2.msra.mxu0 0.0
    %3150 = vmatprep.subr.mxu0 0.0
    %3151 = vmatpush2.msra.mxu0 0.0
    %3152 = vmatprep.subr.mxu0 0.0
    %3153 = vmatpush2.msra.mxu0 0.0
    %3154 = vmatprep.subr.mxu0 0.0
    %3155 = vmatpush2.msra.mxu0 0.0
    %3156 = vmatprep.subr.mxu0 0.0
    %3157 = vmatpush2.msra.mxu0 0.0
    %3158 = vmatprep.subr.mxu0 0.0
    %3159 = vmatpush2.msra.mxu0 0.0
    %3160 = vmatprep.subr.mxu0 0.0
    %3161 = vmatpush2.msra.mxu0 0.0
    %3162 = vmatprep.subr.mxu0 0.0
    %3163 = vmatpush2.msra.mxu0 0.0
    %3164 = vmatprep.subr.mxu0 0.0
    %3165 = vmatpush2.msra.mxu0 0.0
    %3166 = vmatprep.subr.mxu0 0.0
    %3167 = vmatpush2.msra.mxu0 0.0
    %3168 = vmatprep.mubr.f32.mxu0 0.0
    %v3169 = vand.u32 %v2948, 4294901760
    %v3170 = vsub.f32 %v2948, %v3169
    %3171 = vmatmul.mubr.f32.gmra.mxu0 %v3170
    %v3172 = vpop.f32.mrf.mxu0
    %v3173 = vadd.f32 %v3099, %v3172
    %v3174 = vpop.f32.mrf.mxu0
    %3175 = vdwg.mxu0
    %3176 = vmatprep.subr.mxu0 0.0
    %3177 = vmatpush1.msra.mxu0 0.0
    %3178 = vmatprep.subr.mxu0 0.0
    %3179 = vmatpush1.msra.mxu0 0.0
    %3180 = vmatprep.subr.mxu0 0.0
    %3181 = vmatpush1.msra.mxu0 0.0
    %3182 = vmatprep.subr.mxu0 0.0
    %3183 = vmatpush1.msra.mxu0 0.0
    %3184 = vmatprep.subr.mxu0 0.0
    %3185 = vmatpush1.msra.mxu0 0.0
    %3186 = vmatprep.subr.mxu0 0.0
    %3187 = vmatpush1.msra.mxu0 0.0
    %3188 = vmatprep.subr.mxu0 0.0
    %3189 = vmatpush1.msra.mxu0 0.0
    %3190 = vmatprep.subr.mxu0 0.0
    %3191 = vmatpush1.msra.mxu0 0.0
    %3192 = vmatprep.subr.mxu0 0.0
    %3193 = vmatpush1.msra.mxu0 0.0
    %3194 = vmatprep.subr.mxu0 0.0
    %3195 = vmatpush1.msra.mxu0 0.0
    %3196 = vmatprep.subr.mxu0 0.0
    %3197 = vmatpush1.msra.mxu0 0.0
    %3198 = vmatprep.subr.mxu0 0.0
    %3199 = vmatpush1.msra.mxu0 0.0
    %3200 = vmatprep.subr.mxu0 0.0
    %3201 = vmatpush1.msra.mxu0 0.0
    %3202 = vmatprep.subr.mxu0 0.0
    %3203 = vmatpush1.msra.mxu0 0.0
    %3204 = vmatprep.subr.mxu0 0.0
    %3205 = vmatpush1.msra.mxu0 0.0
    %3206 = vmatprep.subr.mxu0 0.0
    %v3207 = vand.u32 %v2940, 4294901760
    %3208 = vmatpush1.msra.mxu0 %v3207
    %3209 = vmatprep.subr.mxu0 0.0
    %3210 = vmatpush2.msra.mxu0 0.0
    %3211 = vmatprep.subr.mxu0 0.0
    %3212 = vmatpush2.msra.mxu0 0.0
    %3213 = vmatprep.subr.mxu0 0.0
    %3214 = vmatpush2.msra.mxu0 0.0
    %3215 = vmatprep.subr.mxu0 0.0
    %3216 = vmatpush2.msra.mxu0 0.0
    %3217 = vmatprep.subr.mxu0 0.0
    %3218 = vmatpush2.msra.mxu0 0.0
    %3219 = vmatprep.subr.mxu0 0.0
    %3220 = vmatpush2.msra.mxu0 0.0
    %3221 = vmatprep.subr.mxu0 0.0
    %3222 = vmatpush2.msra.mxu0 0.0
    %3223 = vmatprep.subr.mxu0 0.0
    %3224 = vmatpush2.msra.mxu0 0.0
    %3225 = vmatprep.subr.mxu0 0.0
    %3226 = vmatpush2.msra.mxu0 0.0
    %3227 = vmatprep.subr.mxu0 0.0
    %3228 = vmatpush2.msra.mxu0 0.0
    %3229 = vmatprep.subr.mxu0 0.0
    %3230 = vmatpush2.msra.mxu0 0.0
    %3231 = vmatprep.subr.mxu0 0.0
    %3232 = vmatpush2.msra.mxu0 0.0
    %3233 = vmatprep.subr.mxu0 0.0
    %3234 = vmatpush2.msra.mxu0 0.0
    %3235 = vmatprep.subr.mxu0 0.0
    %3236 = vmatpush2.msra.mxu0 0.0
    %3237 = vmatprep.subr.mxu0 0.0
    %3238 = vmatpush2.msra.mxu0 0.0
    %3239 = vmatprep.subr.mxu0 0.0
    %3240 = vmatpush2.msra.mxu0 0.0
    %3241 = vmatprep.mubr.f32.mxu0 0.0
    %v3242 = vand.u32 %v2948, 4294901760
    %v3243 = vsub.f32 %v2948, %v3242
    %v3244 = vand.u32 %v3243, 4294901760
    %3245 = vmatmul.mubr.f32.gmra.mxu0 %v3244
    %v3246 = vpop.f32.mrf.mxu0
    %v3247 = vadd.f32 %v3173, %v3246
    %v3248 = vpop.f32.mrf.mxu0
    %3249 = vdwg.mxu0
    %3250 = vmatprep.subr.mxu0 0.0
    %3251 = vmatpush1.msra.mxu0 0.0
    %3252 = vmatprep.subr.mxu0 0.0
    %3253 = vmatpush1.msra.mxu0 0.0
    %3254 = vmatprep.subr.mxu0 0.0
    %3255 = vmatpush1.msra.mxu0 0.0
    %3256 = vmatprep.subr.mxu0 0.0
    %3257 = vmatpush1.msra.mxu0 0.0
    %3258 = vmatprep.subr.mxu0 0.0
    %3259 = vmatpush1.msra.mxu0 0.0
    %3260 = vmatprep.subr.mxu0 0.0
    %3261 = vmatpush1.msra.mxu0 0.0
    %3262 = vmatprep.subr.mxu0 0.0
    %3263 = vmatpush1.msra.mxu0 0.0
    %3264 = vmatprep.subr.mxu0 0.0
    %3265 = vmatpush1.msra.mxu0 0.0
    %3266 = vmatprep.subr.mxu0 0.0
    %3267 = vmatpush1.msra.mxu0 0.0
    %3268 = vmatprep.subr.mxu0 0.0
    %3269 = vmatpush1.msra.mxu0 0.0
    %3270 = vmatprep.subr.mxu0 0.0
    %3271 = vmatpush1.msra.mxu0 0.0
    %3272 = vmatprep.subr.mxu0 0.0
    %3273 = vmatpush1.msra.mxu0 0.0
    %3274 = vmatprep.subr.mxu0 0.0
    %3275 = vmatpush1.msra.mxu0 0.0
    %3276 = vmatprep.subr.mxu0 0.0
    %3277 = vmatpush1.msra.mxu0 0.0
    %3278 = vmatprep.subr.mxu0 0.0
    %3279 = vmatpush1.msra.mxu0 0.0
    %3280 = vmatprep.subr.mxu0 0.0
    %v3281 = vand.u32 %v2940, 4294901760
    %v3282 = vsub.f32 %v2940, %v3281
    %v3283 = vand.u32 %v3282, 4294901760
    %3284 = vmatpush1.msra.mxu0 %v3283
    %3285 = vmatprep.subr.mxu0 0.0
    %3286 = vmatpush2.msra.mxu0 0.0
    %3287 = vmatprep.subr.mxu0 0.0
    %3288 = vmatpush2.msra.mxu0 0.0
    %3289 = vmatprep.subr.mxu0 0.0
    %3290 = vmatpush2.msra.mxu0 0.0
    %3291 = vmatprep.subr.mxu0 0.0
    %3292 = vmatpush2.msra.mxu0 0.0
    %3293 = vmatprep.subr.mxu0 0.0
    %3294 = vmatpush2.msra.mxu0 0.0
    %3295 = vmatprep.subr.mxu0 0.0
    %3296 = vmatpush2.msra.mxu0 0.0
    %3297 = vmatprep.subr.mxu0 0.0
    %3298 = vmatpush2.msra.mxu0 0.0
    %3299 = vmatprep.subr.mxu0 0.0
    %3300 = vmatpush2.msra.mxu0 0.0
    %3301 = vmatprep.subr.mxu0 0.0
    %3302 = vmatpush2.msra.mxu0 0.0
    %3303 = vmatprep.subr.mxu0 0.0
    %3304 = vmatpush2.msra.mxu0 0.0
    %3305 = vmatprep.subr.mxu0 0.0
    %3306 = vmatpush2.msra.mxu0 0.0
    %3307 = vmatprep.subr.mxu0 0.0
    %3308 = vmatpush2.msra.mxu0 0.0
    %3309 = vmatprep.subr.mxu0 0.0
    %3310 = vmatpush2.msra.mxu0 0.0
    %3311 = vmatprep.subr.mxu0 0.0
    %3312 = vmatpush2.msra.mxu0 0.0
    %3313 = vmatprep.subr.mxu0 0.0
    %3314 = vmatpush2.msra.mxu0 0.0
    %3315 = vmatprep.subr.mxu0 0.0
    %3316 = vmatpush2.msra.mxu0 0.0
    %3317 = vmatprep.mubr.f32.mxu0 0.0
    %v3318 = vand.u32 %v2948, 4294901760
    %3319 = vmatmul.mubr.f32.gmra.mxu0 %v3318
    %v3320 = vpop.f32.mrf.mxu0
    %v3321 = vadd.f32 %v3247, %v3320
    %v3322 = vpop.f32.mrf.mxu0
    %3323 = vdwg.mxu0
    %3324 = vmatprep.subr.mxu0 0.0
    %3325 = vmatpush1.msra.mxu0 0.0
    %3326 = vmatprep.subr.mxu0 0.0
    %3327 = vmatpush1.msra.mxu0 0.0
    %3328 = vmatprep.subr.mxu0 0.0
    %3329 = vmatpush1.msra.mxu0 0.0
    %3330 = vmatprep.subr.mxu0 0.0
    %3331 = vmatpush1.msra.mxu0 0.0
    %3332 = vmatprep.subr.mxu0 0.0
    %3333 = vmatpush1.msra.mxu0 0.0
    %3334 = vmatprep.subr.mxu0 0.0
    %3335 = vmatpush1.msra.mxu0 0.0
    %3336 = vmatprep.subr.mxu0 0.0
    %3337 = vmatpush1.msra.mxu0 0.0
    %3338 = vmatprep.subr.mxu0 0.0
    %3339 = vmatpush1.msra.mxu0 0.0
    %3340 = vmatprep.subr.mxu0 0.0
    %3341 = vmatpush1.msra.mxu0 0.0
    %3342 = vmatprep.subr.mxu0 0.0
    %3343 = vmatpush1.msra.mxu0 0.0
    %3344 = vmatprep.subr.mxu0 0.0
    %3345 = vmatpush1.msra.mxu0 0.0
    %3346 = vmatprep.subr.mxu0 0.0
    %3347 = vmatpush1.msra.mxu0 0.0
    %3348 = vmatprep.subr.mxu0 0.0
    %3349 = vmatpush1.msra.mxu0 0.0
    %3350 = vmatprep.subr.mxu0 0.0
    %3351 = vmatpush1.msra.mxu0 0.0
    %3352 = vmatprep.subr.mxu0 0.0
    %3353 = vmatpush1.msra.mxu0 0.0
    %3354 = vmatprep.subr.mxu0 0.0
    %v3355 = vand.u32 %v2940, 4294901760
    %3356 = vmatpush1.msra.mxu0 %v3355
    %3357 = vmatprep.subr.mxu0 0.0
    %3358 = vmatpush2.msra.mxu0 0.0
    %3359 = vmatprep.subr.mxu0 0.0
    %3360 = vmatpush2.msra.mxu0 0.0
    %3361 = vmatprep.subr.mxu0 0.0
    %3362 = vmatpush2.msra.mxu0 0.0
    %3363 = vmatprep.subr.mxu0 0.0
    %3364 = vmatpush2.msra.mxu0 0.0
    %3365 = vmatprep.subr.mxu0 0.0
    %3366 = vmatpush2.msra.mxu0 0.0
    %3367 = vmatprep.subr.mxu0 0.0
    %3368 = vmatpush2.msra.mxu0 0.0
    %3369 = vmatprep.subr.mxu0 0.0
    %3370 = vmatpush2.msra.mxu0 0.0
    %3371 = vmatprep.subr.mxu0 0.0
    %3372 = vmatpush2.msra.mxu0 0.0
    %3373 = vmatprep.subr.mxu0 0.0
    %3374 = vmatpush2.msra.mxu0 0.0
    %3375 = vmatprep.subr.mxu0 0.0
    %3376 = vmatpush2.msra.mxu0 0.0
    %3377 = vmatprep.subr.mxu0 0.0
    %3378 = vmatpush2.msra.mxu0 0.0
    %3379 = vmatprep.subr.mxu0 0.0
    %3380 = vmatpush2.msra.mxu0 0.0
    %3381 = vmatprep.subr.mxu0 0.0
    %3382 = vmatpush2.msra.mxu0 0.0
    %3383 = vmatprep.subr.mxu0 0.0
    %3384 = vmatpush2.msra.mxu0 0.0
    %3385 = vmatprep.subr.mxu0 0.0
    %3386 = vmatpush2.msra.mxu0 0.0
    %3387 = vmatprep.subr.mxu0 0.0
    %3388 = vmatpush2.msra.mxu0 0.0
    %3389 = vmatprep.mubr.f32.mxu0 0.0
    %v3390 = vand.u32 %v2948, 4294901760
    %3391 = vmatmul.mubr.f32.gmra.mxu0 %v3390
    %v3392 = vpop.f32.mrf.mxu0
    %v3393 = vadd.f32 %v3321, %v3392
    %v3394 = vpop.f32.mrf.mxu0
    %3395 = vdwg.mxu0
    %v3396 = vadd.f32 %v2871, %v3393
    %s3397 = scalar_lea.vmem %s9, 64
    %v3398 = vld [vmem:[%s3397] sm:$0xf]
    %v3399 = vld [vmem:[%s3397 + $0x4] sm:$0xf]
    %v3400 = vld [vmem:[%s3397 + $0x8] sm:$0xf]
    %v3401 = vld [vmem:[%s3397 + $0xc] sm:$0xf]
    %v3402 = vld [vmem:[%s3397 + $0x10] sm:$0xf]
    %v3403 = vld [vmem:[%s3397 + $0x14] sm:$0xf]
    %v3404 = vld [vmem:[%s3397 + $0x18] sm:$0xf]
    %v3405 = vld [vmem:[%s3397 + $0x1c] sm:$0xf]
    %v3414 = vunpack.c.l.b16 %v3398
    %v3415 = vunpack.c.l.b16 %v3399
    %v3416 = vunpack.c.l.b16 %v3400
    %v3417 = vunpack.c.l.b16 %v3401
    %v3418 = vunpack.c.l.b16 %v3402
    %v3419 = vunpack.c.l.b16 %v3403
    %v3420 = vunpack.c.l.b16 %v3404
    %v3421 = vunpack.c.l.b16 %v3405
    %v3422 = vpack.c.b16 %v3415, %v3414
    %v3423 = vpack.c.b16 %v3417, %v3416
    %v3424 = vpack.c.b16 %v3419, %v3418
    %v3425 = vpack.c.b16 %v3421, %v3420
    %3430 = vmatprep.subr.bf16.mxu0 0
    %3431 = vmatpush1.bf16.msra.mxu0 0
    %3432 = vmatprep.subr.bf16.mxu0 0
    %3433 = vmatpush1.bf16.msra.mxu0 0
    %3434 = vmatprep.subr.bf16.mxu0 0
    %3435 = vmatpush1.bf16.msra.mxu0 0
    %3436 = vmatprep.subr.bf16.mxu0 0
    %3437 = vmatpush1.bf16.msra.mxu0 0
    %3438 = vmatprep.subr.bf16.mxu0 0
    %3439 = vmatpush1.bf16.msra.mxu0 %v3425
    %3440 = vmatprep.subr.bf16.mxu0 0
    %3441 = vmatpush1.bf16.msra.mxu0 %v3424
    %3442 = vmatprep.subr.bf16.mxu0 0
    %3443 = vmatpush1.bf16.msra.mxu0 %v3423
    %3444 = vmatprep.subr.bf16.mxu0 0
    %3445 = vmatpush1.bf16.msra.mxu0 %v3422
    %3446 = vmatprep.subr.bf16.mxu0 0
    %3447 = vmatpush2.bf16.msra.mxu0 0
    %3448 = vmatprep.subr.bf16.mxu0 0
    %3449 = vmatpush2.bf16.msra.mxu0 0
    %3450 = vmatprep.subr.bf16.mxu0 0
    %3451 = vmatpush2.bf16.msra.mxu0 0
    %3452 = vmatprep.subr.bf16.mxu0 0
    %3453 = vmatpush2.bf16.msra.mxu0 0
    %3454 = vmatprep.subr.bf16.mxu0 0
    %3455 = vmatpush2.bf16.msra.mxu0 0
    %3456 = vmatprep.subr.bf16.mxu0 0
    %3457 = vmatpush2.bf16.msra.mxu0 0
    %3458 = vmatprep.subr.bf16.mxu0 0
    %3459 = vmatpush2.bf16.msra.mxu0 0
    %3460 = vmatprep.subr.bf16.mxu0 0
    %3461 = vmatpush2.bf16.msra.mxu0 0
    %3462 = vmatprep.mubr.bf16.mxu0 0
    %3463 = vmatmul.mubr.bf16.gmra.mxu0 %v2379
    %v3464 = vpop.f32.mrf.mxu0
    %v3465 = vadd.f32 0.0, %v3464
    %v3466 = vpop.f32.mrf.mxu0
    %v3467 = vpop.f32.mrf.mxu0
    %v3468 = vpop.f32.mrf.mxu0
    %3469 = vdwg.mxu0
    %s3470 = scalar_lea.vmem [#allocation14], 8
    %v3471 = vld [vmem:[%s3470] sm:$0xf]
    %v3473 = vsel %vm1323, %v3471, 0
    %3475 = vmatprep.subr.mxu0 0.0
    %3476 = vmatpush1.msra.mxu0 0.0
    %3477 = vmatprep.subr.mxu0 0.0
    %3478 = vmatpush1.msra.mxu0 0.0
    %3479 = vmatprep.subr.mxu0 0.0
    %3480 = vmatpush1.msra.mxu0 0.0
    %3481 = vmatprep.subr.mxu0 0.0
    %3482 = vmatpush1.msra.mxu0 0.0
    %3483 = vmatprep.subr.mxu0 0.0
    %3484 = vmatpush1.msra.mxu0 0.0
    %3485 = vmatprep.subr.mxu0 0.0
    %3486 = vmatpush1.msra.mxu0 0.0
    %3487 = vmatprep.subr.mxu0 0.0
    %3488 = vmatpush1.msra.mxu0 0.0
    %3489 = vmatprep.subr.mxu0 0.0
    %3490 = vmatpush1.msra.mxu0 0.0
    %3491 = vmatprep.subr.mxu0 0.0
    %3492 = vmatpush1.msra.mxu0 0.0
    %3493 = vmatprep.subr.mxu0 0.0
    %3494 = vmatpush1.msra.mxu0 0.0
    %3495 = vmatprep.subr.mxu0 0.0
    %3496 = vmatpush1.msra.mxu0 0.0
    %3497 = vmatprep.subr.mxu0 0.0
    %3498 = vmatpush1.msra.mxu0 0.0
    %3499 = vmatprep.subr.mxu0 0.0
    %3500 = vmatpush1.msra.mxu0 0.0
    %3501 = vmatprep.subr.mxu0 0.0
    %3502 = vmatpush1.msra.mxu0 0.0
    %3503 = vmatprep.subr.mxu0 0.0
    %3504 = vmatpush1.msra.mxu0 0.0
    %3505 = vmatprep.subr.mxu0 0.0
    %v3506 = vand.u32 %v3465, 4294901760
    %3507 = vmatpush1.msra.mxu0 %v3506
    %3508 = vmatprep.subr.mxu0 0.0
    %3509 = vmatpush2.msra.mxu0 0.0
    %3510 = vmatprep.subr.mxu0 0.0
    %3511 = vmatpush2.msra.mxu0 0.0
    %3512 = vmatprep.subr.mxu0 0.0
    %3513 = vmatpush2.msra.mxu0 0.0
    %3514 = vmatprep.subr.mxu0 0.0
    %3515 = vmatpush2.msra.mxu0 0.0
    %3516 = vmatprep.subr.mxu0 0.0
    %3517 = vmatpush2.msra.mxu0 0.0
    %3518 = vmatprep.subr.mxu0 0.0
    %3519 = vmatpush2.msra.mxu0 0.0
    %3520 = vmatprep.subr.mxu0 0.0
    %3521 = vmatpush2.msra.mxu0 0.0
    %3522 = vmatprep.subr.mxu0 0.0
    %3523 = vmatpush2.msra.mxu0 0.0
    %3524 = vmatprep.subr.mxu0 0.0
    %3525 = vmatpush2.msra.mxu0 0.0
    %3526 = vmatprep.subr.mxu0 0.0
    %3527 = vmatpush2.msra.mxu0 0.0
    %3528 = vmatprep.subr.mxu0 0.0
    %3529 = vmatpush2.msra.mxu0 0.0
    %3530 = vmatprep.subr.mxu0 0.0
    %3531 = vmatpush2.msra.mxu0 0.0
    %3532 = vmatprep.subr.mxu0 0.0
    %3533 = vmatpush2.msra.mxu0 0.0
    %3534 = vmatprep.subr.mxu0 0.0
    %3535 = vmatpush2.msra.mxu0 0.0
    %3536 = vmatprep.subr.mxu0 0.0
    %3537 = vmatpush2.msra.mxu0 0.0
    %3538 = vmatprep.subr.mxu0 0.0
    %3539 = vmatpush2.msra.mxu0 0.0
    %3540 = vmatprep.mubr.f32.mxu0 0.0
    %v3541 = vand.u32 %v3473, 4294901760
    %v3542 = vsub.f32 %v3473, %v3541
    %v3543 = vand.u32 %v3542, 4294901760
    %v3544 = vsub.f32 %v3542, %v3543
    %v3545 = vand.u32 %v3544, 4294901760
    %3546 = vmatmul.mubr.f32.gmra.mxu0 %v3545
    %v3547 = vpop.f32.mrf.mxu0
    %v3548 = vadd.f32 0.0, %v3547
    %v3549 = vpop.f32.mrf.mxu0
    %3550 = vdwg.mxu0
    %3551 = vmatprep.subr.mxu0 0.0
    %3552 = vmatpush1.msra.mxu0 0.0
    %3553 = vmatprep.subr.mxu0 0.0
    %3554 = vmatpush1.msra.mxu0 0.0
    %3555 = vmatprep.subr.mxu0 0.0
    %3556 = vmatpush1.msra.mxu0 0.0
    %3557 = vmatprep.subr.mxu0 0.0
    %3558 = vmatpush1.msra.mxu0 0.0
    %3559 = vmatprep.subr.mxu0 0.0
    %3560 = vmatpush1.msra.mxu0 0.0
    %3561 = vmatprep.subr.mxu0 0.0
    %3562 = vmatpush1.msra.mxu0 0.0
    %3563 = vmatprep.subr.mxu0 0.0
    %3564 = vmatpush1.msra.mxu0 0.0
    %3565 = vmatprep.subr.mxu0 0.0
    %3566 = vmatpush1.msra.mxu0 0.0
    %3567 = vmatprep.subr.mxu0 0.0
    %3568 = vmatpush1.msra.mxu0 0.0
    %3569 = vmatprep.subr.mxu0 0.0
    %3570 = vmatpush1.msra.mxu0 0.0
    %3571 = vmatprep.subr.mxu0 0.0
    %3572 = vmatpush1.msra.mxu0 0.0
    %3573 = vmatprep.subr.mxu0 0.0
    %3574 = vmatpush1.msra.mxu0 0.0
    %3575 = vmatprep.subr.mxu0 0.0
    %3576 = vmatpush1.msra.mxu0 0.0
    %3577 = vmatprep.subr.mxu0 0.0
    %3578 = vmatpush1.msra.mxu0 0.0
    %3579 = vmatprep.subr.mxu0 0.0
    %3580 = vmatpush1.msra.mxu0 0.0
    %3581 = vmatprep.subr.mxu0 0.0
    %v3582 = vand.u32 %v3465, 4294901760
    %v3583 = vsub.f32 %v3465, %v3582
    %v3584 = vand.u32 %v3583, 4294901760
    %v3585 = vsub.f32 %v3583, %v3584
    %v3586 = vand.u32 %v3585, 4294901760
    %3587 = vmatpush1.msra.mxu0 %v3586
    %3588 = vmatprep.subr.mxu0 0.0
    %3589 = vmatpush2.msra.mxu0 0.0
    %3590 = vmatprep.subr.mxu0 0.0
    %3591 = vmatpush2.msra.mxu0 0.0
    %3592 = vmatprep.subr.mxu0 0.0
    %3593 = vmatpush2.msra.mxu0 0.0
    %3594 = vmatprep.subr.mxu0 0.0
    %3595 = vmatpush2.msra.mxu0 0.0
    %3596 = vmatprep.subr.mxu0 0.0
    %3597 = vmatpush2.msra.mxu0 0.0
    %3598 = vmatprep.subr.mxu0 0.0
    %3599 = vmatpush2.msra.mxu0 0.0
    %3600 = vmatprep.subr.mxu0 0.0
    %3601 = vmatpush2.msra.mxu0 0.0
    %3602 = vmatprep.subr.mxu0 0.0
    %3603 = vmatpush2.msra.mxu0 0.0
    %3604 = vmatprep.subr.mxu0 0.0
    %3605 = vmatpush2.msra.mxu0 0.0
    %3606 = vmatprep.subr.mxu0 0.0
    %3607 = vmatpush2.msra.mxu0 0.0
    %3608 = vmatprep.subr.mxu0 0.0
    %3609 = vmatpush2.msra.mxu0 0.0
    %3610 = vmatprep.subr.mxu0 0.0
    %3611 = vmatpush2.msra.mxu0 0.0
    %3612 = vmatprep.subr.mxu0 0.0
    %3613 = vmatpush2.msra.mxu0 0.0
    %3614 = vmatprep.subr.mxu0 0.0
    %3615 = vmatpush2.msra.mxu0 0.0
    %3616 = vmatprep.subr.mxu0 0.0
    %3617 = vmatpush2.msra.mxu0 0.0
    %3618 = vmatprep.subr.mxu0 0.0
    %3619 = vmatpush2.msra.mxu0 0.0
    %3620 = vmatprep.mubr.f32.mxu0 0.0
    %v3621 = vand.u32 %v3473, 4294901760
    %3622 = vmatmul.mubr.f32.gmra.mxu0 %v3621
    %v3623 = vpop.f32.mrf.mxu0
    %v3624 = vadd.f32 %v3548, %v3623
    %v3625 = vpop.f32.mrf.mxu0
    %3626 = vdwg.mxu0
    %3627 = vmatprep.subr.mxu0 0.0
    %3628 = vmatpush1.msra.mxu0 0.0
    %3629 = vmatprep.subr.mxu0 0.0
    %3630 = vmatpush1.msra.mxu0 0.0
    %3631 = vmatprep.subr.mxu0 0.0
    %3632 = vmatpush1.msra.mxu0 0.0
    %3633 = vmatprep.subr.mxu0 0.0
    %3634 = vmatpush1.msra.mxu0 0.0
    %3635 = vmatprep.subr.mxu0 0.0
    %3636 = vmatpush1.msra.mxu0 0.0
    %3637 = vmatprep.subr.mxu0 0.0
    %3638 = vmatpush1.msra.mxu0 0.0
    %3639 = vmatprep.subr.mxu0 0.0
    %3640 = vmatpush1.msra.mxu0 0.0
    %3641 = vmatprep.subr.mxu0 0.0
    %3642 = vmatpush1.msra.mxu0 0.0
    %3643 = vmatprep.subr.mxu0 0.0
    %3644 = vmatpush1.msra.mxu0 0.0
    %3645 = vmatprep.subr.mxu0 0.0
    %3646 = vmatpush1.msra.mxu0 0.0
    %3647 = vmatprep.subr.mxu0 0.0
    %3648 = vmatpush1.msra.mxu0 0.0
    %3649 = vmatprep.subr.mxu0 0.0
    %3650 = vmatpush1.msra.mxu0 0.0
    %3651 = vmatprep.subr.mxu0 0.0
    %3652 = vmatpush1.msra.mxu0 0.0
    %3653 = vmatprep.subr.mxu0 0.0
    %3654 = vmatpush1.msra.mxu0 0.0
    %3655 = vmatprep.subr.mxu0 0.0
    %3656 = vmatpush1.msra.mxu0 0.0
    %3657 = vmatprep.subr.mxu0 0.0
    %v3658 = vand.u32 %v3465, 4294901760
    %v3659 = vsub.f32 %v3465, %v3658
    %3660 = vmatpush1.msra.mxu0 %v3659
    %3661 = vmatprep.subr.mxu0 0.0
    %3662 = vmatpush2.msra.mxu0 0.0
    %3663 = vmatprep.subr.mxu0 0.0
    %3664 = vmatpush2.msra.mxu0 0.0
    %3665 = vmatprep.subr.mxu0 0.0
    %3666 = vmatpush2.msra.mxu0 0.0
    %3667 = vmatprep.subr.mxu0 0.0
    %3668 = vmatpush2.msra.mxu0 0.0
    %3669 = vmatprep.subr.mxu0 0.0
    %3670 = vmatpush2.msra.mxu0 0.0
    %3671 = vmatprep.subr.mxu0 0.0
    %3672 = vmatpush2.msra.mxu0 0.0
    %3673 = vmatprep.subr.mxu0 0.0
    %3674 = vmatpush2.msra.mxu0 0.0
    %3675 = vmatprep.subr.mxu0 0.0
    %3676 = vmatpush2.msra.mxu0 0.0
    %3677 = vmatprep.subr.mxu0 0.0
    %3678 = vmatpush2.msra.mxu0 0.0
    %3679 = vmatprep.subr.mxu0 0.0
    %3680 = vmatpush2.msra.mxu0 0.0
    %3681 = vmatprep.subr.mxu0 0.0
    %3682 = vmatpush2.msra.mxu0 0.0
    %3683 = vmatprep.subr.mxu0 0.0
    %3684 = vmatpush2.msra.mxu0 0.0
    %3685 = vmatprep.subr.mxu0 0.0
    %3686 = vmatpush2.msra.mxu0 0.0
    %3687 = vmatprep.subr.mxu0 0.0
    %3688 = vmatpush2.msra.mxu0 0.0
    %3689 = vmatprep.subr.mxu0 0.0
    %3690 = vmatpush2.msra.mxu0 0.0
    %3691 = vmatprep.subr.mxu0 0.0
    %3692 = vmatpush2.msra.mxu0 0.0
    %3693 = vmatprep.mubr.f32.mxu0 0.0
    %v3694 = vand.u32 %v3473, 4294901760
    %v3695 = vsub.f32 %v3473, %v3694
    %3696 = vmatmul.mubr.f32.gmra.mxu0 %v3695
    %v3697 = vpop.f32.mrf.mxu0
    %v3698 = vadd.f32 %v3624, %v3697
    %v3699 = vpop.f32.mrf.mxu0
    %3700 = vdwg.mxu0
    %3701 = vmatprep.subr.mxu0 0.0
    %3702 = vmatpush1.msra.mxu0 0.0
    %3703 = vmatprep.subr.mxu0 0.0
    %3704 = vmatpush1.msra.mxu0 0.0
    %3705 = vmatprep.subr.mxu0 0.0
    %3706 = vmatpush1.msra.mxu0 0.0
    %3707 = vmatprep.subr.mxu0 0.0
    %3708 = vmatpush1.msra.mxu0 0.0
    %3709 = vmatprep.subr.mxu0 0.0
    %3710 = vmatpush1.msra.mxu0 0.0
    %3711 = vmatprep.subr.mxu0 0.0
    %3712 = vmatpush1.msra.mxu0 0.0
    %3713 = vmatprep.subr.mxu0 0.0
    %3714 = vmatpush1.msra.mxu0 0.0
    %3715 = vmatprep.subr.mxu0 0.0
    %3716 = vmatpush1.msra.mxu0 0.0
    %3717 = vmatprep.subr.mxu0 0.0
    %3718 = vmatpush1.msra.mxu0 0.0
    %3719 = vmatprep.subr.mxu0 0.0
    %3720 = vmatpush1.msra.mxu0 0.0
    %3721 = vmatprep.subr.mxu0 0.0
    %3722 = vmatpush1.msra.mxu0 0.0
    %3723 = vmatprep.subr.mxu0 0.0
    %3724 = vmatpush1.msra.mxu0 0.0
    %3725 = vmatprep.subr.mxu0 0.0
    %3726 = vmatpush1.msra.mxu0 0.0
    %3727 = vmatprep.subr.mxu0 0.0
    %3728 = vmatpush1.msra.mxu0 0.0
    %3729 = vmatprep.subr.mxu0 0.0
    %3730 = vmatpush1.msra.mxu0 0.0
    %3731 = vmatprep.subr.mxu0 0.0
    %v3732 = vand.u32 %v3465, 4294901760
    %3733 = vmatpush1.msra.mxu0 %v3732
    %3734 = vmatprep.subr.mxu0 0.0
    %3735 = vmatpush2.msra.mxu0 0.0
    %3736 = vmatprep.subr.mxu0 0.0
    %3737 = vmatpush2.msra.mxu0 0.0
    %3738 = vmatprep.subr.mxu0 0.0
    %3739 = vmatpush2.msra.mxu0 0.0
    %3740 = vmatprep.subr.mxu0 0.0
    %3741 = vmatpush2.msra.mxu0 0.0
    %3742 = vmatprep.subr.mxu0 0.0
    %3743 = vmatpush2.msra.mxu0 0.0
    %3744 = vmatprep.subr.mxu0 0.0
    %3745 = vmatpush2.msra.mxu0 0.0
    %3746 = vmatprep.subr.mxu0 0.0
    %3747 = vmatpush2.msra.mxu0 0.0
    %3748 = vmatprep.subr.mxu0 0.0
    %3749 = vmatpush2.msra.mxu0 0.0
    %3750 = vmatprep.subr.mxu0 0.0
    %3751 = vmatpush2.msra.mxu0 0.0
    %3752 = vmatprep.subr.mxu0 0.0
    %3753 = vmatpush2.msra.mxu0 0.0
    %3754 = vmatprep.subr.mxu0 0.0
    %3755 = vmatpush2.msra.mxu0 0.0
    %3756 = vmatprep.subr.mxu0 0.0
    %3757 = vmatpush2.msra.mxu0 0.0
    %3758 = vmatprep.subr.mxu0 0.0
    %3759 = vmatpush2.msra.mxu0 0.0
    %3760 = vmatprep.subr.mxu0 0.0
    %3761 = vmatpush2.msra.mxu0 0.0
    %3762 = vmatprep.subr.mxu0 0.0
    %3763 = vmatpush2.msra.mxu0 0.0
    %3764 = vmatprep.subr.mxu0 0.0
    %3765 = vmatpush2.msra.mxu0 0.0
    %3766 = vmatprep.mubr.f32.mxu0 0.0
    %v3767 = vand.u32 %v3473, 4294901760
    %v3768 = vsub.f32 %v3473, %v3767
    %v3769 = vand.u32 %v3768, 4294901760
    %3770 = vmatmul.mubr.f32.gmra.mxu0 %v3769
    %v3771 = vpop.f32.mrf.mxu0
    %v3772 = vadd.f32 %v3698, %v3771
    %v3773 = vpop.f32.mrf.mxu0
    %3774 = vdwg.mxu0
    %3775 = vmatprep.subr.mxu0 0.0
    %3776 = vmatpush1.msra.mxu0 0.0
    %3777 = vmatprep.subr.mxu0 0.0
    %3778 = vmatpush1.msra.mxu0 0.0
    %3779 = vmatprep.subr.mxu0 0.0
    %3780 = vmatpush1.msra.mxu0 0.0
    %3781 = vmatprep.subr.mxu0 0.0
    %3782 = vmatpush1.msra.mxu0 0.0
    %3783 = vmatprep.subr.mxu0 0.0
    %3784 = vmatpush1.msra.mxu0 0.0
    %3785 = vmatprep.subr.mxu0 0.0
    %3786 = vmatpush1.msra.mxu0 0.0
    %3787 = vmatprep.subr.mxu0 0.0
    %3788 = vmatpush1.msra.mxu0 0.0
    %3789 = vmatprep.subr.mxu0 0.0
    %3790 = vmatpush1.msra.mxu0 0.0
    %3791 = vmatprep.subr.mxu0 0.0
    %3792 = vmatpush1.msra.mxu0 0.0
    %3793 = vmatprep.subr.mxu0 0.0
    %3794 = vmatpush1.msra.mxu0 0.0
    %3795 = vmatprep.subr.mxu0 0.0
    %3796 = vmatpush1.msra.mxu0 0.0
    %3797 = vmatprep.subr.mxu0 0.0
    %3798 = vmatpush1.msra.mxu0 0.0
    %3799 = vmatprep.subr.mxu0 0.0
    %3800 = vmatpush1.msra.mxu0 0.0
    %3801 = vmatprep.subr.mxu0 0.0
    %3802 = vmatpush1.msra.mxu0 0.0
    %3803 = vmatprep.subr.mxu0 0.0
    %3804 = vmatpush1.msra.mxu0 0.0
    %3805 = vmatprep.subr.mxu0 0.0
    %v3806 = vand.u32 %v3465, 4294901760
    %v3807 = vsub.f32 %v3465, %v3806
    %v3808 = vand.u32 %v3807, 4294901760
    %3809 = vmatpush1.msra.mxu0 %v3808
    %3810 = vmatprep.subr.mxu0 0.0
    %3811 = vmatpush2.msra.mxu0 0.0
    %3812 = vmatprep.subr.mxu0 0.0
    %3813 = vmatpush2.msra.mxu0 0.0
    %3814 = vmatprep.subr.mxu0 0.0
    %3815 = vmatpush2.msra.mxu0 0.0
    %3816 = vmatprep.subr.mxu0 0.0
    %3817 = vmatpush2.msra.mxu0 0.0
    %3818 = vmatprep.subr.mxu0 0.0
    %3819 = vmatpush2.msra.mxu0 0.0
    %3820 = vmatprep.subr.mxu0 0.0
    %3821 = vmatpush2.msra.mxu0 0.0
    %3822 = vmatprep.subr.mxu0 0.0
    %3823 = vmatpush2.msra.mxu0 0.0
    %3824 = vmatprep.subr.mxu0 0.0
    %3825 = vmatpush2.msra.mxu0 0.0
    %3826 = vmatprep.subr.mxu0 0.0
    %3827 = vmatpush2.msra.mxu0 0.0
    %3828 = vmatprep.subr.mxu0 0.0
    %3829 = vmatpush2.msra.mxu0 0.0
    %3830 = vmatprep.subr.mxu0 0.0
    %3831 = vmatpush2.msra.mxu0 0.0
    %3832 = vmatprep.subr.mxu0 0.0
    %3833 = vmatpush2.msra.mxu0 0.0
    %3834 = vmatprep.subr.mxu0 0.0
    %3835 = vmatpush2.msra.mxu0 0.0
    %3836 = vmatprep.subr.mxu0 0.0
    %3837 = vmatpush2.msra.mxu0 0.0
    %3838 = vmatprep.subr.mxu0 0.0
    %3839 = vmatpush2.msra.mxu0 0.0
    %3840 = vmatprep.subr.mxu0 0.0
    %3841 = vmatpush2.msra.mxu0 0.0
    %3842 = vmatprep.mubr.f32.mxu0 0.0
    %v3843 = vand.u32 %v3473, 4294901760
    %3844 = vmatmul.mubr.f32.gmra.mxu0 %v3843
    %v3845 = vpop.f32.mrf.mxu0
    %v3846 = vadd.f32 %v3772, %v3845
    %v3847 = vpop.f32.mrf.mxu0
    %3848 = vdwg.mxu0
    %3849 = vmatprep.subr.mxu0 0.0
    %3850 = vmatpush1.msra.mxu0 0.0
    %3851 = vmatprep.subr.mxu0 0.0
    %3852 = vmatpush1.msra.mxu0 0.0
    %3853 = vmatprep.subr.mxu0 0.0
    %3854 = vmatpush1.msra.mxu0 0.0
    %3855 = vmatprep.subr.mxu0 0.0
    %3856 = vmatpush1.msra.mxu0 0.0
    %3857 = vmatprep.subr.mxu0 0.0
    %3858 = vmatpush1.msra.mxu0 0.0
    %3859 = vmatprep.subr.mxu0 0.0
    %3860 = vmatpush1.msra.mxu0 0.0
    %3861 = vmatprep.subr.mxu0 0.0
    %3862 = vmatpush1.msra.mxu0 0.0
    %3863 = vmatprep.subr.mxu0 0.0
    %3864 = vmatpush1.msra.mxu0 0.0
    %3865 = vmatprep.subr.mxu0 0.0
    %3866 = vmatpush1.msra.mxu0 0.0
    %3867 = vmatprep.subr.mxu0 0.0
    %3868 = vmatpush1.msra.mxu0 0.0
    %3869 = vmatprep.subr.mxu0 0.0
    %3870 = vmatpush1.msra.mxu0 0.0
    %3871 = vmatprep.subr.mxu0 0.0
    %3872 = vmatpush1.msra.mxu0 0.0
    %3873 = vmatprep.subr.mxu0 0.0
    %3874 = vmatpush1.msra.mxu0 0.0
    %3875 = vmatprep.subr.mxu0 0.0
    %3876 = vmatpush1.msra.mxu0 0.0
    %3877 = vmatprep.subr.mxu0 0.0
    %3878 = vmatpush1.msra.mxu0 0.0
    %3879 = vmatprep.subr.mxu0 0.0
    %v3880 = vand.u32 %v3465, 4294901760
    %3881 = vmatpush1.msra.mxu0 %v3880
    %3882 = vmatprep.subr.mxu0 0.0
    %3883 = vmatpush2.msra.mxu0 0.0
    %3884 = vmatprep.subr.mxu0 0.0
    %3885 = vmatpush2.msra.mxu0 0.0
    %3886 = vmatprep.subr.mxu0 0.0
    %3887 = vmatpush2.msra.mxu0 0.0
    %3888 = vmatprep.subr.mxu0 0.0
    %3889 = vmatpush2.msra.mxu0 0.0
    %3890 = vmatprep.subr.mxu0 0.0
    %3891 = vmatpush2.msra.mxu0 0.0
    %3892 = vmatprep.subr.mxu0 0.0
    %3893 = vmatpush2.msra.mxu0 0.0
    %3894 = vmatprep.subr.mxu0 0.0
    %3895 = vmatpush2.msra.mxu0 0.0
    %3896 = vmatprep.subr.mxu0 0.0
    %3897 = vmatpush2.msra.mxu0 0.0
    %3898 = vmatprep.subr.mxu0 0.0
    %3899 = vmatpush2.msra.mxu0 0.0
    %3900 = vmatprep.subr.mxu0 0.0
    %3901 = vmatpush2.msra.mxu0 0.0
    %3902 = vmatprep.subr.mxu0 0.0
    %3903 = vmatpush2.msra.mxu0 0.0
    %3904 = vmatprep.subr.mxu0 0.0
    %3905 = vmatpush2.msra.mxu0 0.0
    %3906 = vmatprep.subr.mxu0 0.0
    %3907 = vmatpush2.msra.mxu0 0.0
    %3908 = vmatprep.subr.mxu0 0.0
    %3909 = vmatpush2.msra.mxu0 0.0
    %3910 = vmatprep.subr.mxu0 0.0
    %3911 = vmatpush2.msra.mxu0 0.0
    %3912 = vmatprep.subr.mxu0 0.0
    %3913 = vmatpush2.msra.mxu0 0.0
    %3914 = vmatprep.mubr.f32.mxu0 0.0
    %v3915 = vand.u32 %v3473, 4294901760
    %3916 = vmatmul.mubr.f32.gmra.mxu0 %v3915
    %v3917 = vpop.f32.mrf.mxu0
    %v3918 = vadd.f32 %v3846, %v3917
    %v3919 = vpop.f32.mrf.mxu0
    %3920 = vdwg.mxu0
    %v3921 = vadd.f32 %v3396, %v3918
    %v3922 = vmul.f32 %v3921, 0.2
    %v3923 = vmax.f32 %v3921, %v3922
    %s3924 = smul.u32 4, 3
    %s3925 = smul.u32 %s3924, 16
    %s3926 = smul.u32 %s3925, 2
    %s3927 = sshll.u32 %s3926, 4
    %3928 = dma.done [#allocation4], %s3927
    %v3929 = vpack.c.bf16 %v3923, %v3923
    %v3930 = vld [vmem:[#allocation19] sm:$0xff]
    %v3931 = vld [vmem:[#allocation2] sm:$0xff]
    %v3932 = vld [vmem:[#allocation2 + $0x8] sm:$0xff]
    %v3933 = vld [vmem:[#allocation2 + $0x10] sm:$0xff]
    %v3934 = vld [vmem:[#allocation2 + $0x18] sm:$0xff]
    %v3935 = vld [vmem:[#allocation2 + $0x20] sm:$0xff]
    %v3936 = vld [vmem:[#allocation2 + $0x28] sm:$0xff]
    %v3937 = vld [vmem:[#allocation2 + $0x30] sm:$0xff]
    %v3938 = vld [vmem:[#allocation2 + $0x38] sm:$0xff]
    %v3939 = vld [vmem:[#allocation2 + $0x40] sm:$0xff]
    %v3940 = vld [vmem:[#allocation2 + $0x48] sm:$0xff]
    %v3941 = vld [vmem:[#allocation2 + $0x50] sm:$0xff]
    %v3942 = vld [vmem:[#allocation2 + $0x58] sm:$0xff]
    %v3943 = vld [vmem:[#allocation2 + $0x60] sm:$0xff]
    %v3944 = vld [vmem:[#allocation2 + $0x68] sm:$0xff]
    %v3945 = vld [vmem:[#allocation2 + $0x70] sm:$0xff]
    %v3946 = vld [vmem:[#allocation2 + $0x78] sm:$0xff]
    %v3963 = vunpack.c.l.b16 %v3931
    %v3964 = vunpack.c.h.b16 %v3931
    %v3965 = vunpack.c.l.b16 %v3932
    %v3966 = vunpack.c.h.b16 %v3932
    %v3967 = vunpack.c.l.b16 %v3933
    %v3968 = vunpack.c.h.b16 %v3933
    %v3969 = vunpack.c.l.b16 %v3934
    %v3970 = vunpack.c.h.b16 %v3934
    %v3971 = vunpack.c.l.b16 %v3935
    %v3972 = vunpack.c.h.b16 %v3935
    %v3973 = vunpack.c.l.b16 %v3936
    %v3974 = vunpack.c.h.b16 %v3936
    %v3975 = vunpack.c.l.b16 %v3937
    %v3976 = vunpack.c.h.b16 %v3937
    %v3977 = vunpack.c.l.b16 %v3938
    %v3978 = vunpack.c.h.b16 %v3938
    %v3979 = vunpack.c.l.b16 %v3939
    %v3980 = vunpack.c.h.b16 %v3939
    %v3981 = vunpack.c.l.b16 %v3940
    %v3982 = vunpack.c.h.b16 %v3940
    %v3983 = vunpack.c.l.b16 %v3941
    %v3984 = vunpack.c.h.b16 %v3941
    %v3985 = vunpack.c.l.b16 %v3942
    %v3986 = vunpack.c.h.b16 %v3942
    %v3987 = vunpack.c.l.b16 %v3943
    %v3988 = vunpack.c.h.b16 %v3943
    %v3989 = vunpack.c.l.b16 %v3944
    %v3990 = vunpack.c.h.b16 %v3944
    %v3991 = vunpack.c.l.b16 %v3945
    %v3992 = vunpack.c.h.b16 %v3945
    %v3993 = vunpack.c.l.b16 %v3946
    %v3994 = vunpack.c.h.b16 %v3946
    %v3995 = vpack.c.b16 %v3965, %v3963
    %v3996 = vpack.c.b16 %v3966, %v3964
    %v3997 = vpack.c.b16 %v3969, %v3967
    %v3998 = vpack.c.b16 %v3970, %v3968
    %v3999 = vpack.c.b16 %v3973, %v3971
    %v4000 = vpack.c.b16 %v3974, %v3972
    %v4001 = vpack.c.b16 %v3977, %v3975
    %v4002 = vpack.c.b16 %v3978, %v3976
    %v4003 = vpack.c.b16 %v3981, %v3979
    %v4004 = vpack.c.b16 %v3982, %v3980
    %v4005 = vpack.c.b16 %v3985, %v3983
    %v4006 = vpack.c.b16 %v3986, %v3984
    %v4007 = vpack.c.b16 %v3989, %v3987
    %v4008 = vpack.c.b16 %v3990, %v3988
    %v4009 = vpack.c.b16 %v3993, %v3991
    %v4010 = vpack.c.b16 %v3994, %v3992
    %4027 = vmatprep.subr.bf16.mxu0 %v4010
    %4028 = vmatpush1.bf16.msra.mxu0 %v4009
    %4029 = vmatprep.subr.bf16.mxu0 %v4008
    %4030 = vmatpush1.bf16.msra.mxu0 %v4007
    %4031 = vmatprep.subr.bf16.mxu0 %v4006
    %4032 = vmatpush1.bf16.msra.mxu0 %v4005
    %4033 = vmatprep.subr.bf16.mxu0 %v4004
    %4034 = vmatpush1.bf16.msra.mxu0 %v4003
    %4035 = vmatprep.subr.bf16.mxu0 %v4002
    %4036 = vmatpush1.bf16.msra.mxu0 %v4001
    %4037 = vmatprep.subr.bf16.mxu0 %v4000
    %4038 = vmatpush1.bf16.msra.mxu0 %v3999
    %4039 = vmatprep.subr.bf16.mxu0 %v3998
    %4040 = vmatpush1.bf16.msra.mxu0 %v3997
    %4041 = vmatprep.subr.bf16.mxu0 %v3996
    %4042 = vmatpush1.bf16.msra.mxu0 %v3995
    %4043 = vmatprep.subr.bf16.mxu0 0
    %4044 = vmatpush2.bf16.msra.mxu0 0
    %4045 = vmatprep.subr.bf16.mxu0 0
    %4046 = vmatpush2.bf16.msra.mxu0 0
    %4047 = vmatprep.subr.bf16.mxu0 0
    %4048 = vmatpush2.bf16.msra.mxu0 0
    %4049 = vmatprep.subr.bf16.mxu0 0
    %4050 = vmatpush2.bf16.msra.mxu0 0
    %4051 = vmatprep.subr.bf16.mxu0 0
    %4052 = vmatpush2.bf16.msra.mxu0 0
    %4053 = vmatprep.subr.bf16.mxu0 0
    %4054 = vmatpush2.bf16.msra.mxu0 0
    %4055 = vmatprep.subr.bf16.mxu0 0
    %4056 = vmatpush2.bf16.msra.mxu0 0
    %4057 = vmatprep.subr.bf16.mxu0 0
    %4058 = vmatpush2.bf16.msra.mxu0 0
    %4059 = vmatprep.mubr.bf16.mxu0 0
    %4060 = vmatmul.mubr.bf16.gmra.mxu0 %v3929
    %v4061 = vpop.f32.mrf.mxu0
    %v4062 = vadd.f32 0.0, %v4061
    %v4063 = vpop.f32.mrf.mxu0
    %v4064 = vadd.f32 0.0, %v4063
    %v4065 = vpop.f32.mrf.mxu0
    %v4066 = vpop.f32.mrf.mxu0
    %4067 = vdwg.mxu0
    %v4068 = vld [vmem:[#allocation17] sm:$0xf]
    %vm4069 = vcmask 31744
    %v4071 = vsel %vm4069, %v4068, 0
    %v4074 = vsel %vm235, %v4062, 0
    %v4077 = vsel %vm235, %v4064, 0
    %4079 = vmatprep.subr.mxu0 0.0
    %4080 = vmatpush1.msra.mxu0 0.0
    %4081 = vmatprep.subr.mxu0 0.0
    %4082 = vmatpush1.msra.mxu0 0.0
    %4083 = vmatprep.subr.mxu0 0.0
    %4084 = vmatpush1.msra.mxu0 0.0
    %4085 = vmatprep.subr.mxu0 0.0
    %4086 = vmatpush1.msra.mxu0 0.0
    %4087 = vmatprep.subr.mxu0 0.0
    %4088 = vmatpush1.msra.mxu0 0.0
    %4089 = vmatprep.subr.mxu0 0.0
    %4090 = vmatpush1.msra.mxu0 0.0
    %4091 = vmatprep.subr.mxu0 0.0
    %4092 = vmatpush1.msra.mxu0 0.0
    %4093 = vmatprep.subr.mxu0 0.0
    %4094 = vmatpush1.msra.mxu0 0.0
    %4095 = vmatprep.subr.mxu0 0.0
    %4096 = vmatpush1.msra.mxu0 0.0
    %4097 = vmatprep.subr.mxu0 0.0
    %4098 = vmatpush1.msra.mxu0 0.0
    %4099 = vmatprep.subr.mxu0 0.0
    %4100 = vmatpush1.msra.mxu0 0.0
    %4101 = vmatprep.subr.mxu0 0.0
    %4102 = vmatpush1.msra.mxu0 0.0
    %4103 = vmatprep.subr.mxu0 0.0
    %4104 = vmatpush1.msra.mxu0 0.0
    %4105 = vmatprep.subr.mxu0 0.0
    %4106 = vmatpush1.msra.mxu0 0.0
    %4107 = vmatprep.subr.mxu0 0.0
    %4108 = vmatpush1.msra.mxu0 0.0
    %v4109 = vand.u32 %v4077, 4294901760
    %4110 = vmatprep.subr.mxu0 %v4109
    %v4111 = vand.u32 %v4074, 4294901760
    %4112 = vmatpush1.msra.mxu0 %v4111
    %4113 = vmatprep.subr.mxu0 0.0
    %4114 = vmatpush2.msra.mxu0 0.0
    %4115 = vmatprep.subr.mxu0 0.0
    %4116 = vmatpush2.msra.mxu0 0.0
    %4117 = vmatprep.subr.mxu0 0.0
    %4118 = vmatpush2.msra.mxu0 0.0
    %4119 = vmatprep.subr.mxu0 0.0
    %4120 = vmatpush2.msra.mxu0 0.0
    %4121 = vmatprep.subr.mxu0 0.0
    %4122 = vmatpush2.msra.mxu0 0.0
    %4123 = vmatprep.subr.mxu0 0.0
    %4124 = vmatpush2.msra.mxu0 0.0
    %4125 = vmatprep.subr.mxu0 0.0
    %4126 = vmatpush2.msra.mxu0 0.0
    %4127 = vmatprep.subr.mxu0 0.0
    %4128 = vmatpush2.msra.mxu0 0.0
    %4129 = vmatprep.subr.mxu0 0.0
    %4130 = vmatpush2.msra.mxu0 0.0
    %4131 = vmatprep.subr.mxu0 0.0
    %4132 = vmatpush2.msra.mxu0 0.0
    %4133 = vmatprep.subr.mxu0 0.0
    %4134 = vmatpush2.msra.mxu0 0.0
    %4135 = vmatprep.subr.mxu0 0.0
    %4136 = vmatpush2.msra.mxu0 0.0
    %4137 = vmatprep.subr.mxu0 0.0
    %4138 = vmatpush2.msra.mxu0 0.0
    %4139 = vmatprep.subr.mxu0 0.0
    %4140 = vmatpush2.msra.mxu0 0.0
    %4141 = vmatprep.subr.mxu0 0.0
    %4142 = vmatpush2.msra.mxu0 0.0
    %4143 = vmatprep.subr.mxu0 0.0
    %4144 = vmatpush2.msra.mxu0 0.0
    %4145 = vmatprep.mubr.f32.mxu0 0.0
    %v4146 = vand.u32 %v4071, 4294901760
    %v4147 = vsub.f32 %v4071, %v4146
    %v4148 = vand.u32 %v4147, 4294901760
    %v4149 = vsub.f32 %v4147, %v4148
    %v4150 = vand.u32 %v4149, 4294901760
    %4151 = vmatmul.mubr.f32.gmra.mxu0 %v4150
    %v4152 = vpop.f32.mrf.mxu0
    %v4153 = vadd.f32 0.0, %v4152
    %v4154 = vpop.f32.mrf.mxu0
    %v4155 = vadd.f32 0.0, %v4154
    %4156 = vdwg.mxu0
    %4157 = vmatprep.subr.mxu0 0.0
    %4158 = vmatpush1.msra.mxu0 0.0
    %4159 = vmatprep.subr.mxu0 0.0
    %4160 = vmatpush1.msra.mxu0 0.0
    %4161 = vmatprep.subr.mxu0 0.0
    %4162 = vmatpush1.msra.mxu0 0.0
    %4163 = vmatprep.subr.mxu0 0.0
    %4164 = vmatpush1.msra.mxu0 0.0
    %4165 = vmatprep.subr.mxu0 0.0
    %4166 = vmatpush1.msra.mxu0 0.0
    %4167 = vmatprep.subr.mxu0 0.0
    %4168 = vmatpush1.msra.mxu0 0.0
    %4169 = vmatprep.subr.mxu0 0.0
    %4170 = vmatpush1.msra.mxu0 0.0
    %4171 = vmatprep.subr.mxu0 0.0
    %4172 = vmatpush1.msra.mxu0 0.0
    %4173 = vmatprep.subr.mxu0 0.0
    %4174 = vmatpush1.msra.mxu0 0.0
    %4175 = vmatprep.subr.mxu0 0.0
    %4176 = vmatpush1.msra.mxu0 0.0
    %4177 = vmatprep.subr.mxu0 0.0
    %4178 = vmatpush1.msra.mxu0 0.0
    %4179 = vmatprep.subr.mxu0 0.0
    %4180 = vmatpush1.msra.mxu0 0.0
    %4181 = vmatprep.subr.mxu0 0.0
    %4182 = vmatpush1.msra.mxu0 0.0
    %4183 = vmatprep.subr.mxu0 0.0
    %4184 = vmatpush1.msra.mxu0 0.0
    %4185 = vmatprep.subr.mxu0 0.0
    %4186 = vmatpush1.msra.mxu0 0.0
    %v4187 = vand.u32 %v4077, 4294901760
    %v4188 = vsub.f32 %v4077, %v4187
    %v4189 = vand.u32 %v4188, 4294901760
    %v4190 = vsub.f32 %v4188, %v4189
    %v4191 = vand.u32 %v4190, 4294901760
    %4192 = vmatprep.subr.mxu0 %v4191
    %v4193 = vand.u32 %v4074, 4294901760
    %v4194 = vsub.f32 %v4074, %v4193
    %v4195 = vand.u32 %v4194, 4294901760
    %v4196 = vsub.f32 %v4194, %v4195
    %v4197 = vand.u32 %v4196, 4294901760
    %4198 = vmatpush1.msra.mxu0 %v4197
    %4199 = vmatprep.subr.mxu0 0.0
    %4200 = vmatpush2.msra.mxu0 0.0
    %4201 = vmatprep.subr.mxu0 0.0
    %4202 = vmatpush2.msra.mxu0 0.0
    %4203 = vmatprep.subr.mxu0 0.0
    %4204 = vmatpush2.msra.mxu0 0.0
    %4205 = vmatprep.subr.mxu0 0.0
    %4206 = vmatpush2.msra.mxu0 0.0
    %4207 = vmatprep.subr.mxu0 0.0
    %4208 = vmatpush2.msra.mxu0 0.0
    %4209 = vmatprep.subr.mxu0 0.0
    %4210 = vmatpush2.msra.mxu0 0.0
    %4211 = vmatprep.subr.mxu0 0.0
    %4212 = vmatpush2.msra.mxu0 0.0
    %4213 = vmatprep.subr.mxu0 0.0
    %4214 = vmatpush2.msra.mxu0 0.0
    %4215 = vmatprep.subr.mxu0 0.0
    %4216 = vmatpush2.msra.mxu0 0.0
    %4217 = vmatprep.subr.mxu0 0.0
    %4218 = vmatpush2.msra.mxu0 0.0
    %4219 = vmatprep.subr.mxu0 0.0
    %4220 = vmatpush2.msra.mxu0 0.0
    %4221 = vmatprep.subr.mxu0 0.0
    %4222 = vmatpush2.msra.mxu0 0.0
    %4223 = vmatprep.subr.mxu0 0.0
    %4224 = vmatpush2.msra.mxu0 0.0
    %4225 = vmatprep.subr.mxu0 0.0
    %4226 = vmatpush2.msra.mxu0 0.0
    %4227 = vmatprep.subr.mxu0 0.0
    %4228 = vmatpush2.msra.mxu0 0.0
    %4229 = vmatprep.subr.mxu0 0.0
    %4230 = vmatpush2.msra.mxu0 0.0
    %4231 = vmatprep.mubr.f32.mxu0 0.0
    %v4232 = vand.u32 %v4071, 4294901760
    %4233 = vmatmul.mubr.f32.gmra.mxu0 %v4232
    %v4234 = vpop.f32.mrf.mxu0
    %v4235 = vadd.f32 %v4153, %v4234
    %v4236 = vpop.f32.mrf.mxu0
    %v4237 = vadd.f32 %v4155, %v4236
    %4238 = vdwg.mxu0
    %4239 = vmatprep.subr.mxu0 0.0
    %4240 = vmatpush1.msra.mxu0 0.0
    %4241 = vmatprep.subr.mxu0 0.0
    %4242 = vmatpush1.msra.mxu0 0.0
    %4243 = vmatprep.subr.mxu0 0.0
    %4244 = vmatpush1.msra.mxu0 0.0
    %4245 = vmatprep.subr.mxu0 0.0
    %4246 = vmatpush1.msra.mxu0 0.0
    %4247 = vmatprep.subr.mxu0 0.0
    %4248 = vmatpush1.msra.mxu0 0.0
    %4249 = vmatprep.subr.mxu0 0.0
    %4250 = vmatpush1.msra.mxu0 0.0
    %4251 = vmatprep.subr.mxu0 0.0
    %4252 = vmatpush1.msra.mxu0 0.0
    %4253 = vmatprep.subr.mxu0 0.0
    %4254 = vmatpush1.msra.mxu0 0.0
    %4255 = vmatprep.subr.mxu0 0.0
    %4256 = vmatpush1.msra.mxu0 0.0
    %4257 = vmatprep.subr.mxu0 0.0
    %4258 = vmatpush1.msra.mxu0 0.0
    %4259 = vmatprep.subr.mxu0 0.0
    %4260 = vmatpush1.msra.mxu0 0.0
    %4261 = vmatprep.subr.mxu0 0.0
    %4262 = vmatpush1.msra.mxu0 0.0
    %4263 = vmatprep.subr.mxu0 0.0
    %4264 = vmatpush1.msra.mxu0 0.0
    %4265 = vmatprep.subr.mxu0 0.0
    %4266 = vmatpush1.msra.mxu0 0.0
    %4267 = vmatprep.subr.mxu0 0.0
    %4268 = vmatpush1.msra.mxu0 0.0
    %v4269 = vand.u32 %v4077, 4294901760
    %v4270 = vsub.f32 %v4077, %v4269
    %4271 = vmatprep.subr.mxu0 %v4270
    %v4272 = vand.u32 %v4074, 4294901760
    %v4273 = vsub.f32 %v4074, %v4272
    %4274 = vmatpush1.msra.mxu0 %v4273
    %4275 = vmatprep.subr.mxu0 0.0
    %4276 = vmatpush2.msra.mxu0 0.0
    %4277 = vmatprep.subr.mxu0 0.0
    %4278 = vmatpush2.msra.mxu0 0.0
    %4279 = vmatprep.subr.mxu0 0.0
    %4280 = vmatpush2.msra.mxu0 0.0
    %4281 = vmatprep.subr.mxu0 0.0
    %4282 = vmatpush2.msra.mxu0 0.0
    %4283 = vmatprep.subr.mxu0 0.0
    %4284 = vmatpush2.msra.mxu0 0.0
    %4285 = vmatprep.subr.mxu0 0.0
    %4286 = vmatpush2.msra.mxu0 0.0
    %4287 = vmatprep.subr.mxu0 0.0
    %4288 = vmatpush2.msra.mxu0 0.0
    %4289 = vmatprep.subr.mxu0 0.0
    %4290 = vmatpush2.msra.mxu0 0.0
    %4291 = vmatprep.subr.mxu0 0.0
    %4292 = vmatpush2.msra.mxu0 0.0
    %4293 = vmatprep.subr.mxu0 0.0
    %4294 = vmatpush2.msra.mxu0 0.0
    %4295 = vmatprep.subr.mxu0 0.0
    %4296 = vmatpush2.msra.mxu0 0.0
    %4297 = vmatprep.subr.mxu0 0.0
    %4298 = vmatpush2.msra.mxu0 0.0
    %4299 = vmatprep.subr.mxu0 0.0
    %4300 = vmatpush2.msra.mxu0 0.0
    %4301 = vmatprep.subr.mxu0 0.0
    %4302 = vmatpush2.msra.mxu0 0.0
    %4303 = vmatprep.subr.mxu0 0.0
    %4304 = vmatpush2.msra.mxu0 0.0
    %4305 = vmatprep.subr.mxu0 0.0
    %4306 = vmatpush2.msra.mxu0 0.0
    %4307 = vmatprep.mubr.f32.mxu0 0.0
    %v4308 = vand.u32 %v4071, 4294901760
    %v4309 = vsub.f32 %v4071, %v4308
    %4310 = vmatmul.mubr.f32.gmra.mxu0 %v4309
    %v4311 = vpop.f32.mrf.mxu0
    %v4312 = vadd.f32 %v4235, %v4311
    %v4313 = vpop.f32.mrf.mxu0
    %v4314 = vadd.f32 %v4237, %v4313
    %4315 = vdwg.mxu0
    %4316 = vmatprep.subr.mxu0 0.0
    %4317 = vmatpush1.msra.mxu0 0.0
    %4318 = vmatprep.subr.mxu0 0.0
    %4319 = vmatpush1.msra.mxu0 0.0
    %4320 = vmatprep.subr.mxu0 0.0
    %4321 = vmatpush1.msra.mxu0 0.0
    %4322 = vmatprep.subr.mxu0 0.0
    %4323 = vmatpush1.msra.mxu0 0.0
    %4324 = vmatprep.subr.mxu0 0.0
    %4325 = vmatpush1.msra.mxu0 0.0
    %4326 = vmatprep.subr.mxu0 0.0
    %4327 = vmatpush1.msra.mxu0 0.0
    %4328 = vmatprep.subr.mxu0 0.0
    %4329 = vmatpush1.msra.mxu0 0.0
    %4330 = vmatprep.subr.mxu0 0.0
    %4331 = vmatpush1.msra.mxu0 0.0
    %4332 = vmatprep.subr.mxu0 0.0
    %4333 = vmatpush1.msra.mxu0 0.0
    %4334 = vmatprep.subr.mxu0 0.0
    %4335 = vmatpush1.msra.mxu0 0.0
    %4336 = vmatprep.subr.mxu0 0.0
    %4337 = vmatpush1.msra.mxu0 0.0
    %4338 = vmatprep.subr.mxu0 0.0
    %4339 = vmatpush1.msra.mxu0 0.0
    %4340 = vmatprep.subr.mxu0 0.0
    %4341 = vmatpush1.msra.mxu0 0.0
    %4342 = vmatprep.subr.mxu0 0.0
    %4343 = vmatpush1.msra.mxu0 0.0
    %4344 = vmatprep.subr.mxu0 0.0
    %4345 = vmatpush1.msra.mxu0 0.0
    %v4346 = vand.u32 %v4077, 4294901760
    %4347 = vmatprep.subr.mxu0 %v4346
    %v4348 = vand.u32 %v4074, 4294901760
    %4349 = vmatpush1.msra.mxu0 %v4348
    %4350 = vmatprep.subr.mxu0 0.0
    %4351 = vmatpush2.msra.mxu0 0.0
    %4352 = vmatprep.subr.mxu0 0.0
    %4353 = vmatpush2.msra.mxu0 0.0
    %4354 = vmatprep.subr.mxu0 0.0
    %4355 = vmatpush2.msra.mxu0 0.0
    %4356 = vmatprep.subr.mxu0 0.0
    %4357 = vmatpush2.msra.mxu0 0.0
    %4358 = vmatprep.subr.mxu0 0.0
    %4359 = vmatpush2.msra.mxu0 0.0
    %4360 = vmatprep.subr.mxu0 0.0
    %4361 = vmatpush2.msra.mxu0 0.0
    %4362 = vmatprep.subr.mxu0 0.0
    %4363 = vmatpush2.msra.mxu0 0.0
    %4364 = vmatprep.subr.mxu0 0.0
    %4365 = vmatpush2.msra.mxu0 0.0
    %4366 = vmatprep.subr.mxu0 0.0
    %4367 = vmatpush2.msra.mxu0 0.0
    %4368 = vmatprep.subr.mxu0 0.0
    %4369 = vmatpush2.msra.mxu0 0.0
    %4370 = vmatprep.subr.mxu0 0.0
    %4371 = vmatpush2.msra.mxu0 0.0
    %4372 = vmatprep.subr.mxu0 0.0
    %4373 = vmatpush2.msra.mxu0 0.0
    %4374 = vmatprep.subr.mxu0 0.0
    %4375 = vmatpush2.msra.mxu0 0.0
    %4376 = vmatprep.subr.mxu0 0.0
    %4377 = vmatpush2.msra.mxu0 0.0
    %4378 = vmatprep.subr.mxu0 0.0
    %4379 = vmatpush2.msra.mxu0 0.0
    %4380 = vmatprep.subr.mxu0 0.0
    %4381 = vmatpush2.msra.mxu0 0.0
    %4382 = vmatprep.mubr.f32.mxu0 0.0
    %v4383 = vand.u32 %v4071, 4294901760
    %v4384 = vsub.f32 %v4071, %v4383
    %v4385 = vand.u32 %v4384, 4294901760
    %4386 = vmatmul.mubr.f32.gmra.mxu0 %v4385
    %v4387 = vpop.f32.mrf.mxu0
    %v4388 = vadd.f32 %v4312, %v4387
    %v4389 = vpop.f32.mrf.mxu0
    %v4390 = vadd.f32 %v4314, %v4389
    %4391 = vdwg.mxu0
    %4392 = vmatprep.subr.mxu0 0.0
    %4393 = vmatpush1.msra.mxu0 0.0
    %4394 = vmatprep.subr.mxu0 0.0
    %4395 = vmatpush1.msra.mxu0 0.0
    %4396 = vmatprep.subr.mxu0 0.0
    %4397 = vmatpush1.msra.mxu0 0.0
    %4398 = vmatprep.subr.mxu0 0.0
    %4399 = vmatpush1.msra.mxu0 0.0
    %4400 = vmatprep.subr.mxu0 0.0
    %4401 = vmatpush1.msra.mxu0 0.0
    %4402 = vmatprep.subr.mxu0 0.0
    %4403 = vmatpush1.msra.mxu0 0.0
    %4404 = vmatprep.subr.mxu0 0.0
    %4405 = vmatpush1.msra.mxu0 0.0
    %4406 = vmatprep.subr.mxu0 0.0
    %4407 = vmatpush1.msra.mxu0 0.0
    %4408 = vmatprep.subr.mxu0 0.0
    %4409 = vmatpush1.msra.mxu0 0.0
    %4410 = vmatprep.subr.mxu0 0.0
    %4411 = vmatpush1.msra.mxu0 0.0
    %4412 = vmatprep.subr.mxu0 0.0
    %4413 = vmatpush1.msra.mxu0 0.0
    %4414 = vmatprep.subr.mxu0 0.0
    %4415 = vmatpush1.msra.mxu0 0.0
    %4416 = vmatprep.subr.mxu0 0.0
    %4417 = vmatpush1.msra.mxu0 0.0
    %4418 = vmatprep.subr.mxu0 0.0
    %4419 = vmatpush1.msra.mxu0 0.0
    %4420 = vmatprep.subr.mxu0 0.0
    %4421 = vmatpush1.msra.mxu0 0.0
    %v4422 = vand.u32 %v4077, 4294901760
    %v4423 = vsub.f32 %v4077, %v4422
    %v4424 = vand.u32 %v4423, 4294901760
    %4425 = vmatprep.subr.mxu0 %v4424
    %v4426 = vand.u32 %v4074, 4294901760
    %v4427 = vsub.f32 %v4074, %v4426
    %v4428 = vand.u32 %v4427, 4294901760
    %4429 = vmatpush1.msra.mxu0 %v4428
    %4430 = vmatprep.subr.mxu0 0.0
    %4431 = vmatpush2.msra.mxu0 0.0
    %4432 = vmatprep.subr.mxu0 0.0
    %4433 = vmatpush2.msra.mxu0 0.0
    %4434 = vmatprep.subr.mxu0 0.0
    %4435 = vmatpush2.msra.mxu0 0.0
    %4436 = vmatprep.subr.mxu0 0.0
    %4437 = vmatpush2.msra.mxu0 0.0
    %4438 = vmatprep.subr.mxu0 0.0
    %4439 = vmatpush2.msra.mxu0 0.0
    %4440 = vmatprep.subr.mxu0 0.0
    %4441 = vmatpush2.msra.mxu0 0.0
    %4442 = vmatprep.subr.mxu0 0.0
    %4443 = vmatpush2.msra.mxu0 0.0
    %4444 = vmatprep.subr.mxu0 0.0
    %4445 = vmatpush2.msra.mxu0 0.0
    %4446 = vmatprep.subr.mxu0 0.0
    %4447 = vmatpush2.msra.mxu0 0.0
    %4448 = vmatprep.subr.mxu0 0.0
    %4449 = vmatpush2.msra.mxu0 0.0
    %4450 = vmatprep.subr.mxu0 0.0
    %4451 = vmatpush2.msra.mxu0 0.0
    %4452 = vmatprep.subr.mxu0 0.0
    %4453 = vmatpush2.msra.mxu0 0.0
    %4454 = vmatprep.subr.mxu0 0.0
    %4455 = vmatpush2.msra.mxu0 0.0
    %4456 = vmatprep.subr.mxu0 0.0
    %4457 = vmatpush2.msra.mxu0 0.0
    %4458 = vmatprep.subr.mxu0 0.0
    %4459 = vmatpush2.msra.mxu0 0.0
    %4460 = vmatprep.subr.mxu0 0.0
    %4461 = vmatpush2.msra.mxu0 0.0
    %4462 = vmatprep.mubr.f32.mxu0 0.0
    %v4463 = vand.u32 %v4071, 4294901760
    %4464 = vmatmul.mubr.f32.gmra.mxu0 %v4463
    %v4465 = vpop.f32.mrf.mxu0
    %v4466 = vadd.f32 %v4388, %v4465
    %v4467 = vpop.f32.mrf.mxu0
    %v4468 = vadd.f32 %v4390, %v4467
    %4469 = vdwg.mxu0
    %4470 = vmatprep.subr.mxu0 0.0
    %4471 = vmatpush1.msra.mxu0 0.0
    %4472 = vmatprep.subr.mxu0 0.0
    %4473 = vmatpush1.msra.mxu0 0.0
    %4474 = vmatprep.subr.mxu0 0.0
    %4475 = vmatpush1.msra.mxu0 0.0
    %4476 = vmatprep.subr.mxu0 0.0
    %4477 = vmatpush1.msra.mxu0 0.0
    %4478 = vmatprep.subr.mxu0 0.0
    %4479 = vmatpush1.msra.mxu0 0.0
    %4480 = vmatprep.subr.mxu0 0.0
    %4481 = vmatpush1.msra.mxu0 0.0
    %4482 = vmatprep.subr.mxu0 0.0
    %4483 = vmatpush1.msra.mxu0 0.0
    %4484 = vmatprep.subr.mxu0 0.0
    %4485 = vmatpush1.msra.mxu0 0.0
    %4486 = vmatprep.subr.mxu0 0.0
    %4487 = vmatpush1.msra.mxu0 0.0
    %4488 = vmatprep.subr.mxu0 0.0
    %4489 = vmatpush1.msra.mxu0 0.0
    %4490 = vmatprep.subr.mxu0 0.0
    %4491 = vmatpush1.msra.mxu0 0.0
    %4492 = vmatprep.subr.mxu0 0.0
    %4493 = vmatpush1.msra.mxu0 0.0
    %4494 = vmatprep.subr.mxu0 0.0
    %4495 = vmatpush1.msra.mxu0 0.0
    %4496 = vmatprep.subr.mxu0 0.0
    %4497 = vmatpush1.msra.mxu0 0.0
    %4498 = vmatprep.subr.mxu0 0.0
    %4499 = vmatpush1.msra.mxu0 0.0
    %v4500 = vand.u32 %v4077, 4294901760
    %4501 = vmatprep.subr.mxu0 %v4500
    %v4502 = vand.u32 %v4074, 4294901760
    %4503 = vmatpush1.msra.mxu0 %v4502
    %4504 = vmatprep.subr.mxu0 0.0
    %4505 = vmatpush2.msra.mxu0 0.0
    %4506 = vmatprep.subr.mxu0 0.0
    %4507 = vmatpush2.msra.mxu0 0.0
    %4508 = vmatprep.subr.mxu0 0.0
    %4509 = vmatpush2.msra.mxu0 0.0
    %4510 = vmatprep.subr.mxu0 0.0
    %4511 = vmatpush2.msra.mxu0 0.0
    %4512 = vmatprep.subr.mxu0 0.0
    %4513 = vmatpush2.msra.mxu0 0.0
    %4514 = vmatprep.subr.mxu0 0.0
    %4515 = vmatpush2.msra.mxu0 0.0
    %4516 = vmatprep.subr.mxu0 0.0
    %4517 = vmatpush2.msra.mxu0 0.0
    %4518 = vmatprep.subr.mxu0 0.0
    %4519 = vmatpush2.msra.mxu0 0.0
    %4520 = vmatprep.subr.mxu0 0.0
    %4521 = vmatpush2.msra.mxu0 0.0
    %4522 = vmatprep.subr.mxu0 0.0
    %4523 = vmatpush2.msra.mxu0 0.0
    %4524 = vmatprep.subr.mxu0 0.0
    %4525 = vmatpush2.msra.mxu0 0.0
    %4526 = vmatprep.subr.mxu0 0.0
    %4527 = vmatpush2.msra.mxu0 0.0
    %4528 = vmatprep.subr.mxu0 0.0
    %4529 = vmatpush2.msra.mxu0 0.0
    %4530 = vmatprep.subr.mxu0 0.0
    %4531 = vmatpush2.msra.mxu0 0.0
    %4532 = vmatprep.subr.mxu0 0.0
    %4533 = vmatpush2.msra.mxu0 0.0
    %4534 = vmatprep.subr.mxu0 0.0
    %4535 = vmatpush2.msra.mxu0 0.0
    %4536 = vmatprep.mubr.f32.mxu0 0.0
    %v4537 = vand.u32 %v4071, 4294901760
    %4538 = vmatmul.mubr.f32.gmra.mxu0 %v4537
    %v4539 = vpop.f32.mrf.mxu0
    %v4540 = vadd.f32 %v4466, %v4539
    %v4541 = vpop.f32.mrf.mxu0
    %v4542 = vadd.f32 %v4468, %v4541
    %4543 = vdwg.mxu0
    %v4546 = vcombine.low %v4540, %v4542
    %v4548 = vadd.f32 %v3930, %v4546
    %s4549 = scalar_lea.vmem [#allocation2], 128
    %v4550 = vld [vmem:[%s4549] sm:$0xff]
    %v4551 = vld [vmem:[%s4549 + $0x8] sm:$0xff]
    %v4552 = vld [vmem:[%s4549 + $0x10] sm:$0xff]
    %v4553 = vld [vmem:[%s4549 + $0x18] sm:$0xff]
    %v4554 = vld [vmem:[%s4549 + $0x20] sm:$0xff]
    %v4555 = vld [vmem:[%s4549 + $0x28] sm:$0xff]
    %v4556 = vld [vmem:[%s4549 + $0x30] sm:$0xff]
    %v4557 = vld [vmem:[%s4549 + $0x38] sm:$0xff]
    %v4558 = vld [vmem:[%s4549 + $0x40] sm:$0xff]
    %v4559 = vld [vmem:[%s4549 + $0x48] sm:$0xff]
    %v4560 = vld [vmem:[%s4549 + $0x50] sm:$0xff]
    %v4561 = vld [vmem:[%s4549 + $0x58] sm:$0xff]
    %v4562 = vld [vmem:[%s4549 + $0x60] sm:$0xff]
    %v4563 = vld [vmem:[%s4549 + $0x68] sm:$0xff]
    %v4564 = vld [vmem:[%s4549 + $0x70] sm:$0xff]
    %v4565 = vld [vmem:[%s4549 + $0x78] sm:$0xff]
    %v4582 = vunpack.c.l.b16 %v4550
    %v4583 = vunpack.c.h.b16 %v4550
    %v4584 = vunpack.c.l.b16 %v4551
    %v4585 = vunpack.c.h.b16 %v4551
    %v4586 = vunpack.c.l.b16 %v4552
    %v4587 = vunpack.c.h.b16 %v4552
    %v4588 = vunpack.c.l.b16 %v4553
    %v4589 = vunpack.c.h.b16 %v4553
    %v4590 = vunpack.c.l.b16 %v4554
    %v4591 = vunpack.c.h.b16 %v4554
    %v4592 = vunpack.c.l.b16 %v4555
    %v4593 = vunpack.c.h.b16 %v4555
    %v4594 = vunpack.c.l.b16 %v4556
    %v4595 = vunpack.c.h.b16 %v4556
    %v4596 = vunpack.c.l.b16 %v4557
    %v4597 = vunpack.c.h.b16 %v4557
    %v4598 = vunpack.c.l.b16 %v4558
    %v4599 = vunpack.c.h.b16 %v4558
    %v4600 = vunpack.c.l.b16 %v4559
    %v4601 = vunpack.c.h.b16 %v4559
    %v4602 = vunpack.c.l.b16 %v4560
    %v4603 = vunpack.c.h.b16 %v4560
    %v4604 = vunpack.c.l.b16 %v4561
    %v4605 = vunpack.c.h.b16 %v4561
    %v4606 = vunpack.c.l.b16 %v4562
    %v4607 = vunpack.c.h.b16 %v4562
    %v4608 = vunpack.c.l.b16 %v4563
    %v4609 = vunpack.c.h.b16 %v4563
    %v4610 = vunpack.c.l.b16 %v4564
    %v4611 = vunpack.c.h.b16 %v4564
    %v4612 = vunpack.c.l.b16 %v4565
    %v4613 = vunpack.c.h.b16 %v4565
    %v4614 = vpack.c.b16 %v4584, %v4582
    %v4615 = vpack.c.b16 %v4585, %v4583
    %v4616 = vpack.c.b16 %v4588, %v4586
    %v4617 = vpack.c.b16 %v4589, %v4587
    %v4618 = vpack.c.b16 %v4592, %v4590
    %v4619 = vpack.c.b16 %v4593, %v4591
    %v4620 = vpack.c.b16 %v4596, %v4594
    %v4621 = vpack.c.b16 %v4597, %v4595
    %v4622 = vpack.c.b16 %v4600, %v4598
    %v4623 = vpack.c.b16 %v4601, %v4599
    %v4624 = vpack.c.b16 %v4604, %v4602
    %v4625 = vpack.c.b16 %v4605, %v4603
    %v4626 = vpack.c.b16 %v4608, %v4606
    %v4627 = vpack.c.b16 %v4609, %v4607
    %v4628 = vpack.c.b16 %v4612, %v4610
    %v4629 = vpack.c.b16 %v4613, %v4611
    %4646 = vmatprep.subr.bf16.mxu0 %v4629
    %4647 = vmatpush1.bf16.msra.mxu0 %v4628
    %4648 = vmatprep.subr.bf16.mxu0 %v4627
    %4649 = vmatpush1.bf16.msra.mxu0 %v4626
    %4650 = vmatprep.subr.bf16.mxu0 %v4625
    %4651 = vmatpush1.bf16.msra.mxu0 %v4624
    %4652 = vmatprep.subr.bf16.mxu0 %v4623
    %4653 = vmatpush1.bf16.msra.mxu0 %v4622
    %4654 = vmatprep.subr.bf16.mxu0 %v4621
    %4655 = vmatpush1.bf16.msra.mxu0 %v4620
    %4656 = vmatprep.subr.bf16.mxu0 %v4619
    %4657 = vmatpush1.bf16.msra.mxu0 %v4618
    %4658 = vmatprep.subr.bf16.mxu0 %v4617
    %4659 = vmatpush1.bf16.msra.mxu0 %v4616
    %4660 = vmatprep.subr.bf16.mxu0 %v4615
    %4661 = vmatpush1.bf16.msra.mxu0 %v4614
    %4662 = vmatprep.subr.bf16.mxu0 0
    %4663 = vmatpush2.bf16.msra.mxu0 0
    %4664 = vmatprep.subr.bf16.mxu0 0
    %4665 = vmatpush2.bf16.msra.mxu0 0
    %4666 = vmatprep.subr.bf16.mxu0 0
    %4667 = vmatpush2.bf16.msra.mxu0 0
    %4668 = vmatprep.subr.bf16.mxu0 0
    %4669 = vmatpush2.bf16.msra.mxu0 0
    %4670 = vmatprep.subr.bf16.mxu0 0
    %4671 = vmatpush2.bf16.msra.mxu0 0
    %4672 = vmatprep.subr.bf16.mxu0 0
    %4673 = vmatpush2.bf16.msra.mxu0 0
    %4674 = vmatprep.subr.bf16.mxu0 0
    %4675 = vmatpush2.bf16.msra.mxu0 0
    %4676 = vmatprep.subr.bf16.mxu0 0
    %4677 = vmatpush2.bf16.msra.mxu0 0
    %4678 = vmatprep.mubr.bf16.mxu0 0
    %4679 = vmatmul.mubr.bf16.gmra.mxu0 %v3929
    %v4680 = vpop.f32.mrf.mxu0
    %v4681 = vadd.f32 0.0, %v4680
    %v4682 = vpop.f32.mrf.mxu0
    %v4683 = vadd.f32 0.0, %v4682
    %v4684 = vpop.f32.mrf.mxu0
    %v4685 = vpop.f32.mrf.mxu0
    %4686 = vdwg.mxu0
    %s4687 = scalar_lea.vmem [#allocation17], 4
    %v4688 = vld [vmem:[%s4687] sm:$0xf]
    %v4690 = vsel %vm4069, %v4688, 0
    %v4693 = vsel %vm235, %v4681, 0
    %v4696 = vsel %vm235, %v4683, 0
    %4698 = vmatprep.subr.mxu0 0.0
    %4699 = vmatpush1.msra.mxu0 0.0
    %4700 = vmatprep.subr.mxu0 0.0
    %4701 = vmatpush1.msra.mxu0 0.0
    %4702 = vmatprep.subr.mxu0 0.0
    %4703 = vmatpush1.msra.mxu0 0.0
    %4704 = vmatprep.subr.mxu0 0.0
    %4705 = vmatpush1.msra.mxu0 0.0
    %4706 = vmatprep.subr.mxu0 0.0
    %4707 = vmatpush1.msra.mxu0 0.0
    %4708 = vmatprep.subr.mxu0 0.0
    %4709 = vmatpush1.msra.mxu0 0.0
    %4710 = vmatprep.subr.mxu0 0.0
    %4711 = vmatpush1.msra.mxu0 0.0
    %4712 = vmatprep.subr.mxu0 0.0
    %4713 = vmatpush1.msra.mxu0 0.0
    %4714 = vmatprep.subr.mxu0 0.0
    %4715 = vmatpush1.msra.mxu0 0.0
    %4716 = vmatprep.subr.mxu0 0.0
    %4717 = vmatpush1.msra.mxu0 0.0
    %4718 = vmatprep.subr.mxu0 0.0
    %4719 = vmatpush1.msra.mxu0 0.0
    %4720 = vmatprep.subr.mxu0 0.0
    %4721 = vmatpush1.msra.mxu0 0.0
    %4722 = vmatprep.subr.mxu0 0.0
    %4723 = vmatpush1.msra.mxu0 0.0
    %4724 = vmatprep.subr.mxu0 0.0
    %4725 = vmatpush1.msra.mxu0 0.0
    %4726 = vmatprep.subr.mxu0 0.0
    %4727 = vmatpush1.msra.mxu0 0.0
    %v4728 = vand.u32 %v4696, 4294901760
    %4729 = vmatprep.subr.mxu0 %v4728
    %v4730 = vand.u32 %v4693, 4294901760
    %4731 = vmatpush1.msra.mxu0 %v4730
    %4732 = vmatprep.subr.mxu0 0.0
    %4733 = vmatpush2.msra.mxu0 0.0
    %4734 = vmatprep.subr.mxu0 0.0
    %4735 = vmatpush2.msra.mxu0 0.0
    %4736 = vmatprep.subr.mxu0 0.0
    %4737 = vmatpush2.msra.mxu0 0.0
    %4738 = vmatprep.subr.mxu0 0.0
    %4739 = vmatpush2.msra.mxu0 0.0
    %4740 = vmatprep.subr.mxu0 0.0
    %4741 = vmatpush2.msra.mxu0 0.0
    %4742 = vmatprep.subr.mxu0 0.0
    %4743 = vmatpush2.msra.mxu0 0.0
    %4744 = vmatprep.subr.mxu0 0.0
    %4745 = vmatpush2.msra.mxu0 0.0
    %4746 = vmatprep.subr.mxu0 0.0
    %4747 = vmatpush2.msra.mxu0 0.0
    %4748 = vmatprep.subr.mxu0 0.0
    %4749 = vmatpush2.msra.mxu0 0.0
    %4750 = vmatprep.subr.mxu0 0.0
    %4751 = vmatpush2.msra.mxu0 0.0
    %4752 = vmatprep.subr.mxu0 0.0
    %4753 = vmatpush2.msra.mxu0 0.0
    %4754 = vmatprep.subr.mxu0 0.0
    %4755 = vmatpush2.msra.mxu0 0.0
    %4756 = vmatprep.subr.mxu0 0.0
    %4757 = vmatpush2.msra.mxu0 0.0
    %4758 = vmatprep.subr.mxu0 0.0
    %4759 = vmatpush2.msra.mxu0 0.0
    %4760 = vmatprep.subr.mxu0 0.0
    %4761 = vmatpush2.msra.mxu0 0.0
    %4762 = vmatprep.subr.mxu0 0.0
    %4763 = vmatpush2.msra.mxu0 0.0
    %4764 = vmatprep.mubr.f32.mxu0 0.0
    %v4765 = vand.u32 %v4690, 4294901760
    %v4766 = vsub.f32 %v4690, %v4765
    %v4767 = vand.u32 %v4766, 4294901760
    %v4768 = vsub.f32 %v4766, %v4767
    %v4769 = vand.u32 %v4768, 4294901760
    %4770 = vmatmul.mubr.f32.gmra.mxu0 %v4769
    %v4771 = vpop.f32.mrf.mxu0
    %v4772 = vadd.f32 0.0, %v4771
    %v4773 = vpop.f32.mrf.mxu0
    %v4774 = vadd.f32 0.0, %v4773
    %4775 = vdwg.mxu0
    %4776 = vmatprep.subr.mxu0 0.0
    %4777 = vmatpush1.msra.mxu0 0.0
    %4778 = vmatprep.subr.mxu0 0.0
    %4779 = vmatpush1.msra.mxu0 0.0
    %4780 = vmatprep.subr.mxu0 0.0
    %4781 = vmatpush1.msra.mxu0 0.0
    %4782 = vmatprep.subr.mxu0 0.0
    %4783 = vmatpush1.msra.mxu0 0.0
    %4784 = vmatprep.subr.mxu0 0.0
    %4785 = vmatpush1.msra.mxu0 0.0
    %4786 = vmatprep.subr.mxu0 0.0
    %4787 = vmatpush1.msra.mxu0 0.0
    %4788 = vmatprep.subr.mxu0 0.0
    %4789 = vmatpush1.msra.mxu0 0.0
    %4790 = vmatprep.subr.mxu0 0.0
    %4791 = vmatpush1.msra.mxu0 0.0
    %4792 = vmatprep.subr.mxu0 0.0
    %4793 = vmatpush1.msra.mxu0 0.0
    %4794 = vmatprep.subr.mxu0 0.0
    %4795 = vmatpush1.msra.mxu0 0.0
    %4796 = vmatprep.subr.mxu0 0.0
    %4797 = vmatpush1.msra.mxu0 0.0
    %4798 = vmatprep.subr.mxu0 0.0
    %4799 = vmatpush1.msra.mxu0 0.0
    %4800 = vmatprep.subr.mxu0 0.0
    %4801 = vmatpush1.msra.mxu0 0.0
    %4802 = vmatprep.subr.mxu0 0.0
    %4803 = vmatpush1.msra.mxu0 0.0
    %4804 = vmatprep.subr.mxu0 0.0
    %4805 = vmatpush1.msra.mxu0 0.0
    %v4806 = vand.u32 %v4696, 4294901760
    %v4807 = vsub.f32 %v4696, %v4806
    %v4808 = vand.u32 %v4807, 4294901760
    %v4809 = vsub.f32 %v4807, %v4808
    %v4810 = vand.u32 %v4809, 4294901760
    %4811 = vmatprep.subr.mxu0 %v4810
    %v4812 = vand.u32 %v4693, 4294901760
    %v4813 = vsub.f32 %v4693, %v4812
    %v4814 = vand.u32 %v4813, 4294901760
    %v4815 = vsub.f32 %v4813, %v4814
    %v4816 = vand.u32 %v4815, 4294901760
    %4817 = vmatpush1.msra.mxu0 %v4816
    %4818 = vmatprep.subr.mxu0 0.0
    %4819 = vmatpush2.msra.mxu0 0.0
    %4820 = vmatprep.subr.mxu0 0.0
    %4821 = vmatpush2.msra.mxu0 0.0
    %4822 = vmatprep.subr.mxu0 0.0
    %4823 = vmatpush2.msra.mxu0 0.0
    %4824 = vmatprep.subr.mxu0 0.0
    %4825 = vmatpush2.msra.mxu0 0.0
    %4826 = vmatprep.subr.mxu0 0.0
    %4827 = vmatpush2.msra.mxu0 0.0
    %4828 = vmatprep.subr.mxu0 0.0
    %4829 = vmatpush2.msra.mxu0 0.0
    %4830 = vmatprep.subr.mxu0 0.0
    %4831 = vmatpush2.msra.mxu0 0.0
    %4832 = vmatprep.subr.mxu0 0.0
    %4833 = vmatpush2.msra.mxu0 0.0
    %4834 = vmatprep.subr.mxu0 0.0
    %4835 = vmatpush2.msra.mxu0 0.0
    %4836 = vmatprep.subr.mxu0 0.0
    %4837 = vmatpush2.msra.mxu0 0.0
    %4838 = vmatprep.subr.mxu0 0.0
    %4839 = vmatpush2.msra.mxu0 0.0
    %4840 = vmatprep.subr.mxu0 0.0
    %4841 = vmatpush2.msra.mxu0 0.0
    %4842 = vmatprep.subr.mxu0 0.0
    %4843 = vmatpush2.msra.mxu0 0.0
    %4844 = vmatprep.subr.mxu0 0.0
    %4845 = vmatpush2.msra.mxu0 0.0
    %4846 = vmatprep.subr.mxu0 0.0
    %4847 = vmatpush2.msra.mxu0 0.0
    %4848 = vmatprep.subr.mxu0 0.0
    %4849 = vmatpush2.msra.mxu0 0.0
    %4850 = vmatprep.mubr.f32.mxu0 0.0
    %v4851 = vand.u32 %v4690, 4294901760
    %4852 = vmatmul.mubr.f32.gmra.mxu0 %v4851
    %v4853 = vpop.f32.mrf.mxu0
    %v4854 = vadd.f32 %v4772, %v4853
    %v4855 = vpop.f32.mrf.mxu0
    %v4856 = vadd.f32 %v4774, %v4855
    %4857 = vdwg.mxu0
    %4858 = vmatprep.subr.mxu0 0.0
    %4859 = vmatpush1.msra.mxu0 0.0
    %4860 = vmatprep.subr.mxu0 0.0
    %4861 = vmatpush1.msra.mxu0 0.0
    %4862 = vmatprep.subr.mxu0 0.0
    %4863 = vmatpush1.msra.mxu0 0.0
    %4864 = vmatprep.subr.mxu0 0.0
    %4865 = vmatpush1.msra.mxu0 0.0
    %4866 = vmatprep.subr.mxu0 0.0
    %4867 = vmatpush1.msra.mxu0 0.0
    %4868 = vmatprep.subr.mxu0 0.0
    %4869 = vmatpush1.msra.mxu0 0.0
    %4870 = vmatprep.subr.mxu0 0.0
    %4871 = vmatpush1.msra.mxu0 0.0
    %4872 = vmatprep.subr.mxu0 0.0
    %4873 = vmatpush1.msra.mxu0 0.0
    %4874 = vmatprep.subr.mxu0 0.0
    %4875 = vmatpush1.msra.mxu0 0.0
    %4876 = vmatprep.subr.mxu0 0.0
    %4877 = vmatpush1.msra.mxu0 0.0
    %4878 = vmatprep.subr.mxu0 0.0
    %4879 = vmatpush1.msra.mxu0 0.0
    %4880 = vmatprep.subr.mxu0 0.0
    %4881 = vmatpush1.msra.mxu0 0.0
    %4882 = vmatprep.subr.mxu0 0.0
    %4883 = vmatpush1.msra.mxu0 0.0
    %4884 = vmatprep.subr.mxu0 0.0
    %4885 = vmatpush1.msra.mxu0 0.0
    %4886 = vmatprep.subr.mxu0 0.0
    %4887 = vmatpush1.msra.mxu0 0.0
    %v4888 = vand.u32 %v4696, 4294901760
    %v4889 = vsub.f32 %v4696, %v4888
    %4890 = vmatprep.subr.mxu0 %v4889
    %v4891 = vand.u32 %v4693, 4294901760
    %v4892 = vsub.f32 %v4693, %v4891
    %4893 = vmatpush1.msra.mxu0 %v4892
    %4894 = vmatprep.subr.mxu0 0.0
    %4895 = vmatpush2.msra.mxu0 0.0
    %4896 = vmatprep.subr.mxu0 0.0
    %4897 = vmatpush2.msra.mxu0 0.0
    %4898 = vmatprep.subr.mxu0 0.0
    %4899 = vmatpush2.msra.mxu0 0.0
    %4900 = vmatprep.subr.mxu0 0.0
    %4901 = vmatpush2.msra.mxu0 0.0
    %4902 = vmatprep.subr.mxu0 0.0
    %4903 = vmatpush2.msra.mxu0 0.0
    %4904 = vmatprep.subr.mxu0 0.0
    %4905 = vmatpush2.msra.mxu0 0.0
    %4906 = vmatprep.subr.mxu0 0.0
    %4907 = vmatpush2.msra.mxu0 0.0
    %4908 = vmatprep.subr.mxu0 0.0
    %4909 = vmatpush2.msra.mxu0 0.0
    %4910 = vmatprep.subr.mxu0 0.0
    %4911 = vmatpush2.msra.mxu0 0.0
    %4912 = vmatprep.subr.mxu0 0.0
    %4913 = vmatpush2.msra.mxu0 0.0
    %4914 = vmatprep.subr.mxu0 0.0
    %4915 = vmatpush2.msra.mxu0 0.0
    %4916 = vmatprep.subr.mxu0 0.0
    %4917 = vmatpush2.msra.mxu0 0.0
    %4918 = vmatprep.subr.mxu0 0.0
    %4919 = vmatpush2.msra.mxu0 0.0
    %4920 = vmatprep.subr.mxu0 0.0
    %4921 = vmatpush2.msra.mxu0 0.0
    %4922 = vmatprep.subr.mxu0 0.0
    %4923 = vmatpush2.msra.mxu0 0.0
    %4924 = vmatprep.subr.mxu0 0.0
    %4925 = vmatpush2.msra.mxu0 0.0
    %4926 = vmatprep.mubr.f32.mxu0 0.0
    %v4927 = vand.u32 %v4690, 4294901760
    %v4928 = vsub.f32 %v4690, %v4927
    %4929 = vmatmul.mubr.f32.gmra.mxu0 %v4928
    %v4930 = vpop.f32.mrf.mxu0
    %v4931 = vadd.f32 %v4854, %v4930
    %v4932 = vpop.f32.mrf.mxu0
    %v4933 = vadd.f32 %v4856, %v4932
    %4934 = vdwg.mxu0
    %4935 = vmatprep.subr.mxu0 0.0
    %4936 = vmatpush1.msra.mxu0 0.0
    %4937 = vmatprep.subr.mxu0 0.0
    %4938 = vmatpush1.msra.mxu0 0.0
    %4939 = vmatprep.subr.mxu0 0.0
    %4940 = vmatpush1.msra.mxu0 0.0
    %4941 = vmatprep.subr.mxu0 0.0
    %4942 = vmatpush1.msra.mxu0 0.0
    %4943 = vmatprep.subr.mxu0 0.0
    %4944 = vmatpush1.msra.mxu0 0.0
    %4945 = vmatprep.subr.mxu0 0.0
    %4946 = vmatpush1.msra.mxu0 0.0
    %4947 = vmatprep.subr.mxu0 0.0
    %4948 = vmatpush1.msra.mxu0 0.0
    %4949 = vmatprep.subr.mxu0 0.0
    %4950 = vmatpush1.msra.mxu0 0.0
    %4951 = vmatprep.subr.mxu0 0.0
    %4952 = vmatpush1.msra.mxu0 0.0
    %4953 = vmatprep.subr.mxu0 0.0
    %4954 = vmatpush1.msra.mxu0 0.0
    %4955 = vmatprep.subr.mxu0 0.0
    %4956 = vmatpush1.msra.mxu0 0.0
    %4957 = vmatprep.subr.mxu0 0.0
    %4958 = vmatpush1.msra.mxu0 0.0
    %4959 = vmatprep.subr.mxu0 0.0
    %4960 = vmatpush1.msra.mxu0 0.0
    %4961 = vmatprep.subr.mxu0 0.0
    %4962 = vmatpush1.msra.mxu0 0.0
    %4963 = vmatprep.subr.mxu0 0.0
    %4964 = vmatpush1.msra.mxu0 0.0
    %v4965 = vand.u32 %v4696, 4294901760
    %4966 = vmatprep.subr.mxu0 %v4965
    %v4967 = vand.u32 %v4693, 4294901760
    %4968 = vmatpush1.msra.mxu0 %v4967
    %4969 = vmatprep.subr.mxu0 0.0
    %4970 = vmatpush2.msra.mxu0 0.0
    %4971 = vmatprep.subr.mxu0 0.0
    %4972 = vmatpush2.msra.mxu0 0.0
    %4973 = vmatprep.subr.mxu0 0.0
    %4974 = vmatpush2.msra.mxu0 0.0
    %4975 = vmatprep.subr.mxu0 0.0
    %4976 = vmatpush2.msra.mxu0 0.0
    %4977 = vmatprep.subr.mxu0 0.0
    %4978 = vmatpush2.msra.mxu0 0.0
    %4979 = vmatprep.subr.mxu0 0.0
    %4980 = vmatpush2.msra.mxu0 0.0
    %4981 = vmatprep.subr.mxu0 0.0
    %4982 = vmatpush2.msra.mxu0 0.0
    %4983 = vmatprep.subr.mxu0 0.0
    %4984 = vmatpush2.msra.mxu0 0.0
    %4985 = vmatprep.subr.mxu0 0.0
    %4986 = vmatpush2.msra.mxu0 0.0
    %4987 = vmatprep.subr.mxu0 0.0
    %4988 = vmatpush2.msra.mxu0 0.0
    %4989 = vmatprep.subr.mxu0 0.0
    %4990 = vmatpush2.msra.mxu0 0.0
    %4991 = vmatprep.subr.mxu0 0.0
    %4992 = vmatpush2.msra.mxu0 0.0
    %4993 = vmatprep.subr.mxu0 0.0
    %4994 = vmatpush2.msra.mxu0 0.0
    %4995 = vmatprep.subr.mxu0 0.0
    %4996 = vmatpush2.msra.mxu0 0.0
    %4997 = vmatprep.subr.mxu0 0.0
    %4998 = vmatpush2.msra.mxu0 0.0
    %4999 = vmatprep.subr.mxu0 0.0
    %5000 = vmatpush2.msra.mxu0 0.0
    %5001 = vmatprep.mubr.f32.mxu0 0.0
    %v5002 = vand.u32 %v4690, 4294901760
    %v5003 = vsub.f32 %v4690, %v5002
    %v5004 = vand.u32 %v5003, 4294901760
    %5005 = vmatmul.mubr.f32.gmra.mxu0 %v5004
    %v5006 = vpop.f32.mrf.mxu0
    %v5007 = vadd.f32 %v4931, %v5006
    %v5008 = vpop.f32.mrf.mxu0
    %v5009 = vadd.f32 %v4933, %v5008
    %5010 = vdwg.mxu0
    %5011 = vmatprep.subr.mxu0 0.0
    %5012 = vmatpush1.msra.mxu0 0.0
    %5013 = vmatprep.subr.mxu0 0.0
    %5014 = vmatpush1.msra.mxu0 0.0
    %5015 = vmatprep.subr.mxu0 0.0
    %5016 = vmatpush1.msra.mxu0 0.0
    %5017 = vmatprep.subr.mxu0 0.0
    %5018 = vmatpush1.msra.mxu0 0.0
    %5019 = vmatprep.subr.mxu0 0.0
    %5020 = vmatpush1.msra.mxu0 0.0
    %5021 = vmatprep.subr.mxu0 0.0
    %5022 = vmatpush1.msra.mxu0 0.0
    %5023 = vmatprep.subr.mxu0 0.0
    %5024 = vmatpush1.msra.mxu0 0.0
    %5025 = vmatprep.subr.mxu0 0.0
    %5026 = vmatpush1.msra.mxu0 0.0
    %5027 = vmatprep.subr.mxu0 0.0
    %5028 = vmatpush1.msra.mxu0 0.0
    %5029 = vmatprep.subr.mxu0 0.0
    %5030 = vmatpush1.msra.mxu0 0.0
    %5031 = vmatprep.subr.mxu0 0.0
    %5032 = vmatpush1.msra.mxu0 0.0
    %5033 = vmatprep.subr.mxu0 0.0
    %5034 = vmatpush1.msra.mxu0 0.0
    %5035 = vmatprep.subr.mxu0 0.0
    %5036 = vmatpush1.msra.mxu0 0.0
    %5037 = vmatprep.subr.mxu0 0.0
    %5038 = vmatpush1.msra.mxu0 0.0
    %5039 = vmatprep.subr.mxu0 0.0
    %5040 = vmatpush1.msra.mxu0 0.0
    %v5041 = vand.u32 %v4696, 4294901760
    %v5042 = vsub.f32 %v4696, %v5041
    %v5043 = vand.u32 %v5042, 4294901760
    %5044 = vmatprep.subr.mxu0 %v5043
    %v5045 = vand.u32 %v4693, 4294901760
    %v5046 = vsub.f32 %v4693, %v5045
    %v5047 = vand.u32 %v5046, 4294901760
    %5048 = vmatpush1.msra.mxu0 %v5047
    %5049 = vmatprep.subr.mxu0 0.0
    %5050 = vmatpush2.msra.mxu0 0.0
    %5051 = vmatprep.subr.mxu0 0.0
    %5052 = vmatpush2.msra.mxu0 0.0
    %5053 = vmatprep.subr.mxu0 0.0
    %5054 = vmatpush2.msra.mxu0 0.0
    %5055 = vmatprep.subr.mxu0 0.0
    %5056 = vmatpush2.msra.mxu0 0.0
    %5057 = vmatprep.subr.mxu0 0.0
    %5058 = vmatpush2.msra.mxu0 0.0
    %5059 = vmatprep.subr.mxu0 0.0
    %5060 = vmatpush2.msra.mxu0 0.0
    %5061 = vmatprep.subr.mxu0 0.0
    %5062 = vmatpush2.msra.mxu0 0.0
    %5063 = vmatprep.subr.mxu0 0.0
    %5064 = vmatpush2.msra.mxu0 0.0
    %5065 = vmatprep.subr.mxu0 0.0
    %5066 = vmatpush2.msra.mxu0 0.0
    %5067 = vmatprep.subr.mxu0 0.0
    %5068 = vmatpush2.msra.mxu0 0.0
    %5069 = vmatprep.subr.mxu0 0.0
    %5070 = vmatpush2.msra.mxu0 0.0
    %5071 = vmatprep.subr.mxu0 0.0
    %5072 = vmatpush2.msra.mxu0 0.0
    %5073 = vmatprep.subr.mxu0 0.0
    %5074 = vmatpush2.msra.mxu0 0.0
    %5075 = vmatprep.subr.mxu0 0.0
    %5076 = vmatpush2.msra.mxu0 0.0
    %5077 = vmatprep.subr.mxu0 0.0
    %5078 = vmatpush2.msra.mxu0 0.0
    %5079 = vmatprep.subr.mxu0 0.0
    %5080 = vmatpush2.msra.mxu0 0.0
    %5081 = vmatprep.mubr.f32.mxu0 0.0
    %v5082 = vand.u32 %v4690, 4294901760
    %5083 = vmatmul.mubr.f32.gmra.mxu0 %v5082
    %v5084 = vpop.f32.mrf.mxu0
    %v5085 = vadd.f32 %v5007, %v5084
    %v5086 = vpop.f32.mrf.mxu0
    %v5087 = vadd.f32 %v5009, %v5086
    %5088 = vdwg.mxu0
    %5089 = vmatprep.subr.mxu0 0.0
    %5090 = vmatpush1.msra.mxu0 0.0
    %5091 = vmatprep.subr.mxu0 0.0
    %5092 = vmatpush1.msra.mxu0 0.0
    %5093 = vmatprep.subr.mxu0 0.0
    %5094 = vmatpush1.msra.mxu0 0.0
    %5095 = vmatprep.subr.mxu0 0.0
    %5096 = vmatpush1.msra.mxu0 0.0
    %5097 = vmatprep.subr.mxu0 0.0
    %5098 = vmatpush1.msra.mxu0 0.0
    %5099 = vmatprep.subr.mxu0 0.0
    %5100 = vmatpush1.msra.mxu0 0.0
    %5101 = vmatprep.subr.mxu0 0.0
    %5102 = vmatpush1.msra.mxu0 0.0
    %5103 = vmatprep.subr.mxu0 0.0
    %5104 = vmatpush1.msra.mxu0 0.0
    %5105 = vmatprep.subr.mxu0 0.0
    %5106 = vmatpush1.msra.mxu0 0.0
    %5107 = vmatprep.subr.mxu0 0.0
    %5108 = vmatpush1.msra.mxu0 0.0
    %5109 = vmatprep.subr.mxu0 0.0
    %5110 = vmatpush1.msra.mxu0 0.0
    %5111 = vmatprep.subr.mxu0 0.0
    %5112 = vmatpush1.msra.mxu0 0.0
    %5113 = vmatprep.subr.mxu0 0.0
    %5114 = vmatpush1.msra.mxu0 0.0
    %5115 = vmatprep.subr.mxu0 0.0
    %5116 = vmatpush1.msra.mxu0 0.0
    %5117 = vmatprep.subr.mxu0 0.0
    %5118 = vmatpush1.msra.mxu0 0.0
    %v5119 = vand.u32 %v4696, 4294901760
    %5120 = vmatprep.subr.mxu0 %v5119
    %v5121 = vand.u32 %v4693, 4294901760
    %5122 = vmatpush1.msra.mxu0 %v5121
    %5123 = vmatprep.subr.mxu0 0.0
    %5124 = vmatpush2.msra.mxu0 0.0
    %5125 = vmatprep.subr.mxu0 0.0
    %5126 = vmatpush2.msra.mxu0 0.0
    %5127 = vmatprep.subr.mxu0 0.0
    %5128 = vmatpush2.msra.mxu0 0.0
    %5129 = vmatprep.subr.mxu0 0.0
    %5130 = vmatpush2.msra.mxu0 0.0
    %5131 = vmatprep.subr.mxu0 0.0
    %5132 = vmatpush2.msra.mxu0 0.0
    %5133 = vmatprep.subr.mxu0 0.0
    %5134 = vmatpush2.msra.mxu0 0.0
    %5135 = vmatprep.subr.mxu0 0.0
    %5136 = vmatpush2.msra.mxu0 0.0
    %5137 = vmatprep.subr.mxu0 0.0
    %5138 = vmatpush2.msra.mxu0 0.0
    %5139 = vmatprep.subr.mxu0 0.0
    %5140 = vmatpush2.msra.mxu0 0.0
    %5141 = vmatprep.subr.mxu0 0.0
    %5142 = vmatpush2.msra.mxu0 0.0
    %5143 = vmatprep.subr.mxu0 0.0
    %5144 = vmatpush2.msra.mxu0 0.0
    %5145 = vmatprep.subr.mxu0 0.0
    %5146 = vmatpush2.msra.mxu0 0.0
    %5147 = vmatprep.subr.mxu0 0.0
    %5148 = vmatpush2.msra.mxu0 0.0
    %5149 = vmatprep.subr.mxu0 0.0
    %5150 = vmatpush2.msra.mxu0 0.0
    %5151 = vmatprep.subr.mxu0 0.0
    %5152 = vmatpush2.msra.mxu0 0.0
    %5153 = vmatprep.subr.mxu0 0.0
    %5154 = vmatpush2.msra.mxu0 0.0
    %5155 = vmatprep.mubr.f32.mxu0 0.0
    %v5156 = vand.u32 %v4690, 4294901760
    %5157 = vmatmul.mubr.f32.gmra.mxu0 %v5156
    %v5158 = vpop.f32.mrf.mxu0
    %v5159 = vadd.f32 %v5085, %v5158
    %v5160 = vpop.f32.mrf.mxu0
    %v5161 = vadd.f32 %v5087, %v5160
    %5162 = vdwg.mxu0
    %v5165 = vcombine.low %v5159, %v5161
    %v5167 = vadd.f32 %v4548, %v5165
    %s5168 = scalar_lea.vmem [#allocation2], 256
    %v5169 = vld [vmem:[%s5168] sm:$0xff]
    %v5170 = vld [vmem:[%s5168 + $0x8] sm:$0xff]
    %v5171 = vld [vmem:[%s5168 + $0x10] sm:$0xff]
    %v5172 = vld [vmem:[%s5168 + $0x18] sm:$0xff]
    %v5173 = vld [vmem:[%s5168 + $0x20] sm:$0xff]
    %v5174 = vld [vmem:[%s5168 + $0x28] sm:$0xff]
    %v5175 = vld [vmem:[%s5168 + $0x30] sm:$0xff]
    %v5176 = vld [vmem:[%s5168 + $0x38] sm:$0xff]
    %v5177 = vld [vmem:[%s5168 + $0x40] sm:$0xff]
    %v5178 = vld [vmem:[%s5168 + $0x48] sm:$0xff]
    %v5179 = vld [vmem:[%s5168 + $0x50] sm:$0xff]
    %v5180 = vld [vmem:[%s5168 + $0x58] sm:$0xff]
    %v5181 = vld [vmem:[%s5168 + $0x60] sm:$0xff]
    %v5182 = vld [vmem:[%s5168 + $0x68] sm:$0xff]
    %v5183 = vld [vmem:[%s5168 + $0x70] sm:$0xff]
    %v5184 = vld [vmem:[%s5168 + $0x78] sm:$0xff]
    %v5201 = vunpack.c.l.b16 %v5169
    %v5202 = vunpack.c.h.b16 %v5169
    %v5203 = vunpack.c.l.b16 %v5170
    %v5204 = vunpack.c.h.b16 %v5170
    %v5205 = vunpack.c.l.b16 %v5171
    %v5206 = vunpack.c.h.b16 %v5171
    %v5207 = vunpack.c.l.b16 %v5172
    %v5208 = vunpack.c.h.b16 %v5172
    %v5209 = vunpack.c.l.b16 %v5173
    %v5210 = vunpack.c.h.b16 %v5173
    %v5211 = vunpack.c.l.b16 %v5174
    %v5212 = vunpack.c.h.b16 %v5174
    %v5213 = vunpack.c.l.b16 %v5175
    %v5214 = vunpack.c.h.b16 %v5175
    %v5215 = vunpack.c.l.b16 %v5176
    %v5216 = vunpack.c.h.b16 %v5176
    %v5217 = vunpack.c.l.b16 %v5177
    %v5218 = vunpack.c.h.b16 %v5177
    %v5219 = vunpack.c.l.b16 %v5178
    %v5220 = vunpack.c.h.b16 %v5178
    %v5221 = vunpack.c.l.b16 %v5179
    %v5222 = vunpack.c.h.b16 %v5179
    %v5223 = vunpack.c.l.b16 %v5180
    %v5224 = vunpack.c.h.b16 %v5180
    %v5225 = vunpack.c.l.b16 %v5181
    %v5226 = vunpack.c.h.b16 %v5181
    %v5227 = vunpack.c.l.b16 %v5182
    %v5228 = vunpack.c.h.b16 %v5182
    %v5229 = vunpack.c.l.b16 %v5183
    %v5230 = vunpack.c.h.b16 %v5183
    %v5231 = vunpack.c.l.b16 %v5184
    %v5232 = vunpack.c.h.b16 %v5184
    %v5233 = vpack.c.b16 %v5203, %v5201
    %v5234 = vpack.c.b16 %v5204, %v5202
    %v5235 = vpack.c.b16 %v5207, %v5205
    %v5236 = vpack.c.b16 %v5208, %v5206
    %v5237 = vpack.c.b16 %v5211, %v5209
    %v5238 = vpack.c.b16 %v5212, %v5210
    %v5239 = vpack.c.b16 %v5215, %v5213
    %v5240 = vpack.c.b16 %v5216, %v5214
    %v5241 = vpack.c.b16 %v5219, %v5217
    %v5242 = vpack.c.b16 %v5220, %v5218
    %v5243 = vpack.c.b16 %v5223, %v5221
    %v5244 = vpack.c.b16 %v5224, %v5222
    %v5245 = vpack.c.b16 %v5227, %v5225
    %v5246 = vpack.c.b16 %v5228, %v5226
    %v5247 = vpack.c.b16 %v5231, %v5229
    %v5248 = vpack.c.b16 %v5232, %v5230
    %5265 = vmatprep.subr.bf16.mxu0 %v5248
    %5266 = vmatpush1.bf16.msra.mxu0 %v5247
    %5267 = vmatprep.subr.bf16.mxu0 %v5246
    %5268 = vmatpush1.bf16.msra.mxu0 %v5245
    %5269 = vmatprep.subr.bf16.mxu0 %v5244
    %5270 = vmatpush1.bf16.msra.mxu0 %v5243
    %5271 = vmatprep.subr.bf16.mxu0 %v5242
    %5272 = vmatpush1.bf16.msra.mxu0 %v5241
    %5273 = vmatprep.subr.bf16.mxu0 %v5240
    %5274 = vmatpush1.bf16.msra.mxu0 %v5239
    %5275 = vmatprep.subr.bf16.mxu0 %v5238
    %5276 = vmatpush1.bf16.msra.mxu0 %v5237
    %5277 = vmatprep.subr.bf16.mxu0 %v5236
    %5278 = vmatpush1.bf16.msra.mxu0 %v5235
    %5279 = vmatprep.subr.bf16.mxu0 %v5234
    %5280 = vmatpush1.bf16.msra.mxu0 %v5233
    %5281 = vmatprep.subr.bf16.mxu0 0
    %5282 = vmatpush2.bf16.msra.mxu0 0
    %5283 = vmatprep.subr.bf16.mxu0 0
    %5284 = vmatpush2.bf16.msra.mxu0 0
    %5285 = vmatprep.subr.bf16.mxu0 0
    %5286 = vmatpush2.bf16.msra.mxu0 0
    %5287 = vmatprep.subr.bf16.mxu0 0
    %5288 = vmatpush2.bf16.msra.mxu0 0
    %5289 = vmatprep.subr.bf16.mxu0 0
    %5290 = vmatpush2.bf16.msra.mxu0 0
    %5291 = vmatprep.subr.bf16.mxu0 0
    %5292 = vmatpush2.bf16.msra.mxu0 0
    %5293 = vmatprep.subr.bf16.mxu0 0
    %5294 = vmatpush2.bf16.msra.mxu0 0
    %5295 = vmatprep.subr.bf16.mxu0 0
    %5296 = vmatpush2.bf16.msra.mxu0 0
    %5297 = vmatprep.mubr.bf16.mxu0 0
    %5298 = vmatmul.mubr.bf16.gmra.mxu0 %v3929
    %v5299 = vpop.f32.mrf.mxu0
    %v5300 = vadd.f32 0.0, %v5299
    %v5301 = vpop.f32.mrf.mxu0
    %v5302 = vadd.f32 0.0, %v5301
    %v5303 = vpop.f32.mrf.mxu0
    %v5304 = vpop.f32.mrf.mxu0
    %5305 = vdwg.mxu0
    %v5308 = vcombine.low %v5300, %v5302
    %v5310 = vadd.f32 %v5167, %v5308
    %v5311 = vmul.f32 %v5310, 0.2
    %v5312 = vmax.f32 %v5310, %v5311
    %s5313 = smul.u32 %s3924, 32
    %s5314 = smul.u32 %s5313, 4
    %s5315 = sshll.u32 %s5314, 4
    %5316 = dma.done %s213, %s5315
    %v5318 = vcombine.high %v5312, %v5312
    %v5320 = vpack.c.bf16 %v5312, %v5312
    %v5321 = vpack.c.bf16 %v5318, %v5318
    %v5322 = vld [vmem:[%s16] sm:$0xff]
    %v5323 = vld [vmem:[#allocation3] sm:$0xff]
    %v5324 = vld [vmem:[#allocation3 + $0x8] sm:$0xff]
    %v5325 = vld [vmem:[#allocation3 + $0x10] sm:$0xff]
    %v5326 = vld [vmem:[#allocation3 + $0x18] sm:$0xff]
    %v5327 = vld [vmem:[#allocation3 + $0x20] sm:$0xff]
    %v5328 = vld [vmem:[#allocation3 + $0x28] sm:$0xff]
    %v5329 = vld [vmem:[#allocation3 + $0x30] sm:$0xff]
    %v5330 = vld [vmem:[#allocation3 + $0x38] sm:$0xff]
    %v5331 = vld [vmem:[#allocation3 + $0x40] sm:$0xff]
    %v5332 = vld [vmem:[#allocation3 + $0x48] sm:$0xff]
    %v5333 = vld [vmem:[#allocation3 + $0x50] sm:$0xff]
    %v5334 = vld [vmem:[#allocation3 + $0x58] sm:$0xff]
    %v5335 = vld [vmem:[#allocation3 + $0x60] sm:$0xff]
    %v5336 = vld [vmem:[#allocation3 + $0x68] sm:$0xff]
    %v5337 = vld [vmem:[#allocation3 + $0x70] sm:$0xff]
    %v5338 = vld [vmem:[#allocation3 + $0x78] sm:$0xff]
    %v5339 = vld [vmem:[#allocation3 + $0x80] sm:$0xff]
    %v5340 = vld [vmem:[#allocation3 + $0x88] sm:$0xff]
    %v5341 = vld [vmem:[#allocation3 + $0x90] sm:$0xff]
    %v5342 = vld [vmem:[#allocation3 + $0x98] sm:$0xff]
    %v5343 = vld [vmem:[#allocation3 + $0xa0] sm:$0xff]
    %v5344 = vld [vmem:[#allocation3 + $0xa8] sm:$0xff]
    %v5345 = vld [vmem:[#allocation3 + $0xb0] sm:$0xff]
    %v5346 = vld [vmem:[#allocation3 + $0xb8] sm:$0xff]
    %v5347 = vld [vmem:[#allocation3 + $0xc0] sm:$0xff]
    %v5348 = vld [vmem:[#allocation3 + $0xc8] sm:$0xff]
    %v5349 = vld [vmem:[#allocation3 + $0xd0] sm:$0xff]
    %v5350 = vld [vmem:[#allocation3 + $0xd8] sm:$0xff]
    %v5351 = vld [vmem:[#allocation3 + $0xe0] sm:$0xff]
    %v5352 = vld [vmem:[#allocation3 + $0xe8] sm:$0xff]
    %v5353 = vld [vmem:[#allocation3 + $0xf0] sm:$0xff]
    %v5354 = vld [vmem:[#allocation3 + $0xf8] sm:$0xff]
    %v5355 = vld [vmem:[#allocation3 + $0x100] sm:$0xff]
    %v5356 = vld [vmem:[#allocation3 + $0x108] sm:$0xff]
    %v5357 = vld [vmem:[#allocation3 + $0x110] sm:$0xff]
    %v5358 = vld [vmem:[#allocation3 + $0x118] sm:$0xff]
    %v5359 = vld [vmem:[#allocation3 + $0x120] sm:$0xff]
    %v5360 = vld [vmem:[#allocation3 + $0x128] sm:$0xff]
    %v5361 = vld [vmem:[#allocation3 + $0x130] sm:$0xff]
    %v5362 = vld [vmem:[#allocation3 + $0x138] sm:$0xff]
    %v5363 = vld [vmem:[#allocation3 + $0x140] sm:$0xff]
    %v5364 = vld [vmem:[#allocation3 + $0x148] sm:$0xff]
    %v5365 = vld [vmem:[#allocation3 + $0x150] sm:$0xff]
    %v5366 = vld [vmem:[#allocation3 + $0x158] sm:$0xff]
    %v5367 = vld [vmem:[#allocation3 + $0x160] sm:$0xff]
    %v5368 = vld [vmem:[#allocation3 + $0x168] sm:$0xff]
    %v5369 = vld [vmem:[#allocation3 + $0x170] sm:$0xff]
    %v5370 = vld [vmem:[#allocation3 + $0x178] sm:$0xff]
    %v5371 = vld [vmem:[#allocation3 + $0x180] sm:$0xff]
    %v5372 = vld [vmem:[#allocation3 + $0x188] sm:$0xff]
    %v5373 = vld [vmem:[#allocation3 + $0x190] sm:$0xff]
    %v5374 = vld [vmem:[#allocation3 + $0x198] sm:$0xff]
    %v5375 = vld [vmem:[#allocation3 + $0x1a0] sm:$0xff]
    %v5376 = vld [vmem:[#allocation3 + $0x1a8] sm:$0xff]
    %v5377 = vld [vmem:[#allocation3 + $0x1b0] sm:$0xff]
    %v5378 = vld [vmem:[#allocation3 + $0x1b8] sm:$0xff]
    %v5379 = vld [vmem:[#allocation3 + $0x1c0] sm:$0xff]
    %v5380 = vld [vmem:[#allocation3 + $0x1c8] sm:$0xff]
    %v5381 = vld [vmem:[#allocation3 + $0x1d0] sm:$0xff]
    %v5382 = vld [vmem:[#allocation3 + $0x1d8] sm:$0xff]
    %v5383 = vld [vmem:[#allocation3 + $0x1e0] sm:$0xff]
    %v5384 = vld [vmem:[#allocation3 + $0x1e8] sm:$0xff]
    %v5385 = vld [vmem:[#allocation3 + $0x1f0] sm:$0xff]
    %v5386 = vld [vmem:[#allocation3 + $0x1f8] sm:$0xff]
    %v5451 = vunpack.c.l.b16 %v5323
    %v5452 = vunpack.c.h.b16 %v5323
    %v5453 = vunpack.c.l.b16 %v5324
    %v5454 = vunpack.c.h.b16 %v5324
    %v5455 = vunpack.c.l.b16 %v5325
    %v5456 = vunpack.c.h.b16 %v5325
    %v5457 = vunpack.c.l.b16 %v5326
    %v5458 = vunpack.c.h.b16 %v5326
    %v5459 = vunpack.c.l.b16 %v5327
    %v5460 = vunpack.c.h.b16 %v5327
    %v5461 = vunpack.c.l.b16 %v5328
    %v5462 = vunpack.c.h.b16 %v5328
    %v5463 = vunpack.c.l.b16 %v5329
    %v5464 = vunpack.c.h.b16 %v5329
    %v5465 = vunpack.c.l.b16 %v5330
    %v5466 = vunpack.c.h.b16 %v5330
    %v5467 = vunpack.c.l.b16 %v5331
    %v5468 = vunpack.c.h.b16 %v5331
    %v5469 = vunpack.c.l.b16 %v5332
    %v5470 = vunpack.c.h.b16 %v5332
    %v5471 = vunpack.c.l.b16 %v5333
    %v5472 = vunpack.c.h.b16 %v5333
    %v5473 = vunpack.c.l.b16 %v5334
    %v5474 = vunpack.c.h.b16 %v5334
    %v5475 = vunpack.c.l.b16 %v5335
    %v5476 = vunpack.c.h.b16 %v5335
    %v5477 = vunpack.c.l.b16 %v5336
    %v5478 = vunpack.c.h.b16 %v5336
    %v5479 = vunpack.c.l.b16 %v5337
    %v5480 = vunpack.c.h.b16 %v5337
    %v5481 = vunpack.c.l.b16 %v5338
    %v5482 = vunpack.c.h.b16 %v5338
    %v5483 = vunpack.c.l.b16 %v5339
    %v5484 = vunpack.c.h.b16 %v5339
    %v5485 = vunpack.c.l.b16 %v5340
    %v5486 = vunpack.c.h.b16 %v5340
    %v5487 = vunpack.c.l.b16 %v5341
    %v5488 = vunpack.c.h.b16 %v5341
    %v5489 = vunpack.c.l.b16 %v5342
    %v5490 = vunpack.c.h.b16 %v5342
    %v5491 = vunpack.c.l.b16 %v5343
    %v5492 = vunpack.c.h.b16 %v5343
    %v5493 = vunpack.c.l.b16 %v5344
    %v5494 = vunpack.c.h.b16 %v5344
    %v5495 = vunpack.c.l.b16 %v5345
    %v5496 = vunpack.c.h.b16 %v5345
    %v5497 = vunpack.c.l.b16 %v5346
    %v5498 = vunpack.c.h.b16 %v5346
    %v5499 = vunpack.c.l.b16 %v5347
    %v5500 = vunpack.c.h.b16 %v5347
    %v5501 = vunpack.c.l.b16 %v5348
    %v5502 = vunpack.c.h.b16 %v5348
    %v5503 = vunpack.c.l.b16 %v5349
    %v5504 = vunpack.c.h.b16 %v5349
    %v5505 = vunpack.c.l.b16 %v5350
    %v5506 = vunpack.c.h.b16 %v5350
    %v5507 = vunpack.c.l.b16 %v5351
    %v5508 = vunpack.c.h.b16 %v5351
    %v5509 = vunpack.c.l.b16 %v5352
    %v5510 = vunpack.c.h.b16 %v5352
    %v5511 = vunpack.c.l.b16 %v5353
    %v5512 = vunpack.c.h.b16 %v5353
    %v5513 = vunpack.c.l.b16 %v5354
    %v5514 = vunpack.c.h.b16 %v5354
    %v5515 = vunpack.c.l.b16 %v5355
    %v5516 = vunpack.c.h.b16 %v5355
    %v5517 = vunpack.c.l.b16 %v5356
    %v5518 = vunpack.c.h.b16 %v5356
    %v5519 = vunpack.c.l.b16 %v5357
    %v5520 = vunpack.c.h.b16 %v5357
    %v5521 = vunpack.c.l.b16 %v5358
    %v5522 = vunpack.c.h.b16 %v5358
    %v5523 = vunpack.c.l.b16 %v5359
    %v5524 = vunpack.c.h.b16 %v5359
    %v5525 = vunpack.c.l.b16 %v5360
    %v5526 = vunpack.c.h.b16 %v5360
    %v5527 = vunpack.c.l.b16 %v5361
    %v5528 = vunpack.c.h.b16 %v5361
    %v5529 = vunpack.c.l.b16 %v5362
    %v5530 = vunpack.c.h.b16 %v5362
    %v5531 = vunpack.c.l.b16 %v5363
    %v5532 = vunpack.c.h.b16 %v5363
    %v5533 = vunpack.c.l.b16 %v5364
    %v5534 = vunpack.c.h.b16 %v5364
    %v5535 = vunpack.c.l.b16 %v5365
    %v5536 = vunpack.c.h.b16 %v5365
    %v5537 = vunpack.c.l.b16 %v5366
    %v5538 = vunpack.c.h.b16 %v5366
    %v5539 = vunpack.c.l.b16 %v5367
    %v5540 = vunpack.c.h.b16 %v5367
    %v5541 = vunpack.c.l.b16 %v5368
    %v5542 = vunpack.c.h.b16 %v5368
    %v5543 = vunpack.c.l.b16 %v5369
    %v5544 = vunpack.c.h.b16 %v5369
    %v5545 = vunpack.c.l.b16 %v5370
    %v5546 = vunpack.c.h.b16 %v5370
    %v5547 = vunpack.c.l.b16 %v5371
    %v5548 = vunpack.c.h.b16 %v5371
    %v5549 = vunpack.c.l.b16 %v5372
    %v5550 = vunpack.c.h.b16 %v5372
    %v5551 = vunpack.c.l.b16 %v5373
    %v5552 = vunpack.c.h.b16 %v5373
    %v5553 = vunpack.c.l.b16 %v5374
    %v5554 = vunpack.c.h.b16 %v5374
    %v5555 = vunpack.c.l.b16 %v5375
    %v5556 = vunpack.c.h.b16 %v5375
    %v5557 = vunpack.c.l.b16 %v5376
    %v5558 = vunpack.c.h.b16 %v5376
    %v5559 = vunpack.c.l.b16 %v5377
    %v5560 = vunpack.c.h.b16 %v5377
    %v5561 = vunpack.c.l.b16 %v5378
    %v5562 = vunpack.c.h.b16 %v5378
    %v5563 = vunpack.c.l.b16 %v5379
    %v5564 = vunpack.c.h.b16 %v5379
    %v5565 = vunpack.c.l.b16 %v5380
    %v5566 = vunpack.c.h.b16 %v5380
    %v5567 = vunpack.c.l.b16 %v5381
    %v5568 = vunpack.c.h.b16 %v5381
    %v5569 = vunpack.c.l.b16 %v5382
    %v5570 = vunpack.c.h.b16 %v5382
    %v5571 = vunpack.c.l.b16 %v5383
    %v5572 = vunpack.c.h.b16 %v5383
    %v5573 = vunpack.c.l.b16 %v5384
    %v5574 = vunpack.c.h.b16 %v5384
    %v5575 = vunpack.c.l.b16 %v5385
    %v5576 = vunpack.c.h.b16 %v5385
    %v5577 = vunpack.c.l.b16 %v5386
    %v5578 = vunpack.c.h.b16 %v5386
    %v5579 = vpack.c.b16 %v5455, %v5451
    %v5580 = vpack.c.b16 %v5456, %v5452
    %v5581 = vpack.c.b16 %v5457, %v5453
    %v5582 = vpack.c.b16 %v5458, %v5454
    %v5583 = vpack.c.b16 %v5463, %v5459
    %v5584 = vpack.c.b16 %v5464, %v5460
    %v5585 = vpack.c.b16 %v5465, %v5461
    %v5586 = vpack.c.b16 %v5466, %v5462
    %v5587 = vpack.c.b16 %v5471, %v5467
    %v5588 = vpack.c.b16 %v5472, %v5468
    %v5589 = vpack.c.b16 %v5473, %v5469
    %v5590 = vpack.c.b16 %v5474, %v5470
    %v5591 = vpack.c.b16 %v5479, %v5475
    %v5592 = vpack.c.b16 %v5480, %v5476
    %v5593 = vpack.c.b16 %v5481, %v5477
    %v5594 = vpack.c.b16 %v5482, %v5478
    %v5595 = vpack.c.b16 %v5487, %v5483
    %v5596 = vpack.c.b16 %v5488, %v5484
    %v5597 = vpack.c.b16 %v5489, %v5485
    %v5598 = vpack.c.b16 %v5490, %v5486
    %v5599 = vpack.c.b16 %v5495, %v5491
    %v5600 = vpack.c.b16 %v5496, %v5492
    %v5601 = vpack.c.b16 %v5497, %v5493
    %v5602 = vpack.c.b16 %v5498, %v5494
    %v5603 = vpack.c.b16 %v5503, %v5499
    %v5604 = vpack.c.b16 %v5504, %v5500
    %v5605 = vpack.c.b16 %v5505, %v5501
    %v5606 = vpack.c.b16 %v5506, %v5502
    %v5607 = vpack.c.b16 %v5511, %v5507
    %v5608 = vpack.c.b16 %v5512, %v5508
    %v5609 = vpack.c.b16 %v5513, %v5509
    %v5610 = vpack.c.b16 %v5514, %v5510
    %v5611 = vpack.c.b16 %v5519, %v5515
    %v5612 = vpack.c.b16 %v5520, %v5516
    %v5613 = vpack.c.b16 %v5521, %v5517
    %v5614 = vpack.c.b16 %v5522, %v5518
    %v5615 = vpack.c.b16 %v5527, %v5523
    %v5616 = vpack.c.b16 %v5528, %v5524
    %v5617 = vpack.c.b16 %v5529, %v5525
    %v5618 = vpack.c.b16 %v5530, %v5526
    %v5619 = vpack.c.b16 %v5535, %v5531
    %v5620 = vpack.c.b16 %v5536, %v5532
    %v5621 = vpack.c.b16 %v5537, %v5533
    %v5622 = vpack.c.b16 %v5538, %v5534
    %v5623 = vpack.c.b16 %v5543, %v5539
    %v5624 = vpack.c.b16 %v5544, %v5540
    %v5625 = vpack.c.b16 %v5545, %v5541
    %v5626 = vpack.c.b16 %v5546, %v5542
    %v5627 = vpack.c.b16 %v5551, %v5547
    %v5628 = vpack.c.b16 %v5552, %v5548
    %v5629 = vpack.c.b16 %v5553, %v5549
    %v5630 = vpack.c.b16 %v5554, %v5550
    %v5631 = vpack.c.b16 %v5559, %v5555
    %v5632 = vpack.c.b16 %v5560, %v5556
    %v5633 = vpack.c.b16 %v5561, %v5557
    %v5634 = vpack.c.b16 %v5562, %v5558
    %v5635 = vpack.c.b16 %v5567, %v5563
    %v5636 = vpack.c.b16 %v5568, %v5564
    %v5637 = vpack.c.b16 %v5569, %v5565
    %v5638 = vpack.c.b16 %v5570, %v5566
    %v5639 = vpack.c.b16 %v5575, %v5571
    %v5640 = vpack.c.b16 %v5576, %v5572
    %v5641 = vpack.c.b16 %v5577, %v5573
    %v5642 = vpack.c.b16 %v5578, %v5574
    %5707 = vmatprep.subr.bf16.mxu0 %v5608
    %5708 = vmatpush1.bf16.msra.mxu0 %v5607
    %5709 = vmatprep.subr.bf16.mxu0 %v5604
    %5710 = vmatpush1.bf16.msra.mxu0 %v5603
    %5711 = vmatprep.subr.bf16.mxu0 %v5600
    %5712 = vmatpush1.bf16.msra.mxu0 %v5599
    %5713 = vmatprep.subr.bf16.mxu0 %v5596
    %5714 = vmatpush1.bf16.msra.mxu0 %v5595
    %5715 = vmatprep.subr.bf16.mxu0 %v5592
    %5716 = vmatpush1.bf16.msra.mxu0 %v5591
    %5717 = vmatprep.subr.bf16.mxu0 %v5588
    %5718 = vmatpush1.bf16.msra.mxu0 %v5587
    %5719 = vmatprep.subr.bf16.mxu0 %v5584
    %5720 = vmatpush1.bf16.msra.mxu0 %v5583
    %5721 = vmatprep.subr.bf16.mxu0 %v5580
    %5722 = vmatpush1.bf16.msra.mxu0 %v5579
    %5723 = vmatprep.subr.bf16.mxu0 %v5640
    %5724 = vmatpush2.bf16.msra.mxu0 %v5639
    %5725 = vmatprep.subr.bf16.mxu0 %v5636
    %5726 = vmatpush2.bf16.msra.mxu0 %v5635
    %5727 = vmatprep.subr.bf16.mxu0 %v5632
    %5728 = vmatpush2.bf16.msra.mxu0 %v5631
    %5729 = vmatprep.subr.bf16.mxu0 %v5628
    %5730 = vmatpush2.bf16.msra.mxu0 %v5627
    %5731 = vmatprep.subr.bf16.mxu0 %v5624
    %5732 = vmatpush2.bf16.msra.mxu0 %v5623
    %5733 = vmatprep.subr.bf16.mxu0 %v5620
    %5734 = vmatpush2.bf16.msra.mxu0 %v5619
    %5735 = vmatprep.subr.bf16.mxu0 %v5616
    %5736 = vmatpush2.bf16.msra.mxu0 %v5615
    %5737 = vmatprep.subr.bf16.mxu0 %v5612
    %5738 = vmatpush2.bf16.msra.mxu0 %v5611
    %5739 = vmatprep.mubr.bf16.mxu0 %v5321
    %5740 = vmatmul.mubr.bf16.gmra.mxu0 %v5320
    %v5741 = vpop.f32.mrf.mxu0
    %v5742 = vadd.f32 0.0, %v5741
    %v5743 = vpop.f32.mrf.mxu0
    %v5744 = vadd.f32 0.0, %v5743
    %v5745 = vpop.f32.mrf.mxu0
    %v5746 = vpop.f32.mrf.mxu0
    %5747 = vdwg.mxu0
    %5748 = vmatprep.subr.bf16.mxu0 %v5610
    %5749 = vmatpush1.bf16.msra.mxu0 %v5609
    %5750 = vmatprep.subr.bf16.mxu0 %v5606
    %5751 = vmatpush1.bf16.msra.mxu0 %v5605
    %5752 = vmatprep.subr.bf16.mxu0 %v5602
    %5753 = vmatpush1.bf16.msra.mxu0 %v5601
    %5754 = vmatprep.subr.bf16.mxu0 %v5598
    %5755 = vmatpush1.bf16.msra.mxu0 %v5597
    %5756 = vmatprep.subr.bf16.mxu0 %v5594
    %5757 = vmatpush1.bf16.msra.mxu0 %v5593
    %5758 = vmatprep.subr.bf16.mxu0 %v5590
    %5759 = vmatpush1.bf16.msra.mxu0 %v5589
    %5760 = vmatprep.subr.bf16.mxu0 %v5586
    %5761 = vmatpush1.bf16.msra.mxu0 %v5585
    %5762 = vmatprep.subr.bf16.mxu0 %v5582
    %5763 = vmatpush1.bf16.msra.mxu0 %v5581
    %5764 = vmatprep.subr.bf16.mxu0 %v5642
    %5765 = vmatpush2.bf16.msra.mxu0 %v5641
    %5766 = vmatprep.subr.bf16.mxu0 %v5638
    %5767 = vmatpush2.bf16.msra.mxu0 %v5637
    %5768 = vmatprep.subr.bf16.mxu0 %v5634
    %5769 = vmatpush2.bf16.msra.mxu0 %v5633
    %5770 = vmatprep.subr.bf16.mxu0 %v5630
    %5771 = vmatpush2.bf16.msra.mxu0 %v5629
    %5772 = vmatprep.subr.bf16.mxu0 %v5626
    %5773 = vmatpush2.bf16.msra.mxu0 %v5625
    %5774 = vmatprep.subr.bf16.mxu0 %v5622
    %5775 = vmatpush2.bf16.msra.mxu0 %v5621
    %5776 = vmatprep.subr.bf16.mxu0 %v5618
    %5777 = vmatpush2.bf16.msra.mxu0 %v5617
    %5778 = vmatprep.subr.bf16.mxu0 %v5614
    %5779 = vmatpush2.bf16.msra.mxu0 %v5613
    %5780 = vmatprep.mubr.bf16.mxu0 %v5321
    %5781 = vmatmul.mubr.bf16.gmra.mxu0 %v5320
    %v5782 = vpop.f32.mrf.mxu0
    %v5783 = vadd.f32 0.0, %v5782
    %v5784 = vpop.f32.mrf.mxu0
    %v5785 = vadd.f32 0.0, %v5784
    %v5786 = vpop.f32.mrf.mxu0
    %v5787 = vpop.f32.mrf.mxu0
    %5788 = vdwg.mxu0
    %v5789 = vld [vmem:[#allocation20] sm:$0x3]
    %v5791 = vsel %vm4069, %v5789, 0
    %v5794 = vsel %vm235, %v5742, 0
    %v5797 = vsel %vm235, %v5744, 0
    %v5800 = vsel %vm235, %v5783, 0
    %v5803 = vsel %vm235, %v5785, 0
    %5805 = vmatprep.subr.mxu0 0.0
    %5806 = vmatpush1.msra.mxu0 0.0
    %5807 = vmatprep.subr.mxu0 0.0
    %5808 = vmatpush1.msra.mxu0 0.0
    %5809 = vmatprep.subr.mxu0 0.0
    %5810 = vmatpush1.msra.mxu0 0.0
    %5811 = vmatprep.subr.mxu0 0.0
    %5812 = vmatpush1.msra.mxu0 0.0
    %5813 = vmatprep.subr.mxu0 0.0
    %5814 = vmatpush1.msra.mxu0 0.0
    %5815 = vmatprep.subr.mxu0 0.0
    %5816 = vmatpush1.msra.mxu0 0.0
    %5817 = vmatprep.subr.mxu0 0.0
    %5818 = vmatpush1.msra.mxu0 0.0
    %5819 = vmatprep.subr.mxu0 0.0
    %5820 = vmatpush1.msra.mxu0 0.0
    %5821 = vmatprep.subr.mxu0 0.0
    %5822 = vmatpush1.msra.mxu0 0.0
    %5823 = vmatprep.subr.mxu0 0.0
    %5824 = vmatpush1.msra.mxu0 0.0
    %5825 = vmatprep.subr.mxu0 0.0
    %5826 = vmatpush1.msra.mxu0 0.0
    %5827 = vmatprep.subr.mxu0 0.0
    %5828 = vmatpush1.msra.mxu0 0.0
    %5829 = vmatprep.subr.mxu0 0.0
    %5830 = vmatpush1.msra.mxu0 0.0
    %5831 = vmatprep.subr.mxu0 0.0
    %5832 = vmatpush1.msra.mxu0 0.0
    %5833 = vmatprep.subr.mxu0 0.0
    %5834 = vmatpush1.msra.mxu0 0.0
    %v5835 = vand.u32 %v5797, 4294901760
    %5836 = vmatprep.subr.mxu0 %v5835
    %v5837 = vand.u32 %v5794, 4294901760
    %5838 = vmatpush1.msra.mxu0 %v5837
    %5839 = vmatprep.subr.mxu0 0.0
    %5840 = vmatpush2.msra.mxu0 0.0
    %5841 = vmatprep.subr.mxu0 0.0
    %5842 = vmatpush2.msra.mxu0 0.0
    %5843 = vmatprep.subr.mxu0 0.0
    %5844 = vmatpush2.msra.mxu0 0.0
    %5845 = vmatprep.subr.mxu0 0.0
    %5846 = vmatpush2.msra.mxu0 0.0
    %5847 = vmatprep.subr.mxu0 0.0
    %5848 = vmatpush2.msra.mxu0 0.0
    %5849 = vmatprep.subr.mxu0 0.0
    %5850 = vmatpush2.msra.mxu0 0.0
    %5851 = vmatprep.subr.mxu0 0.0
    %5852 = vmatpush2.msra.mxu0 0.0
    %5853 = vmatprep.subr.mxu0 0.0
    %5854 = vmatpush2.msra.mxu0 0.0
    %5855 = vmatprep.subr.mxu0 0.0
    %5856 = vmatpush2.msra.mxu0 0.0
    %5857 = vmatprep.subr.mxu0 0.0
    %5858 = vmatpush2.msra.mxu0 0.0
    %5859 = vmatprep.subr.mxu0 0.0
    %5860 = vmatpush2.msra.mxu0 0.0
    %5861 = vmatprep.subr.mxu0 0.0
    %5862 = vmatpush2.msra.mxu0 0.0
    %5863 = vmatprep.subr.mxu0 0.0
    %5864 = vmatpush2.msra.mxu0 0.0
    %5865 = vmatprep.subr.mxu0 0.0
    %5866 = vmatpush2.msra.mxu0 0.0
    %5867 = vmatprep.subr.mxu0 0.0
    %5868 = vmatpush2.msra.mxu0 0.0
    %5869 = vmatprep.subr.mxu0 0.0
    %5870 = vmatpush2.msra.mxu0 0.0
    %5871 = vmatprep.mubr.f32.mxu0 0.0
    %v5872 = vand.u32 %v5791, 4294901760
    %v5873 = vsub.f32 %v5791, %v5872
    %v5874 = vand.u32 %v5873, 4294901760
    %v5875 = vsub.f32 %v5873, %v5874
    %v5876 = vand.u32 %v5875, 4294901760
    %5877 = vmatmul.mubr.f32.gmra.mxu0 %v5876
    %v5878 = vpop.f32.mrf.mxu0
    %v5879 = vadd.f32 0.0, %v5878
    %v5880 = vpop.f32.mrf.mxu0
    %v5881 = vadd.f32 0.0, %v5880
    %5882 = vdwg.mxu0
    %5883 = vmatprep.subr.mxu0 0.0
    %5884 = vmatpush1.msra.mxu0 0.0
    %5885 = vmatprep.subr.mxu0 0.0
    %5886 = vmatpush1.msra.mxu0 0.0
    %5887 = vmatprep.subr.mxu0 0.0
    %5888 = vmatpush1.msra.mxu0 0.0
    %5889 = vmatprep.subr.mxu0 0.0
    %5890 = vmatpush1.msra.mxu0 0.0
    %5891 = vmatprep.subr.mxu0 0.0
    %5892 = vmatpush1.msra.mxu0 0.0
    %5893 = vmatprep.subr.mxu0 0.0
    %5894 = vmatpush1.msra.mxu0 0.0
    %5895 = vmatprep.subr.mxu0 0.0
    %5896 = vmatpush1.msra.mxu0 0.0
    %5897 = vmatprep.subr.mxu0 0.0
    %5898 = vmatpush1.msra.mxu0 0.0
    %5899 = vmatprep.subr.mxu0 0.0
    %5900 = vmatpush1.msra.mxu0 0.0
    %5901 = vmatprep.subr.mxu0 0.0
    %5902 = vmatpush1.msra.mxu0 0.0
    %5903 = vmatprep.subr.mxu0 0.0
    %5904 = vmatpush1.msra.mxu0 0.0
    %5905 = vmatprep.subr.mxu0 0.0
    %5906 = vmatpush1.msra.mxu0 0.0
    %5907 = vmatprep.subr.mxu0 0.0
    %5908 = vmatpush1.msra.mxu0 0.0
    %5909 = vmatprep.subr.mxu0 0.0
    %5910 = vmatpush1.msra.mxu0 0.0
    %5911 = vmatprep.subr.mxu0 0.0
    %5912 = vmatpush1.msra.mxu0 0.0
    %v5913 = vand.u32 %v5797, 4294901760
    %v5914 = vsub.f32 %v5797, %v5913
    %v5915 = vand.u32 %v5914, 4294901760
    %v5916 = vsub.f32 %v5914, %v5915
    %v5917 = vand.u32 %v5916, 4294901760
    %5918 = vmatprep.subr.mxu0 %v5917
    %v5919 = vand.u32 %v5794, 4294901760
    %v5920 = vsub.f32 %v5794, %v5919
    %v5921 = vand.u32 %v5920, 4294901760
    %v5922 = vsub.f32 %v5920, %v5921
    %v5923 = vand.u32 %v5922, 4294901760
    %5924 = vmatpush1.msra.mxu0 %v5923
    %5925 = vmatprep.subr.mxu0 0.0
    %5926 = vmatpush2.msra.mxu0 0.0
    %5927 = vmatprep.subr.mxu0 0.0
    %5928 = vmatpush2.msra.mxu0 0.0
    %5929 = vmatprep.subr.mxu0 0.0
    %5930 = vmatpush2.msra.mxu0 0.0
    %5931 = vmatprep.subr.mxu0 0.0
    %5932 = vmatpush2.msra.mxu0 0.0
    %5933 = vmatprep.subr.mxu0 0.0
    %5934 = vmatpush2.msra.mxu0 0.0
    %5935 = vmatprep.subr.mxu0 0.0
    %5936 = vmatpush2.msra.mxu0 0.0
    %5937 = vmatprep.subr.mxu0 0.0
    %5938 = vmatpush2.msra.mxu0 0.0
    %5939 = vmatprep.subr.mxu0 0.0
    %5940 = vmatpush2.msra.mxu0 0.0
    %5941 = vmatprep.subr.mxu0 0.0
    %5942 = vmatpush2.msra.mxu0 0.0
    %5943 = vmatprep.subr.mxu0 0.0
    %5944 = vmatpush2.msra.mxu0 0.0
    %5945 = vmatprep.subr.mxu0 0.0
    %5946 = vmatpush2.msra.mxu0 0.0
    %5947 = vmatprep.subr.mxu0 0.0
    %5948 = vmatpush2.msra.mxu0 0.0
    %5949 = vmatprep.subr.mxu0 0.0
    %5950 = vmatpush2.msra.mxu0 0.0
    %5951 = vmatprep.subr.mxu0 0.0
    %5952 = vmatpush2.msra.mxu0 0.0
    %5953 = vmatprep.subr.mxu0 0.0
    %5954 = vmatpush2.msra.mxu0 0.0
    %5955 = vmatprep.subr.mxu0 0.0
    %5956 = vmatpush2.msra.mxu0 0.0
    %5957 = vmatprep.mubr.f32.mxu0 0.0
    %v5958 = vand.u32 %v5791, 4294901760
    %5959 = vmatmul.mubr.f32.gmra.mxu0 %v5958
    %v5960 = vpop.f32.mrf.mxu0
    %v5961 = vadd.f32 %v5879, %v5960
    %v5962 = vpop.f32.mrf.mxu0
    %v5963 = vadd.f32 %v5881, %v5962
    %5964 = vdwg.mxu0
    %5965 = vmatprep.subr.mxu0 0.0
    %5966 = vmatpush1.msra.mxu0 0.0
    %5967 = vmatprep.subr.mxu0 0.0
    %5968 = vmatpush1.msra.mxu0 0.0
    %5969 = vmatprep.subr.mxu0 0.0
    %5970 = vmatpush1.msra.mxu0 0.0
    %5971 = vmatprep.subr.mxu0 0.0
    %5972 = vmatpush1.msra.mxu0 0.0
    %5973 = vmatprep.subr.mxu0 0.0
    %5974 = vmatpush1.msra.mxu0 0.0
    %5975 = vmatprep.subr.mxu0 0.0
    %5976 = vmatpush1.msra.mxu0 0.0
    %5977 = vmatprep.subr.mxu0 0.0
    %5978 = vmatpush1.msra.mxu0 0.0
    %5979 = vmatprep.subr.mxu0 0.0
    %5980 = vmatpush1.msra.mxu0 0.0
    %5981 = vmatprep.subr.mxu0 0.0
    %5982 = vmatpush1.msra.mxu0 0.0
    %5983 = vmatprep.subr.mxu0 0.0
    %5984 = vmatpush1.msra.mxu0 0.0
    %5985 = vmatprep.subr.mxu0 0.0
    %5986 = vmatpush1.msra.mxu0 0.0
    %5987 = vmatprep.subr.mxu0 0.0
    %5988 = vmatpush1.msra.mxu0 0.0
    %5989 = vmatprep.subr.mxu0 0.0
    %5990 = vmatpush1.msra.mxu0 0.0
    %5991 = vmatprep.subr.mxu0 0.0
    %5992 = vmatpush1.msra.mxu0 0.0
    %5993 = vmatprep.subr.mxu0 0.0
    %5994 = vmatpush1.msra.mxu0 0.0
    %v5995 = vand.u32 %v5797, 4294901760
    %v5996 = vsub.f32 %v5797, %v5995
    %5997 = vmatprep.subr.mxu0 %v5996
    %v5998 = vand.u32 %v5794, 4294901760
    %v5999 = vsub.f32 %v5794, %v5998
    %6000 = vmatpush1.msra.mxu0 %v5999
    %6001 = vmatprep.subr.mxu0 0.0
    %6002 = vmatpush2.msra.mxu0 0.0
    %6003 = vmatprep.subr.mxu0 0.0
    %6004 = vmatpush2.msra.mxu0 0.0
    %6005 = vmatprep.subr.mxu0 0.0
    %6006 = vmatpush2.msra.mxu0 0.0
    %6007 = vmatprep.subr.mxu0 0.0
    %6008 = vmatpush2.msra.mxu0 0.0
    %6009 = vmatprep.subr.mxu0 0.0
    %6010 = vmatpush2.msra.mxu0 0.0
    %6011 = vmatprep.subr.mxu0 0.0
    %6012 = vmatpush2.msra.mxu0 0.0
    %6013 = vmatprep.subr.mxu0 0.0
    %6014 = vmatpush2.msra.mxu0 0.0
    %6015 = vmatprep.subr.mxu0 0.0
    %6016 = vmatpush2.msra.mxu0 0.0
    %6017 = vmatprep.subr.mxu0 0.0
    %6018 = vmatpush2.msra.mxu0 0.0
    %6019 = vmatprep.subr.mxu0 0.0
    %6020 = vmatpush2.msra.mxu0 0.0
    %6021 = vmatprep.subr.mxu0 0.0
    %6022 = vmatpush2.msra.mxu0 0.0
    %6023 = vmatprep.subr.mxu0 0.0
    %6024 = vmatpush2.msra.mxu0 0.0
    %6025 = vmatprep.subr.mxu0 0.0
    %6026 = vmatpush2.msra.mxu0 0.0
    %6027 = vmatprep.subr.mxu0 0.0
    %6028 = vmatpush2.msra.mxu0 0.0
    %6029 = vmatprep.subr.mxu0 0.0
    %6030 = vmatpush2.msra.mxu0 0.0
    %6031 = vmatprep.subr.mxu0 0.0
    %6032 = vmatpush2.msra.mxu0 0.0
    %6033 = vmatprep.mubr.f32.mxu0 0.0
    %v6034 = vand.u32 %v5791, 4294901760
    %v6035 = vsub.f32 %v5791, %v6034
    %6036 = vmatmul.mubr.f32.gmra.mxu0 %v6035
    %v6037 = vpop.f32.mrf.mxu0
    %v6038 = vadd.f32 %v5961, %v6037
    %v6039 = vpop.f32.mrf.mxu0
    %v6040 = vadd.f32 %v5963, %v6039
    %6041 = vdwg.mxu0
    %6042 = vmatprep.subr.mxu0 0.0
    %6043 = vmatpush1.msra.mxu0 0.0
    %6044 = vmatprep.subr.mxu0 0.0
    %6045 = vmatpush1.msra.mxu0 0.0
    %6046 = vmatprep.subr.mxu0 0.0
    %6047 = vmatpush1.msra.mxu0 0.0
    %6048 = vmatprep.subr.mxu0 0.0
    %6049 = vmatpush1.msra.mxu0 0.0
    %6050 = vmatprep.subr.mxu0 0.0
    %6051 = vmatpush1.msra.mxu0 0.0
    %6052 = vmatprep.subr.mxu0 0.0
    %6053 = vmatpush1.msra.mxu0 0.0
    %6054 = vmatprep.subr.mxu0 0.0
    %6055 = vmatpush1.msra.mxu0 0.0
    %6056 = vmatprep.subr.mxu0 0.0
    %6057 = vmatpush1.msra.mxu0 0.0
    %6058 = vmatprep.subr.mxu0 0.0
    %6059 = vmatpush1.msra.mxu0 0.0
    %6060 = vmatprep.subr.mxu0 0.0
    %6061 = vmatpush1.msra.mxu0 0.0
    %6062 = vmatprep.subr.mxu0 0.0
    %6063 = vmatpush1.msra.mxu0 0.0
    %6064 = vmatprep.subr.mxu0 0.0
    %6065 = vmatpush1.msra.mxu0 0.0
    %6066 = vmatprep.subr.mxu0 0.0
    %6067 = vmatpush1.msra.mxu0 0.0
    %6068 = vmatprep.subr.mxu0 0.0
    %6069 = vmatpush1.msra.mxu0 0.0
    %6070 = vmatprep.subr.mxu0 0.0
    %6071 = vmatpush1.msra.mxu0 0.0
    %v6072 = vand.u32 %v5797, 4294901760
    %6073 = vmatprep.subr.mxu0 %v6072
    %v6074 = vand.u32 %v5794, 4294901760
    %6075 = vmatpush1.msra.mxu0 %v6074
    %6076 = vmatprep.subr.mxu0 0.0
    %6077 = vmatpush2.msra.mxu0 0.0
    %6078 = vmatprep.subr.mxu0 0.0
    %6079 = vmatpush2.msra.mxu0 0.0
    %6080 = vmatprep.subr.mxu0 0.0
    %6081 = vmatpush2.msra.mxu0 0.0
    %6082 = vmatprep.subr.mxu0 0.0
    %6083 = vmatpush2.msra.mxu0 0.0
    %6084 = vmatprep.subr.mxu0 0.0
    %6085 = vmatpush2.msra.mxu0 0.0
    %6086 = vmatprep.subr.mxu0 0.0
    %6087 = vmatpush2.msra.mxu0 0.0
    %6088 = vmatprep.subr.mxu0 0.0
    %6089 = vmatpush2.msra.mxu0 0.0
    %6090 = vmatprep.subr.mxu0 0.0
    %6091 = vmatpush2.msra.mxu0 0.0
    %6092 = vmatprep.subr.mxu0 0.0
    %6093 = vmatpush2.msra.mxu0 0.0
    %6094 = vmatprep.subr.mxu0 0.0
    %6095 = vmatpush2.msra.mxu0 0.0
    %6096 = vmatprep.subr.mxu0 0.0
    %6097 = vmatpush2.msra.mxu0 0.0
    %6098 = vmatprep.subr.mxu0 0.0
    %6099 = vmatpush2.msra.mxu0 0.0
    %6100 = vmatprep.subr.mxu0 0.0
    %6101 = vmatpush2.msra.mxu0 0.0
    %6102 = vmatprep.subr.mxu0 0.0
    %6103 = vmatpush2.msra.mxu0 0.0
    %6104 = vmatprep.subr.mxu0 0.0
    %6105 = vmatpush2.msra.mxu0 0.0
    %6106 = vmatprep.subr.mxu0 0.0
    %6107 = vmatpush2.msra.mxu0 0.0
    %6108 = vmatprep.mubr.f32.mxu0 0.0
    %v6109 = vand.u32 %v5791, 4294901760
    %v6110 = vsub.f32 %v5791, %v6109
    %v6111 = vand.u32 %v6110, 4294901760
    %6112 = vmatmul.mubr.f32.gmra.mxu0 %v6111
    %v6113 = vpop.f32.mrf.mxu0
    %v6114 = vadd.f32 %v6038, %v6113
    %v6115 = vpop.f32.mrf.mxu0
    %v6116 = vadd.f32 %v6040, %v6115
    %6117 = vdwg.mxu0
    %6118 = vmatprep.subr.mxu0 0.0
    %6119 = vmatpush1.msra.mxu0 0.0
    %6120 = vmatprep.subr.mxu0 0.0
    %6121 = vmatpush1.msra.mxu0 0.0
    %6122 = vmatprep.subr.mxu0 0.0
    %6123 = vmatpush1.msra.mxu0 0.0
    %6124 = vmatprep.subr.mxu0 0.0
    %6125 = vmatpush1.msra.mxu0 0.0
    %6126 = vmatprep.subr.mxu0 0.0
    %6127 = vmatpush1.msra.mxu0 0.0
    %6128 = vmatprep.subr.mxu0 0.0
    %6129 = vmatpush1.msra.mxu0 0.0
    %6130 = vmatprep.subr.mxu0 0.0
    %6131 = vmatpush1.msra.mxu0 0.0
    %6132 = vmatprep.subr.mxu0 0.0
    %6133 = vmatpush1.msra.mxu0 0.0
    %6134 = vmatprep.subr.mxu0 0.0
    %6135 = vmatpush1.msra.mxu0 0.0
    %6136 = vmatprep.subr.mxu0 0.0
    %6137 = vmatpush1.msra.mxu0 0.0
    %6138 = vmatprep.subr.mxu0 0.0
    %6139 = vmatpush1.msra.mxu0 0.0
    %6140 = vmatprep.subr.mxu0 0.0
    %6141 = vmatpush1.msra.mxu0 0.0
    %6142 = vmatprep.subr.mxu0 0.0
    %6143 = vmatpush1.msra.mxu0 0.0
    %6144 = vmatprep.subr.mxu0 0.0
    %6145 = vmatpush1.msra.mxu0 0.0
    %6146 = vmatprep.subr.mxu0 0.0
    %6147 = vmatpush1.msra.mxu0 0.0
    %v6148 = vand.u32 %v5797, 4294901760
    %v6149 = vsub.f32 %v5797, %v6148
    %v6150 = vand.u32 %v6149, 4294901760
    %6151 = vmatprep.subr.mxu0 %v6150
    %v6152 = vand.u32 %v5794, 4294901760
    %v6153 = vsub.f32 %v5794, %v6152
    %v6154 = vand.u32 %v6153, 4294901760
    %6155 = vmatpush1.msra.mxu0 %v6154
    %6156 = vmatprep.subr.mxu0 0.0
    %6157 = vmatpush2.msra.mxu0 0.0
    %6158 = vmatprep.subr.mxu0 0.0
    %6159 = vmatpush2.msra.mxu0 0.0
    %6160 = vmatprep.subr.mxu0 0.0
    %6161 = vmatpush2.msra.mxu0 0.0
    %6162 = vmatprep.subr.mxu0 0.0
    %6163 = vmatpush2.msra.mxu0 0.0
    %6164 = vmatprep.subr.mxu0 0.0
    %6165 = vmatpush2.msra.mxu0 0.0
    %6166 = vmatprep.subr.mxu0 0.0
    %6167 = vmatpush2.msra.mxu0 0.0
    %6168 = vmatprep.subr.mxu0 0.0
    %6169 = vmatpush2.msra.mxu0 0.0
    %6170 = vmatprep.subr.mxu0 0.0
    %6171 = vmatpush2.msra.mxu0 0.0
    %6172 = vmatprep.subr.mxu0 0.0
    %6173 = vmatpush2.msra.mxu0 0.0
    %6174 = vmatprep.subr.mxu0 0.0
    %6175 = vmatpush2.msra.mxu0 0.0
    %6176 = vmatprep.subr.mxu0 0.0
    %6177 = vmatpush2.msra.mxu0 0.0
    %6178 = vmatprep.subr.mxu0 0.0
    %6179 = vmatpush2.msra.mxu0 0.0
    %6180 = vmatprep.subr.mxu0 0.0
    %6181 = vmatpush2.msra.mxu0 0.0
    %6182 = vmatprep.subr.mxu0 0.0
    %6183 = vmatpush2.msra.mxu0 0.0
    %6184 = vmatprep.subr.mxu0 0.0
    %6185 = vmatpush2.msra.mxu0 0.0
    %6186 = vmatprep.subr.mxu0 0.0
    %6187 = vmatpush2.msra.mxu0 0.0
    %6188 = vmatprep.mubr.f32.mxu0 0.0
    %v6189 = vand.u32 %v5791, 4294901760
    %6190 = vmatmul.mubr.f32.gmra.mxu0 %v6189
    %v6191 = vpop.f32.mrf.mxu0
    %v6192 = vadd.f32 %v6114, %v6191
    %v6193 = vpop.f32.mrf.mxu0
    %v6194 = vadd.f32 %v6116, %v6193
    %6195 = vdwg.mxu0
    %6196 = vmatprep.subr.mxu0 0.0
    %6197 = vmatpush1.msra.mxu0 0.0
    %6198 = vmatprep.subr.mxu0 0.0
    %6199 = vmatpush1.msra.mxu0 0.0
    %6200 = vmatprep.subr.mxu0 0.0
    %6201 = vmatpush1.msra.mxu0 0.0
    %6202 = vmatprep.subr.mxu0 0.0
    %6203 = vmatpush1.msra.mxu0 0.0
    %6204 = vmatprep.subr.mxu0 0.0
    %6205 = vmatpush1.msra.mxu0 0.0
    %6206 = vmatprep.subr.mxu0 0.0
    %6207 = vmatpush1.msra.mxu0 0.0
    %6208 = vmatprep.subr.mxu0 0.0
    %6209 = vmatpush1.msra.mxu0 0.0
    %6210 = vmatprep.subr.mxu0 0.0
    %6211 = vmatpush1.msra.mxu0 0.0
    %6212 = vmatprep.subr.mxu0 0.0
    %6213 = vmatpush1.msra.mxu0 0.0
    %6214 = vmatprep.subr.mxu0 0.0
    %6215 = vmatpush1.msra.mxu0 0.0
    %6216 = vmatprep.subr.mxu0 0.0
    %6217 = vmatpush1.msra.mxu0 0.0
    %6218 = vmatprep.subr.mxu0 0.0
    %6219 = vmatpush1.msra.mxu0 0.0
    %6220 = vmatprep.subr.mxu0 0.0
    %6221 = vmatpush1.msra.mxu0 0.0
    %6222 = vmatprep.subr.mxu0 0.0
    %6223 = vmatpush1.msra.mxu0 0.0
    %6224 = vmatprep.subr.mxu0 0.0
    %6225 = vmatpush1.msra.mxu0 0.0
    %v6226 = vand.u32 %v5797, 4294901760
    %6227 = vmatprep.subr.mxu0 %v6226
    %v6228 = vand.u32 %v5794, 4294901760
    %6229 = vmatpush1.msra.mxu0 %v6228
    %6230 = vmatprep.subr.mxu0 0.0
    %6231 = vmatpush2.msra.mxu0 0.0
    %6232 = vmatprep.subr.mxu0 0.0
    %6233 = vmatpush2.msra.mxu0 0.0
    %6234 = vmatprep.subr.mxu0 0.0
    %6235 = vmatpush2.msra.mxu0 0.0
    %6236 = vmatprep.subr.mxu0 0.0
    %6237 = vmatpush2.msra.mxu0 0.0
    %6238 = vmatprep.subr.mxu0 0.0
    %6239 = vmatpush2.msra.mxu0 0.0
    %6240 = vmatprep.subr.mxu0 0.0
    %6241 = vmatpush2.msra.mxu0 0.0
    %6242 = vmatprep.subr.mxu0 0.0
    %6243 = vmatpush2.msra.mxu0 0.0
    %6244 = vmatprep.subr.mxu0 0.0
    %6245 = vmatpush2.msra.mxu0 0.0
    %6246 = vmatprep.subr.mxu0 0.0
    %6247 = vmatpush2.msra.mxu0 0.0
    %6248 = vmatprep.subr.mxu0 0.0
    %6249 = vmatpush2.msra.mxu0 0.0
    %6250 = vmatprep.subr.mxu0 0.0
    %6251 = vmatpush2.msra.mxu0 0.0
    %6252 = vmatprep.subr.mxu0 0.0
    %6253 = vmatpush2.msra.mxu0 0.0
    %6254 = vmatprep.subr.mxu0 0.0
    %6255 = vmatpush2.msra.mxu0 0.0
    %6256 = vmatprep.subr.mxu0 0.0
    %6257 = vmatpush2.msra.mxu0 0.0
    %6258 = vmatprep.subr.mxu0 0.0
    %6259 = vmatpush2.msra.mxu0 0.0
    %6260 = vmatprep.subr.mxu0 0.0
    %6261 = vmatpush2.msra.mxu0 0.0
    %6262 = vmatprep.mubr.f32.mxu0 0.0
    %v6263 = vand.u32 %v5791, 4294901760
    %6264 = vmatmul.mubr.f32.gmra.mxu0 %v6263
    %v6265 = vpop.f32.mrf.mxu0
    %v6266 = vadd.f32 %v6192, %v6265
    %v6267 = vpop.f32.mrf.mxu0
    %v6268 = vadd.f32 %v6194, %v6267
    %6269 = vdwg.mxu0
    %6270 = vmatprep.subr.mxu0 0.0
    %6271 = vmatpush1.msra.mxu0 0.0
    %6272 = vmatprep.subr.mxu0 0.0
    %6273 = vmatpush1.msra.mxu0 0.0
    %6274 = vmatprep.subr.mxu0 0.0
    %6275 = vmatpush1.msra.mxu0 0.0
    %6276 = vmatprep.subr.mxu0 0.0
    %6277 = vmatpush1.msra.mxu0 0.0
    %6278 = vmatprep.subr.mxu0 0.0
    %6279 = vmatpush1.msra.mxu0 0.0
    %6280 = vmatprep.subr.mxu0 0.0
    %6281 = vmatpush1.msra.mxu0 0.0
    %6282 = vmatprep.subr.mxu0 0.0
    %6283 = vmatpush1.msra.mxu0 0.0
    %6284 = vmatprep.subr.mxu0 0.0
    %6285 = vmatpush1.msra.mxu0 0.0
    %6286 = vmatprep.subr.mxu0 0.0
    %6287 = vmatpush1.msra.mxu0 0.0
    %6288 = vmatprep.subr.mxu0 0.0
    %6289 = vmatpush1.msra.mxu0 0.0
    %6290 = vmatprep.subr.mxu0 0.0
    %6291 = vmatpush1.msra.mxu0 0.0
    %6292 = vmatprep.subr.mxu0 0.0
    %6293 = vmatpush1.msra.mxu0 0.0
    %6294 = vmatprep.subr.mxu0 0.0
    %6295 = vmatpush1.msra.mxu0 0.0
    %6296 = vmatprep.subr.mxu0 0.0
    %6297 = vmatpush1.msra.mxu0 0.0
    %6298 = vmatprep.subr.mxu0 0.0
    %6299 = vmatpush1.msra.mxu0 0.0
    %v6300 = vand.u32 %v5803, 4294901760
    %6301 = vmatprep.subr.mxu0 %v6300
    %v6302 = vand.u32 %v5800, 4294901760
    %6303 = vmatpush1.msra.mxu0 %v6302
    %6304 = vmatprep.subr.mxu0 0.0
    %6305 = vmatpush2.msra.mxu0 0.0
    %6306 = vmatprep.subr.mxu0 0.0
    %6307 = vmatpush2.msra.mxu0 0.0
    %6308 = vmatprep.subr.mxu0 0.0
    %6309 = vmatpush2.msra.mxu0 0.0
    %6310 = vmatprep.subr.mxu0 0.0
    %6311 = vmatpush2.msra.mxu0 0.0
    %6312 = vmatprep.subr.mxu0 0.0
    %6313 = vmatpush2.msra.mxu0 0.0
    %6314 = vmatprep.subr.mxu0 0.0
    %6315 = vmatpush2.msra.mxu0 0.0
    %6316 = vmatprep.subr.mxu0 0.0
    %6317 = vmatpush2.msra.mxu0 0.0
    %6318 = vmatprep.subr.mxu0 0.0
    %6319 = vmatpush2.msra.mxu0 0.0
    %6320 = vmatprep.subr.mxu0 0.0
    %6321 = vmatpush2.msra.mxu0 0.0
    %6322 = vmatprep.subr.mxu0 0.0
    %6323 = vmatpush2.msra.mxu0 0.0
    %6324 = vmatprep.subr.mxu0 0.0
    %6325 = vmatpush2.msra.mxu0 0.0
    %6326 = vmatprep.subr.mxu0 0.0
    %6327 = vmatpush2.msra.mxu0 0.0
    %6328 = vmatprep.subr.mxu0 0.0
    %6329 = vmatpush2.msra.mxu0 0.0
    %6330 = vmatprep.subr.mxu0 0.0
    %6331 = vmatpush2.msra.mxu0 0.0
    %6332 = vmatprep.subr.mxu0 0.0
    %6333 = vmatpush2.msra.mxu0 0.0
    %6334 = vmatprep.subr.mxu0 0.0
    %6335 = vmatpush2.msra.mxu0 0.0
    %6336 = vmatprep.mubr.f32.mxu0 0.0
    %v6337 = vand.u32 %v5791, 4294901760
    %v6338 = vsub.f32 %v5791, %v6337
    %v6339 = vand.u32 %v6338, 4294901760
    %v6340 = vsub.f32 %v6338, %v6339
    %v6341 = vand.u32 %v6340, 4294901760
    %6342 = vmatmul.mubr.f32.gmra.mxu0 %v6341
    %v6343 = vpop.f32.mrf.mxu0
    %v6344 = vadd.f32 0.0, %v6343
    %v6345 = vpop.f32.mrf.mxu0
    %v6346 = vadd.f32 0.0, %v6345
    %6347 = vdwg.mxu0
    %6348 = vmatprep.subr.mxu0 0.0
    %6349 = vmatpush1.msra.mxu0 0.0
    %6350 = vmatprep.subr.mxu0 0.0
    %6351 = vmatpush1.msra.mxu0 0.0
    %6352 = vmatprep.subr.mxu0 0.0
    %6353 = vmatpush1.msra.mxu0 0.0
    %6354 = vmatprep.subr.mxu0 0.0
    %6355 = vmatpush1.msra.mxu0 0.0
    %6356 = vmatprep.subr.mxu0 0.0
    %6357 = vmatpush1.msra.mxu0 0.0
    %6358 = vmatprep.subr.mxu0 0.0
    %6359 = vmatpush1.msra.mxu0 0.0
    %6360 = vmatprep.subr.mxu0 0.0
    %6361 = vmatpush1.msra.mxu0 0.0
    %6362 = vmatprep.subr.mxu0 0.0
    %6363 = vmatpush1.msra.mxu0 0.0
    %6364 = vmatprep.subr.mxu0 0.0
    %6365 = vmatpush1.msra.mxu0 0.0
    %6366 = vmatprep.subr.mxu0 0.0
    %6367 = vmatpush1.msra.mxu0 0.0
    %6368 = vmatprep.subr.mxu0 0.0
    %6369 = vmatpush1.msra.mxu0 0.0
    %6370 = vmatprep.subr.mxu0 0.0
    %6371 = vmatpush1.msra.mxu0 0.0
    %6372 = vmatprep.subr.mxu0 0.0
    %6373 = vmatpush1.msra.mxu0 0.0
    %6374 = vmatprep.subr.mxu0 0.0
    %6375 = vmatpush1.msra.mxu0 0.0
    %6376 = vmatprep.subr.mxu0 0.0
    %6377 = vmatpush1.msra.mxu0 0.0
    %v6378 = vand.u32 %v5803, 4294901760
    %v6379 = vsub.f32 %v5803, %v6378
    %v6380 = vand.u32 %v6379, 4294901760
    %v6381 = vsub.f32 %v6379, %v6380
    %v6382 = vand.u32 %v6381, 4294901760
    %6383 = vmatprep.subr.mxu0 %v6382
    %v6384 = vand.u32 %v5800, 4294901760
    %v6385 = vsub.f32 %v5800, %v6384
    %v6386 = vand.u32 %v6385, 4294901760
    %v6387 = vsub.f32 %v6385, %v6386
    %v6388 = vand.u32 %v6387, 4294901760
    %6389 = vmatpush1.msra.mxu0 %v6388
    %6390 = vmatprep.subr.mxu0 0.0
    %6391 = vmatpush2.msra.mxu0 0.0
    %6392 = vmatprep.subr.mxu0 0.0
    %6393 = vmatpush2.msra.mxu0 0.0
    %6394 = vmatprep.subr.mxu0 0.0
    %6395 = vmatpush2.msra.mxu0 0.0
    %6396 = vmatprep.subr.mxu0 0.0
    %6397 = vmatpush2.msra.mxu0 0.0
    %6398 = vmatprep.subr.mxu0 0.0
    %6399 = vmatpush2.msra.mxu0 0.0
    %6400 = vmatprep.subr.mxu0 0.0
    %6401 = vmatpush2.msra.mxu0 0.0
    %6402 = vmatprep.subr.mxu0 0.0
    %6403 = vmatpush2.msra.mxu0 0.0
    %6404 = vmatprep.subr.mxu0 0.0
    %6405 = vmatpush2.msra.mxu0 0.0
    %6406 = vmatprep.subr.mxu0 0.0
    %6407 = vmatpush2.msra.mxu0 0.0
    %6408 = vmatprep.subr.mxu0 0.0
    %6409 = vmatpush2.msra.mxu0 0.0
    %6410 = vmatprep.subr.mxu0 0.0
    %6411 = vmatpush2.msra.mxu0 0.0
    %6412 = vmatprep.subr.mxu0 0.0
    %6413 = vmatpush2.msra.mxu0 0.0
    %6414 = vmatprep.subr.mxu0 0.0
    %6415 = vmatpush2.msra.mxu0 0.0
    %6416 = vmatprep.subr.mxu0 0.0
    %6417 = vmatpush2.msra.mxu0 0.0
    %6418 = vmatprep.subr.mxu0 0.0
    %6419 = vmatpush2.msra.mxu0 0.0
    %6420 = vmatprep.subr.mxu0 0.0
    %6421 = vmatpush2.msra.mxu0 0.0
    %6422 = vmatprep.mubr.f32.mxu0 0.0
    %v6423 = vand.u32 %v5791, 4294901760
    %6424 = vmatmul.mubr.f32.gmra.mxu0 %v6423
    %v6425 = vpop.f32.mrf.mxu0
    %v6426 = vadd.f32 %v6344, %v6425
    %v6427 = vpop.f32.mrf.mxu0
    %v6428 = vadd.f32 %v6346, %v6427
    %6429 = vdwg.mxu0
    %6430 = vmatprep.subr.mxu0 0.0
    %6431 = vmatpush1.msra.mxu0 0.0
    %6432 = vmatprep.subr.mxu0 0.0
    %6433 = vmatpush1.msra.mxu0 0.0
    %6434 = vmatprep.subr.mxu0 0.0
    %6435 = vmatpush1.msra.mxu0 0.0
    %6436 = vmatprep.subr.mxu0 0.0
    %6437 = vmatpush1.msra.mxu0 0.0
    %6438 = vmatprep.subr.mxu0 0.0
    %6439 = vmatpush1.msra.mxu0 0.0
    %6440 = vmatprep.subr.mxu0 0.0
    %6441 = vmatpush1.msra.mxu0 0.0
    %6442 = vmatprep.subr.mxu0 0.0
    %6443 = vmatpush1.msra.mxu0 0.0
    %6444 = vmatprep.subr.mxu0 0.0
    %6445 = vmatpush1.msra.mxu0 0.0
    %6446 = vmatprep.subr.mxu0 0.0
    %6447 = vmatpush1.msra.mxu0 0.0
    %6448 = vmatprep.subr.mxu0 0.0
    %6449 = vmatpush1.msra.mxu0 0.0
    %6450 = vmatprep.subr.mxu0 0.0
    %6451 = vmatpush1.msra.mxu0 0.0
    %6452 = vmatprep.subr.mxu0 0.0
    %6453 = vmatpush1.msra.mxu0 0.0
    %6454 = vmatprep.subr.mxu0 0.0
    %6455 = vmatpush1.msra.mxu0 0.0
    %6456 = vmatprep.subr.mxu0 0.0
    %6457 = vmatpush1.msra.mxu0 0.0
    %6458 = vmatprep.subr.mxu0 0.0
    %6459 = vmatpush1.msra.mxu0 0.0
    %v6460 = vand.u32 %v5803, 4294901760
    %v6461 = vsub.f32 %v5803, %v6460
    %6462 = vmatprep.subr.mxu0 %v6461
    %v6463 = vand.u32 %v5800, 4294901760
    %v6464 = vsub.f32 %v5800, %v6463
    %6465 = vmatpush1.msra.mxu0 %v6464
    %6466 = vmatprep.subr.mxu0 0.0
    %6467 = vmatpush2.msra.mxu0 0.0
    %6468 = vmatprep.subr.mxu0 0.0
    %6469 = vmatpush2.msra.mxu0 0.0
    %6470 = vmatprep.subr.mxu0 0.0
    %6471 = vmatpush2.msra.mxu0 0.0
    %6472 = vmatprep.subr.mxu0 0.0
    %6473 = vmatpush2.msra.mxu0 0.0
    %6474 = vmatprep.subr.mxu0 0.0
    %6475 = vmatpush2.msra.mxu0 0.0
    %6476 = vmatprep.subr.mxu0 0.0
    %6477 = vmatpush2.msra.mxu0 0.0
    %6478 = vmatprep.subr.mxu0 0.0
    %6479 = vmatpush2.msra.mxu0 0.0
    %6480 = vmatprep.subr.mxu0 0.0
    %6481 = vmatpush2.msra.mxu0 0.0
    %6482 = vmatprep.subr.mxu0 0.0
    %6483 = vmatpush2.msra.mxu0 0.0
    %6484 = vmatprep.subr.mxu0 0.0
    %6485 = vmatpush2.msra.mxu0 0.0
    %6486 = vmatprep.subr.mxu0 0.0
    %6487 = vmatpush2.msra.mxu0 0.0
    %6488 = vmatprep.subr.mxu0 0.0
    %6489 = vmatpush2.msra.mxu0 0.0
    %6490 = vmatprep.subr.mxu0 0.0
    %6491 = vmatpush2.msra.mxu0 0.0
    %6492 = vmatprep.subr.mxu0 0.0
    %6493 = vmatpush2.msra.mxu0 0.0
    %6494 = vmatprep.subr.mxu0 0.0
    %6495 = vmatpush2.msra.mxu0 0.0
    %6496 = vmatprep.subr.mxu0 0.0
    %6497 = vmatpush2.msra.mxu0 0.0
    %6498 = vmatprep.mubr.f32.mxu0 0.0
    %v6499 = vand.u32 %v5791, 4294901760
    %v6500 = vsub.f32 %v5791, %v6499
    %6501 = vmatmul.mubr.f32.gmra.mxu0 %v6500
    %v6502 = vpop.f32.mrf.mxu0
    %v6503 = vadd.f32 %v6426, %v6502
    %v6504 = vpop.f32.mrf.mxu0
    %v6505 = vadd.f32 %v6428, %v6504
    %6506 = vdwg.mxu0
    %6507 = vmatprep.subr.mxu0 0.0
    %6508 = vmatpush1.msra.mxu0 0.0
    %6509 = vmatprep.subr.mxu0 0.0
    %6510 = vmatpush1.msra.mxu0 0.0
    %6511 = vmatprep.subr.mxu0 0.0
    %6512 = vmatpush1.msra.mxu0 0.0
    %6513 = vmatprep.subr.mxu0 0.0
    %6514 = vmatpush1.msra.mxu0 0.0
    %6515 = vmatprep.subr.mxu0 0.0
    %6516 = vmatpush1.msra.mxu0 0.0
    %6517 = vmatprep.subr.mxu0 0.0
    %6518 = vmatpush1.msra.mxu0 0.0
    %6519 = vmatprep.subr.mxu0 0.0
    %6520 = vmatpush1.msra.mxu0 0.0
    %6521 = vmatprep.subr.mxu0 0.0
    %6522 = vmatpush1.msra.mxu0 0.0
    %6523 = vmatprep.subr.mxu0 0.0
    %6524 = vmatpush1.msra.mxu0 0.0
    %6525 = vmatprep.subr.mxu0 0.0
    %6526 = vmatpush1.msra.mxu0 0.0
    %6527 = vmatprep.subr.mxu0 0.0
    %6528 = vmatpush1.msra.mxu0 0.0
    %6529 = vmatprep.subr.mxu0 0.0
    %6530 = vmatpush1.msra.mxu0 0.0
    %6531 = vmatprep.subr.mxu0 0.0
    %6532 = vmatpush1.msra.mxu0 0.0
    %6533 = vmatprep.subr.mxu0 0.0
    %6534 = vmatpush1.msra.mxu0 0.0
    %6535 = vmatprep.subr.mxu0 0.0
    %6536 = vmatpush1.msra.mxu0 0.0
    %v6537 = vand.u32 %v5803, 4294901760
    %6538 = vmatprep.subr.mxu0 %v6537
    %v6539 = vand.u32 %v5800, 4294901760
    %6540 = vmatpush1.msra.mxu0 %v6539
    %6541 = vmatprep.subr.mxu0 0.0
    %6542 = vmatpush2.msra.mxu0 0.0
    %6543 = vmatprep.subr.mxu0 0.0
    %6544 = vmatpush2.msra.mxu0 0.0
    %6545 = vmatprep.subr.mxu0 0.0
    %6546 = vmatpush2.msra.mxu0 0.0
    %6547 = vmatprep.subr.mxu0 0.0
    %6548 = vmatpush2.msra.mxu0 0.0
    %6549 = vmatprep.subr.mxu0 0.0
    %6550 = vmatpush2.msra.mxu0 0.0
    %6551 = vmatprep.subr.mxu0 0.0
    %6552 = vmatpush2.msra.mxu0 0.0
    %6553 = vmatprep.subr.mxu0 0.0
    %6554 = vmatpush2.msra.mxu0 0.0
    %6555 = vmatprep.subr.mxu0 0.0
    %6556 = vmatpush2.msra.mxu0 0.0
    %6557 = vmatprep.subr.mxu0 0.0
    %6558 = vmatpush2.msra.mxu0 0.0
    %6559 = vmatprep.subr.mxu0 0.0
    %6560 = vmatpush2.msra.mxu0 0.0
    %6561 = vmatprep.subr.mxu0 0.0
    %6562 = vmatpush2.msra.mxu0 0.0
    %6563 = vmatprep.subr.mxu0 0.0
    %6564 = vmatpush2.msra.mxu0 0.0
    %6565 = vmatprep.subr.mxu0 0.0
    %6566 = vmatpush2.msra.mxu0 0.0
    %6567 = vmatprep.subr.mxu0 0.0
    %6568 = vmatpush2.msra.mxu0 0.0
    %6569 = vmatprep.subr.mxu0 0.0
    %6570 = vmatpush2.msra.mxu0 0.0
    %6571 = vmatprep.subr.mxu0 0.0
    %6572 = vmatpush2.msra.mxu0 0.0
    %6573 = vmatprep.mubr.f32.mxu0 0.0
    %v6574 = vand.u32 %v5791, 4294901760
    %v6575 = vsub.f32 %v5791, %v6574
    %v6576 = vand.u32 %v6575, 4294901760
    %6577 = vmatmul.mubr.f32.gmra.mxu0 %v6576
    %v6578 = vpop.f32.mrf.mxu0
    %v6579 = vadd.f32 %v6503, %v6578
    %v6580 = vpop.f32.mrf.mxu0
    %v6581 = vadd.f32 %v6505, %v6580
    %6582 = vdwg.mxu0
    %6583 = vmatprep.subr.mxu0 0.0
    %6584 = vmatpush1.msra.mxu0 0.0
    %6585 = vmatprep.subr.mxu0 0.0
    %6586 = vmatpush1.msra.mxu0 0.0
    %6587 = vmatprep.subr.mxu0 0.0
    %6588 = vmatpush1.msra.mxu0 0.0
    %6589 = vmatprep.subr.mxu0 0.0
    %6590 = vmatpush1.msra.mxu0 0.0
    %6591 = vmatprep.subr.mxu0 0.0
    %6592 = vmatpush1.msra.mxu0 0.0
    %6593 = vmatprep.subr.mxu0 0.0
    %6594 = vmatpush1.msra.mxu0 0.0
    %6595 = vmatprep.subr.mxu0 0.0
    %6596 = vmatpush1.msra.mxu0 0.0
    %6597 = vmatprep.subr.mxu0 0.0
    %6598 = vmatpush1.msra.mxu0 0.0
    %6599 = vmatprep.subr.mxu0 0.0
    %6600 = vmatpush1.msra.mxu0 0.0
    %6601 = vmatprep.subr.mxu0 0.0
    %6602 = vmatpush1.msra.mxu0 0.0
    %6603 = vmatprep.subr.mxu0 0.0
    %6604 = vmatpush1.msra.mxu0 0.0
    %6605 = vmatprep.subr.mxu0 0.0
    %6606 = vmatpush1.msra.mxu0 0.0
    %6607 = vmatprep.subr.mxu0 0.0
    %6608 = vmatpush1.msra.mxu0 0.0
    %6609 = vmatprep.subr.mxu0 0.0
    %6610 = vmatpush1.msra.mxu0 0.0
    %6611 = vmatprep.subr.mxu0 0.0
    %6612 = vmatpush1.msra.mxu0 0.0
    %v6613 = vand.u32 %v5803, 4294901760
    %v6614 = vsub.f32 %v5803, %v6613
    %v6615 = vand.u32 %v6614, 4294901760
    %6616 = vmatprep.subr.mxu0 %v6615
    %v6617 = vand.u32 %v5800, 4294901760
    %v6618 = vsub.f32 %v5800, %v6617
    %v6619 = vand.u32 %v6618, 4294901760
    %6620 = vmatpush1.msra.mxu0 %v6619
    %6621 = vmatprep.subr.mxu0 0.0
    %6622 = vmatpush2.msra.mxu0 0.0
    %6623 = vmatprep.subr.mxu0 0.0
    %6624 = vmatpush2.msra.mxu0 0.0
    %6625 = vmatprep.subr.mxu0 0.0
    %6626 = vmatpush2.msra.mxu0 0.0
    %6627 = vmatprep.subr.mxu0 0.0
    %6628 = vmatpush2.msra.mxu0 0.0
    %6629 = vmatprep.subr.mxu0 0.0
    %6630 = vmatpush2.msra.mxu0 0.0
    %6631 = vmatprep.subr.mxu0 0.0
    %6632 = vmatpush2.msra.mxu0 0.0
    %6633 = vmatprep.subr.mxu0 0.0
    %6634 = vmatpush2.msra.mxu0 0.0
    %6635 = vmatprep.subr.mxu0 0.0
    %6636 = vmatpush2.msra.mxu0 0.0
    %6637 = vmatprep.subr.mxu0 0.0
    %6638 = vmatpush2.msra.mxu0 0.0
    %6639 = vmatprep.subr.mxu0 0.0
    %6640 = vmatpush2.msra.mxu0 0.0
    %6641 = vmatprep.subr.mxu0 0.0
    %6642 = vmatpush2.msra.mxu0 0.0
    %6643 = vmatprep.subr.mxu0 0.0
    %6644 = vmatpush2.msra.mxu0 0.0
    %6645 = vmatprep.subr.mxu0 0.0
    %6646 = vmatpush2.msra.mxu0 0.0
    %6647 = vmatprep.subr.mxu0 0.0
    %6648 = vmatpush2.msra.mxu0 0.0
    %6649 = vmatprep.subr.mxu0 0.0
    %6650 = vmatpush2.msra.mxu0 0.0
    %6651 = vmatprep.subr.mxu0 0.0
    %6652 = vmatpush2.msra.mxu0 0.0
    %6653 = vmatprep.mubr.f32.mxu0 0.0
    %v6654 = vand.u32 %v5791, 4294901760
    %6655 = vmatmul.mubr.f32.gmra.mxu0 %v6654
    %v6656 = vpop.f32.mrf.mxu0
    %v6657 = vadd.f32 %v6579, %v6656
    %v6658 = vpop.f32.mrf.mxu0
    %v6659 = vadd.f32 %v6581, %v6658
    %6660 = vdwg.mxu0
    %6661 = vmatprep.subr.mxu0 0.0
    %6662 = vmatpush1.msra.mxu0 0.0
    %6663 = vmatprep.subr.mxu0 0.0
    %6664 = vmatpush1.msra.mxu0 0.0
    %6665 = vmatprep.subr.mxu0 0.0
    %6666 = vmatpush1.msra.mxu0 0.0
    %6667 = vmatprep.subr.mxu0 0.0
    %6668 = vmatpush1.msra.mxu0 0.0
    %6669 = vmatprep.subr.mxu0 0.0
    %6670 = vmatpush1.msra.mxu0 0.0
    %6671 = vmatprep.subr.mxu0 0.0
    %6672 = vmatpush1.msra.mxu0 0.0
    %6673 = vmatprep.subr.mxu0 0.0
    %6674 = vmatpush1.msra.mxu0 0.0
    %6675 = vmatprep.subr.mxu0 0.0
    %6676 = vmatpush1.msra.mxu0 0.0
    %6677 = vmatprep.subr.mxu0 0.0
    %6678 = vmatpush1.msra.mxu0 0.0
    %6679 = vmatprep.subr.mxu0 0.0
    %6680 = vmatpush1.msra.mxu0 0.0
    %6681 = vmatprep.subr.mxu0 0.0
    %6682 = vmatpush1.msra.mxu0 0.0
    %6683 = vmatprep.subr.mxu0 0.0
    %6684 = vmatpush1.msra.mxu0 0.0
    %6685 = vmatprep.subr.mxu0 0.0
    %6686 = vmatpush1.msra.mxu0 0.0
    %6687 = vmatprep.subr.mxu0 0.0
    %6688 = vmatpush1.msra.mxu0 0.0
    %6689 = vmatprep.subr.mxu0 0.0
    %6690 = vmatpush1.msra.mxu0 0.0
    %v6691 = vand.u32 %v5803, 4294901760
    %6692 = vmatprep.subr.mxu0 %v6691
    %v6693 = vand.u32 %v5800, 4294901760
    %6694 = vmatpush1.msra.mxu0 %v6693
    %6695 = vmatprep.subr.mxu0 0.0
    %6696 = vmatpush2.msra.mxu0 0.0
    %6697 = vmatprep.subr.mxu0 0.0
    %6698 = vmatpush2.msra.mxu0 0.0
    %6699 = vmatprep.subr.mxu0 0.0
    %6700 = vmatpush2.msra.mxu0 0.0
    %6701 = vmatprep.subr.mxu0 0.0
    %6702 = vmatpush2.msra.mxu0 0.0
    %6703 = vmatprep.subr.mxu0 0.0
    %6704 = vmatpush2.msra.mxu0 0.0
    %6705 = vmatprep.subr.mxu0 0.0
    %6706 = vmatpush2.msra.mxu0 0.0
    %6707 = vmatprep.subr.mxu0 0.0
    %6708 = vmatpush2.msra.mxu0 0.0
    %6709 = vmatprep.subr.mxu0 0.0
    %6710 = vmatpush2.msra.mxu0 0.0
    %6711 = vmatprep.subr.mxu0 0.0
    %6712 = vmatpush2.msra.mxu0 0.0
    %6713 = vmatprep.subr.mxu0 0.0
    %6714 = vmatpush2.msra.mxu0 0.0
    %6715 = vmatprep.subr.mxu0 0.0
    %6716 = vmatpush2.msra.mxu0 0.0
    %6717 = vmatprep.subr.mxu0 0.0
    %6718 = vmatpush2.msra.mxu0 0.0
    %6719 = vmatprep.subr.mxu0 0.0
    %6720 = vmatpush2.msra.mxu0 0.0
    %6721 = vmatprep.subr.mxu0 0.0
    %6722 = vmatpush2.msra.mxu0 0.0
    %6723 = vmatprep.subr.mxu0 0.0
    %6724 = vmatpush2.msra.mxu0 0.0
    %6725 = vmatprep.subr.mxu0 0.0
    %6726 = vmatpush2.msra.mxu0 0.0
    %6727 = vmatprep.mubr.f32.mxu0 0.0
    %v6728 = vand.u32 %v5791, 4294901760
    %6729 = vmatmul.mubr.f32.gmra.mxu0 %v6728
    %v6730 = vpop.f32.mrf.mxu0
    %v6731 = vadd.f32 %v6657, %v6730
    %v6732 = vpop.f32.mrf.mxu0
    %v6733 = vadd.f32 %v6659, %v6732
    %6734 = vdwg.mxu0
    %v6739 = vcombine.low %v6266, %v6268
    %v6740 = vcombine.low %v6731, %v6733
    %v6742 = vunpack.c.l.s4 1983009808
    %v6743 = vunpack.c.0.s8 %v6742
    %v6744 = vlaneseq
    %v6745 = vshrl.u32 %v6744, 7
    %v6746 = vsub.s32 %v6743, %v6745
    %v6747 = vrot.slane %v6739, %v6746
    %v6749 = vunpack.c.l.s4 1983009808
    %v6750 = vunpack.c.0.s8 %v6749
    %v6751 = vlaneseq
    %v6752 = vshrl.u32 %v6751, 7
    %v6753 = vsub.s32 %v6750, %v6752
    %v6754 = vrot.slane %v6740, %v6753
    %v6755 = vcombine.low %v6747, %v6754
    %v6757 = vadd.f32 %v5322, %v6755
    %s6758 = scalar_lea.vmem [#allocation3], 512
    %v6759 = vld [vmem:[%s6758] sm:$0xff]
    %v6760 = vld [vmem:[%s6758 + $0x8] sm:$0xff]
    %v6761 = vld [vmem:[%s6758 + $0x10] sm:$0xff]
    %v6762 = vld [vmem:[%s6758 + $0x18] sm:$0xff]
    %v6763 = vld [vmem:[%s6758 + $0x20] sm:$0xff]
    %v6764 = vld [vmem:[%s6758 + $0x28] sm:$0xff]
    %v6765 = vld [vmem:[%s6758 + $0x30] sm:$0xff]
    %v6766 = vld [vmem:[%s6758 + $0x38] sm:$0xff]
    %v6767 = vld [vmem:[%s6758 + $0x40] sm:$0xff]
    %v6768 = vld [vmem:[%s6758 + $0x48] sm:$0xff]
    %v6769 = vld [vmem:[%s6758 + $0x50] sm:$0xff]
    %v6770 = vld [vmem:[%s6758 + $0x58] sm:$0xff]
    %v6771 = vld [vmem:[%s6758 + $0x60] sm:$0xff]
    %v6772 = vld [vmem:[%s6758 + $0x68] sm:$0xff]
    %v6773 = vld [vmem:[%s6758 + $0x70] sm:$0xff]
    %v6774 = vld [vmem:[%s6758 + $0x78] sm:$0xff]
    %v6775 = vld [vmem:[%s6758 + $0x80] sm:$0xff]
    %v6776 = vld [vmem:[%s6758 + $0x88] sm:$0xff]
    %v6777 = vld [vmem:[%s6758 + $0x90] sm:$0xff]
    %v6778 = vld [vmem:[%s6758 + $0x98] sm:$0xff]
    %v6779 = vld [vmem:[%s6758 + $0xa0] sm:$0xff]
    %v6780 = vld [vmem:[%s6758 + $0xa8] sm:$0xff]
    %v6781 = vld [vmem:[%s6758 + $0xb0] sm:$0xff]
    %v6782 = vld [vmem:[%s6758 + $0xb8] sm:$0xff]
    %v6783 = vld [vmem:[%s6758 + $0xc0] sm:$0xff]
    %v6784 = vld [vmem:[%s6758 + $0xc8] sm:$0xff]
    %v6785 = vld [vmem:[%s6758 + $0xd0] sm:$0xff]
    %v6786 = vld [vmem:[%s6758 + $0xd8] sm:$0xff]
    %v6787 = vld [vmem:[%s6758 + $0xe0] sm:$0xff]
    %v6788 = vld [vmem:[%s6758 + $0xe8] sm:$0xff]
    %v6789 = vld [vmem:[%s6758 + $0xf0] sm:$0xff]
    %v6790 = vld [vmem:[%s6758 + $0xf8] sm:$0xff]
    %v6791 = vld [vmem:[%s6758 + $0x100] sm:$0xff]
    %v6792 = vld [vmem:[%s6758 + $0x108] sm:$0xff]
    %v6793 = vld [vmem:[%s6758 + $0x110] sm:$0xff]
    %v6794 = vld [vmem:[%s6758 + $0x118] sm:$0xff]
    %v6795 = vld [vmem:[%s6758 + $0x120] sm:$0xff]
    %v6796 = vld [vmem:[%s6758 + $0x128] sm:$0xff]
    %v6797 = vld [vmem:[%s6758 + $0x130] sm:$0xff]
    %v6798 = vld [vmem:[%s6758 + $0x138] sm:$0xff]
    %v6799 = vld [vmem:[%s6758 + $0x140] sm:$0xff]
    %v6800 = vld [vmem:[%s6758 + $0x148] sm:$0xff]
    %v6801 = vld [vmem:[%s6758 + $0x150] sm:$0xff]
    %v6802 = vld [vmem:[%s6758 + $0x158] sm:$0xff]
    %v6803 = vld [vmem:[%s6758 + $0x160] sm:$0xff]
    %v6804 = vld [vmem:[%s6758 + $0x168] sm:$0xff]
    %v6805 = vld [vmem:[%s6758 + $0x170] sm:$0xff]
    %v6806 = vld [vmem:[%s6758 + $0x178] sm:$0xff]
    %v6807 = vld [vmem:[%s6758 + $0x180] sm:$0xff]
    %v6808 = vld [vmem:[%s6758 + $0x188] sm:$0xff]
    %v6809 = vld [vmem:[%s6758 + $0x190] sm:$0xff]
    %v6810 = vld [vmem:[%s6758 + $0x198] sm:$0xff]
    %v6811 = vld [vmem:[%s6758 + $0x1a0] sm:$0xff]
    %v6812 = vld [vmem:[%s6758 + $0x1a8] sm:$0xff]
    %v6813 = vld [vmem:[%s6758 + $0x1b0] sm:$0xff]
    %v6814 = vld [vmem:[%s6758 + $0x1b8] sm:$0xff]
    %v6815 = vld [vmem:[%s6758 + $0x1c0] sm:$0xff]
    %v6816 = vld [vmem:[%s6758 + $0x1c8] sm:$0xff]
    %v6817 = vld [vmem:[%s6758 + $0x1d0] sm:$0xff]
    %v6818 = vld [vmem:[%s6758 + $0x1d8] sm:$0xff]
    %v6819 = vld [vmem:[%s6758 + $0x1e0] sm:$0xff]
    %v6820 = vld [vmem:[%s6758 + $0x1e8] sm:$0xff]
    %v6821 = vld [vmem:[%s6758 + $0x1f0] sm:$0xff]
    %v6822 = vld [vmem:[%s6758 + $0x1f8] sm:$0xff]
    %v6887 = vunpack.c.l.b16 %v6759
    %v6888 = vunpack.c.h.b16 %v6759
    %v6889 = vunpack.c.l.b16 %v6760
    %v6890 = vunpack.c.h.b16 %v6760
    %v6891 = vunpack.c.l.b16 %v6761
    %v6892 = vunpack.c.h.b16 %v6761
    %v6893 = vunpack.c.l.b16 %v6762
    %v6894 = vunpack.c.h.b16 %v6762
    %v6895 = vunpack.c.l.b16 %v6763
    %v6896 = vunpack.c.h.b16 %v6763
    %v6897 = vunpack.c.l.b16 %v6764
    %v6898 = vunpack.c.h.b16 %v6764
    %v6899 = vunpack.c.l.b16 %v6765
    %v6900 = vunpack.c.h.b16 %v6765
    %v6901 = vunpack.c.l.b16 %v6766
    %v6902 = vunpack.c.h.b16 %v6766
    %v6903 = vunpack.c.l.b16 %v6767
    %v6904 = vunpack.c.h.b16 %v6767
    %v6905 = vunpack.c.l.b16 %v6768
    %v6906 = vunpack.c.h.b16 %v6768
    %v6907 = vunpack.c.l.b16 %v6769
    %v6908 = vunpack.c.h.b16 %v6769
    %v6909 = vunpack.c.l.b16 %v6770
    %v6910 = vunpack.c.h.b16 %v6770
    %v6911 = vunpack.c.l.b16 %v6771
    %v6912 = vunpack.c.h.b16 %v6771
    %v6913 = vunpack.c.l.b16 %v6772
    %v6914 = vunpack.c.h.b16 %v6772
    %v6915 = vunpack.c.l.b16 %v6773
    %v6916 = vunpack.c.h.b16 %v6773
    %v6917 = vunpack.c.l.b16 %v6774
    %v6918 = vunpack.c.h.b16 %v6774
    %v6919 = vunpack.c.l.b16 %v6775
    %v6920 = vunpack.c.h.b16 %v6775
    %v6921 = vunpack.c.l.b16 %v6776
    %v6922 = vunpack.c.h.b16 %v6776
    %v6923 = vunpack.c.l.b16 %v6777
    %v6924 = vunpack.c.h.b16 %v6777
    %v6925 = vunpack.c.l.b16 %v6778
    %v6926 = vunpack.c.h.b16 %v6778
    %v6927 = vunpack.c.l.b16 %v6779
    %v6928 = vunpack.c.h.b16 %v6779
    %v6929 = vunpack.c.l.b16 %v6780
    %v6930 = vunpack.c.h.b16 %v6780
    %v6931 = vunpack.c.l.b16 %v6781
    %v6932 = vunpack.c.h.b16 %v6781
    %v6933 = vunpack.c.l.b16 %v6782
    %v6934 = vunpack.c.h.b16 %v6782
    %v6935 = vunpack.c.l.b16 %v6783
    %v6936 = vunpack.c.h.b16 %v6783
    %v6937 = vunpack.c.l.b16 %v6784
    %v6938 = vunpack.c.h.b16 %v6784
    %v6939 = vunpack.c.l.b16 %v6785
    %v6940 = vunpack.c.h.b16 %v6785
    %v6941 = vunpack.c.l.b16 %v6786
    %v6942 = vunpack.c.h.b16 %v6786
    %v6943 = vunpack.c.l.b16 %v6787
    %v6944 = vunpack.c.h.b16 %v6787
    %v6945 = vunpack.c.l.b16 %v6788
    %v6946 = vunpack.c.h.b16 %v6788
    %v6947 = vunpack.c.l.b16 %v6789
    %v6948 = vunpack.c.h.b16 %v6789
    %v6949 = vunpack.c.l.b16 %v6790
    %v6950 = vunpack.c.h.b16 %v6790
    %v6951 = vunpack.c.l.b16 %v6791
    %v6952 = vunpack.c.h.b16 %v6791
    %v6953 = vunpack.c.l.b16 %v6792
    %v6954 = vunpack.c.h.b16 %v6792
    %v6955 = vunpack.c.l.b16 %v6793
    %v6956 = vunpack.c.h.b16 %v6793
    %v6957 = vunpack.c.l.b16 %v6794
    %v6958 = vunpack.c.h.b16 %v6794
    %v6959 = vunpack.c.l.b16 %v6795
    %v6960 = vunpack.c.h.b16 %v6795
    %v6961 = vunpack.c.l.b16 %v6796
    %v6962 = vunpack.c.h.b16 %v6796
    %v6963 = vunpack.c.l.b16 %v6797
    %v6964 = vunpack.c.h.b16 %v6797
    %v6965 = vunpack.c.l.b16 %v6798
    %v6966 = vunpack.c.h.b16 %v6798
    %v6967 = vunpack.c.l.b16 %v6799
    %v6968 = vunpack.c.h.b16 %v6799
    %v6969 = vunpack.c.l.b16 %v6800
    %v6970 = vunpack.c.h.b16 %v6800
    %v6971 = vunpack.c.l.b16 %v6801
    %v6972 = vunpack.c.h.b16 %v6801
    %v6973 = vunpack.c.l.b16 %v6802
    %v6974 = vunpack.c.h.b16 %v6802
    %v6975 = vunpack.c.l.b16 %v6803
    %v6976 = vunpack.c.h.b16 %v6803
    %v6977 = vunpack.c.l.b16 %v6804
    %v6978 = vunpack.c.h.b16 %v6804
    %v6979 = vunpack.c.l.b16 %v6805
    %v6980 = vunpack.c.h.b16 %v6805
    %v6981 = vunpack.c.l.b16 %v6806
    %v6982 = vunpack.c.h.b16 %v6806
    %v6983 = vunpack.c.l.b16 %v6807
    %v6984 = vunpack.c.h.b16 %v6807
    %v6985 = vunpack.c.l.b16 %v6808
    %v6986 = vunpack.c.h.b16 %v6808
    %v6987 = vunpack.c.l.b16 %v6809
    %v6988 = vunpack.c.h.b16 %v6809
    %v6989 = vunpack.c.l.b16 %v6810
    %v6990 = vunpack.c.h.b16 %v6810
    %v6991 = vunpack.c.l.b16 %v6811
    %v6992 = vunpack.c.h.b16 %v6811
    %v6993 = vunpack.c.l.b16 %v6812
    %v6994 = vunpack.c.h.b16 %v6812
    %v6995 = vunpack.c.l.b16 %v6813
    %v6996 = vunpack.c.h.b16 %v6813
    %v6997 = vunpack.c.l.b16 %v6814
    %v6998 = vunpack.c.h.b16 %v6814
    %v6999 = vunpack.c.l.b16 %v6815
    %v7000 = vunpack.c.h.b16 %v6815
    %v7001 = vunpack.c.l.b16 %v6816
    %v7002 = vunpack.c.h.b16 %v6816
    %v7003 = vunpack.c.l.b16 %v6817
    %v7004 = vunpack.c.h.b16 %v6817
    %v7005 = vunpack.c.l.b16 %v6818
    %v7006 = vunpack.c.h.b16 %v6818
    %v7007 = vunpack.c.l.b16 %v6819
    %v7008 = vunpack.c.h.b16 %v6819
    %v7009 = vunpack.c.l.b16 %v6820
    %v7010 = vunpack.c.h.b16 %v6820
    %v7011 = vunpack.c.l.b16 %v6821
    %v7012 = vunpack.c.h.b16 %v6821
    %v7013 = vunpack.c.l.b16 %v6822
    %v7014 = vunpack.c.h.b16 %v6822
    %v7015 = vpack.c.b16 %v6891, %v6887
    %v7016 = vpack.c.b16 %v6892, %v6888
    %v7017 = vpack.c.b16 %v6893, %v6889
    %v7018 = vpack.c.b16 %v6894, %v6890
    %v7019 = vpack.c.b16 %v6899, %v6895
    %v7020 = vpack.c.b16 %v6900, %v6896
    %v7021 = vpack.c.b16 %v6901, %v6897
    %v7022 = vpack.c.b16 %v6902, %v6898
    %v7023 = vpack.c.b16 %v6907, %v6903
    %v7024 = vpack.c.b16 %v6908, %v6904
    %v7025 = vpack.c.b16 %v6909, %v6905
    %v7026 = vpack.c.b16 %v6910, %v6906
    %v7027 = vpack.c.b16 %v6915, %v6911
    %v7028 = vpack.c.b16 %v6916, %v6912
    %v7029 = vpack.c.b16 %v6917, %v6913
    %v7030 = vpack.c.b16 %v6918, %v6914
    %v7031 = vpack.c.b16 %v6923, %v6919
    %v7032 = vpack.c.b16 %v6924, %v6920
    %v7033 = vpack.c.b16 %v6925, %v6921
    %v7034 = vpack.c.b16 %v6926, %v6922
    %v7035 = vpack.c.b16 %v6931, %v6927
    %v7036 = vpack.c.b16 %v6932, %v6928
    %v7037 = vpack.c.b16 %v6933, %v6929
    %v7038 = vpack.c.b16 %v6934, %v6930
    %v7039 = vpack.c.b16 %v6939, %v6935
    %v7040 = vpack.c.b16 %v6940, %v6936
    %v7041 = vpack.c.b16 %v6941, %v6937
    %v7042 = vpack.c.b16 %v6942, %v6938
    %v7043 = vpack.c.b16 %v6947, %v6943
    %v7044 = vpack.c.b16 %v6948, %v6944
    %v7045 = vpack.c.b16 %v6949, %v6945
    %v7046 = vpack.c.b16 %v6950, %v6946
    %v7047 = vpack.c.b16 %v6955, %v6951
    %v7048 = vpack.c.b16 %v6956, %v6952
    %v7049 = vpack.c.b16 %v6957, %v6953
    %v7050 = vpack.c.b16 %v6958, %v6954
    %v7051 = vpack.c.b16 %v6963, %v6959
    %v7052 = vpack.c.b16 %v6964, %v6960
    %v7053 = vpack.c.b16 %v6965, %v6961
    %v7054 = vpack.c.b16 %v6966, %v6962
    %v7055 = vpack.c.b16 %v6971, %v6967
    %v7056 = vpack.c.b16 %v6972, %v6968
    %v7057 = vpack.c.b16 %v6973, %v6969
    %v7058 = vpack.c.b16 %v6974, %v6970
    %v7059 = vpack.c.b16 %v6979, %v6975
    %v7060 = vpack.c.b16 %v6980, %v6976
    %v7061 = vpack.c.b16 %v6981, %v6977
    %v7062 = vpack.c.b16 %v6982, %v6978
    %v7063 = vpack.c.b16 %v6987, %v6983
    %v7064 = vpack.c.b16 %v6988, %v6984
    %v7065 = vpack.c.b16 %v6989, %v6985
    %v7066 = vpack.c.b16 %v6990, %v6986
    %v7067 = vpack.c.b16 %v6995, %v6991
    %v7068 = vpack.c.b16 %v6996, %v6992
    %v7069 = vpack.c.b16 %v6997, %v6993
    %v7070 = vpack.c.b16 %v6998, %v6994
    %v7071 = vpack.c.b16 %v7003, %v6999
    %v7072 = vpack.c.b16 %v7004, %v7000
    %v7073 = vpack.c.b16 %v7005, %v7001
    %v7074 = vpack.c.b16 %v7006, %v7002
    %v7075 = vpack.c.b16 %v7011, %v7007
    %v7076 = vpack.c.b16 %v7012, %v7008
    %v7077 = vpack.c.b16 %v7013, %v7009
    %v7078 = vpack.c.b16 %v7014, %v7010
    %7143 = vmatprep.subr.bf16.mxu0 %v7044
    %7144 = vmatpush1.bf16.msra.mxu0 %v7043
    %7145 = vmatprep.subr.bf16.mxu0 %v7040
    %7146 = vmatpush1.bf16.msra.mxu0 %v7039
    %7147 = vmatprep.subr.bf16.mxu0 %v7036
    %7148 = vmatpush1.bf16.msra.mxu0 %v7035
    %7149 = vmatprep.subr.bf16.mxu0 %v7032
    %7150 = vmatpush1.bf16.msra.mxu0 %v7031
    %7151 = vmatprep.subr.bf16.mxu0 %v7028
    %7152 = vmatpush1.bf16.msra.mxu0 %v7027
    %7153 = vmatprep.subr.bf16.mxu0 %v7024
    %7154 = vmatpush1.bf16.msra.mxu0 %v7023
    %7155 = vmatprep.subr.bf16.mxu0 %v7020
    %7156 = vmatpush1.bf16.msra.mxu0 %v7019
    %7157 = vmatprep.subr.bf16.mxu0 %v7016
    %7158 = vmatpush1.bf16.msra.mxu0 %v7015
    %7159 = vmatprep.subr.bf16.mxu0 %v7076
    %7160 = vmatpush2.bf16.msra.mxu0 %v7075
    %7161 = vmatprep.subr.bf16.mxu0 %v7072
    %7162 = vmatpush2.bf16.msra.mxu0 %v7071
    %7163 = vmatprep.subr.bf16.mxu0 %v7068
    %7164 = vmatpush2.bf16.msra.mxu0 %v7067
    %7165 = vmatprep.subr.bf16.mxu0 %v7064
    %7166 = vmatpush2.bf16.msra.mxu0 %v7063
    %7167 = vmatprep.subr.bf16.mxu0 %v7060
    %7168 = vmatpush2.bf16.msra.mxu0 %v7059
    %7169 = vmatprep.subr.bf16.mxu0 %v7056
    %7170 = vmatpush2.bf16.msra.mxu0 %v7055
    %7171 = vmatprep.subr.bf16.mxu0 %v7052
    %7172 = vmatpush2.bf16.msra.mxu0 %v7051
    %7173 = vmatprep.subr.bf16.mxu0 %v7048
    %7174 = vmatpush2.bf16.msra.mxu0 %v7047
    %7175 = vmatprep.mubr.bf16.mxu0 %v5321
    %7176 = vmatmul.mubr.bf16.gmra.mxu0 %v5320
    %v7177 = vpop.f32.mrf.mxu0
    %v7178 = vadd.f32 0.0, %v7177
    %v7179 = vpop.f32.mrf.mxu0
    %v7180 = vadd.f32 0.0, %v7179
    %v7181 = vpop.f32.mrf.mxu0
    %v7182 = vpop.f32.mrf.mxu0
    %7183 = vdwg.mxu0
    %7184 = vmatprep.subr.bf16.mxu0 %v7046
    %7185 = vmatpush1.bf16.msra.mxu0 %v7045
    %7186 = vmatprep.subr.bf16.mxu0 %v7042
    %7187 = vmatpush1.bf16.msra.mxu0 %v7041
    %7188 = vmatprep.subr.bf16.mxu0 %v7038
    %7189 = vmatpush1.bf16.msra.mxu0 %v7037
    %7190 = vmatprep.subr.bf16.mxu0 %v7034
    %7191 = vmatpush1.bf16.msra.mxu0 %v7033
    %7192 = vmatprep.subr.bf16.mxu0 %v7030
    %7193 = vmatpush1.bf16.msra.mxu0 %v7029
    %7194 = vmatprep.subr.bf16.mxu0 %v7026
    %7195 = vmatpush1.bf16.msra.mxu0 %v7025
    %7196 = vmatprep.subr.bf16.mxu0 %v7022
    %7197 = vmatpush1.bf16.msra.mxu0 %v7021
    %7198 = vmatprep.subr.bf16.mxu0 %v7018
    %7199 = vmatpush1.bf16.msra.mxu0 %v7017
    %7200 = vmatprep.subr.bf16.mxu0 %v7078
    %7201 = vmatpush2.bf16.msra.mxu0 %v7077
    %7202 = vmatprep.subr.bf16.mxu0 %v7074
    %7203 = vmatpush2.bf16.msra.mxu0 %v7073
    %7204 = vmatprep.subr.bf16.mxu0 %v7070
    %7205 = vmatpush2.bf16.msra.mxu0 %v7069
    %7206 = vmatprep.subr.bf16.mxu0 %v7066
    %7207 = vmatpush2.bf16.msra.mxu0 %v7065
    %7208 = vmatprep.subr.bf16.mxu0 %v7062
    %7209 = vmatpush2.bf16.msra.mxu0 %v7061
    %7210 = vmatprep.subr.bf16.mxu0 %v7058
    %7211 = vmatpush2.bf16.msra.mxu0 %v7057
    %7212 = vmatprep.subr.bf16.mxu0 %v7054
    %7213 = vmatpush2.bf16.msra.mxu0 %v7053
    %7214 = vmatprep.subr.bf16.mxu0 %v7050
    %7215 = vmatpush2.bf16.msra.mxu0 %v7049
    %7216 = vmatprep.mubr.bf16.mxu0 %v5321
    %7217 = vmatmul.mubr.bf16.gmra.mxu0 %v5320
    %v7218 = vpop.f32.mrf.mxu0
    %v7219 = vadd.f32 0.0, %v7218
    %v7220 = vpop.f32.mrf.mxu0
    %v7221 = vadd.f32 0.0, %v7220
    %v7222 = vpop.f32.mrf.mxu0
    %v7223 = vpop.f32.mrf.mxu0
    %7224 = vdwg.mxu0
    %s7225 = scalar_lea.vmem [#allocation20], 2
    %v7226 = vld [vmem:[%s7225] sm:$0x3]
    %v7228 = vsel %vm4069, %v7226, 0
    %v7231 = vsel %vm235, %v7178, 0
    %v7234 = vsel %vm235, %v7180, 0
    %v7237 = vsel %vm235, %v7219, 0
    %v7240 = vsel %vm235, %v7221, 0
    %7242 = vmatprep.subr.mxu0 0.0
    %7243 = vmatpush1.msra.mxu0 0.0
    %7244 = vmatprep.subr.mxu0 0.0
    %7245 = vmatpush1.msra.mxu0 0.0
    %7246 = vmatprep.subr.mxu0 0.0
    %7247 = vmatpush1.msra.mxu0 0.0
    %7248 = vmatprep.subr.mxu0 0.0
    %7249 = vmatpush1.msra.mxu0 0.0
    %7250 = vmatprep.subr.mxu0 0.0
    %7251 = vmatpush1.msra.mxu0 0.0
    %7252 = vmatprep.subr.mxu0 0.0
    %7253 = vmatpush1.msra.mxu0 0.0
    %7254 = vmatprep.subr.mxu0 0.0
    %7255 = vmatpush1.msra.mxu0 0.0
    %7256 = vmatprep.subr.mxu0 0.0
    %7257 = vmatpush1.msra.mxu0 0.0
    %7258 = vmatprep.subr.mxu0 0.0
    %7259 = vmatpush1.msra.mxu0 0.0
    %7260 = vmatprep.subr.mxu0 0.0
    %7261 = vmatpush1.msra.mxu0 0.0
    %7262 = vmatprep.subr.mxu0 0.0
    %7263 = vmatpush1.msra.mxu0 0.0
    %7264 = vmatprep.subr.mxu0 0.0
    %7265 = vmatpush1.msra.mxu0 0.0
    %7266 = vmatprep.subr.mxu0 0.0
    %7267 = vmatpush1.msra.mxu0 0.0
    %7268 = vmatprep.subr.mxu0 0.0
    %7269 = vmatpush1.msra.mxu0 0.0
    %7270 = vmatprep.subr.mxu0 0.0
    %7271 = vmatpush1.msra.mxu0 0.0
    %v7272 = vand.u32 %v7234, 4294901760
    %7273 = vmatprep.subr.mxu0 %v7272
    %v7274 = vand.u32 %v7231, 4294901760
    %7275 = vmatpush1.msra.mxu0 %v7274
    %7276 = vmatprep.subr.mxu0 0.0
    %7277 = vmatpush2.msra.mxu0 0.0
    %7278 = vmatprep.subr.mxu0 0.0
    %7279 = vmatpush2.msra.mxu0 0.0
    %7280 = vmatprep.subr.mxu0 0.0
    %7281 = vmatpush2.msra.mxu0 0.0
    %7282 = vmatprep.subr.mxu0 0.0
    %7283 = vmatpush2.msra.mxu0 0.0
    %7284 = vmatprep.subr.mxu0 0.0
    %7285 = vmatpush2.msra.mxu0 0.0
    %7286 = vmatprep.subr.mxu0 0.0
    %7287 = vmatpush2.msra.mxu0 0.0
    %7288 = vmatprep.subr.mxu0 0.0
    %7289 = vmatpush2.msra.mxu0 0.0
    %7290 = vmatprep.subr.mxu0 0.0
    %7291 = vmatpush2.msra.mxu0 0.0
    %7292 = vmatprep.subr.mxu0 0.0
    %7293 = vmatpush2.msra.mxu0 0.0
    %7294 = vmatprep.subr.mxu0 0.0
    %7295 = vmatpush2.msra.mxu0 0.0
    %7296 = vmatprep.subr.mxu0 0.0
    %7297 = vmatpush2.msra.mxu0 0.0
    %7298 = vmatprep.subr.mxu0 0.0
    %7299 = vmatpush2.msra.mxu0 0.0
    %7300 = vmatprep.subr.mxu0 0.0
    %7301 = vmatpush2.msra.mxu0 0.0
    %7302 = vmatprep.subr.mxu0 0.0
    %7303 = vmatpush2.msra.mxu0 0.0
    %7304 = vmatprep.subr.mxu0 0.0
    %7305 = vmatpush2.msra.mxu0 0.0
    %7306 = vmatprep.subr.mxu0 0.0
    %7307 = vmatpush2.msra.mxu0 0.0
    %7308 = vmatprep.mubr.f32.mxu0 0.0
    %v7309 = vand.u32 %v7228, 4294901760
    %v7310 = vsub.f32 %v7228, %v7309
    %v7311 = vand.u32 %v7310, 4294901760
    %v7312 = vsub.f32 %v7310, %v7311
    %v7313 = vand.u32 %v7312, 4294901760
    %7314 = vmatmul.mubr.f32.gmra.mxu0 %v7313
    %v7315 = vpop.f32.mrf.mxu0
    %v7316 = vadd.f32 0.0, %v7315
    %v7317 = vpop.f32.mrf.mxu0
    %v7318 = vadd.f32 0.0, %v7317
    %7319 = vdwg.mxu0
    %7320 = vmatprep.subr.mxu0 0.0
    %7321 = vmatpush1.msra.mxu0 0.0
    %7322 = vmatprep.subr.mxu0 0.0
    %7323 = vmatpush1.msra.mxu0 0.0
    %7324 = vmatprep.subr.mxu0 0.0
    %7325 = vmatpush1.msra.mxu0 0.0
    %7326 = vmatprep.subr.mxu0 0.0
    %7327 = vmatpush1.msra.mxu0 0.0
    %7328 = vmatprep.subr.mxu0 0.0
    %7329 = vmatpush1.msra.mxu0 0.0
    %7330 = vmatprep.subr.mxu0 0.0
    %7331 = vmatpush1.msra.mxu0 0.0
    %7332 = vmatprep.subr.mxu0 0.0
    %7333 = vmatpush1.msra.mxu0 0.0
    %7334 = vmatprep.subr.mxu0 0.0
    %7335 = vmatpush1.msra.mxu0 0.0
    %7336 = vmatprep.subr.mxu0 0.0
    %7337 = vmatpush1.msra.mxu0 0.0
    %7338 = vmatprep.subr.mxu0 0.0
    %7339 = vmatpush1.msra.mxu0 0.0
    %7340 = vmatprep.subr.mxu0 0.0
    %7341 = vmatpush1.msra.mxu0 0.0
    %7342 = vmatprep.subr.mxu0 0.0
    %7343 = vmatpush1.msra.mxu0 0.0
    %7344 = vmatprep.subr.mxu0 0.0
    %7345 = vmatpush1.msra.mxu0 0.0
    %7346 = vmatprep.subr.mxu0 0.0
    %7347 = vmatpush1.msra.mxu0 0.0
    %7348 = vmatprep.subr.mxu0 0.0
    %7349 = vmatpush1.msra.mxu0 0.0
    %v7350 = vand.u32 %v7234, 4294901760
    %v7351 = vsub.f32 %v7234, %v7350
    %v7352 = vand.u32 %v7351, 4294901760
    %v7353 = vsub.f32 %v7351, %v7352
    %v7354 = vand.u32 %v7353, 4294901760
    %7355 = vmatprep.subr.mxu0 %v7354
    %v7356 = vand.u32 %v7231, 4294901760
    %v7357 = vsub.f32 %v7231, %v7356
    %v7358 = vand.u32 %v7357, 4294901760
    %v7359 = vsub.f32 %v7357, %v7358
    %v7360 = vand.u32 %v7359, 4294901760
    %7361 = vmatpush1.msra.mxu0 %v7360
    %7362 = vmatprep.subr.mxu0 0.0
    %7363 = vmatpush2.msra.mxu0 0.0
    %7364 = vmatprep.subr.mxu0 0.0
    %7365 = vmatpush2.msra.mxu0 0.0
    %7366 = vmatprep.subr.mxu0 0.0
    %7367 = vmatpush2.msra.mxu0 0.0
    %7368 = vmatprep.subr.mxu0 0.0
    %7369 = vmatpush2.msra.mxu0 0.0
    %7370 = vmatprep.subr.mxu0 0.0
    %7371 = vmatpush2.msra.mxu0 0.0
    %7372 = vmatprep.subr.mxu0 0.0
    %7373 = vmatpush2.msra.mxu0 0.0
    %7374 = vmatprep.subr.mxu0 0.0
    %7375 = vmatpush2.msra.mxu0 0.0
    %7376 = vmatprep.subr.mxu0 0.0
    %7377 = vmatpush2.msra.mxu0 0.0
    %7378 = vmatprep.subr.mxu0 0.0
    %7379 = vmatpush2.msra.mxu0 0.0
    %7380 = vmatprep.subr.mxu0 0.0
    %7381 = vmatpush2.msra.mxu0 0.0
    %7382 = vmatprep.subr.mxu0 0.0
    %7383 = vmatpush2.msra.mxu0 0.0
    %7384 = vmatprep.subr.mxu0 0.0
    %7385 = vmatpush2.msra.mxu0 0.0
    %7386 = vmatprep.subr.mxu0 0.0
    %7387 = vmatpush2.msra.mxu0 0.0
    %7388 = vmatprep.subr.mxu0 0.0
    %7389 = vmatpush2.msra.mxu0 0.0
    %7390 = vmatprep.subr.mxu0 0.0
    %7391 = vmatpush2.msra.mxu0 0.0
    %7392 = vmatprep.subr.mxu0 0.0
    %7393 = vmatpush2.msra.mxu0 0.0
    %7394 = vmatprep.mubr.f32.mxu0 0.0
    %v7395 = vand.u32 %v7228, 4294901760
    %7396 = vmatmul.mubr.f32.gmra.mxu0 %v7395
    %v7397 = vpop.f32.mrf.mxu0
    %v7398 = vadd.f32 %v7316, %v7397
    %v7399 = vpop.f32.mrf.mxu0
    %v7400 = vadd.f32 %v7318, %v7399
    %7401 = vdwg.mxu0
    %7402 = vmatprep.subr.mxu0 0.0
    %7403 = vmatpush1.msra.mxu0 0.0
    %7404 = vmatprep.subr.mxu0 0.0
    %7405 = vmatpush1.msra.mxu0 0.0
    %7406 = vmatprep.subr.mxu0 0.0
    %7407 = vmatpush1.msra.mxu0 0.0
    %7408 = vmatprep.subr.mxu0 0.0
    %7409 = vmatpush1.msra.mxu0 0.0
    %7410 = vmatprep.subr.mxu0 0.0
    %7411 = vmatpush1.msra.mxu0 0.0
    %7412 = vmatprep.subr.mxu0 0.0
    %7413 = vmatpush1.msra.mxu0 0.0
    %7414 = vmatprep.subr.mxu0 0.0
    %7415 = vmatpush1.msra.mxu0 0.0
    %7416 = vmatprep.subr.mxu0 0.0
    %7417 = vmatpush1.msra.mxu0 0.0
    %7418 = vmatprep.subr.mxu0 0.0
    %7419 = vmatpush1.msra.mxu0 0.0
    %7420 = vmatprep.subr.mxu0 0.0
    %7421 = vmatpush1.msra.mxu0 0.0
    %7422 = vmatprep.subr.mxu0 0.0
    %7423 = vmatpush1.msra.mxu0 0.0
    %7424 = vmatprep.subr.mxu0 0.0
    %7425 = vmatpush1.msra.mxu0 0.0
    %7426 = vmatprep.subr.mxu0 0.0
    %7427 = vmatpush1.msra.mxu0 0.0
    %7428 = vmatprep.subr.mxu0 0.0
    %7429 = vmatpush1.msra.mxu0 0.0
    %7430 = vmatprep.subr.mxu0 0.0
    %7431 = vmatpush1.msra.mxu0 0.0
    %v7432 = vand.u32 %v7234, 4294901760
    %v7433 = vsub.f32 %v7234, %v7432
    %7434 = vmatprep.subr.mxu0 %v7433
    %v7435 = vand.u32 %v7231, 4294901760
    %v7436 = vsub.f32 %v7231, %v7435
    %7437 = vmatpush1.msra.mxu0 %v7436
    %7438 = vmatprep.subr.mxu0 0.0
    %7439 = vmatpush2.msra.mxu0 0.0
    %7440 = vmatprep.subr.mxu0 0.0
    %7441 = vmatpush2.msra.mxu0 0.0
    %7442 = vmatprep.subr.mxu0 0.0
    %7443 = vmatpush2.msra.mxu0 0.0
    %7444 = vmatprep.subr.mxu0 0.0
    %7445 = vmatpush2.msra.mxu0 0.0
    %7446 = vmatprep.subr.mxu0 0.0
    %7447 = vmatpush2.msra.mxu0 0.0
    %7448 = vmatprep.subr.mxu0 0.0
    %7449 = vmatpush2.msra.mxu0 0.0
    %7450 = vmatprep.subr.mxu0 0.0
    %7451 = vmatpush2.msra.mxu0 0.0
    %7452 = vmatprep.subr.mxu0 0.0
    %7453 = vmatpush2.msra.mxu0 0.0
    %7454 = vmatprep.subr.mxu0 0.0
    %7455 = vmatpush2.msra.mxu0 0.0
    %7456 = vmatprep.subr.mxu0 0.0
    %7457 = vmatpush2.msra.mxu0 0.0
    %7458 = vmatprep.subr.mxu0 0.0
    %7459 = vmatpush2.msra.mxu0 0.0
    %7460 = vmatprep.subr.mxu0 0.0
    %7461 = vmatpush2.msra.mxu0 0.0
    %7462 = vmatprep.subr.mxu0 0.0
    %7463 = vmatpush2.msra.mxu0 0.0
    %7464 = vmatprep.subr.mxu0 0.0
    %7465 = vmatpush2.msra.mxu0 0.0
    %7466 = vmatprep.subr.mxu0 0.0
    %7467 = vmatpush2.msra.mxu0 0.0
    %7468 = vmatprep.subr.mxu0 0.0
    %7469 = vmatpush2.msra.mxu0 0.0
    %7470 = vmatprep.mubr.f32.mxu0 0.0
    %v7471 = vand.u32 %v7228, 4294901760
    %v7472 = vsub.f32 %v7228, %v7471
    %7473 = vmatmul.mubr.f32.gmra.mxu0 %v7472
    %v7474 = vpop.f32.mrf.mxu0
    %v7475 = vadd.f32 %v7398, %v7474
    %v7476 = vpop.f32.mrf.mxu0
    %v7477 = vadd.f32 %v7400, %v7476
    %7478 = vdwg.mxu0
    %7479 = vmatprep.subr.mxu0 0.0
    %7480 = vmatpush1.msra.mxu0 0.0
    %7481 = vmatprep.subr.mxu0 0.0
    %7482 = vmatpush1.msra.mxu0 0.0
    %7483 = vmatprep.subr.mxu0 0.0
    %7484 = vmatpush1.msra.mxu0 0.0
    %7485 = vmatprep.subr.mxu0 0.0
    %7486 = vmatpush1.msra.mxu0 0.0
    %7487 = vmatprep.subr.mxu0 0.0
    %7488 = vmatpush1.msra.mxu0 0.0
    %7489 = vmatprep.subr.mxu0 0.0
    %7490 = vmatpush1.msra.mxu0 0.0
    %7491 = vmatprep.subr.mxu0 0.0
    %7492 = vmatpush1.msra.mxu0 0.0
    %7493 = vmatprep.subr.mxu0 0.0
    %7494 = vmatpush1.msra.mxu0 0.0
    %7495 = vmatprep.subr.mxu0 0.0
    %7496 = vmatpush1.msra.mxu0 0.0
    %7497 = vmatprep.subr.mxu0 0.0
    %7498 = vmatpush1.msra.mxu0 0.0
    %7499 = vmatprep.subr.mxu0 0.0
    %7500 = vmatpush1.msra.mxu0 0.0
    %7501 = vmatprep.subr.mxu0 0.0
    %7502 = vmatpush1.msra.mxu0 0.0
    %7503 = vmatprep.subr.mxu0 0.0
    %7504 = vmatpush1.msra.mxu0 0.0
    %7505 = vmatprep.subr.mxu0 0.0
    %7506 = vmatpush1.msra.mxu0 0.0
    %7507 = vmatprep.subr.mxu0 0.0
    %7508 = vmatpush1.msra.mxu0 0.0
    %v7509 = vand.u32 %v7234, 4294901760
    %7510 = vmatprep.subr.mxu0 %v7509
    %v7511 = vand.u32 %v7231, 4294901760
    %7512 = vmatpush1.msra.mxu0 %v7511
    %7513 = vmatprep.subr.mxu0 0.0
    %7514 = vmatpush2.msra.mxu0 0.0
    %7515 = vmatprep.subr.mxu0 0.0
    %7516 = vmatpush2.msra.mxu0 0.0
    %7517 = vmatprep.subr.mxu0 0.0
    %7518 = vmatpush2.msra.mxu0 0.0
    %7519 = vmatprep.subr.mxu0 0.0
    %7520 = vmatpush2.msra.mxu0 0.0
    %7521 = vmatprep.subr.mxu0 0.0
    %7522 = vmatpush2.msra.mxu0 0.0
    %7523 = vmatprep.subr.mxu0 0.0
    %7524 = vmatpush2.msra.mxu0 0.0
    %7525 = vmatprep.subr.mxu0 0.0
    %7526 = vmatpush2.msra.mxu0 0.0
    %7527 = vmatprep.subr.mxu0 0.0
    %7528 = vmatpush2.msra.mxu0 0.0
    %7529 = vmatprep.subr.mxu0 0.0
    %7530 = vmatpush2.msra.mxu0 0.0
    %7531 = vmatprep.subr.mxu0 0.0
    %7532 = vmatpush2.msra.mxu0 0.0
    %7533 = vmatprep.subr.mxu0 0.0
    %7534 = vmatpush2.msra.mxu0 0.0
    %7535 = vmatprep.subr.mxu0 0.0
    %7536 = vmatpush2.msra.mxu0 0.0
    %7537 = vmatprep.subr.mxu0 0.0
    %7538 = vmatpush2.msra.mxu0 0.0
    %7539 = vmatprep.subr.mxu0 0.0
    %7540 = vmatpush2.msra.mxu0 0.0
    %7541 = vmatprep.subr.mxu0 0.0
    %7542 = vmatpush2.msra.mxu0 0.0
    %7543 = vmatprep.subr.mxu0 0.0
    %7544 = vmatpush2.msra.mxu0 0.0
    %7545 = vmatprep.mubr.f32.mxu0 0.0
    %v7546 = vand.u32 %v7228, 4294901760
    %v7547 = vsub.f32 %v7228, %v7546
    %v7548 = vand.u32 %v7547, 4294901760
    %7549 = vmatmul.mubr.f32.gmra.mxu0 %v7548
    %v7550 = vpop.f32.mrf.mxu0
    %v7551 = vadd.f32 %v7475, %v7550
    %v7552 = vpop.f32.mrf.mxu0
    %v7553 = vadd.f32 %v7477, %v7552
    %7554 = vdwg.mxu0
    %7555 = vmatprep.subr.mxu0 0.0
    %7556 = vmatpush1.msra.mxu0 0.0
    %7557 = vmatprep.subr.mxu0 0.0
    %7558 = vmatpush1.msra.mxu0 0.0
    %7559 = vmatprep.subr.mxu0 0.0
    %7560 = vmatpush1.msra.mxu0 0.0
    %7561 = vmatprep.subr.mxu0 0.0
    %7562 = vmatpush1.msra.mxu0 0.0
    %7563 = vmatprep.subr.mxu0 0.0
    %7564 = vmatpush1.msra.mxu0 0.0
    %7565 = vmatprep.subr.mxu0 0.0
    %7566 = vmatpush1.msra.mxu0 0.0
    %7567 = vmatprep.subr.mxu0 0.0
    %7568 = vmatpush1.msra.mxu0 0.0
    %7569 = vmatprep.subr.mxu0 0.0
    %7570 = vmatpush1.msra.mxu0 0.0
    %7571 = vmatprep.subr.mxu0 0.0
    %7572 = vmatpush1.msra.mxu0 0.0
    %7573 = vmatprep.subr.mxu0 0.0
    %7574 = vmatpush1.msra.mxu0 0.0
    %7575 = vmatprep.subr.mxu0 0.0
    %7576 = vmatpush1.msra.mxu0 0.0
    %7577 = vmatprep.subr.mxu0 0.0
    %7578 = vmatpush1.msra.mxu0 0.0
    %7579 = vmatprep.subr.mxu0 0.0
    %7580 = vmatpush1.msra.mxu0 0.0
    %7581 = vmatprep.subr.mxu0 0.0
    %7582 = vmatpush1.msra.mxu0 0.0
    %7583 = vmatprep.subr.mxu0 0.0
    %7584 = vmatpush1.msra.mxu0 0.0
    %v7585 = vand.u32 %v7234, 4294901760
    %v7586 = vsub.f32 %v7234, %v7585
    %v7587 = vand.u32 %v7586, 4294901760
    %7588 = vmatprep.subr.mxu0 %v7587
    %v7589 = vand.u32 %v7231, 4294901760
    %v7590 = vsub.f32 %v7231, %v7589
    %v7591 = vand.u32 %v7590, 4294901760
    %7592 = vmatpush1.msra.mxu0 %v7591
    %7593 = vmatprep.subr.mxu0 0.0
    %7594 = vmatpush2.msra.mxu0 0.0
    %7595 = vmatprep.subr.mxu0 0.0
    %7596 = vmatpush2.msra.mxu0 0.0
    %7597 = vmatprep.subr.mxu0 0.0
    %7598 = vmatpush2.msra.mxu0 0.0
    %7599 = vmatprep.subr.mxu0 0.0
    %7600 = vmatpush2.msra.mxu0 0.0
    %7601 = vmatprep.subr.mxu0 0.0
    %7602 = vmatpush2.msra.mxu0 0.0
    %7603 = vmatprep.subr.mxu0 0.0
    %7604 = vmatpush2.msra.mxu0 0.0
    %7605 = vmatprep.subr.mxu0 0.0
    %7606 = vmatpush2.msra.mxu0 0.0
    %7607 = vmatprep.subr.mxu0 0.0
    %7608 = vmatpush2.msra.mxu0 0.0
    %7609 = vmatprep.subr.mxu0 0.0
    %7610 = vmatpush2.msra.mxu0 0.0
    %7611 = vmatprep.subr.mxu0 0.0
    %7612 = vmatpush2.msra.mxu0 0.0
    %7613 = vmatprep.subr.mxu0 0.0
    %7614 = vmatpush2.msra.mxu0 0.0
    %7615 = vmatprep.subr.mxu0 0.0
    %7616 = vmatpush2.msra.mxu0 0.0
    %7617 = vmatprep.subr.mxu0 0.0
    %7618 = vmatpush2.msra.mxu0 0.0
    %7619 = vmatprep.subr.mxu0 0.0
    %7620 = vmatpush2.msra.mxu0 0.0
    %7621 = vmatprep.subr.mxu0 0.0
    %7622 = vmatpush2.msra.mxu0 0.0
    %7623 = vmatprep.subr.mxu0 0.0
    %7624 = vmatpush2.msra.mxu0 0.0
    %7625 = vmatprep.mubr.f32.mxu0 0.0
    %v7626 = vand.u32 %v7228, 4294901760
    %7627 = vmatmul.mubr.f32.gmra.mxu0 %v7626
    %v7628 = vpop.f32.mrf.mxu0
    %v7629 = vadd.f32 %v7551, %v7628
    %v7630 = vpop.f32.mrf.mxu0
    %v7631 = vadd.f32 %v7553, %v7630
    %7632 = vdwg.mxu0
    %7633 = vmatprep.subr.mxu0 0.0
    %7634 = vmatpush1.msra.mxu0 0.0
    %7635 = vmatprep.subr.mxu0 0.0
    %7636 = vmatpush1.msra.mxu0 0.0
    %7637 = vmatprep.subr.mxu0 0.0
    %7638 = vmatpush1.msra.mxu0 0.0
    %7639 = vmatprep.subr.mxu0 0.0
    %7640 = vmatpush1.msra.mxu0 0.0
    %7641 = vmatprep.subr.mxu0 0.0
    %7642 = vmatpush1.msra.mxu0 0.0
    %7643 = vmatprep.subr.mxu0 0.0
    %7644 = vmatpush1.msra.mxu0 0.0
    %7645 = vmatprep.subr.mxu0 0.0
    %7646 = vmatpush1.msra.mxu0 0.0
    %7647 = vmatprep.subr.mxu0 0.0
    %7648 = vmatpush1.msra.mxu0 0.0
    %7649 = vmatprep.subr.mxu0 0.0
    %7650 = vmatpush1.msra.mxu0 0.0
    %7651 = vmatprep.subr.mxu0 0.0
    %7652 = vmatpush1.msra.mxu0 0.0
    %7653 = vmatprep.subr.mxu0 0.0
    %7654 = vmatpush1.msra.mxu0 0.0
    %7655 = vmatprep.subr.mxu0 0.0
    %7656 = vmatpush1.msra.mxu0 0.0
    %7657 = vmatprep.subr.mxu0 0.0
    %7658 = vmatpush1.msra.mxu0 0.0
    %7659 = vmatprep.subr.mxu0 0.0
    %7660 = vmatpush1.msra.mxu0 0.0
    %7661 = vmatprep.subr.mxu0 0.0
    %7662 = vmatpush1.msra.mxu0 0.0
    %v7663 = vand.u32 %v7234, 4294901760
    %7664 = vmatprep.subr.mxu0 %v7663
    %v7665 = vand.u32 %v7231, 4294901760
    %7666 = vmatpush1.msra.mxu0 %v7665
    %7667 = vmatprep.subr.mxu0 0.0
    %7668 = vmatpush2.msra.mxu0 0.0
    %7669 = vmatprep.subr.mxu0 0.0
    %7670 = vmatpush2.msra.mxu0 0.0
    %7671 = vmatprep.subr.mxu0 0.0
    %7672 = vmatpush2.msra.mxu0 0.0
    %7673 = vmatprep.subr.mxu0 0.0
    %7674 = vmatpush2.msra.mxu0 0.0
    %7675 = vmatprep.subr.mxu0 0.0
    %7676 = vmatpush2.msra.mxu0 0.0
    %7677 = vmatprep.subr.mxu0 0.0
    %7678 = vmatpush2.msra.mxu0 0.0
    %7679 = vmatprep.subr.mxu0 0.0
    %7680 = vmatpush2.msra.mxu0 0.0
    %7681 = vmatprep.subr.mxu0 0.0
    %7682 = vmatpush2.msra.mxu0 0.0
    %7683 = vmatprep.subr.mxu0 0.0
    %7684 = vmatpush2.msra.mxu0 0.0
    %7685 = vmatprep.subr.mxu0 0.0
    %7686 = vmatpush2.msra.mxu0 0.0
    %7687 = vmatprep.subr.mxu0 0.0
    %7688 = vmatpush2.msra.mxu0 0.0
    %7689 = vmatprep.subr.mxu0 0.0
    %7690 = vmatpush2.msra.mxu0 0.0
    %7691 = vmatprep.subr.mxu0 0.0
    %7692 = vmatpush2.msra.mxu0 0.0
    %7693 = vmatprep.subr.mxu0 0.0
    %7694 = vmatpush2.msra.mxu0 0.0
    %7695 = vmatprep.subr.mxu0 0.0
    %7696 = vmatpush2.msra.mxu0 0.0
    %7697 = vmatprep.subr.mxu0 0.0
    %7698 = vmatpush2.msra.mxu0 0.0
    %7699 = vmatprep.mubr.f32.mxu0 0.0
    %v7700 = vand.u32 %v7228, 4294901760
    %7701 = vmatmul.mubr.f32.gmra.mxu0 %v7700
    %v7702 = vpop.f32.mrf.mxu0
    %v7703 = vadd.f32 %v7629, %v7702
    %v7704 = vpop.f32.mrf.mxu0
    %v7705 = vadd.f32 %v7631, %v7704
    %7706 = vdwg.mxu0
    %7707 = vmatprep.subr.mxu0 0.0
    %7708 = vmatpush1.msra.mxu0 0.0
    %7709 = vmatprep.subr.mxu0 0.0
    %7710 = vmatpush1.msra.mxu0 0.0
    %7711 = vmatprep.subr.mxu0 0.0
    %7712 = vmatpush1.msra.mxu0 0.0
    %7713 = vmatprep.subr.mxu0 0.0
    %7714 = vmatpush1.msra.mxu0 0.0
    %7715 = vmatprep.subr.mxu0 0.0
    %7716 = vmatpush1.msra.mxu0 0.0
    %7717 = vmatprep.subr.mxu0 0.0
    %7718 = vmatpush1.msra.mxu0 0.0
    %7719 = vmatprep.subr.mxu0 0.0
    %7720 = vmatpush1.msra.mxu0 0.0
    %7721 = vmatprep.subr.mxu0 0.0
    %7722 = vmatpush1.msra.mxu0 0.0
    %7723 = vmatprep.subr.mxu0 0.0
    %7724 = vmatpush1.msra.mxu0 0.0
    %7725 = vmatprep.subr.mxu0 0.0
    %7726 = vmatpush1.msra.mxu0 0.0
    %7727 = vmatprep.subr.mxu0 0.0
    %7728 = vmatpush1.msra.mxu0 0.0
    %7729 = vmatprep.subr.mxu0 0.0
    %7730 = vmatpush1.msra.mxu0 0.0
    %7731 = vmatprep.subr.mxu0 0.0
    %7732 = vmatpush1.msra.mxu0 0.0
    %7733 = vmatprep.subr.mxu0 0.0
    %7734 = vmatpush1.msra.mxu0 0.0
    %7735 = vmatprep.subr.mxu0 0.0
    %7736 = vmatpush1.msra.mxu0 0.0
    %v7737 = vand.u32 %v7240, 4294901760
    %7738 = vmatprep.subr.mxu0 %v7737
    %v7739 = vand.u32 %v7237, 4294901760
    %7740 = vmatpush1.msra.mxu0 %v7739
    %7741 = vmatprep.subr.mxu0 0.0
    %7742 = vmatpush2.msra.mxu0 0.0
    %7743 = vmatprep.subr.mxu0 0.0
    %7744 = vmatpush2.msra.mxu0 0.0
    %7745 = vmatprep.subr.mxu0 0.0
    %7746 = vmatpush2.msra.mxu0 0.0
    %7747 = vmatprep.subr.mxu0 0.0
    %7748 = vmatpush2.msra.mxu0 0.0
    %7749 = vmatprep.subr.mxu0 0.0
    %7750 = vmatpush2.msra.mxu0 0.0
    %7751 = vmatprep.subr.mxu0 0.0
    %7752 = vmatpush2.msra.mxu0 0.0
    %7753 = vmatprep.subr.mxu0 0.0
    %7754 = vmatpush2.msra.mxu0 0.0
    %7755 = vmatprep.subr.mxu0 0.0
    %7756 = vmatpush2.msra.mxu0 0.0
    %7757 = vmatprep.subr.mxu0 0.0
    %7758 = vmatpush2.msra.mxu0 0.0
    %7759 = vmatprep.subr.mxu0 0.0
    %7760 = vmatpush2.msra.mxu0 0.0
    %7761 = vmatprep.subr.mxu0 0.0
    %7762 = vmatpush2.msra.mxu0 0.0
    %7763 = vmatprep.subr.mxu0 0.0
    %7764 = vmatpush2.msra.mxu0 0.0
    %7765 = vmatprep.subr.mxu0 0.0
    %7766 = vmatpush2.msra.mxu0 0.0
    %7767 = vmatprep.subr.mxu0 0.0
    %7768 = vmatpush2.msra.mxu0 0.0
    %7769 = vmatprep.subr.mxu0 0.0
    %7770 = vmatpush2.msra.mxu0 0.0
    %7771 = vmatprep.subr.mxu0 0.0
    %7772 = vmatpush2.msra.mxu0 0.0
    %7773 = vmatprep.mubr.f32.mxu0 0.0
    %v7774 = vand.u32 %v7228, 4294901760
    %v7775 = vsub.f32 %v7228, %v7774
    %v7776 = vand.u32 %v7775, 4294901760
    %v7777 = vsub.f32 %v7775, %v7776
    %v7778 = vand.u32 %v7777, 4294901760
    %7779 = vmatmul.mubr.f32.gmra.mxu0 %v7778
    %v7780 = vpop.f32.mrf.mxu0
    %v7781 = vadd.f32 0.0, %v7780
    %v7782 = vpop.f32.mrf.mxu0
    %v7783 = vadd.f32 0.0, %v7782
    %7784 = vdwg.mxu0
    %7785 = vmatprep.subr.mxu0 0.0
    %7786 = vmatpush1.msra.mxu0 0.0
    %7787 = vmatprep.subr.mxu0 0.0
    %7788 = vmatpush1.msra.mxu0 0.0
    %7789 = vmatprep.subr.mxu0 0.0
    %7790 = vmatpush1.msra.mxu0 0.0
    %7791 = vmatprep.subr.mxu0 0.0
    %7792 = vmatpush1.msra.mxu0 0.0
    %7793 = vmatprep.subr.mxu0 0.0
    %7794 = vmatpush1.msra.mxu0 0.0
    %7795 = vmatprep.subr.mxu0 0.0
    %7796 = vmatpush1.msra.mxu0 0.0
    %7797 = vmatprep.subr.mxu0 0.0
    %7798 = vmatpush1.msra.mxu0 0.0
    %7799 = vmatprep.subr.mxu0 0.0
    %7800 = vmatpush1.msra.mxu0 0.0
    %7801 = vmatprep.subr.mxu0 0.0
    %7802 = vmatpush1.msra.mxu0 0.0
    %7803 = vmatprep.subr.mxu0 0.0
    %7804 = vmatpush1.msra.mxu0 0.0
    %7805 = vmatprep.subr.mxu0 0.0
    %7806 = vmatpush1.msra.mxu0 0.0
    %7807 = vmatprep.subr.mxu0 0.0
    %7808 = vmatpush1.msra.mxu0 0.0
    %7809 = vmatprep.subr.mxu0 0.0
    %7810 = vmatpush1.msra.mxu0 0.0
    %7811 = vmatprep.subr.mxu0 0.0
    %7812 = vmatpush1.msra.mxu0 0.0
    %7813 = vmatprep.subr.mxu0 0.0
    %7814 = vmatpush1.msra.mxu0 0.0
    %v7815 = vand.u32 %v7240, 4294901760
    %v7816 = vsub.f32 %v7240, %v7815
    %v7817 = vand.u32 %v7816, 4294901760
    %v7818 = vsub.f32 %v7816, %v7817
    %v7819 = vand.u32 %v7818, 4294901760
    %7820 = vmatprep.subr.mxu0 %v7819
    %v7821 = vand.u32 %v7237, 4294901760
    %v7822 = vsub.f32 %v7237, %v7821
    %v7823 = vand.u32 %v7822, 4294901760
    %v7824 = vsub.f32 %v7822, %v7823
    %v7825 = vand.u32 %v7824, 4294901760
    %7826 = vmatpush1.msra.mxu0 %v7825
    %7827 = vmatprep.subr.mxu0 0.0
    %7828 = vmatpush2.msra.mxu0 0.0
    %7829 = vmatprep.subr.mxu0 0.0
    %7830 = vmatpush2.msra.mxu0 0.0
    %7831 = vmatprep.subr.mxu0 0.0
    %7832 = vmatpush2.msra.mxu0 0.0
    %7833 = vmatprep.subr.mxu0 0.0
    %7834 = vmatpush2.msra.mxu0 0.0
    %7835 = vmatprep.subr.mxu0 0.0
    %7836 = vmatpush2.msra.mxu0 0.0
    %7837 = vmatprep.subr.mxu0 0.0
    %7838 = vmatpush2.msra.mxu0 0.0
    %7839 = vmatprep.subr.mxu0 0.0
    %7840 = vmatpush2.msra.mxu0 0.0
    %7841 = vmatprep.subr.mxu0 0.0
    %7842 = vmatpush2.msra.mxu0 0.0
    %7843 = vmatprep.subr.mxu0 0.0
    %7844 = vmatpush2.msra.mxu0 0.0
    %7845 = vmatprep.subr.mxu0 0.0
    %7846 = vmatpush2.msra.mxu0 0.0
    %7847 = vmatprep.subr.mxu0 0.0
    %7848 = vmatpush2.msra.mxu0 0.0
    %7849 = vmatprep.subr.mxu0 0.0
    %7850 = vmatpush2.msra.mxu0 0.0
    %7851 = vmatprep.subr.mxu0 0.0
    %7852 = vmatpush2.msra.mxu0 0.0
    %7853 = vmatprep.subr.mxu0 0.0
    %7854 = vmatpush2.msra.mxu0 0.0
    %7855 = vmatprep.subr.mxu0 0.0
    %7856 = vmatpush2.msra.mxu0 0.0
    %7857 = vmatprep.subr.mxu0 0.0
    %7858 = vmatpush2.msra.mxu0 0.0
    %7859 = vmatprep.mubr.f32.mxu0 0.0
    %v7860 = vand.u32 %v7228, 4294901760
    %7861 = vmatmul.mubr.f32.gmra.mxu0 %v7860
    %v7862 = vpop.f32.mrf.mxu0
    %v7863 = vadd.f32 %v7781, %v7862
    %v7864 = vpop.f32.mrf.mxu0
    %v7865 = vadd.f32 %v7783, %v7864
    %7866 = vdwg.mxu0
    %7867 = vmatprep.subr.mxu0 0.0
    %7868 = vmatpush1.msra.mxu0 0.0
    %7869 = vmatprep.subr.mxu0 0.0
    %7870 = vmatpush1.msra.mxu0 0.0
    %7871 = vmatprep.subr.mxu0 0.0
    %7872 = vmatpush1.msra.mxu0 0.0
    %7873 = vmatprep.subr.mxu0 0.0
    %7874 = vmatpush1.msra.mxu0 0.0
    %7875 = vmatprep.subr.mxu0 0.0
    %7876 = vmatpush1.msra.mxu0 0.0
    %7877 = vmatprep.subr.mxu0 0.0
    %7878 = vmatpush1.msra.mxu0 0.0
    %7879 = vmatprep.subr.mxu0 0.0
    %7880 = vmatpush1.msra.mxu0 0.0
    %7881 = vmatprep.subr.mxu0 0.0
    %7882 = vmatpush1.msra.mxu0 0.0
    %7883 = vmatprep.subr.mxu0 0.0
    %7884 = vmatpush1.msra.mxu0 0.0
    %7885 = vmatprep.subr.mxu0 0.0
    %7886 = vmatpush1.msra.mxu0 0.0
    %7887 = vmatprep.subr.mxu0 0.0
    %7888 = vmatpush1.msra.mxu0 0.0
    %7889 = vmatprep.subr.mxu0 0.0
    %7890 = vmatpush1.msra.mxu0 0.0
    %7891 = vmatprep.subr.mxu0 0.0
    %7892 = vmatpush1.msra.mxu0 0.0
    %7893 = vmatprep.subr.mxu0 0.0
    %7894 = vmatpush1.msra.mxu0 0.0
    %7895 = vmatprep.subr.mxu0 0.0
    %7896 = vmatpush1.msra.mxu0 0.0
    %v7897 = vand.u32 %v7240, 4294901760
    %v7898 = vsub.f32 %v7240, %v7897
    %7899 = vmatprep.subr.mxu0 %v7898
    %v7900 = vand.u32 %v7237, 4294901760
    %v7901 = vsub.f32 %v7237, %v7900
    %7902 = vmatpush1.msra.mxu0 %v7901
    %7903 = vmatprep.subr.mxu0 0.0
    %7904 = vmatpush2.msra.mxu0 0.0
    %7905 = vmatprep.subr.mxu0 0.0
    %7906 = vmatpush2.msra.mxu0 0.0
    %7907 = vmatprep.subr.mxu0 0.0
    %7908 = vmatpush2.msra.mxu0 0.0
    %7909 = vmatprep.subr.mxu0 0.0
    %7910 = vmatpush2.msra.mxu0 0.0
    %7911 = vmatprep.subr.mxu0 0.0
    %7912 = vmatpush2.msra.mxu0 0.0
    %7913 = vmatprep.subr.mxu0 0.0
    %7914 = vmatpush2.msra.mxu0 0.0
    %7915 = vmatprep.subr.mxu0 0.0
    %7916 = vmatpush2.msra.mxu0 0.0
    %7917 = vmatprep.subr.mxu0 0.0
    %7918 = vmatpush2.msra.mxu0 0.0
    %7919 = vmatprep.subr.mxu0 0.0
    %7920 = vmatpush2.msra.mxu0 0.0
    %7921 = vmatprep.subr.mxu0 0.0
    %7922 = vmatpush2.msra.mxu0 0.0
    %7923 = vmatprep.subr.mxu0 0.0
    %7924 = vmatpush2.msra.mxu0 0.0
    %7925 = vmatprep.subr.mxu0 0.0
    %7926 = vmatpush2.msra.mxu0 0.0
    %7927 = vmatprep.subr.mxu0 0.0
    %7928 = vmatpush2.msra.mxu0 0.0
    %7929 = vmatprep.subr.mxu0 0.0
    %7930 = vmatpush2.msra.mxu0 0.0
    %7931 = vmatprep.subr.mxu0 0.0
    %7932 = vmatpush2.msra.mxu0 0.0
    %7933 = vmatprep.subr.mxu0 0.0
    %7934 = vmatpush2.msra.mxu0 0.0
    %7935 = vmatprep.mubr.f32.mxu0 0.0
    %v7936 = vand.u32 %v7228, 4294901760
    %v7937 = vsub.f32 %v7228, %v7936
    %7938 = vmatmul.mubr.f32.gmra.mxu0 %v7937
    %v7939 = vpop.f32.mrf.mxu0
    %v7940 = vadd.f32 %v7863, %v7939
    %v7941 = vpop.f32.mrf.mxu0
    %v7942 = vadd.f32 %v7865, %v7941
    %7943 = vdwg.mxu0
    %7944 = vmatprep.subr.mxu0 0.0
    %7945 = vmatpush1.msra.mxu0 0.0
    %7946 = vmatprep.subr.mxu0 0.0
    %7947 = vmatpush1.msra.mxu0 0.0
    %7948 = vmatprep.subr.mxu0 0.0
    %7949 = vmatpush1.msra.mxu0 0.0
    %7950 = vmatprep.subr.mxu0 0.0
    %7951 = vmatpush1.msra.mxu0 0.0
    %7952 = vmatprep.subr.mxu0 0.0
    %7953 = vmatpush1.msra.mxu0 0.0
    %7954 = vmatprep.subr.mxu0 0.0
    %7955 = vmatpush1.msra.mxu0 0.0
    %7956 = vmatprep.subr.mxu0 0.0
    %7957 = vmatpush1.msra.mxu0 0.0
    %7958 = vmatprep.subr.mxu0 0.0
    %7959 = vmatpush1.msra.mxu0 0.0
    %7960 = vmatprep.subr.mxu0 0.0
    %7961 = vmatpush1.msra.mxu0 0.0
    %7962 = vmatprep.subr.mxu0 0.0
    %7963 = vmatpush1.msra.mxu0 0.0
    %7964 = vmatprep.subr.mxu0 0.0
    %7965 = vmatpush1.msra.mxu0 0.0
    %7966 = vmatprep.subr.mxu0 0.0
    %7967 = vmatpush1.msra.mxu0 0.0
    %7968 = vmatprep.subr.mxu0 0.0
    %7969 = vmatpush1.msra.mxu0 0.0
    %7970 = vmatprep.subr.mxu0 0.0
    %7971 = vmatpush1.msra.mxu0 0.0
    %7972 = vmatprep.subr.mxu0 0.0
    %7973 = vmatpush1.msra.mxu0 0.0
    %v7974 = vand.u32 %v7240, 4294901760
    %7975 = vmatprep.subr.mxu0 %v7974
    %v7976 = vand.u32 %v7237, 4294901760
    %7977 = vmatpush1.msra.mxu0 %v7976
    %7978 = vmatprep.subr.mxu0 0.0
    %7979 = vmatpush2.msra.mxu0 0.0
    %7980 = vmatprep.subr.mxu0 0.0
    %7981 = vmatpush2.msra.mxu0 0.0
    %7982 = vmatprep.subr.mxu0 0.0
    %7983 = vmatpush2.msra.mxu0 0.0
    %7984 = vmatprep.subr.mxu0 0.0
    %7985 = vmatpush2.msra.mxu0 0.0
    %7986 = vmatprep.subr.mxu0 0.0
    %7987 = vmatpush2.msra.mxu0 0.0
    %7988 = vmatprep.subr.mxu0 0.0
    %7989 = vmatpush2.msra.mxu0 0.0
    %7990 = vmatprep.subr.mxu0 0.0
    %7991 = vmatpush2.msra.mxu0 0.0
    %7992 = vmatprep.subr.mxu0 0.0
    %7993 = vmatpush2.msra.mxu0 0.0
    %7994 = vmatprep.subr.mxu0 0.0
    %7995 = vmatpush2.msra.mxu0 0.0
    %7996 = vmatprep.subr.mxu0 0.0
    %7997 = vmatpush2.msra.mxu0 0.0
    %7998 = vmatprep.subr.mxu0 0.0
    %7999 = vmatpush2.msra.mxu0 0.0
    %8000 = vmatprep.subr.mxu0 0.0
    %8001 = vmatpush2.msra.mxu0 0.0
    %8002 = vmatprep.subr.mxu0 0.0
    %8003 = vmatpush2.msra.mxu0 0.0
    %8004 = vmatprep.subr.mxu0 0.0
    %8005 = vmatpush2.msra.mxu0 0.0
    %8006 = vmatprep.subr.mxu0 0.0
    %8007 = vmatpush2.msra.mxu0 0.0
    %8008 = vmatprep.subr.mxu0 0.0
    %8009 = vmatpush2.msra.mxu0 0.0
    %8010 = vmatprep.mubr.f32.mxu0 0.0
    %v8011 = vand.u32 %v7228, 4294901760
    %v8012 = vsub.f32 %v7228, %v8011
    %v8013 = vand.u32 %v8012, 4294901760
    %8014 = vmatmul.mubr.f32.gmra.mxu0 %v8013
    %v8015 = vpop.f32.mrf.mxu0
    %v8016 = vadd.f32 %v7940, %v8015
    %v8017 = vpop.f32.mrf.mxu0
    %v8018 = vadd.f32 %v7942, %v8017
    %8019 = vdwg.mxu0
    %8020 = vmatprep.subr.mxu0 0.0
    %8021 = vmatpush1.msra.mxu0 0.0
    %8022 = vmatprep.subr.mxu0 0.0
    %8023 = vmatpush1.msra.mxu0 0.0
    %8024 = vmatprep.subr.mxu0 0.0
    %8025 = vmatpush1.msra.mxu0 0.0
    %8026 = vmatprep.subr.mxu0 0.0
    %8027 = vmatpush1.msra.mxu0 0.0
    %8028 = vmatprep.subr.mxu0 0.0
    %8029 = vmatpush1.msra.mxu0 0.0
    %8030 = vmatprep.subr.mxu0 0.0
    %8031 = vmatpush1.msra.mxu0 0.0
    %8032 = vmatprep.subr.mxu0 0.0
    %8033 = vmatpush1.msra.mxu0 0.0
    %8034 = vmatprep.subr.mxu0 0.0
    %8035 = vmatpush1.msra.mxu0 0.0
    %8036 = vmatprep.subr.mxu0 0.0
    %8037 = vmatpush1.msra.mxu0 0.0
    %8038 = vmatprep.subr.mxu0 0.0
    %8039 = vmatpush1.msra.mxu0 0.0
    %8040 = vmatprep.subr.mxu0 0.0
    %8041 = vmatpush1.msra.mxu0 0.0
    %8042 = vmatprep.subr.mxu0 0.0
    %8043 = vmatpush1.msra.mxu0 0.0
    %8044 = vmatprep.subr.mxu0 0.0
    %8045 = vmatpush1.msra.mxu0 0.0
    %8046 = vmatprep.subr.mxu0 0.0
    %8047 = vmatpush1.msra.mxu0 0.0
    %8048 = vmatprep.subr.mxu0 0.0
    %8049 = vmatpush1.msra.mxu0 0.0
    %v8050 = vand.u32 %v7240, 4294901760
    %v8051 = vsub.f32 %v7240, %v8050
    %v8052 = vand.u32 %v8051, 4294901760
    %8053 = vmatprep.subr.mxu0 %v8052
    %v8054 = vand.u32 %v7237, 4294901760
    %v8055 = vsub.f32 %v7237, %v8054
    %v8056 = vand.u32 %v8055, 4294901760
    %8057 = vmatpush1.msra.mxu0 %v8056
    %8058 = vmatprep.subr.mxu0 0.0
    %8059 = vmatpush2.msra.mxu0 0.0
    %8060 = vmatprep.subr.mxu0 0.0
    %8061 = vmatpush2.msra.mxu0 0.0
    %8062 = vmatprep.subr.mxu0 0.0
    %8063 = vmatpush2.msra.mxu0 0.0
    %8064 = vmatprep.subr.mxu0 0.0
    %8065 = vmatpush2.msra.mxu0 0.0
    %8066 = vmatprep.subr.mxu0 0.0
    %8067 = vmatpush2.msra.mxu0 0.0
    %8068 = vmatprep.subr.mxu0 0.0
    %8069 = vmatpush2.msra.mxu0 0.0
    %8070 = vmatprep.subr.mxu0 0.0
    %8071 = vmatpush2.msra.mxu0 0.0
    %8072 = vmatprep.subr.mxu0 0.0
    %8073 = vmatpush2.msra.mxu0 0.0
    %8074 = vmatprep.subr.mxu0 0.0
    %8075 = vmatpush2.msra.mxu0 0.0
    %8076 = vmatprep.subr.mxu0 0.0
    %8077 = vmatpush2.msra.mxu0 0.0
    %8078 = vmatprep.subr.mxu0 0.0
    %8079 = vmatpush2.msra.mxu0 0.0
    %8080 = vmatprep.subr.mxu0 0.0
    %8081 = vmatpush2.msra.mxu0 0.0
    %8082 = vmatprep.subr.mxu0 0.0
    %8083 = vmatpush2.msra.mxu0 0.0
    %8084 = vmatprep.subr.mxu0 0.0
    %8085 = vmatpush2.msra.mxu0 0.0
    %8086 = vmatprep.subr.mxu0 0.0
    %8087 = vmatpush2.msra.mxu0 0.0
    %8088 = vmatprep.subr.mxu0 0.0
    %8089 = vmatpush2.msra.mxu0 0.0
    %8090 = vmatprep.mubr.f32.mxu0 0.0
    %v8091 = vand.u32 %v7228, 4294901760
    %8092 = vmatmul.mubr.f32.gmra.mxu0 %v8091
    %v8093 = vpop.f32.mrf.mxu0
    %v8094 = vadd.f32 %v8016, %v8093
    %v8095 = vpop.f32.mrf.mxu0
    %v8096 = vadd.f32 %v8018, %v8095
    %8097 = vdwg.mxu0
    %8098 = vmatprep.subr.mxu0 0.0
    %8099 = vmatpush1.msra.mxu0 0.0
    %8100 = vmatprep.subr.mxu0 0.0
    %8101 = vmatpush1.msra.mxu0 0.0
    %8102 = vmatprep.subr.mxu0 0.0
    %8103 = vmatpush1.msra.mxu0 0.0
    %8104 = vmatprep.subr.mxu0 0.0
    %8105 = vmatpush1.msra.mxu0 0.0
    %8106 = vmatprep.subr.mxu0 0.0
    %8107 = vmatpush1.msra.mxu0 0.0
    %8108 = vmatprep.subr.mxu0 0.0
    %8109 = vmatpush1.msra.mxu0 0.0
    %8110 = vmatprep.subr.mxu0 0.0
    %8111 = vmatpush1.msra.mxu0 0.0
    %8112 = vmatprep.subr.mxu0 0.0
    %8113 = vmatpush1.msra.mxu0 0.0
    %8114 = vmatprep.subr.mxu0 0.0
    %8115 = vmatpush1.msra.mxu0 0.0
    %8116 = vmatprep.subr.mxu0 0.0
    %8117 = vmatpush1.msra.mxu0 0.0
    %8118 = vmatprep.subr.mxu0 0.0
    %8119 = vmatpush1.msra.mxu0 0.0
    %8120 = vmatprep.subr.mxu0 0.0
    %8121 = vmatpush1.msra.mxu0 0.0
    %8122 = vmatprep.subr.mxu0 0.0
    %8123 = vmatpush1.msra.mxu0 0.0
    %8124 = vmatprep.subr.mxu0 0.0
    %8125 = vmatpush1.msra.mxu0 0.0
    %8126 = vmatprep.subr.mxu0 0.0
    %8127 = vmatpush1.msra.mxu0 0.0
    %v8128 = vand.u32 %v7240, 4294901760
    %8129 = vmatprep.subr.mxu0 %v8128
    %v8130 = vand.u32 %v7237, 4294901760
    %8131 = vmatpush1.msra.mxu0 %v8130
    %8132 = vmatprep.subr.mxu0 0.0
    %8133 = vmatpush2.msra.mxu0 0.0
    %8134 = vmatprep.subr.mxu0 0.0
    %8135 = vmatpush2.msra.mxu0 0.0
    %8136 = vmatprep.subr.mxu0 0.0
    %8137 = vmatpush2.msra.mxu0 0.0
    %8138 = vmatprep.subr.mxu0 0.0
    %8139 = vmatpush2.msra.mxu0 0.0
    %8140 = vmatprep.subr.mxu0 0.0
    %8141 = vmatpush2.msra.mxu0 0.0
    %8142 = vmatprep.subr.mxu0 0.0
    %8143 = vmatpush2.msra.mxu0 0.0
    %8144 = vmatprep.subr.mxu0 0.0
    %8145 = vmatpush2.msra.mxu0 0.0
    %8146 = vmatprep.subr.mxu0 0.0
    %8147 = vmatpush2.msra.mxu0 0.0
    %8148 = vmatprep.subr.mxu0 0.0
    %8149 = vmatpush2.msra.mxu0 0.0
    %8150 = vmatprep.subr.mxu0 0.0
    %8151 = vmatpush2.msra.mxu0 0.0
    %8152 = vmatprep.subr.mxu0 0.0
    %8153 = vmatpush2.msra.mxu0 0.0
    %8154 = vmatprep.subr.mxu0 0.0
    %8155 = vmatpush2.msra.mxu0 0.0
    %8156 = vmatprep.subr.mxu0 0.0
    %8157 = vmatpush2.msra.mxu0 0.0
    %8158 = vmatprep.subr.mxu0 0.0
    %8159 = vmatpush2.msra.mxu0 0.0
    %8160 = vmatprep.subr.mxu0 0.0
    %8161 = vmatpush2.msra.mxu0 0.0
    %8162 = vmatprep.subr.mxu0 0.0
    %8163 = vmatpush2.msra.mxu0 0.0
    %8164 = vmatprep.mubr.f32.mxu0 0.0
    %v8165 = vand.u32 %v7228, 4294901760
    %8166 = vmatmul.mubr.f32.gmra.mxu0 %v8165
    %v8167 = vpop.f32.mrf.mxu0
    %v8168 = vadd.f32 %v8094, %v8167
    %v8169 = vpop.f32.mrf.mxu0
    %v8170 = vadd.f32 %v8096, %v8169
    %8171 = vdwg.mxu0
    %v8176 = vcombine.low %v7703, %v7705
    %v8177 = vcombine.low %v8168, %v8170
    %v8179 = vunpack.c.l.s4 1983009808
    %v8180 = vunpack.c.0.s8 %v8179
    %v8181 = vlaneseq
    %v8182 = vshrl.u32 %v8181, 7
    %v8183 = vsub.s32 %v8180, %v8182
    %v8184 = vrot.slane %v8176, %v8183
    %v8186 = vunpack.c.l.s4 1983009808
    %v8187 = vunpack.c.0.s8 %v8186
    %v8188 = vlaneseq
    %v8189 = vshrl.u32 %v8188, 7
    %v8190 = vsub.s32 %v8187, %v8189
    %v8191 = vrot.slane %v8177, %v8190
    %v8192 = vcombine.low %v8184, %v8191
    %v8194 = vadd.f32 %v6757, %v8192
    %s8195 = scalar_lea.vmem [#allocation3], 1024
    %v8196 = vld [vmem:[%s8195] sm:$0xff]
    %v8197 = vld [vmem:[%s8195 + $0x8] sm:$0xff]
    %v8198 = vld [vmem:[%s8195 + $0x10] sm:$0xff]
    %v8199 = vld [vmem:[%s8195 + $0x18] sm:$0xff]
    %v8200 = vld [vmem:[%s8195 + $0x20] sm:$0xff]
    %v8201 = vld [vmem:[%s8195 + $0x28] sm:$0xff]
    %v8202 = vld [vmem:[%s8195 + $0x30] sm:$0xff]
    %v8203 = vld [vmem:[%s8195 + $0x38] sm:$0xff]
    %v8204 = vld [vmem:[%s8195 + $0x40] sm:$0xff]
    %v8205 = vld [vmem:[%s8195 + $0x48] sm:$0xff]
    %v8206 = vld [vmem:[%s8195 + $0x50] sm:$0xff]
    %v8207 = vld [vmem:[%s8195 + $0x58] sm:$0xff]
    %v8208 = vld [vmem:[%s8195 + $0x60] sm:$0xff]
    %v8209 = vld [vmem:[%s8195 + $0x68] sm:$0xff]
    %v8210 = vld [vmem:[%s8195 + $0x70] sm:$0xff]
    %v8211 = vld [vmem:[%s8195 + $0x78] sm:$0xff]
    %v8212 = vld [vmem:[%s8195 + $0x80] sm:$0xff]
    %v8213 = vld [vmem:[%s8195 + $0x88] sm:$0xff]
    %v8214 = vld [vmem:[%s8195 + $0x90] sm:$0xff]
    %v8215 = vld [vmem:[%s8195 + $0x98] sm:$0xff]
    %v8216 = vld [vmem:[%s8195 + $0xa0] sm:$0xff]
    %v8217 = vld [vmem:[%s8195 + $0xa8] sm:$0xff]
    %v8218 = vld [vmem:[%s8195 + $0xb0] sm:$0xff]
    %v8219 = vld [vmem:[%s8195 + $0xb8] sm:$0xff]
    %v8220 = vld [vmem:[%s8195 + $0xc0] sm:$0xff]
    %v8221 = vld [vmem:[%s8195 + $0xc8] sm:$0xff]
    %v8222 = vld [vmem:[%s8195 + $0xd0] sm:$0xff]
    %v8223 = vld [vmem:[%s8195 + $0xd8] sm:$0xff]
    %v8224 = vld [vmem:[%s8195 + $0xe0] sm:$0xff]
    %v8225 = vld [vmem:[%s8195 + $0xe8] sm:$0xff]
    %v8226 = vld [vmem:[%s8195 + $0xf0] sm:$0xff]
    %v8227 = vld [vmem:[%s8195 + $0xf8] sm:$0xff]
    %v8228 = vld [vmem:[%s8195 + $0x100] sm:$0xff]
    %v8229 = vld [vmem:[%s8195 + $0x108] sm:$0xff]
    %v8230 = vld [vmem:[%s8195 + $0x110] sm:$0xff]
    %v8231 = vld [vmem:[%s8195 + $0x118] sm:$0xff]
    %v8232 = vld [vmem:[%s8195 + $0x120] sm:$0xff]
    %v8233 = vld [vmem:[%s8195 + $0x128] sm:$0xff]
    %v8234 = vld [vmem:[%s8195 + $0x130] sm:$0xff]
    %v8235 = vld [vmem:[%s8195 + $0x138] sm:$0xff]
    %v8236 = vld [vmem:[%s8195 + $0x140] sm:$0xff]
    %v8237 = vld [vmem:[%s8195 + $0x148] sm:$0xff]
    %v8238 = vld [vmem:[%s8195 + $0x150] sm:$0xff]
    %v8239 = vld [vmem:[%s8195 + $0x158] sm:$0xff]
    %v8240 = vld [vmem:[%s8195 + $0x160] sm:$0xff]
    %v8241 = vld [vmem:[%s8195 + $0x168] sm:$0xff]
    %v8242 = vld [vmem:[%s8195 + $0x170] sm:$0xff]
    %v8243 = vld [vmem:[%s8195 + $0x178] sm:$0xff]
    %v8244 = vld [vmem:[%s8195 + $0x180] sm:$0xff]
    %v8245 = vld [vmem:[%s8195 + $0x188] sm:$0xff]
    %v8246 = vld [vmem:[%s8195 + $0x190] sm:$0xff]
    %v8247 = vld [vmem:[%s8195 + $0x198] sm:$0xff]
    %v8248 = vld [vmem:[%s8195 + $0x1a0] sm:$0xff]
    %v8249 = vld [vmem:[%s8195 + $0x1a8] sm:$0xff]
    %v8250 = vld [vmem:[%s8195 + $0x1b0] sm:$0xff]
    %v8251 = vld [vmem:[%s8195 + $0x1b8] sm:$0xff]
    %v8252 = vld [vmem:[%s8195 + $0x1c0] sm:$0xff]
    %v8253 = vld [vmem:[%s8195 + $0x1c8] sm:$0xff]
    %v8254 = vld [vmem:[%s8195 + $0x1d0] sm:$0xff]
    %v8255 = vld [vmem:[%s8195 + $0x1d8] sm:$0xff]
    %v8256 = vld [vmem:[%s8195 + $0x1e0] sm:$0xff]
    %v8257 = vld [vmem:[%s8195 + $0x1e8] sm:$0xff]
    %v8258 = vld [vmem:[%s8195 + $0x1f0] sm:$0xff]
    %v8259 = vld [vmem:[%s8195 + $0x1f8] sm:$0xff]
    %v8324 = vunpack.c.l.b16 %v8196
    %v8325 = vunpack.c.h.b16 %v8196
    %v8326 = vunpack.c.l.b16 %v8197
    %v8327 = vunpack.c.h.b16 %v8197
    %v8328 = vunpack.c.l.b16 %v8198
    %v8329 = vunpack.c.h.b16 %v8198
    %v8330 = vunpack.c.l.b16 %v8199
    %v8331 = vunpack.c.h.b16 %v8199
    %v8332 = vunpack.c.l.b16 %v8200
    %v8333 = vunpack.c.h.b16 %v8200
    %v8334 = vunpack.c.l.b16 %v8201
    %v8335 = vunpack.c.h.b16 %v8201
    %v8336 = vunpack.c.l.b16 %v8202
    %v8337 = vunpack.c.h.b16 %v8202
    %v8338 = vunpack.c.l.b16 %v8203
    %v8339 = vunpack.c.h.b16 %v8203
    %v8340 = vunpack.c.l.b16 %v8204
    %v8341 = vunpack.c.h.b16 %v8204
    %v8342 = vunpack.c.l.b16 %v8205
    %v8343 = vunpack.c.h.b16 %v8205
    %v8344 = vunpack.c.l.b16 %v8206
    %v8345 = vunpack.c.h.b16 %v8206
    %v8346 = vunpack.c.l.b16 %v8207
    %v8347 = vunpack.c.h.b16 %v8207
    %v8348 = vunpack.c.l.b16 %v8208
    %v8349 = vunpack.c.h.b16 %v8208
    %v8350 = vunpack.c.l.b16 %v8209
    %v8351 = vunpack.c.h.b16 %v8209
    %v8352 = vunpack.c.l.b16 %v8210
    %v8353 = vunpack.c.h.b16 %v8210
    %v8354 = vunpack.c.l.b16 %v8211
    %v8355 = vunpack.c.h.b16 %v8211
    %v8356 = vunpack.c.l.b16 %v8212
    %v8357 = vunpack.c.h.b16 %v8212
    %v8358 = vunpack.c.l.b16 %v8213
    %v8359 = vunpack.c.h.b16 %v8213
    %v8360 = vunpack.c.l.b16 %v8214
    %v8361 = vunpack.c.h.b16 %v8214
    %v8362 = vunpack.c.l.b16 %v8215
    %v8363 = vunpack.c.h.b16 %v8215
    %v8364 = vunpack.c.l.b16 %v8216
    %v8365 = vunpack.c.h.b16 %v8216
    %v8366 = vunpack.c.l.b16 %v8217
    %v8367 = vunpack.c.h.b16 %v8217
    %v8368 = vunpack.c.l.b16 %v8218
    %v8369 = vunpack.c.h.b16 %v8218
    %v8370 = vunpack.c.l.b16 %v8219
    %v8371 = vunpack.c.h.b16 %v8219
    %v8372 = vunpack.c.l.b16 %v8220
    %v8373 = vunpack.c.h.b16 %v8220
    %v8374 = vunpack.c.l.b16 %v8221
    %v8375 = vunpack.c.h.b16 %v8221
    %v8376 = vunpack.c.l.b16 %v8222
    %v8377 = vunpack.c.h.b16 %v8222
    %v8378 = vunpack.c.l.b16 %v8223
    %v8379 = vunpack.c.h.b16 %v8223
    %v8380 = vunpack.c.l.b16 %v8224
    %v8381 = vunpack.c.h.b16 %v8224
    %v8382 = vunpack.c.l.b16 %v8225
    %v8383 = vunpack.c.h.b16 %v8225
    %v8384 = vunpack.c.l.b16 %v8226
    %v8385 = vunpack.c.h.b16 %v8226
    %v8386 = vunpack.c.l.b16 %v8227
    %v8387 = vunpack.c.h.b16 %v8227
    %v8388 = vunpack.c.l.b16 %v8228
    %v8389 = vunpack.c.h.b16 %v8228
    %v8390 = vunpack.c.l.b16 %v8229
    %v8391 = vunpack.c.h.b16 %v8229
    %v8392 = vunpack.c.l.b16 %v8230
    %v8393 = vunpack.c.h.b16 %v8230
    %v8394 = vunpack.c.l.b16 %v8231
    %v8395 = vunpack.c.h.b16 %v8231
    %v8396 = vunpack.c.l.b16 %v8232
    %v8397 = vunpack.c.h.b16 %v8232
    %v8398 = vunpack.c.l.b16 %v8233
    %v8399 = vunpack.c.h.b16 %v8233
    %v8400 = vunpack.c.l.b16 %v8234
    %v8401 = vunpack.c.h.b16 %v8234
    %v8402 = vunpack.c.l.b16 %v8235
    %v8403 = vunpack.c.h.b16 %v8235
    %v8404 = vunpack.c.l.b16 %v8236
    %v8405 = vunpack.c.h.b16 %v8236
    %v8406 = vunpack.c.l.b16 %v8237
    %v8407 = vunpack.c.h.b16 %v8237
    %v8408 = vunpack.c.l.b16 %v8238
    %v8409 = vunpack.c.h.b16 %v8238
    %v8410 = vunpack.c.l.b16 %v8239
    %v8411 = vunpack.c.h.b16 %v8239
    %v8412 = vunpack.c.l.b16 %v8240
    %v8413 = vunpack.c.h.b16 %v8240
    %v8414 = vunpack.c.l.b16 %v8241
    %v8415 = vunpack.c.h.b16 %v8241
    %v8416 = vunpack.c.l.b16 %v8242
    %v8417 = vunpack.c.h.b16 %v8242
    %v8418 = vunpack.c.l.b16 %v8243
    %v8419 = vunpack.c.h.b16 %v8243
    %v8420 = vunpack.c.l.b16 %v8244
    %v8421 = vunpack.c.h.b16 %v8244
    %v8422 = vunpack.c.l.b16 %v8245
    %v8423 = vunpack.c.h.b16 %v8245
    %v8424 = vunpack.c.l.b16 %v8246
    %v8425 = vunpack.c.h.b16 %v8246
    %v8426 = vunpack.c.l.b16 %v8247
    %v8427 = vunpack.c.h.b16 %v8247
    %v8428 = vunpack.c.l.b16 %v8248
    %v8429 = vunpack.c.h.b16 %v8248
    %v8430 = vunpack.c.l.b16 %v8249
    %v8431 = vunpack.c.h.b16 %v8249
    %v8432 = vunpack.c.l.b16 %v8250
    %v8433 = vunpack.c.h.b16 %v8250
    %v8434 = vunpack.c.l.b16 %v8251
    %v8435 = vunpack.c.h.b16 %v8251
    %v8436 = vunpack.c.l.b16 %v8252
    %v8437 = vunpack.c.h.b16 %v8252
    %v8438 = vunpack.c.l.b16 %v8253
    %v8439 = vunpack.c.h.b16 %v8253
    %v8440 = vunpack.c.l.b16 %v8254
    %v8441 = vunpack.c.h.b16 %v8254
    %v8442 = vunpack.c.l.b16 %v8255
    %v8443 = vunpack.c.h.b16 %v8255
    %v8444 = vunpack.c.l.b16 %v8256
    %v8445 = vunpack.c.h.b16 %v8256
    %v8446 = vunpack.c.l.b16 %v8257
    %v8447 = vunpack.c.h.b16 %v8257
    %v8448 = vunpack.c.l.b16 %v8258
    %v8449 = vunpack.c.h.b16 %v8258
    %v8450 = vunpack.c.l.b16 %v8259
    %v8451 = vunpack.c.h.b16 %v8259
    %v8452 = vpack.c.b16 %v8328, %v8324
    %v8453 = vpack.c.b16 %v8329, %v8325
    %v8454 = vpack.c.b16 %v8330, %v8326
    %v8455 = vpack.c.b16 %v8331, %v8327
    %v8456 = vpack.c.b16 %v8336, %v8332
    %v8457 = vpack.c.b16 %v8337, %v8333
    %v8458 = vpack.c.b16 %v8338, %v8334
    %v8459 = vpack.c.b16 %v8339, %v8335
    %v8460 = vpack.c.b16 %v8344, %v8340
    %v8461 = vpack.c.b16 %v8345, %v8341
    %v8462 = vpack.c.b16 %v8346, %v8342
    %v8463 = vpack.c.b16 %v8347, %v8343
    %v8464 = vpack.c.b16 %v8352, %v8348
    %v8465 = vpack.c.b16 %v8353, %v8349
    %v8466 = vpack.c.b16 %v8354, %v8350
    %v8467 = vpack.c.b16 %v8355, %v8351
    %v8468 = vpack.c.b16 %v8360, %v8356
    %v8469 = vpack.c.b16 %v8361, %v8357
    %v8470 = vpack.c.b16 %v8362, %v8358
    %v8471 = vpack.c.b16 %v8363, %v8359
    %v8472 = vpack.c.b16 %v8368, %v8364
    %v8473 = vpack.c.b16 %v8369, %v8365
    %v8474 = vpack.c.b16 %v8370, %v8366
    %v8475 = vpack.c.b16 %v8371, %v8367
    %v8476 = vpack.c.b16 %v8376, %v8372
    %v8477 = vpack.c.b16 %v8377, %v8373
    %v8478 = vpack.c.b16 %v8378, %v8374
    %v8479 = vpack.c.b16 %v8379, %v8375
    %v8480 = vpack.c.b16 %v8384, %v8380
    %v8481 = vpack.c.b16 %v8385, %v8381
    %v8482 = vpack.c.b16 %v8386, %v8382
    %v8483 = vpack.c.b16 %v8387, %v8383
    %v8484 = vpack.c.b16 %v8392, %v8388
    %v8485 = vpack.c.b16 %v8393, %v8389
    %v8486 = vpack.c.b16 %v8394, %v8390
    %v8487 = vpack.c.b16 %v8395, %v8391
    %v8488 = vpack.c.b16 %v8400, %v8396
    %v8489 = vpack.c.b16 %v8401, %v8397
    %v8490 = vpack.c.b16 %v8402, %v8398
    %v8491 = vpack.c.b16 %v8403, %v8399
    %v8492 = vpack.c.b16 %v8408, %v8404
    %v8493 = vpack.c.b16 %v8409, %v8405
    %v8494 = vpack.c.b16 %v8410, %v8406
    %v8495 = vpack.c.b16 %v8411, %v8407
    %v8496 = vpack.c.b16 %v8416, %v8412
    %v8497 = vpack.c.b16 %v8417, %v8413
    %v8498 = vpack.c.b16 %v8418, %v8414
    %v8499 = vpack.c.b16 %v8419, %v8415
    %v8500 = vpack.c.b16 %v8424, %v8420
    %v8501 = vpack.c.b16 %v8425, %v8421
    %v8502 = vpack.c.b16 %v8426, %v8422
    %v8503 = vpack.c.b16 %v8427, %v8423
    %v8504 = vpack.c.b16 %v8432, %v8428
    %v8505 = vpack.c.b16 %v8433, %v8429
    %v8506 = vpack.c.b16 %v8434, %v8430
    %v8507 = vpack.c.b16 %v8435, %v8431
    %v8508 = vpack.c.b16 %v8440, %v8436
    %v8509 = vpack.c.b16 %v8441, %v8437
    %v8510 = vpack.c.b16 %v8442, %v8438
    %v8511 = vpack.c.b16 %v8443, %v8439
    %v8512 = vpack.c.b16 %v8448, %v8444
    %v8513 = vpack.c.b16 %v8449, %v8445
    %v8514 = vpack.c.b16 %v8450, %v8446
    %v8515 = vpack.c.b16 %v8451, %v8447
    %8580 = vmatprep.subr.bf16.mxu0 %v8481
    %8581 = vmatpush1.bf16.msra.mxu0 %v8480
    %8582 = vmatprep.subr.bf16.mxu0 %v8477
    %8583 = vmatpush1.bf16.msra.mxu0 %v8476
    %8584 = vmatprep.subr.bf16.mxu0 %v8473
    %8585 = vmatpush1.bf16.msra.mxu0 %v8472
    %8586 = vmatprep.subr.bf16.mxu0 %v8469
    %8587 = vmatpush1.bf16.msra.mxu0 %v8468
    %8588 = vmatprep.subr.bf16.mxu0 %v8465
    %8589 = vmatpush1.bf16.msra.mxu0 %v8464
    %8590 = vmatprep.subr.bf16.mxu0 %v8461
    %8591 = vmatpush1.bf16.msra.mxu0 %v8460
    %8592 = vmatprep.subr.bf16.mxu0 %v8457
    %8593 = vmatpush1.bf16.msra.mxu0 %v8456
    %8594 = vmatprep.subr.bf16.mxu0 %v8453
    %8595 = vmatpush1.bf16.msra.mxu0 %v8452
    %8596 = vmatprep.subr.bf16.mxu0 %v8513
    %8597 = vmatpush2.bf16.msra.mxu0 %v8512
    %8598 = vmatprep.subr.bf16.mxu0 %v8509
    %8599 = vmatpush2.bf16.msra.mxu0 %v8508
    %8600 = vmatprep.subr.bf16.mxu0 %v8505
    %8601 = vmatpush2.bf16.msra.mxu0 %v8504
    %8602 = vmatprep.subr.bf16.mxu0 %v8501
    %8603 = vmatpush2.bf16.msra.mxu0 %v8500
    %8604 = vmatprep.subr.bf16.mxu0 %v8497
    %8605 = vmatpush2.bf16.msra.mxu0 %v8496
    %8606 = vmatprep.subr.bf16.mxu0 %v8493
    %8607 = vmatpush2.bf16.msra.mxu0 %v8492
    %8608 = vmatprep.subr.bf16.mxu0 %v8489
    %8609 = vmatpush2.bf16.msra.mxu0 %v8488
    %8610 = vmatprep.subr.bf16.mxu0 %v8485
    %8611 = vmatpush2.bf16.msra.mxu0 %v8484
    %8612 = vmatprep.mubr.bf16.mxu0 %v5321
    %8613 = vmatmul.mubr.bf16.gmra.mxu0 %v5320
    %v8614 = vpop.f32.mrf.mxu0
    %v8615 = vadd.f32 0.0, %v8614
    %v8616 = vpop.f32.mrf.mxu0
    %v8617 = vadd.f32 0.0, %v8616
    %v8618 = vpop.f32.mrf.mxu0
    %v8619 = vpop.f32.mrf.mxu0
    %8620 = vdwg.mxu0
    %8621 = vmatprep.subr.bf16.mxu0 %v8483
    %8622 = vmatpush1.bf16.msra.mxu0 %v8482
    %8623 = vmatprep.subr.bf16.mxu0 %v8479
    %8624 = vmatpush1.bf16.msra.mxu0 %v8478
    %8625 = vmatprep.subr.bf16.mxu0 %v8475
    %8626 = vmatpush1.bf16.msra.mxu0 %v8474
    %8627 = vmatprep.subr.bf16.mxu0 %v8471
    %8628 = vmatpush1.bf16.msra.mxu0 %v8470
    %8629 = vmatprep.subr.bf16.mxu0 %v8467
    %8630 = vmatpush1.bf16.msra.mxu0 %v8466
    %8631 = vmatprep.subr.bf16.mxu0 %v8463
    %8632 = vmatpush1.bf16.msra.mxu0 %v8462
    %8633 = vmatprep.subr.bf16.mxu0 %v8459
    %8634 = vmatpush1.bf16.msra.mxu0 %v8458
    %8635 = vmatprep.subr.bf16.mxu0 %v8455
    %8636 = vmatpush1.bf16.msra.mxu0 %v8454
    %8637 = vmatprep.subr.bf16.mxu0 %v8515
    %8638 = vmatpush2.bf16.msra.mxu0 %v8514
    %8639 = vmatprep.subr.bf16.mxu0 %v8511
    %8640 = vmatpush2.bf16.msra.mxu0 %v8510
    %8641 = vmatprep.subr.bf16.mxu0 %v8507
    %8642 = vmatpush2.bf16.msra.mxu0 %v8506
    %8643 = vmatprep.subr.bf16.mxu0 %v8503
    %8644 = vmatpush2.bf16.msra.mxu0 %v8502
    %8645 = vmatprep.subr.bf16.mxu0 %v8499
    %8646 = vmatpush2.bf16.msra.mxu0 %v8498
    %8647 = vmatprep.subr.bf16.mxu0 %v8495
    %8648 = vmatpush2.bf16.msra.mxu0 %v8494
    %8649 = vmatprep.subr.bf16.mxu0 %v8491
    %8650 = vmatpush2.bf16.msra.mxu0 %v8490
    %8651 = vmatprep.subr.bf16.mxu0 %v8487
    %8652 = vmatpush2.bf16.msra.mxu0 %v8486
    %8653 = vmatprep.mubr.bf16.mxu0 %v5321
    %8654 = vmatmul.mubr.bf16.gmra.mxu0 %v5320
    %v8655 = vpop.f32.mrf.mxu0
    %v8656 = vadd.f32 0.0, %v8655
    %v8657 = vpop.f32.mrf.mxu0
    %v8658 = vadd.f32 0.0, %v8657
    %v8659 = vpop.f32.mrf.mxu0
    %v8660 = vpop.f32.mrf.mxu0
    %8661 = vdwg.mxu0
    %s8662 = scalar_lea.vmem [#allocation20], 4
    %v8663 = vld [vmem:[%s8662] sm:$0x3]
    %v8665 = vsel %vm4069, %v8663, 0
    %v8668 = vsel %vm235, %v8615, 0
    %v8671 = vsel %vm235, %v8617, 0
    %v8674 = vsel %vm235, %v8656, 0
    %v8677 = vsel %vm235, %v8658, 0
    %8679 = vmatprep.subr.mxu0 0.0
    %8680 = vmatpush1.msra.mxu0 0.0
    %8681 = vmatprep.subr.mxu0 0.0
    %8682 = vmatpush1.msra.mxu0 0.0
    %8683 = vmatprep.subr.mxu0 0.0
    %8684 = vmatpush1.msra.mxu0 0.0
    %8685 = vmatprep.subr.mxu0 0.0
    %8686 = vmatpush1.msra.mxu0 0.0
    %8687 = vmatprep.subr.mxu0 0.0
    %8688 = vmatpush1.msra.mxu0 0.0
    %8689 = vmatprep.subr.mxu0 0.0
    %8690 = vmatpush1.msra.mxu0 0.0
    %8691 = vmatprep.subr.mxu0 0.0
    %8692 = vmatpush1.msra.mxu0 0.0
    %8693 = vmatprep.subr.mxu0 0.0
    %8694 = vmatpush1.msra.mxu0 0.0
    %8695 = vmatprep.subr.mxu0 0.0
    %8696 = vmatpush1.msra.mxu0 0.0
    %8697 = vmatprep.subr.mxu0 0.0
    %8698 = vmatpush1.msra.mxu0 0.0
    %8699 = vmatprep.subr.mxu0 0.0
    %8700 = vmatpush1.msra.mxu0 0.0
    %8701 = vmatprep.subr.mxu0 0.0
    %8702 = vmatpush1.msra.mxu0 0.0
    %8703 = vmatprep.subr.mxu0 0.0
    %8704 = vmatpush1.msra.mxu0 0.0
    %8705 = vmatprep.subr.mxu0 0.0
    %8706 = vmatpush1.msra.mxu0 0.0
    %8707 = vmatprep.subr.mxu0 0.0
    %8708 = vmatpush1.msra.mxu0 0.0
    %v8709 = vand.u32 %v8671, 4294901760
    %8710 = vmatprep.subr.mxu0 %v8709
    %v8711 = vand.u32 %v8668, 4294901760
    %8712 = vmatpush1.msra.mxu0 %v8711
    %8713 = vmatprep.subr.mxu0 0.0
    %8714 = vmatpush2.msra.mxu0 0.0
    %8715 = vmatprep.subr.mxu0 0.0
    %8716 = vmatpush2.msra.mxu0 0.0
    %8717 = vmatprep.subr.mxu0 0.0
    %8718 = vmatpush2.msra.mxu0 0.0
    %8719 = vmatprep.subr.mxu0 0.0
    %8720 = vmatpush2.msra.mxu0 0.0
    %8721 = vmatprep.subr.mxu0 0.0
    %8722 = vmatpush2.msra.mxu0 0.0
    %8723 = vmatprep.subr.mxu0 0.0
    %8724 = vmatpush2.msra.mxu0 0.0
    %8725 = vmatprep.subr.mxu0 0.0
    %8726 = vmatpush2.msra.mxu0 0.0
    %8727 = vmatprep.subr.mxu0 0.0
    %8728 = vmatpush2.msra.mxu0 0.0
    %8729 = vmatprep.subr.mxu0 0.0
    %8730 = vmatpush2.msra.mxu0 0.0
    %8731 = vmatprep.subr.mxu0 0.0
    %8732 = vmatpush2.msra.mxu0 0.0
    %8733 = vmatprep.subr.mxu0 0.0
    %8734 = vmatpush2.msra.mxu0 0.0
    %8735 = vmatprep.subr.mxu0 0.0
    %8736 = vmatpush2.msra.mxu0 0.0
    %8737 = vmatprep.subr.mxu0 0.0
    %8738 = vmatpush2.msra.mxu0 0.0
    %8739 = vmatprep.subr.mxu0 0.0
    %8740 = vmatpush2.msra.mxu0 0.0
    %8741 = vmatprep.subr.mxu0 0.0
    %8742 = vmatpush2.msra.mxu0 0.0
    %8743 = vmatprep.subr.mxu0 0.0
    %8744 = vmatpush2.msra.mxu0 0.0
    %8745 = vmatprep.mubr.f32.mxu0 0.0
    %v8746 = vand.u32 %v8665, 4294901760
    %v8747 = vsub.f32 %v8665, %v8746
    %v8748 = vand.u32 %v8747, 4294901760
    %v8749 = vsub.f32 %v8747, %v8748
    %v8750 = vand.u32 %v8749, 4294901760
    %8751 = vmatmul.mubr.f32.gmra.mxu0 %v8750
    %v8752 = vpop.f32.mrf.mxu0
    %v8753 = vadd.f32 0.0, %v8752
    %v8754 = vpop.f32.mrf.mxu0
    %v8755 = vadd.f32 0.0, %v8754
    %8756 = vdwg.mxu0
    %8757 = vmatprep.subr.mxu0 0.0
    %8758 = vmatpush1.msra.mxu0 0.0
    %8759 = vmatprep.subr.mxu0 0.0
    %8760 = vmatpush1.msra.mxu0 0.0
    %8761 = vmatprep.subr.mxu0 0.0
    %8762 = vmatpush1.msra.mxu0 0.0
    %8763 = vmatprep.subr.mxu0 0.0
    %8764 = vmatpush1.msra.mxu0 0.0
    %8765 = vmatprep.subr.mxu0 0.0
    %8766 = vmatpush1.msra.mxu0 0.0
    %8767 = vmatprep.subr.mxu0 0.0
    %8768 = vmatpush1.msra.mxu0 0.0
    %8769 = vmatprep.subr.mxu0 0.0
    %8770 = vmatpush1.msra.mxu0 0.0
    %8771 = vmatprep.subr.mxu0 0.0
    %8772 = vmatpush1.msra.mxu0 0.0
    %8773 = vmatprep.subr.mxu0 0.0
    %8774 = vmatpush1.msra.mxu0 0.0
    %8775 = vmatprep.subr.mxu0 0.0
    %8776 = vmatpush1.msra.mxu0 0.0
    %8777 = vmatprep.subr.mxu0 0.0
    %8778 = vmatpush1.msra.mxu0 0.0
    %8779 = vmatprep.subr.mxu0 0.0
    %8780 = vmatpush1.msra.mxu0 0.0
    %8781 = vmatprep.subr.mxu0 0.0
    %8782 = vmatpush1.msra.mxu0 0.0
    %8783 = vmatprep.subr.mxu0 0.0
    %8784 = vmatpush1.msra.mxu0 0.0
    %8785 = vmatprep.subr.mxu0 0.0
    %8786 = vmatpush1.msra.mxu0 0.0
    %v8787 = vand.u32 %v8671, 4294901760
    %v8788 = vsub.f32 %v8671, %v8787
    %v8789 = vand.u32 %v8788, 4294901760
    %v8790 = vsub.f32 %v8788, %v8789
    %v8791 = vand.u32 %v8790, 4294901760
    %8792 = vmatprep.subr.mxu0 %v8791
    %v8793 = vand.u32 %v8668, 4294901760
    %v8794 = vsub.f32 %v8668, %v8793
    %v8795 = vand.u32 %v8794, 4294901760
    %v8796 = vsub.f32 %v8794, %v8795
    %v8797 = vand.u32 %v8796, 4294901760
    %8798 = vmatpush1.msra.mxu0 %v8797
    %8799 = vmatprep.subr.mxu0 0.0
    %8800 = vmatpush2.msra.mxu0 0.0
    %8801 = vmatprep.subr.mxu0 0.0
    %8802 = vmatpush2.msra.mxu0 0.0
    %8803 = vmatprep.subr.mxu0 0.0
    %8804 = vmatpush2.msra.mxu0 0.0
    %8805 = vmatprep.subr.mxu0 0.0
    %8806 = vmatpush2.msra.mxu0 0.0
    %8807 = vmatprep.subr.mxu0 0.0
    %8808 = vmatpush2.msra.mxu0 0.0
    %8809 = vmatprep.subr.mxu0 0.0
    %8810 = vmatpush2.msra.mxu0 0.0
    %8811 = vmatprep.subr.mxu0 0.0
    %8812 = vmatpush2.msra.mxu0 0.0
    %8813 = vmatprep.subr.mxu0 0.0
    %8814 = vmatpush2.msra.mxu0 0.0
    %8815 = vmatprep.subr.mxu0 0.0
    %8816 = vmatpush2.msra.mxu0 0.0
    %8817 = vmatprep.subr.mxu0 0.0
    %8818 = vmatpush2.msra.mxu0 0.0
    %8819 = vmatprep.subr.mxu0 0.0
    %8820 = vmatpush2.msra.mxu0 0.0
    %8821 = vmatprep.subr.mxu0 0.0
    %8822 = vmatpush2.msra.mxu0 0.0
    %8823 = vmatprep.subr.mxu0 0.0
    %8824 = vmatpush2.msra.mxu0 0.0
    %8825 = vmatprep.subr.mxu0 0.0
    %8826 = vmatpush2.msra.mxu0 0.0
    %8827 = vmatprep.subr.mxu0 0.0
    %8828 = vmatpush2.msra.mxu0 0.0
    %8829 = vmatprep.subr.mxu0 0.0
    %8830 = vmatpush2.msra.mxu0 0.0
    %8831 = vmatprep.mubr.f32.mxu0 0.0
    %v8832 = vand.u32 %v8665, 4294901760
    %8833 = vmatmul.mubr.f32.gmra.mxu0 %v8832
    %v8834 = vpop.f32.mrf.mxu0
    %v8835 = vadd.f32 %v8753, %v8834
    %v8836 = vpop.f32.mrf.mxu0
    %v8837 = vadd.f32 %v8755, %v8836
    %8838 = vdwg.mxu0
    %8839 = vmatprep.subr.mxu0 0.0
    %8840 = vmatpush1.msra.mxu0 0.0
    %8841 = vmatprep.subr.mxu0 0.0
    %8842 = vmatpush1.msra.mxu0 0.0
    %8843 = vmatprep.subr.mxu0 0.0
    %8844 = vmatpush1.msra.mxu0 0.0
    %8845 = vmatprep.subr.mxu0 0.0
    %8846 = vmatpush1.msra.mxu0 0.0
    %8847 = vmatprep.subr.mxu0 0.0
    %8848 = vmatpush1.msra.mxu0 0.0
    %8849 = vmatprep.subr.mxu0 0.0
    %8850 = vmatpush1.msra.mxu0 0.0
    %8851 = vmatprep.subr.mxu0 0.0
    %8852 = vmatpush1.msra.mxu0 0.0
    %8853 = vmatprep.subr.mxu0 0.0
    %8854 = vmatpush1.msra.mxu0 0.0
    %8855 = vmatprep.subr.mxu0 0.0
    %8856 = vmatpush1.msra.mxu0 0.0
    %8857 = vmatprep.subr.mxu0 0.0
    %8858 = vmatpush1.msra.mxu0 0.0
    %8859 = vmatprep.subr.mxu0 0.0
    %8860 = vmatpush1.msra.mxu0 0.0
    %8861 = vmatprep.subr.mxu0 0.0
    %8862 = vmatpush1.msra.mxu0 0.0
    %8863 = vmatprep.subr.mxu0 0.0
    %8864 = vmatpush1.msra.mxu0 0.0
    %8865 = vmatprep.subr.mxu0 0.0
    %8866 = vmatpush1.msra.mxu0 0.0
    %8867 = vmatprep.subr.mxu0 0.0
    %8868 = vmatpush1.msra.mxu0 0.0
    %v8869 = vand.u32 %v8671, 4294901760
    %v8870 = vsub.f32 %v8671, %v8869
    %8871 = vmatprep.subr.mxu0 %v8870
    %v8872 = vand.u32 %v8668, 4294901760
    %v8873 = vsub.f32 %v8668, %v8872
    %8874 = vmatpush1.msra.mxu0 %v8873
    %8875 = vmatprep.subr.mxu0 0.0
    %8876 = vmatpush2.msra.mxu0 0.0
    %8877 = vmatprep.subr.mxu0 0.0
    %8878 = vmatpush2.msra.mxu0 0.0
    %8879 = vmatprep.subr.mxu0 0.0
    %8880 = vmatpush2.msra.mxu0 0.0
    %8881 = vmatprep.subr.mxu0 0.0
    %8882 = vmatpush2.msra.mxu0 0.0
    %8883 = vmatprep.subr.mxu0 0.0
    %8884 = vmatpush2.msra.mxu0 0.0
    %8885 = vmatprep.subr.mxu0 0.0
    %8886 = vmatpush2.msra.mxu0 0.0
    %8887 = vmatprep.subr.mxu0 0.0
    %8888 = vmatpush2.msra.mxu0 0.0
    %8889 = vmatprep.subr.mxu0 0.0
    %8890 = vmatpush2.msra.mxu0 0.0
    %8891 = vmatprep.subr.mxu0 0.0
    %8892 = vmatpush2.msra.mxu0 0.0
    %8893 = vmatprep.subr.mxu0 0.0
    %8894 = vmatpush2.msra.mxu0 0.0
    %8895 = vmatprep.subr.mxu0 0.0
    %8896 = vmatpush2.msra.mxu0 0.0
    %8897 = vmatprep.subr.mxu0 0.0
    %8898 = vmatpush2.msra.mxu0 0.0
    %8899 = vmatprep.subr.mxu0 0.0
    %8900 = vmatpush2.msra.mxu0 0.0
    %8901 = vmatprep.subr.mxu0 0.0
    %8902 = vmatpush2.msra.mxu0 0.0
    %8903 = vmatprep.subr.mxu0 0.0
    %8904 = vmatpush2.msra.mxu0 0.0
    %8905 = vmatprep.subr.mxu0 0.0
    %8906 = vmatpush2.msra.mxu0 0.0
    %8907 = vmatprep.mubr.f32.mxu0 0.0
    %v8908 = vand.u32 %v8665, 4294901760
    %v8909 = vsub.f32 %v8665, %v8908
    %8910 = vmatmul.mubr.f32.gmra.mxu0 %v8909
    %v8911 = vpop.f32.mrf.mxu0
    %v8912 = vadd.f32 %v8835, %v8911
    %v8913 = vpop.f32.mrf.mxu0
    %v8914 = vadd.f32 %v8837, %v8913
    %8915 = vdwg.mxu0
    %8916 = vmatprep.subr.mxu0 0.0
    %8917 = vmatpush1.msra.mxu0 0.0
    %8918 = vmatprep.subr.mxu0 0.0
    %8919 = vmatpush1.msra.mxu0 0.0
    %8920 = vmatprep.subr.mxu0 0.0
    %8921 = vmatpush1.msra.mxu0 0.0
    %8922 = vmatprep.subr.mxu0 0.0
    %8923 = vmatpush1.msra.mxu0 0.0
    %8924 = vmatprep.subr.mxu0 0.0
    %8925 = vmatpush1.msra.mxu0 0.0
    %8926 = vmatprep.subr.mxu0 0.0
    %8927 = vmatpush1.msra.mxu0 0.0
    %8928 = vmatprep.subr.mxu0 0.0
    %8929 = vmatpush1.msra.mxu0 0.0
    %8930 = vmatprep.subr.mxu0 0.0
    %8931 = vmatpush1.msra.mxu0 0.0
    %8932 = vmatprep.subr.mxu0 0.0
    %8933 = vmatpush1.msra.mxu0 0.0
    %8934 = vmatprep.subr.mxu0 0.0
    %8935 = vmatpush1.msra.mxu0 0.0
    %8936 = vmatprep.subr.mxu0 0.0
    %8937 = vmatpush1.msra.mxu0 0.0
    %8938 = vmatprep.subr.mxu0 0.0
    %8939 = vmatpush1.msra.mxu0 0.0
    %8940 = vmatprep.subr.mxu0 0.0
    %8941 = vmatpush1.msra.mxu0 0.0
    %8942 = vmatprep.subr.mxu0 0.0
    %8943 = vmatpush1.msra.mxu0 0.0
    %8944 = vmatprep.subr.mxu0 0.0
    %8945 = vmatpush1.msra.mxu0 0.0
    %v8946 = vand.u32 %v8671, 4294901760
    %8947 = vmatprep.subr.mxu0 %v8946
    %v8948 = vand.u32 %v8668, 4294901760
    %8949 = vmatpush1.msra.mxu0 %v8948
    %8950 = vmatprep.subr.mxu0 0.0
    %8951 = vmatpush2.msra.mxu0 0.0
    %8952 = vmatprep.subr.mxu0 0.0
    %8953 = vmatpush2.msra.mxu0 0.0
    %8954 = vmatprep.subr.mxu0 0.0
    %8955 = vmatpush2.msra.mxu0 0.0
    %8956 = vmatprep.subr.mxu0 0.0
    %8957 = vmatpush2.msra.mxu0 0.0
    %8958 = vmatprep.subr.mxu0 0.0
    %8959 = vmatpush2.msra.mxu0 0.0
    %8960 = vmatprep.subr.mxu0 0.0
    %8961 = vmatpush2.msra.mxu0 0.0
    %8962 = vmatprep.subr.mxu0 0.0
    %8963 = vmatpush2.msra.mxu0 0.0
    %8964 = vmatprep.subr.mxu0 0.0
    %8965 = vmatpush2.msra.mxu0 0.0
    %8966 = vmatprep.subr.mxu0 0.0
    %8967 = vmatpush2.msra.mxu0 0.0
    %8968 = vmatprep.subr.mxu0 0.0
    %8969 = vmatpush2.msra.mxu0 0.0
    %8970 = vmatprep.subr.mxu0 0.0
    %8971 = vmatpush2.msra.mxu0 0.0
    %8972 = vmatprep.subr.mxu0 0.0
    %8973 = vmatpush2.msra.mxu0 0.0
    %8974 = vmatprep.subr.mxu0 0.0
    %8975 = vmatpush2.msra.mxu0 0.0
    %8976 = vmatprep.subr.mxu0 0.0
    %8977 = vmatpush2.msra.mxu0 0.0
    %8978 = vmatprep.subr.mxu0 0.0
    %8979 = vmatpush2.msra.mxu0 0.0
    %8980 = vmatprep.subr.mxu0 0.0
    %8981 = vmatpush2.msra.mxu0 0.0
    %8982 = vmatprep.mubr.f32.mxu0 0.0
    %v8983 = vand.u32 %v8665, 4294901760
    %v8984 = vsub.f32 %v8665, %v8983
    %v8985 = vand.u32 %v8984, 4294901760
    %8986 = vmatmul.mubr.f32.gmra.mxu0 %v8985
    %v8987 = vpop.f32.mrf.mxu0
    %v8988 = vadd.f32 %v8912, %v8987
    %v8989 = vpop.f32.mrf.mxu0
    %v8990 = vadd.f32 %v8914, %v8989
    %8991 = vdwg.mxu0
    %8992 = vmatprep.subr.mxu0 0.0
    %8993 = vmatpush1.msra.mxu0 0.0
    %8994 = vmatprep.subr.mxu0 0.0
    %8995 = vmatpush1.msra.mxu0 0.0
    %8996 = vmatprep.subr.mxu0 0.0
    %8997 = vmatpush1.msra.mxu0 0.0
    %8998 = vmatprep.subr.mxu0 0.0
    %8999 = vmatpush1.msra.mxu0 0.0
    %9000 = vmatprep.subr.mxu0 0.0
    %9001 = vmatpush1.msra.mxu0 0.0
    %9002 = vmatprep.subr.mxu0 0.0
    %9003 = vmatpush1.msra.mxu0 0.0
    %9004 = vmatprep.subr.mxu0 0.0
    %9005 = vmatpush1.msra.mxu0 0.0
    %9006 = vmatprep.subr.mxu0 0.0
    %9007 = vmatpush1.msra.mxu0 0.0
    %9008 = vmatprep.subr.mxu0 0.0
    %9009 = vmatpush1.msra.mxu0 0.0
    %9010 = vmatprep.subr.mxu0 0.0
    %9011 = vmatpush1.msra.mxu0 0.0
    %9012 = vmatprep.subr.mxu0 0.0
    %9013 = vmatpush1.msra.mxu0 0.0
    %9014 = vmatprep.subr.mxu0 0.0
    %9015 = vmatpush1.msra.mxu0 0.0
    %9016 = vmatprep.subr.mxu0 0.0
    %9017 = vmatpush1.msra.mxu0 0.0
    %9018 = vmatprep.subr.mxu0 0.0
    %9019 = vmatpush1.msra.mxu0 0.0
    %9020 = vmatprep.subr.mxu0 0.0
    %9021 = vmatpush1.msra.mxu0 0.0
    %v9022 = vand.u32 %v8671, 4294901760
    %v9023 = vsub.f32 %v8671, %v9022
    %v9024 = vand.u32 %v9023, 4294901760
    %9025 = vmatprep.subr.mxu0 %v9024
    %v9026 = vand.u32 %v8668, 4294901760
    %v9027 = vsub.f32 %v8668, %v9026
    %v9028 = vand.u32 %v9027, 4294901760
    %9029 = vmatpush1.msra.mxu0 %v9028
    %9030 = vmatprep.subr.mxu0 0.0
    %9031 = vmatpush2.msra.mxu0 0.0
    %9032 = vmatprep.subr.mxu0 0.0
    %9033 = vmatpush2.msra.mxu0 0.0
    %9034 = vmatprep.subr.mxu0 0.0
    %9035 = vmatpush2.msra.mxu0 0.0
    %9036 = vmatprep.subr.mxu0 0.0
    %9037 = vmatpush2.msra.mxu0 0.0
    %9038 = vmatprep.subr.mxu0 0.0
    %9039 = vmatpush2.msra.mxu0 0.0
    %9040 = vmatprep.subr.mxu0 0.0
    %9041 = vmatpush2.msra.mxu0 0.0
    %9042 = vmatprep.subr.mxu0 0.0
    %9043 = vmatpush2.msra.mxu0 0.0
    %9044 = vmatprep.subr.mxu0 0.0
    %9045 = vmatpush2.msra.mxu0 0.0
    %9046 = vmatprep.subr.mxu0 0.0
    %9047 = vmatpush2.msra.mxu0 0.0
    %9048 = vmatprep.subr.mxu0 0.0
    %9049 = vmatpush2.msra.mxu0 0.0
    %9050 = vmatprep.subr.mxu0 0.0
    %9051 = vmatpush2.msra.mxu0 0.0
    %9052 = vmatprep.subr.mxu0 0.0
    %9053 = vmatpush2.msra.mxu0 0.0
    %9054 = vmatprep.subr.mxu0 0.0
    %9055 = vmatpush2.msra.mxu0 0.0
    %9056 = vmatprep.subr.mxu0 0.0
    %9057 = vmatpush2.msra.mxu0 0.0
    %9058 = vmatprep.subr.mxu0 0.0
    %9059 = vmatpush2.msra.mxu0 0.0
    %9060 = vmatprep.subr.mxu0 0.0
    %9061 = vmatpush2.msra.mxu0 0.0
    %9062 = vmatprep.mubr.f32.mxu0 0.0
    %v9063 = vand.u32 %v8665, 4294901760
    %9064 = vmatmul.mubr.f32.gmra.mxu0 %v9063
    %v9065 = vpop.f32.mrf.mxu0
    %v9066 = vadd.f32 %v8988, %v9065
    %v9067 = vpop.f32.mrf.mxu0
    %v9068 = vadd.f32 %v8990, %v9067
    %9069 = vdwg.mxu0
    %9070 = vmatprep.subr.mxu0 0.0
    %9071 = vmatpush1.msra.mxu0 0.0
    %9072 = vmatprep.subr.mxu0 0.0
    %9073 = vmatpush1.msra.mxu0 0.0
    %9074 = vmatprep.subr.mxu0 0.0
    %9075 = vmatpush1.msra.mxu0 0.0
    %9076 = vmatprep.subr.mxu0 0.0
    %9077 = vmatpush1.msra.mxu0 0.0
    %9078 = vmatprep.subr.mxu0 0.0
    %9079 = vmatpush1.msra.mxu0 0.0
    %9080 = vmatprep.subr.mxu0 0.0
    %9081 = vmatpush1.msra.mxu0 0.0
    %9082 = vmatprep.subr.mxu0 0.0
    %9083 = vmatpush1.msra.mxu0 0.0
    %9084 = vmatprep.subr.mxu0 0.0
    %9085 = vmatpush1.msra.mxu0 0.0
    %9086 = vmatprep.subr.mxu0 0.0
    %9087 = vmatpush1.msra.mxu0 0.0
    %9088 = vmatprep.subr.mxu0 0.0
    %9089 = vmatpush1.msra.mxu0 0.0
    %9090 = vmatprep.subr.mxu0 0.0
    %9091 = vmatpush1.msra.mxu0 0.0
    %9092 = vmatprep.subr.mxu0 0.0
    %9093 = vmatpush1.msra.mxu0 0.0
    %9094 = vmatprep.subr.mxu0 0.0
    %9095 = vmatpush1.msra.mxu0 0.0
    %9096 = vmatprep.subr.mxu0 0.0
    %9097 = vmatpush1.msra.mxu0 0.0
    %9098 = vmatprep.subr.mxu0 0.0
    %9099 = vmatpush1.msra.mxu0 0.0
    %v9100 = vand.u32 %v8671, 4294901760
    %9101 = vmatprep.subr.mxu0 %v9100
    %v9102 = vand.u32 %v8668, 4294901760
    %9103 = vmatpush1.msra.mxu0 %v9102
    %9104 = vmatprep.subr.mxu0 0.0
    %9105 = vmatpush2.msra.mxu0 0.0
    %9106 = vmatprep.subr.mxu0 0.0
    %9107 = vmatpush2.msra.mxu0 0.0
    %9108 = vmatprep.subr.mxu0 0.0
    %9109 = vmatpush2.msra.mxu0 0.0
    %9110 = vmatprep.subr.mxu0 0.0
    %9111 = vmatpush2.msra.mxu0 0.0
    %9112 = vmatprep.subr.mxu0 0.0
    %9113 = vmatpush2.msra.mxu0 0.0
    %9114 = vmatprep.subr.mxu0 0.0
    %9115 = vmatpush2.msra.mxu0 0.0
    %9116 = vmatprep.subr.mxu0 0.0
    %9117 = vmatpush2.msra.mxu0 0.0
    %9118 = vmatprep.subr.mxu0 0.0
    %9119 = vmatpush2.msra.mxu0 0.0
    %9120 = vmatprep.subr.mxu0 0.0
    %9121 = vmatpush2.msra.mxu0 0.0
    %9122 = vmatprep.subr.mxu0 0.0
    %9123 = vmatpush2.msra.mxu0 0.0
    %9124 = vmatprep.subr.mxu0 0.0
    %9125 = vmatpush2.msra.mxu0 0.0
    %9126 = vmatprep.subr.mxu0 0.0
    %9127 = vmatpush2.msra.mxu0 0.0
    %9128 = vmatprep.subr.mxu0 0.0
    %9129 = vmatpush2.msra.mxu0 0.0
    %9130 = vmatprep.subr.mxu0 0.0
    %9131 = vmatpush2.msra.mxu0 0.0
    %9132 = vmatprep.subr.mxu0 0.0
    %9133 = vmatpush2.msra.mxu0 0.0
    %9134 = vmatprep.subr.mxu0 0.0
    %9135 = vmatpush2.msra.mxu0 0.0
    %9136 = vmatprep.mubr.f32.mxu0 0.0
    %v9137 = vand.u32 %v8665, 4294901760
    %9138 = vmatmul.mubr.f32.gmra.mxu0 %v9137
    %v9139 = vpop.f32.mrf.mxu0
    %v9140 = vadd.f32 %v9066, %v9139
    %v9141 = vpop.f32.mrf.mxu0
    %v9142 = vadd.f32 %v9068, %v9141
    %9143 = vdwg.mxu0
    %9144 = vmatprep.subr.mxu0 0.0
    %9145 = vmatpush1.msra.mxu0 0.0
    %9146 = vmatprep.subr.mxu0 0.0
    %9147 = vmatpush1.msra.mxu0 0.0
    %9148 = vmatprep.subr.mxu0 0.0
    %9149 = vmatpush1.msra.mxu0 0.0
    %9150 = vmatprep.subr.mxu0 0.0
    %9151 = vmatpush1.msra.mxu0 0.0
    %9152 = vmatprep.subr.mxu0 0.0
    %9153 = vmatpush1.msra.mxu0 0.0
    %9154 = vmatprep.subr.mxu0 0.0
    %9155 = vmatpush1.msra.mxu0 0.0
    %9156 = vmatprep.subr.mxu0 0.0
    %9157 = vmatpush1.msra.mxu0 0.0
    %9158 = vmatprep.subr.mxu0 0.0
    %9159 = vmatpush1.msra.mxu0 0.0
    %9160 = vmatprep.subr.mxu0 0.0
    %9161 = vmatpush1.msra.mxu0 0.0
    %9162 = vmatprep.subr.mxu0 0.0
    %9163 = vmatpush1.msra.mxu0 0.0
    %9164 = vmatprep.subr.mxu0 0.0
    %9165 = vmatpush1.msra.mxu0 0.0
    %9166 = vmatprep.subr.mxu0 0.0
    %9167 = vmatpush1.msra.mxu0 0.0
    %9168 = vmatprep.subr.mxu0 0.0
    %9169 = vmatpush1.msra.mxu0 0.0
    %9170 = vmatprep.subr.mxu0 0.0
    %9171 = vmatpush1.msra.mxu0 0.0
    %9172 = vmatprep.subr.mxu0 0.0
    %9173 = vmatpush1.msra.mxu0 0.0
    %v9174 = vand.u32 %v8677, 4294901760
    %9175 = vmatprep.subr.mxu0 %v9174
    %v9176 = vand.u32 %v8674, 4294901760
    %9177 = vmatpush1.msra.mxu0 %v9176
    %9178 = vmatprep.subr.mxu0 0.0
    %9179 = vmatpush2.msra.mxu0 0.0
    %9180 = vmatprep.subr.mxu0 0.0
    %9181 = vmatpush2.msra.mxu0 0.0
    %9182 = vmatprep.subr.mxu0 0.0
    %9183 = vmatpush2.msra.mxu0 0.0
    %9184 = vmatprep.subr.mxu0 0.0
    %9185 = vmatpush2.msra.mxu0 0.0
    %9186 = vmatprep.subr.mxu0 0.0
    %9187 = vmatpush2.msra.mxu0 0.0
    %9188 = vmatprep.subr.mxu0 0.0
    %9189 = vmatpush2.msra.mxu0 0.0
    %9190 = vmatprep.subr.mxu0 0.0
    %9191 = vmatpush2.msra.mxu0 0.0
    %9192 = vmatprep.subr.mxu0 0.0
    %9193 = vmatpush2.msra.mxu0 0.0
    %9194 = vmatprep.subr.mxu0 0.0
    %9195 = vmatpush2.msra.mxu0 0.0
    %9196 = vmatprep.subr.mxu0 0.0
    %9197 = vmatpush2.msra.mxu0 0.0
    %9198 = vmatprep.subr.mxu0 0.0
    %9199 = vmatpush2.msra.mxu0 0.0
    %9200 = vmatprep.subr.mxu0 0.0
    %9201 = vmatpush2.msra.mxu0 0.0
    %9202 = vmatprep.subr.mxu0 0.0
    %9203 = vmatpush2.msra.mxu0 0.0
    %9204 = vmatprep.subr.mxu0 0.0
    %9205 = vmatpush2.msra.mxu0 0.0
    %9206 = vmatprep.subr.mxu0 0.0
    %9207 = vmatpush2.msra.mxu0 0.0
    %9208 = vmatprep.subr.mxu0 0.0
    %9209 = vmatpush2.msra.mxu0 0.0
    %9210 = vmatprep.mubr.f32.mxu0 0.0
    %v9211 = vand.u32 %v8665, 4294901760
    %v9212 = vsub.f32 %v8665, %v9211
    %v9213 = vand.u32 %v9212, 4294901760
    %v9214 = vsub.f32 %v9212, %v9213
    %v9215 = vand.u32 %v9214, 4294901760
    %9216 = vmatmul.mubr.f32.gmra.mxu0 %v9215
    %v9217 = vpop.f32.mrf.mxu0
    %v9218 = vadd.f32 0.0, %v9217
    %v9219 = vpop.f32.mrf.mxu0
    %v9220 = vadd.f32 0.0, %v9219
    %9221 = vdwg.mxu0
    %9222 = vmatprep.subr.mxu0 0.0
    %9223 = vmatpush1.msra.mxu0 0.0
    %9224 = vmatprep.subr.mxu0 0.0
    %9225 = vmatpush1.msra.mxu0 0.0
    %9226 = vmatprep.subr.mxu0 0.0
    %9227 = vmatpush1.msra.mxu0 0.0
    %9228 = vmatprep.subr.mxu0 0.0
    %9229 = vmatpush1.msra.mxu0 0.0
    %9230 = vmatprep.subr.mxu0 0.0
    %9231 = vmatpush1.msra.mxu0 0.0
    %9232 = vmatprep.subr.mxu0 0.0
    %9233 = vmatpush1.msra.mxu0 0.0
    %9234 = vmatprep.subr.mxu0 0.0
    %9235 = vmatpush1.msra.mxu0 0.0
    %9236 = vmatprep.subr.mxu0 0.0
    %9237 = vmatpush1.msra.mxu0 0.0
    %9238 = vmatprep.subr.mxu0 0.0
    %9239 = vmatpush1.msra.mxu0 0.0
    %9240 = vmatprep.subr.mxu0 0.0
    %9241 = vmatpush1.msra.mxu0 0.0
    %9242 = vmatprep.subr.mxu0 0.0
    %9243 = vmatpush1.msra.mxu0 0.0
    %9244 = vmatprep.subr.mxu0 0.0
    %9245 = vmatpush1.msra.mxu0 0.0
    %9246 = vmatprep.subr.mxu0 0.0
    %9247 = vmatpush1.msra.mxu0 0.0
    %9248 = vmatprep.subr.mxu0 0.0
    %9249 = vmatpush1.msra.mxu0 0.0
    %9250 = vmatprep.subr.mxu0 0.0
    %9251 = vmatpush1.msra.mxu0 0.0
    %v9252 = vand.u32 %v8677, 4294901760
    %v9253 = vsub.f32 %v8677, %v9252
    %v9254 = vand.u32 %v9253, 4294901760
    %v9255 = vsub.f32 %v9253, %v9254
    %v9256 = vand.u32 %v9255, 4294901760
    %9257 = vmatprep.subr.mxu0 %v9256
    %v9258 = vand.u32 %v8674, 4294901760
    %v9259 = vsub.f32 %v8674, %v9258
    %v9260 = vand.u32 %v9259, 4294901760
    %v9261 = vsub.f32 %v9259, %v9260
    %v9262 = vand.u32 %v9261, 4294901760
    %9263 = vmatpush1.msra.mxu0 %v9262
    %9264 = vmatprep.subr.mxu0 0.0
    %9265 = vmatpush2.msra.mxu0 0.0
    %9266 = vmatprep.subr.mxu0 0.0
    %9267 = vmatpush2.msra.mxu0 0.0
    %9268 = vmatprep.subr.mxu0 0.0
    %9269 = vmatpush2.msra.mxu0 0.0
    %9270 = vmatprep.subr.mxu0 0.0
    %9271 = vmatpush2.msra.mxu0 0.0
    %9272 = vmatprep.subr.mxu0 0.0
    %9273 = vmatpush2.msra.mxu0 0.0
    %9274 = vmatprep.subr.mxu0 0.0
    %9275 = vmatpush2.msra.mxu0 0.0
    %9276 = vmatprep.subr.mxu0 0.0
    %9277 = vmatpush2.msra.mxu0 0.0
    %9278 = vmatprep.subr.mxu0 0.0
    %9279 = vmatpush2.msra.mxu0 0.0
    %9280 = vmatprep.subr.mxu0 0.0
    %9281 = vmatpush2.msra.mxu0 0.0
    %9282 = vmatprep.subr.mxu0 0.0
    %9283 = vmatpush2.msra.mxu0 0.0
    %9284 = vmatprep.subr.mxu0 0.0
    %9285 = vmatpush2.msra.mxu0 0.0
    %9286 = vmatprep.subr.mxu0 0.0
    %9287 = vmatpush2.msra.mxu0 0.0
    %9288 = vmatprep.subr.mxu0 0.0
    %9289 = vmatpush2.msra.mxu0 0.0
    %9290 = vmatprep.subr.mxu0 0.0
    %9291 = vmatpush2.msra.mxu0 0.0
    %9292 = vmatprep.subr.mxu0 0.0
    %9293 = vmatpush2.msra.mxu0 0.0
    %9294 = vmatprep.subr.mxu0 0.0
    %9295 = vmatpush2.msra.mxu0 0.0
    %9296 = vmatprep.mubr.f32.mxu0 0.0
    %v9297 = vand.u32 %v8665, 4294901760
    %9298 = vmatmul.mubr.f32.gmra.mxu0 %v9297
    %v9299 = vpop.f32.mrf.mxu0
    %v9300 = vadd.f32 %v9218, %v9299
    %v9301 = vpop.f32.mrf.mxu0
    %v9302 = vadd.f32 %v9220, %v9301
    %9303 = vdwg.mxu0
    %9304 = vmatprep.subr.mxu0 0.0
    %9305 = vmatpush1.msra.mxu0 0.0
    %9306 = vmatprep.subr.mxu0 0.0
    %9307 = vmatpush1.msra.mxu0 0.0
    %9308 = vmatprep.subr.mxu0 0.0
    %9309 = vmatpush1.msra.mxu0 0.0
    %9310 = vmatprep.subr.mxu0 0.0
    %9311 = vmatpush1.msra.mxu0 0.0
    %9312 = vmatprep.subr.mxu0 0.0
    %9313 = vmatpush1.msra.mxu0 0.0
    %9314 = vmatprep.subr.mxu0 0.0
    %9315 = vmatpush1.msra.mxu0 0.0
    %9316 = vmatprep.subr.mxu0 0.0
    %9317 = vmatpush1.msra.mxu0 0.0
    %9318 = vmatprep.subr.mxu0 0.0
    %9319 = vmatpush1.msra.mxu0 0.0
    %9320 = vmatprep.subr.mxu0 0.0
    %9321 = vmatpush1.msra.mxu0 0.0
    %9322 = vmatprep.subr.mxu0 0.0
    %9323 = vmatpush1.msra.mxu0 0.0
    %9324 = vmatprep.subr.mxu0 0.0
    %9325 = vmatpush1.msra.mxu0 0.0
    %9326 = vmatprep.subr.mxu0 0.0
    %9327 = vmatpush1.msra.mxu0 0.0
    %9328 = vmatprep.subr.mxu0 0.0
    %9329 = vmatpush1.msra.mxu0 0.0
    %9330 = vmatprep.subr.mxu0 0.0
    %9331 = vmatpush1.msra.mxu0 0.0
    %9332 = vmatprep.subr.mxu0 0.0
    %9333 = vmatpush1.msra.mxu0 0.0
    %v9334 = vand.u32 %v8677, 4294901760
    %v9335 = vsub.f32 %v8677, %v9334
    %9336 = vmatprep.subr.mxu0 %v9335
    %v9337 = vand.u32 %v8674, 4294901760
    %v9338 = vsub.f32 %v8674, %v9337
    %9339 = vmatpush1.msra.mxu0 %v9338
    %9340 = vmatprep.subr.mxu0 0.0
    %9341 = vmatpush2.msra.mxu0 0.0
    %9342 = vmatprep.subr.mxu0 0.0
    %9343 = vmatpush2.msra.mxu0 0.0
    %9344 = vmatprep.subr.mxu0 0.0
    %9345 = vmatpush2.msra.mxu0 0.0
    %9346 = vmatprep.subr.mxu0 0.0
    %9347 = vmatpush2.msra.mxu0 0.0
    %9348 = vmatprep.subr.mxu0 0.0
    %9349 = vmatpush2.msra.mxu0 0.0
    %9350 = vmatprep.subr.mxu0 0.0
    %9351 = vmatpush2.msra.mxu0 0.0
    %9352 = vmatprep.subr.mxu0 0.0
    %9353 = vmatpush2.msra.mxu0 0.0
    %9354 = vmatprep.subr.mxu0 0.0
    %9355 = vmatpush2.msra.mxu0 0.0
    %9356 = vmatprep.subr.mxu0 0.0
    %9357 = vmatpush2.msra.mxu0 0.0
    %9358 = vmatprep.subr.mxu0 0.0
    %9359 = vmatpush2.msra.mxu0 0.0
    %9360 = vmatprep.subr.mxu0 0.0
    %9361 = vmatpush2.msra.mxu0 0.0
    %9362 = vmatprep.subr.mxu0 0.0
    %9363 = vmatpush2.msra.mxu0 0.0
    %9364 = vmatprep.subr.mxu0 0.0
    %9365 = vmatpush2.msra.mxu0 0.0
    %9366 = vmatprep.subr.mxu0 0.0
    %9367 = vmatpush2.msra.mxu0 0.0
    %9368 = vmatprep.subr.mxu0 0.0
    %9369 = vmatpush2.msra.mxu0 0.0
    %9370 = vmatprep.subr.mxu0 0.0
    %9371 = vmatpush2.msra.mxu0 0.0
    %9372 = vmatprep.mubr.f32.mxu0 0.0
    %v9373 = vand.u32 %v8665, 4294901760
    %v9374 = vsub.f32 %v8665, %v9373
    %9375 = vmatmul.mubr.f32.gmra.mxu0 %v9374
    %v9376 = vpop.f32.mrf.mxu0
    %v9377 = vadd.f32 %v9300, %v9376
    %v9378 = vpop.f32.mrf.mxu0
    %v9379 = vadd.f32 %v9302, %v9378
    %9380 = vdwg.mxu0
    %9381 = vmatprep.subr.mxu0 0.0
    %9382 = vmatpush1.msra.mxu0 0.0
    %9383 = vmatprep.subr.mxu0 0.0
    %9384 = vmatpush1.msra.mxu0 0.0
    %9385 = vmatprep.subr.mxu0 0.0
    %9386 = vmatpush1.msra.mxu0 0.0
    %9387 = vmatprep.subr.mxu0 0.0
    %9388 = vmatpush1.msra.mxu0 0.0
    %9389 = vmatprep.subr.mxu0 0.0
    %9390 = vmatpush1.msra.mxu0 0.0
    %9391 = vmatprep.subr.mxu0 0.0
    %9392 = vmatpush1.msra.mxu0 0.0
    %9393 = vmatprep.subr.mxu0 0.0
    %9394 = vmatpush1.msra.mxu0 0.0
    %9395 = vmatprep.subr.mxu0 0.0
    %9396 = vmatpush1.msra.mxu0 0.0
    %9397 = vmatprep.subr.mxu0 0.0
    %9398 = vmatpush1.msra.mxu0 0.0
    %9399 = vmatprep.subr.mxu0 0.0
    %9400 = vmatpush1.msra.mxu0 0.0
    %9401 = vmatprep.subr.mxu0 0.0
    %9402 = vmatpush1.msra.mxu0 0.0
    %9403 = vmatprep.subr.mxu0 0.0
    %9404 = vmatpush1.msra.mxu0 0.0
    %9405 = vmatprep.subr.mxu0 0.0
    %9406 = vmatpush1.msra.mxu0 0.0
    %9407 = vmatprep.subr.mxu0 0.0
    %9408 = vmatpush1.msra.mxu0 0.0
    %9409 = vmatprep.subr.mxu0 0.0
    %9410 = vmatpush1.msra.mxu0 0.0
    %v9411 = vand.u32 %v8677, 4294901760
    %9412 = vmatprep.subr.mxu0 %v9411
    %v9413 = vand.u32 %v8674, 4294901760
    %9414 = vmatpush1.msra.mxu0 %v9413
    %9415 = vmatprep.subr.mxu0 0.0
    %9416 = vmatpush2.msra.mxu0 0.0
    %9417 = vmatprep.subr.mxu0 0.0
    %9418 = vmatpush2.msra.mxu0 0.0
    %9419 = vmatprep.subr.mxu0 0.0
    %9420 = vmatpush2.msra.mxu0 0.0
    %9421 = vmatprep.subr.mxu0 0.0
    %9422 = vmatpush2.msra.mxu0 0.0
    %9423 = vmatprep.subr.mxu0 0.0
    %9424 = vmatpush2.msra.mxu0 0.0
    %9425 = vmatprep.subr.mxu0 0.0
    %9426 = vmatpush2.msra.mxu0 0.0
    %9427 = vmatprep.subr.mxu0 0.0
    %9428 = vmatpush2.msra.mxu0 0.0
    %9429 = vmatprep.subr.mxu0 0.0
    %9430 = vmatpush2.msra.mxu0 0.0
    %9431 = vmatprep.subr.mxu0 0.0
    %9432 = vmatpush2.msra.mxu0 0.0
    %9433 = vmatprep.subr.mxu0 0.0
    %9434 = vmatpush2.msra.mxu0 0.0
    %9435 = vmatprep.subr.mxu0 0.0
    %9436 = vmatpush2.msra.mxu0 0.0
    %9437 = vmatprep.subr.mxu0 0.0
    %9438 = vmatpush2.msra.mxu0 0.0
    %9439 = vmatprep.subr.mxu0 0.0
    %9440 = vmatpush2.msra.mxu0 0.0
    %9441 = vmatprep.subr.mxu0 0.0
    %9442 = vmatpush2.msra.mxu0 0.0
    %9443 = vmatprep.subr.mxu0 0.0
    %9444 = vmatpush2.msra.mxu0 0.0
    %9445 = vmatprep.subr.mxu0 0.0
    %9446 = vmatpush2.msra.mxu0 0.0
    %9447 = vmatprep.mubr.f32.mxu0 0.0
    %v9448 = vand.u32 %v8665, 4294901760
    %v9449 = vsub.f32 %v8665, %v9448
    %v9450 = vand.u32 %v9449, 4294901760
    %9451 = vmatmul.mubr.f32.gmra.mxu0 %v9450
    %v9452 = vpop.f32.mrf.mxu0
    %v9453 = vadd.f32 %v9377, %v9452
    %v9454 = vpop.f32.mrf.mxu0
    %v9455 = vadd.f32 %v9379, %v9454
    %9456 = vdwg.mxu0
    %9457 = vmatprep.subr.mxu0 0.0
    %9458 = vmatpush1.msra.mxu0 0.0
    %9459 = vmatprep.subr.mxu0 0.0
    %9460 = vmatpush1.msra.mxu0 0.0
    %9461 = vmatprep.subr.mxu0 0.0
    %9462 = vmatpush1.msra.mxu0 0.0
    %9463 = vmatprep.subr.mxu0 0.0
    %9464 = vmatpush1.msra.mxu0 0.0
    %9465 = vmatprep.subr.mxu0 0.0
    %9466 = vmatpush1.msra.mxu0 0.0
    %9467 = vmatprep.subr.mxu0 0.0
    %9468 = vmatpush1.msra.mxu0 0.0
    %9469 = vmatprep.subr.mxu0 0.0
    %9470 = vmatpush1.msra.mxu0 0.0
    %9471 = vmatprep.subr.mxu0 0.0
    %9472 = vmatpush1.msra.mxu0 0.0
    %9473 = vmatprep.subr.mxu0 0.0
    %9474 = vmatpush1.msra.mxu0 0.0
    %9475 = vmatprep.subr.mxu0 0.0
    %9476 = vmatpush1.msra.mxu0 0.0
    %9477 = vmatprep.subr.mxu0 0.0
    %9478 = vmatpush1.msra.mxu0 0.0
    %9479 = vmatprep.subr.mxu0 0.0
    %9480 = vmatpush1.msra.mxu0 0.0
    %9481 = vmatprep.subr.mxu0 0.0
    %9482 = vmatpush1.msra.mxu0 0.0
    %9483 = vmatprep.subr.mxu0 0.0
    %9484 = vmatpush1.msra.mxu0 0.0
    %9485 = vmatprep.subr.mxu0 0.0
    %9486 = vmatpush1.msra.mxu0 0.0
    %v9487 = vand.u32 %v8677, 4294901760
    %v9488 = vsub.f32 %v8677, %v9487
    %v9489 = vand.u32 %v9488, 4294901760
    %9490 = vmatprep.subr.mxu0 %v9489
    %v9491 = vand.u32 %v8674, 4294901760
    %v9492 = vsub.f32 %v8674, %v9491
    %v9493 = vand.u32 %v9492, 4294901760
    %9494 = vmatpush1.msra.mxu0 %v9493
    %9495 = vmatprep.subr.mxu0 0.0
    %9496 = vmatpush2.msra.mxu0 0.0
    %9497 = vmatprep.subr.mxu0 0.0
    %9498 = vmatpush2.msra.mxu0 0.0
    %9499 = vmatprep.subr.mxu0 0.0
    %9500 = vmatpush2.msra.mxu0 0.0
    %9501 = vmatprep.subr.mxu0 0.0
    %9502 = vmatpush2.msra.mxu0 0.0
    %9503 = vmatprep.subr.mxu0 0.0
    %9504 = vmatpush2.msra.mxu0 0.0
    %9505 = vmatprep.subr.mxu0 0.0
    %9506 = vmatpush2.msra.mxu0 0.0
    %9507 = vmatprep.subr.mxu0 0.0
    %9508 = vmatpush2.msra.mxu0 0.0
    %9509 = vmatprep.subr.mxu0 0.0
    %9510 = vmatpush2.msra.mxu0 0.0
    %9511 = vmatprep.subr.mxu0 0.0
    %9512 = vmatpush2.msra.mxu0 0.0
    %9513 = vmatprep.subr.mxu0 0.0
    %9514 = vmatpush2.msra.mxu0 0.0
    %9515 = vmatprep.subr.mxu0 0.0
    %9516 = vmatpush2.msra.mxu0 0.0
    %9517 = vmatprep.subr.mxu0 0.0
    %9518 = vmatpush2.msra.mxu0 0.0
    %9519 = vmatprep.subr.mxu0 0.0
    %9520 = vmatpush2.msra.mxu0 0.0
    %9521 = vmatprep.subr.mxu0 0.0
    %9522 = vmatpush2.msra.mxu0 0.0
    %9523 = vmatprep.subr.mxu0 0.0
    %9524 = vmatpush2.msra.mxu0 0.0
    %9525 = vmatprep.subr.mxu0 0.0
    %9526 = vmatpush2.msra.mxu0 0.0
    %9527 = vmatprep.mubr.f32.mxu0 0.0
    %v9528 = vand.u32 %v8665, 4294901760
    %9529 = vmatmul.mubr.f32.gmra.mxu0 %v9528
    %v9530 = vpop.f32.mrf.mxu0
    %v9531 = vadd.f32 %v9453, %v9530
    %v9532 = vpop.f32.mrf.mxu0
    %v9533 = vadd.f32 %v9455, %v9532
    %9534 = vdwg.mxu0
    %9535 = vmatprep.subr.mxu0 0.0
    %9536 = vmatpush1.msra.mxu0 0.0
    %9537 = vmatprep.subr.mxu0 0.0
    %9538 = vmatpush1.msra.mxu0 0.0
    %9539 = vmatprep.subr.mxu0 0.0
    %9540 = vmatpush1.msra.mxu0 0.0
    %9541 = vmatprep.subr.mxu0 0.0
    %9542 = vmatpush1.msra.mxu0 0.0
    %9543 = vmatprep.subr.mxu0 0.0
    %9544 = vmatpush1.msra.mxu0 0.0
    %9545 = vmatprep.subr.mxu0 0.0
    %9546 = vmatpush1.msra.mxu0 0.0
    %9547 = vmatprep.subr.mxu0 0.0
    %9548 = vmatpush1.msra.mxu0 0.0
    %9549 = vmatprep.subr.mxu0 0.0
    %9550 = vmatpush1.msra.mxu0 0.0
    %9551 = vmatprep.subr.mxu0 0.0
    %9552 = vmatpush1.msra.mxu0 0.0
    %9553 = vmatprep.subr.mxu0 0.0
    %9554 = vmatpush1.msra.mxu0 0.0
    %9555 = vmatprep.subr.mxu0 0.0
    %9556 = vmatpush1.msra.mxu0 0.0
    %9557 = vmatprep.subr.mxu0 0.0
    %9558 = vmatpush1.msra.mxu0 0.0
    %9559 = vmatprep.subr.mxu0 0.0
    %9560 = vmatpush1.msra.mxu0 0.0
    %9561 = vmatprep.subr.mxu0 0.0
    %9562 = vmatpush1.msra.mxu0 0.0
    %9563 = vmatprep.subr.mxu0 0.0
    %9564 = vmatpush1.msra.mxu0 0.0
    %v9565 = vand.u32 %v8677, 4294901760
    %9566 = vmatprep.subr.mxu0 %v9565
    %v9567 = vand.u32 %v8674, 4294901760
    %9568 = vmatpush1.msra.mxu0 %v9567
    %9569 = vmatprep.subr.mxu0 0.0
    %9570 = vmatpush2.msra.mxu0 0.0
    %9571 = vmatprep.subr.mxu0 0.0
    %9572 = vmatpush2.msra.mxu0 0.0
    %9573 = vmatprep.subr.mxu0 0.0
    %9574 = vmatpush2.msra.mxu0 0.0
    %9575 = vmatprep.subr.mxu0 0.0
    %9576 = vmatpush2.msra.mxu0 0.0
    %9577 = vmatprep.subr.mxu0 0.0
    %9578 = vmatpush2.msra.mxu0 0.0
    %9579 = vmatprep.subr.mxu0 0.0
    %9580 = vmatpush2.msra.mxu0 0.0
    %9581 = vmatprep.subr.mxu0 0.0
    %9582 = vmatpush2.msra.mxu0 0.0
    %9583 = vmatprep.subr.mxu0 0.0
    %9584 = vmatpush2.msra.mxu0 0.0
    %9585 = vmatprep.subr.mxu0 0.0
    %9586 = vmatpush2.msra.mxu0 0.0
    %9587 = vmatprep.subr.mxu0 0.0
    %9588 = vmatpush2.msra.mxu0 0.0
    %9589 = vmatprep.subr.mxu0 0.0
    %9590 = vmatpush2.msra.mxu0 0.0
    %9591 = vmatprep.subr.mxu0 0.0
    %9592 = vmatpush2.msra.mxu0 0.0
    %9593 = vmatprep.subr.mxu0 0.0
    %9594 = vmatpush2.msra.mxu0 0.0
    %9595 = vmatprep.subr.mxu0 0.0
    %9596 = vmatpush2.msra.mxu0 0.0
    %9597 = vmatprep.subr.mxu0 0.0
    %9598 = vmatpush2.msra.mxu0 0.0
    %9599 = vmatprep.subr.mxu0 0.0
    %9600 = vmatpush2.msra.mxu0 0.0
    %9601 = vmatprep.mubr.f32.mxu0 0.0
    %v9602 = vand.u32 %v8665, 4294901760
    %9603 = vmatmul.mubr.f32.gmra.mxu0 %v9602
    %v9604 = vpop.f32.mrf.mxu0
    %v9605 = vadd.f32 %v9531, %v9604
    %v9606 = vpop.f32.mrf.mxu0
    %v9607 = vadd.f32 %v9533, %v9606
    %9608 = vdwg.mxu0
    %v9613 = vcombine.low %v9140, %v9142
    %v9614 = vcombine.low %v9605, %v9607
    %v9616 = vunpack.c.l.s4 1983009808
    %v9617 = vunpack.c.0.s8 %v9616
    %v9618 = vlaneseq
    %v9619 = vshrl.u32 %v9618, 7
    %v9620 = vsub.s32 %v9617, %v9619
    %v9621 = vrot.slane %v9613, %v9620
    %v9623 = vunpack.c.l.s4 1983009808
    %v9624 = vunpack.c.0.s8 %v9623
    %v9625 = vlaneseq
    %v9626 = vshrl.u32 %v9625, 7
    %v9627 = vsub.s32 %v9624, %v9626
    %v9628 = vrot.slane %v9614, %v9627
    %v9629 = vcombine.low %v9621, %v9628
    %v9631 = vadd.f32 %v8194, %v9629
    %v9632 = vmul.f32 %v9631, 0.2
    %v9633 = vmax.f32 %v9631, %v9632
    %v9635 = vcombine.high %v9633, %v9633
    %v9637 = vunpack.c.l.s4 1983009808
    %v9638 = vunpack.c.0.s8 %v9637
    %v9639 = vlaneseq
    %v9640 = vshrl.u32 %v9639, 7
    %v9641 = vsub.s32 %v9638, %v9640
    %v9642 = vrot.slane %v9633, %v9641
    %v9644 = vunpack.c.l.s4 1983009808
    %v9645 = vunpack.c.0.s8 %v9644
    %v9646 = vlaneseq
    %v9647 = vshrl.u32 %v9646, 7
    %v9648 = vsub.s32 %v9645, %v9647
    %v9649 = vrot.slane %v9635, %v9648
    %v9650 = vcombine.high %v9642, %v9642
    %v9651 = vcombine.high %v9649, %v9649
    %v9656 = vpack.c.bf16 %v9642, %v9642
    %v9657 = vpack.c.bf16 %v9650, %v9650
    %v9658 = vpack.c.bf16 %v9649, %v9649
    %v9659 = vpack.c.bf16 %v9651, %v9651
    %v9660 = vld [vmem:[%s19] sm:$0x3]
    %v9661 = vld [vmem:[#allocation22] sm:$0xf]
    %v9662 = vld [vmem:[#allocation22 + $0x4] sm:$0xf]
    %v9663 = vld [vmem:[#allocation22 + $0x8] sm:$0xf]
    %v9664 = vld [vmem:[#allocation22 + $0xc] sm:$0xf]
    %v9665 = vld [vmem:[#allocation22 + $0x10] sm:$0xf]
    %v9666 = vld [vmem:[#allocation22 + $0x14] sm:$0xf]
    %v9667 = vld [vmem:[#allocation22 + $0x18] sm:$0xf]
    %v9668 = vld [vmem:[#allocation22 + $0x1c] sm:$0xf]
    %v9669 = vld [vmem:[#allocation22 + $0x20] sm:$0xf]
    %v9670 = vld [vmem:[#allocation22 + $0x24] sm:$0xf]
    %v9671 = vld [vmem:[#allocation22 + $0x28] sm:$0xf]
    %v9672 = vld [vmem:[#allocation22 + $0x2c] sm:$0xf]
    %v9673 = vld [vmem:[#allocation22 + $0x30] sm:$0xf]
    %v9674 = vld [vmem:[#allocation22 + $0x34] sm:$0xf]
    %v9675 = vld [vmem:[#allocation22 + $0x38] sm:$0xf]
    %v9676 = vld [vmem:[#allocation22 + $0x3c] sm:$0xf]
    %v9677 = vld [vmem:[#allocation22 + $0x40] sm:$0xf]
    %v9678 = vld [vmem:[#allocation22 + $0x44] sm:$0xf]
    %v9679 = vld [vmem:[#allocation22 + $0x48] sm:$0xf]
    %v9680 = vld [vmem:[#allocation22 + $0x4c] sm:$0xf]
    %v9681 = vld [vmem:[#allocation22 + $0x50] sm:$0xf]
    %v9682 = vld [vmem:[#allocation22 + $0x54] sm:$0xf]
    %v9683 = vld [vmem:[#allocation22 + $0x58] sm:$0xf]
    %v9684 = vld [vmem:[#allocation22 + $0x5c] sm:$0xf]
    %v9685 = vld [vmem:[#allocation22 + $0x60] sm:$0xf]
    %v9686 = vld [vmem:[#allocation22 + $0x64] sm:$0xf]
    %v9687 = vld [vmem:[#allocation22 + $0x68] sm:$0xf]
    %v9688 = vld [vmem:[#allocation22 + $0x6c] sm:$0xf]
    %v9689 = vld [vmem:[#allocation22 + $0x70] sm:$0xf]
    %v9690 = vld [vmem:[#allocation22 + $0x74] sm:$0xf]
    %v9691 = vld [vmem:[#allocation22 + $0x78] sm:$0xf]
    %v9692 = vld [vmem:[#allocation22 + $0x7c] sm:$0xf]
    %v9693 = vld [vmem:[#allocation22 + $0x80] sm:$0xf]
    %v9694 = vld [vmem:[#allocation22 + $0x84] sm:$0xf]
    %v9695 = vld [vmem:[#allocation22 + $0x88] sm:$0xf]
    %v9696 = vld [vmem:[#allocation22 + $0x8c] sm:$0xf]
    %v9697 = vld [vmem:[#allocation22 + $0x90] sm:$0xf]
    %v9698 = vld [vmem:[#allocation22 + $0x94] sm:$0xf]
    %v9699 = vld [vmem:[#allocation22 + $0x98] sm:$0xf]
    %v9700 = vld [vmem:[#allocation22 + $0x9c] sm:$0xf]
    %v9701 = vld [vmem:[#allocation22 + $0xa0] sm:$0xf]
    %v9702 = vld [vmem:[#allocation22 + $0xa4] sm:$0xf]
    %v9703 = vld [vmem:[#allocation22 + $0xa8] sm:$0xf]
    %v9704 = vld [vmem:[#allocation22 + $0xac] sm:$0xf]
    %v9705 = vld [vmem:[#allocation22 + $0xb0] sm:$0xf]
    %v9706 = vld [vmem:[#allocation22 + $0xb4] sm:$0xf]
    %v9707 = vld [vmem:[#allocation22 + $0xb8] sm:$0xf]
    %v9708 = vld [vmem:[#allocation22 + $0xbc] sm:$0xf]
    %v9709 = vld [vmem:[#allocation22 + $0xc0] sm:$0xf]
    %v9710 = vld [vmem:[#allocation22 + $0xc4] sm:$0xf]
    %v9711 = vld [vmem:[#allocation22 + $0xc8] sm:$0xf]
    %v9712 = vld [vmem:[#allocation22 + $0xcc] sm:$0xf]
    %v9713 = vld [vmem:[#allocation22 + $0xd0] sm:$0xf]
    %v9714 = vld [vmem:[#allocation22 + $0xd4] sm:$0xf]
    %v9715 = vld [vmem:[#allocation22 + $0xd8] sm:$0xf]
    %v9716 = vld [vmem:[#allocation22 + $0xdc] sm:$0xf]
    %v9717 = vld [vmem:[#allocation22 + $0xe0] sm:$0xf]
    %v9718 = vld [vmem:[#allocation22 + $0xe4] sm:$0xf]
    %v9719 = vld [vmem:[#allocation22 + $0xe8] sm:$0xf]
    %v9720 = vld [vmem:[#allocation22 + $0xec] sm:$0xf]
    %v9721 = vld [vmem:[#allocation22 + $0xf0] sm:$0xf]
    %v9722 = vld [vmem:[#allocation22 + $0xf4] sm:$0xf]
    %v9723 = vld [vmem:[#allocation22 + $0xf8] sm:$0xf]
    %v9724 = vld [vmem:[#allocation22 + $0xfc] sm:$0xf]
    %v9789 = vunpack.c.l.b16 %v9661
    %v9790 = vunpack.c.l.b16 %v9662
    %v9791 = vunpack.c.l.b16 %v9663
    %v9792 = vunpack.c.l.b16 %v9664
    %v9793 = vunpack.c.l.b16 %v9665
    %v9794 = vunpack.c.l.b16 %v9666
    %v9795 = vunpack.c.l.b16 %v9667
    %v9796 = vunpack.c.l.b16 %v9668
    %v9797 = vunpack.c.l.b16 %v9669
    %v9798 = vunpack.c.l.b16 %v9670
    %v9799 = vunpack.c.l.b16 %v9671
    %v9800 = vunpack.c.l.b16 %v9672
    %v9801 = vunpack.c.l.b16 %v9673
    %v9802 = vunpack.c.l.b16 %v9674
    %v9803 = vunpack.c.l.b16 %v9675
    %v9804 = vunpack.c.l.b16 %v9676
    %v9805 = vunpack.c.l.b16 %v9677
    %v9806 = vunpack.c.l.b16 %v9678
    %v9807 = vunpack.c.l.b16 %v9679
    %v9808 = vunpack.c.l.b16 %v9680
    %v9809 = vunpack.c.l.b16 %v9681
    %v9810 = vunpack.c.l.b16 %v9682
    %v9811 = vunpack.c.l.b16 %v9683
    %v9812 = vunpack.c.l.b16 %v9684
    %v9813 = vunpack.c.l.b16 %v9685
    %v9814 = vunpack.c.l.b16 %v9686
    %v9815 = vunpack.c.l.b16 %v9687
    %v9816 = vunpack.c.l.b16 %v9688
    %v9817 = vunpack.c.l.b16 %v9689
    %v9818 = vunpack.c.l.b16 %v9690
    %v9819 = vunpack.c.l.b16 %v9691
    %v9820 = vunpack.c.l.b16 %v9692
    %v9821 = vunpack.c.l.b16 %v9693
    %v9822 = vunpack.c.l.b16 %v9694
    %v9823 = vunpack.c.l.b16 %v9695
    %v9824 = vunpack.c.l.b16 %v9696
    %v9825 = vunpack.c.l.b16 %v9697
    %v9826 = vunpack.c.l.b16 %v9698
    %v9827 = vunpack.c.l.b16 %v9699
    %v9828 = vunpack.c.l.b16 %v9700
    %v9829 = vunpack.c.l.b16 %v9701
    %v9830 = vunpack.c.l.b16 %v9702
    %v9831 = vunpack.c.l.b16 %v9703
    %v9832 = vunpack.c.l.b16 %v9704
    %v9833 = vunpack.c.l.b16 %v9705
    %v9834 = vunpack.c.l.b16 %v9706
    %v9835 = vunpack.c.l.b16 %v9707
    %v9836 = vunpack.c.l.b16 %v9708
    %v9837 = vunpack.c.l.b16 %v9709
    %v9838 = vunpack.c.l.b16 %v9710
    %v9839 = vunpack.c.l.b16 %v9711
    %v9840 = vunpack.c.l.b16 %v9712
    %v9841 = vunpack.c.l.b16 %v9713
    %v9842 = vunpack.c.l.b16 %v9714
    %v9843 = vunpack.c.l.b16 %v9715
    %v9844 = vunpack.c.l.b16 %v9716
    %v9845 = vunpack.c.l.b16 %v9717
    %v9846 = vunpack.c.l.b16 %v9718
    %v9847 = vunpack.c.l.b16 %v9719
    %v9848 = vunpack.c.l.b16 %v9720
    %v9849 = vunpack.c.l.b16 %v9721
    %v9850 = vunpack.c.l.b16 %v9722
    %v9851 = vunpack.c.l.b16 %v9723
    %v9852 = vunpack.c.l.b16 %v9724
    %v9853 = vpack.c.b16 %v9790, %v9789
    %v9854 = vpack.c.b16 %v9792, %v9791
    %v9855 = vpack.c.b16 %v9794, %v9793
    %v9856 = vpack.c.b16 %v9796, %v9795
    %v9857 = vpack.c.b16 %v9798, %v9797
    %v9858 = vpack.c.b16 %v9800, %v9799
    %v9859 = vpack.c.b16 %v9802, %v9801
    %v9860 = vpack.c.b16 %v9804, %v9803
    %v9861 = vpack.c.b16 %v9806, %v9805
    %v9862 = vpack.c.b16 %v9808, %v9807
    %v9863 = vpack.c.b16 %v9810, %v9809
    %v9864 = vpack.c.b16 %v9812, %v9811
    %v9865 = vpack.c.b16 %v9814, %v9813
    %v9866 = vpack.c.b16 %v9816, %v9815
    %v9867 = vpack.c.b16 %v9818, %v9817
    %v9868 = vpack.c.b16 %v9820, %v9819
    %v9869 = vpack.c.b16 %v9822, %v9821
    %v9870 = vpack.c.b16 %v9824, %v9823
    %v9871 = vpack.c.b16 %v9826, %v9825
    %v9872 = vpack.c.b16 %v9828, %v9827
    %v9873 = vpack.c.b16 %v9830, %v9829
    %v9874 = vpack.c.b16 %v9832, %v9831
    %v9875 = vpack.c.b16 %v9834, %v9833
    %v9876 = vpack.c.b16 %v9836, %v9835
    %v9877 = vpack.c.b16 %v9838, %v9837
    %v9878 = vpack.c.b16 %v9840, %v9839
    %v9879 = vpack.c.b16 %v9842, %v9841
    %v9880 = vpack.c.b16 %v9844, %v9843
    %v9881 = vpack.c.b16 %v9846, %v9845
    %v9882 = vpack.c.b16 %v9848, %v9847
    %v9883 = vpack.c.b16 %v9850, %v9849
    %v9884 = vpack.c.b16 %v9852, %v9851
    %9917 = vmatprep.subr.bf16.mxu0 0
    %9918 = vmatpush1.bf16.msra.mxu0 %v9860
    %9919 = vmatprep.subr.bf16.mxu0 0
    %9920 = vmatpush1.bf16.msra.mxu0 %v9859
    %9921 = vmatprep.subr.bf16.mxu0 0
    %9922 = vmatpush1.bf16.msra.mxu0 %v9858
    %9923 = vmatprep.subr.bf16.mxu0 0
    %9924 = vmatpush1.bf16.msra.mxu0 %v9857
    %9925 = vmatprep.subr.bf16.mxu0 0
    %9926 = vmatpush1.bf16.msra.mxu0 %v9856
    %9927 = vmatprep.subr.bf16.mxu0 0
    %9928 = vmatpush1.bf16.msra.mxu0 %v9855
    %9929 = vmatprep.subr.bf16.mxu0 0
    %9930 = vmatpush1.bf16.msra.mxu0 %v9854
    %9931 = vmatprep.subr.bf16.mxu0 0
    %9932 = vmatpush1.bf16.msra.mxu0 %v9853
    %9933 = vmatprep.subr.bf16.mxu0 0
    %9934 = vmatpush2.bf16.msra.mxu0 %v9868
    %9935 = vmatprep.subr.bf16.mxu0 0
    %9936 = vmatpush2.bf16.msra.mxu0 %v9867
    %9937 = vmatprep.subr.bf16.mxu0 0
    %9938 = vmatpush2.bf16.msra.mxu0 %v9866
    %9939 = vmatprep.subr.bf16.mxu0 0
    %9940 = vmatpush2.bf16.msra.mxu0 %v9865
    %9941 = vmatprep.subr.bf16.mxu0 0
    %9942 = vmatpush2.bf16.msra.mxu0 %v9864
    %9943 = vmatprep.subr.bf16.mxu0 0
    %9944 = vmatpush2.bf16.msra.mxu0 %v9863
    %9945 = vmatprep.subr.bf16.mxu0 0
    %9946 = vmatpush2.bf16.msra.mxu0 %v9862
    %9947 = vmatprep.subr.bf16.mxu0 0
    %9948 = vmatpush2.bf16.msra.mxu0 %v9861
    %9949 = vmatprep.mubr.bf16.mxu0 %v9657
    %9950 = vmatmul.mubr.bf16.gmra.mxu0 %v9656
    %v9951 = vpop.f32.mrf.mxu0
    %v9952 = vadd.f32 0.0, %v9951
    %v9953 = vpop.f32.mrf.mxu0
    %v9954 = vpop.f32.mrf.mxu0
    %v9955 = vpop.f32.mrf.mxu0
    %9956 = vdwg.mxu0
    %9957 = vmatprep.subr.bf16.mxu0 0
    %9958 = vmatpush1.bf16.msra.mxu0 %v9876
    %9959 = vmatprep.subr.bf16.mxu0 0
    %9960 = vmatpush1.bf16.msra.mxu0 %v9875
    %9961 = vmatprep.subr.bf16.mxu0 0
    %9962 = vmatpush1.bf16.msra.mxu0 %v9874
    %9963 = vmatprep.subr.bf16.mxu0 0
    %9964 = vmatpush1.bf16.msra.mxu0 %v9873
    %9965 = vmatprep.subr.bf16.mxu0 0
    %9966 = vmatpush1.bf16.msra.mxu0 %v9872
    %9967 = vmatprep.subr.bf16.mxu0 0
    %9968 = vmatpush1.bf16.msra.mxu0 %v9871
    %9969 = vmatprep.subr.bf16.mxu0 0
    %9970 = vmatpush1.bf16.msra.mxu0 %v9870
    %9971 = vmatprep.subr.bf16.mxu0 0
    %9972 = vmatpush1.bf16.msra.mxu0 %v9869
    %9973 = vmatprep.subr.bf16.mxu0 0
    %9974 = vmatpush2.bf16.msra.mxu0 %v9884
    %9975 = vmatprep.subr.bf16.mxu0 0
    %9976 = vmatpush2.bf16.msra.mxu0 %v9883
    %9977 = vmatprep.subr.bf16.mxu0 0
    %9978 = vmatpush2.bf16.msra.mxu0 %v9882
    %9979 = vmatprep.subr.bf16.mxu0 0
    %9980 = vmatpush2.bf16.msra.mxu0 %v9881
    %9981 = vmatprep.subr.bf16.mxu0 0
    %9982 = vmatpush2.bf16.msra.mxu0 %v9880
    %9983 = vmatprep.subr.bf16.mxu0 0
    %9984 = vmatpush2.bf16.msra.mxu0 %v9879
    %9985 = vmatprep.subr.bf16.mxu0 0
    %9986 = vmatpush2.bf16.msra.mxu0 %v9878
    %9987 = vmatprep.subr.bf16.mxu0 0
    %9988 = vmatpush2.bf16.msra.mxu0 %v9877
    %9989 = vmatprep.mubr.bf16.mxu0 %v9659
    %9990 = vmatmul.mubr.bf16.gmra.mxu0 %v9658
    %v9991 = vpop.f32.mrf.mxu0
    %v9992 = vadd.f32 %v9952, %v9991
    %v9993 = vpop.f32.mrf.mxu0
    %v9994 = vpop.f32.mrf.mxu0
    %v9995 = vpop.f32.mrf.mxu0
    %9996 = vdwg.mxu0
    %v9997 = vld [vmem:[%s17] sm:$0x3]
    %vm9998 = vcmask 15360
    %v10000 = vsel %vm9998, %v9997, 0
    %vm10002 = vcmask 1041408
    %v10004 = vsel %vm10002, %v9992, 0
    %10006 = vmatprep.subr.mxu0 0.0
    %10007 = vmatpush1.msra.mxu0 0.0
    %10008 = vmatprep.subr.mxu0 0.0
    %10009 = vmatpush1.msra.mxu0 0.0
    %10010 = vmatprep.subr.mxu0 0.0
    %10011 = vmatpush1.msra.mxu0 0.0
    %10012 = vmatprep.subr.mxu0 0.0
    %10013 = vmatpush1.msra.mxu0 0.0
    %10014 = vmatprep.subr.mxu0 0.0
    %10015 = vmatpush1.msra.mxu0 0.0
    %10016 = vmatprep.subr.mxu0 0.0
    %10017 = vmatpush1.msra.mxu0 0.0
    %10018 = vmatprep.subr.mxu0 0.0
    %10019 = vmatpush1.msra.mxu0 0.0
    %10020 = vmatprep.subr.mxu0 0.0
    %10021 = vmatpush1.msra.mxu0 0.0
    %10022 = vmatprep.subr.mxu0 0.0
    %10023 = vmatpush1.msra.mxu0 0.0
    %10024 = vmatprep.subr.mxu0 0.0
    %10025 = vmatpush1.msra.mxu0 0.0
    %10026 = vmatprep.subr.mxu0 0.0
    %10027 = vmatpush1.msra.mxu0 0.0
    %10028 = vmatprep.subr.mxu0 0.0
    %10029 = vmatpush1.msra.mxu0 0.0
    %10030 = vmatprep.subr.mxu0 0.0
    %10031 = vmatpush1.msra.mxu0 0.0
    %10032 = vmatprep.subr.mxu0 0.0
    %10033 = vmatpush1.msra.mxu0 0.0
    %10034 = vmatprep.subr.mxu0 0.0
    %10035 = vmatpush1.msra.mxu0 0.0
    %10036 = vmatprep.subr.mxu0 0.0
    %v10037 = vand.u32 %v10004, 4294901760
    %10038 = vmatpush1.msra.mxu0 %v10037
    %10039 = vmatprep.subr.mxu0 0.0
    %10040 = vmatpush2.msra.mxu0 0.0
    %10041 = vmatprep.subr.mxu0 0.0
    %10042 = vmatpush2.msra.mxu0 0.0
    %10043 = vmatprep.subr.mxu0 0.0
    %10044 = vmatpush2.msra.mxu0 0.0
    %10045 = vmatprep.subr.mxu0 0.0
    %10046 = vmatpush2.msra.mxu0 0.0
    %10047 = vmatprep.subr.mxu0 0.0
    %10048 = vmatpush2.msra.mxu0 0.0
    %10049 = vmatprep.subr.mxu0 0.0
    %10050 = vmatpush2.msra.mxu0 0.0
    %10051 = vmatprep.subr.mxu0 0.0
    %10052 = vmatpush2.msra.mxu0 0.0
    %10053 = vmatprep.subr.mxu0 0.0
    %10054 = vmatpush2.msra.mxu0 0.0
    %10055 = vmatprep.subr.mxu0 0.0
    %10056 = vmatpush2.msra.mxu0 0.0
    %10057 = vmatprep.subr.mxu0 0.0
    %10058 = vmatpush2.msra.mxu0 0.0
    %10059 = vmatprep.subr.mxu0 0.0
    %10060 = vmatpush2.msra.mxu0 0.0
    %10061 = vmatprep.subr.mxu0 0.0
    %10062 = vmatpush2.msra.mxu0 0.0
    %10063 = vmatprep.subr.mxu0 0.0
    %10064 = vmatpush2.msra.mxu0 0.0
    %10065 = vmatprep.subr.mxu0 0.0
    %10066 = vmatpush2.msra.mxu0 0.0
    %10067 = vmatprep.subr.mxu0 0.0
    %10068 = vmatpush2.msra.mxu0 0.0
    %10069 = vmatprep.subr.mxu0 0.0
    %10070 = vmatpush2.msra.mxu0 0.0
    %10071 = vmatprep.mubr.f32.mxu0 0.0
    %v10072 = vand.u32 %v10000, 4294901760
    %v10073 = vsub.f32 %v10000, %v10072
    %v10074 = vand.u32 %v10073, 4294901760
    %v10075 = vsub.f32 %v10073, %v10074
    %v10076 = vand.u32 %v10075, 4294901760
    %10077 = vmatmul.mubr.f32.gmra.mxu0 %v10076
    %v10078 = vpop.f32.mrf.mxu0
    %v10079 = vadd.f32 0.0, %v10078
    %v10080 = vpop.f32.mrf.mxu0
    %10081 = vdwg.mxu0
    %10082 = vmatprep.subr.mxu0 0.0
    %10083 = vmatpush1.msra.mxu0 0.0
    %10084 = vmatprep.subr.mxu0 0.0
    %10085 = vmatpush1.msra.mxu0 0.0
    %10086 = vmatprep.subr.mxu0 0.0
    %10087 = vmatpush1.msra.mxu0 0.0
    %10088 = vmatprep.subr.mxu0 0.0
    %10089 = vmatpush1.msra.mxu0 0.0
    %10090 = vmatprep.subr.mxu0 0.0
    %10091 = vmatpush1.msra.mxu0 0.0
    %10092 = vmatprep.subr.mxu0 0.0
    %10093 = vmatpush1.msra.mxu0 0.0
    %10094 = vmatprep.subr.mxu0 0.0
    %10095 = vmatpush1.msra.mxu0 0.0
    %10096 = vmatprep.subr.mxu0 0.0
    %10097 = vmatpush1.msra.mxu0 0.0
    %10098 = vmatprep.subr.mxu0 0.0
    %10099 = vmatpush1.msra.mxu0 0.0
    %10100 = vmatprep.subr.mxu0 0.0
    %10101 = vmatpush1.msra.mxu0 0.0
    %10102 = vmatprep.subr.mxu0 0.0
    %10103 = vmatpush1.msra.mxu0 0.0
    %10104 = vmatprep.subr.mxu0 0.0
    %10105 = vmatpush1.msra.mxu0 0.0
    %10106 = vmatprep.subr.mxu0 0.0
    %10107 = vmatpush1.msra.mxu0 0.0
    %10108 = vmatprep.subr.mxu0 0.0
    %10109 = vmatpush1.msra.mxu0 0.0
    %10110 = vmatprep.subr.mxu0 0.0
    %10111 = vmatpush1.msra.mxu0 0.0
    %10112 = vmatprep.subr.mxu0 0.0
    %v10113 = vand.u32 %v10004, 4294901760
    %v10114 = vsub.f32 %v10004, %v10113
    %v10115 = vand.u32 %v10114, 4294901760
    %v10116 = vsub.f32 %v10114, %v10115
    %v10117 = vand.u32 %v10116, 4294901760
    %10118 = vmatpush1.msra.mxu0 %v10117
    %10119 = vmatprep.subr.mxu0 0.0
    %10120 = vmatpush2.msra.mxu0 0.0
    %10121 = vmatprep.subr.mxu0 0.0
    %10122 = vmatpush2.msra.mxu0 0.0
    %10123 = vmatprep.subr.mxu0 0.0
    %10124 = vmatpush2.msra.mxu0 0.0
    %10125 = vmatprep.subr.mxu0 0.0
    %10126 = vmatpush2.msra.mxu0 0.0
    %10127 = vmatprep.subr.mxu0 0.0
    %10128 = vmatpush2.msra.mxu0 0.0
    %10129 = vmatprep.subr.mxu0 0.0
    %10130 = vmatpush2.msra.mxu0 0.0
    %10131 = vmatprep.subr.mxu0 0.0
    %10132 = vmatpush2.msra.mxu0 0.0
    %10133 = vmatprep.subr.mxu0 0.0
    %10134 = vmatpush2.msra.mxu0 0.0
    %10135 = vmatprep.subr.mxu0 0.0
    %10136 = vmatpush2.msra.mxu0 0.0
    %10137 = vmatprep.subr.mxu0 0.0
    %10138 = vmatpush2.msra.mxu0 0.0
    %10139 = vmatprep.subr.mxu0 0.0
    %10140 = vmatpush2.msra.mxu0 0.0
    %10141 = vmatprep.subr.mxu0 0.0
    %10142 = vmatpush2.msra.mxu0 0.0
    %10143 = vmatprep.subr.mxu0 0.0
    %10144 = vmatpush2.msra.mxu0 0.0
    %10145 = vmatprep.subr.mxu0 0.0
    %10146 = vmatpush2.msra.mxu0 0.0
    %10147 = vmatprep.subr.mxu0 0.0
    %10148 = vmatpush2.msra.mxu0 0.0
    %10149 = vmatprep.subr.mxu0 0.0
    %10150 = vmatpush2.msra.mxu0 0.0
    %10151 = vmatprep.mubr.f32.mxu0 0.0
    %v10152 = vand.u32 %v10000, 4294901760
    %10153 = vmatmul.mubr.f32.gmra.mxu0 %v10152
    %v10154 = vpop.f32.mrf.mxu0
    %v10155 = vadd.f32 %v10079, %v10154
    %v10156 = vpop.f32.mrf.mxu0
    %10157 = vdwg.mxu0
    %10158 = vmatprep.subr.mxu0 0.0
    %10159 = vmatpush1.msra.mxu0 0.0
    %10160 = vmatprep.subr.mxu0 0.0
    %10161 = vmatpush1.msra.mxu0 0.0
    %10162 = vmatprep.subr.mxu0 0.0
    %10163 = vmatpush1.msra.mxu0 0.0
    %10164 = vmatprep.subr.mxu0 0.0
    %10165 = vmatpush1.msra.mxu0 0.0
    %10166 = vmatprep.subr.mxu0 0.0
    %10167 = vmatpush1.msra.mxu0 0.0
    %10168 = vmatprep.subr.mxu0 0.0
    %10169 = vmatpush1.msra.mxu0 0.0
    %10170 = vmatprep.subr.mxu0 0.0
    %10171 = vmatpush1.msra.mxu0 0.0
    %10172 = vmatprep.subr.mxu0 0.0
    %10173 = vmatpush1.msra.mxu0 0.0
    %10174 = vmatprep.subr.mxu0 0.0
    %10175 = vmatpush1.msra.mxu0 0.0
    %10176 = vmatprep.subr.mxu0 0.0
    %10177 = vmatpush1.msra.mxu0 0.0
    %10178 = vmatprep.subr.mxu0 0.0
    %10179 = vmatpush1.msra.mxu0 0.0
    %10180 = vmatprep.subr.mxu0 0.0
    %10181 = vmatpush1.msra.mxu0 0.0
    %10182 = vmatprep.subr.mxu0 0.0
    %10183 = vmatpush1.msra.mxu0 0.0
    %10184 = vmatprep.subr.mxu0 0.0
    %10185 = vmatpush1.msra.mxu0 0.0
    %10186 = vmatprep.subr.mxu0 0.0
    %10187 = vmatpush1.msra.mxu0 0.0
    %10188 = vmatprep.subr.mxu0 0.0
    %v10189 = vand.u32 %v10004, 4294901760
    %v10190 = vsub.f32 %v10004, %v10189
    %10191 = vmatpush1.msra.mxu0 %v10190
    %10192 = vmatprep.subr.mxu0 0.0
    %10193 = vmatpush2.msra.mxu0 0.0
    %10194 = vmatprep.subr.mxu0 0.0
    %10195 = vmatpush2.msra.mxu0 0.0
    %10196 = vmatprep.subr.mxu0 0.0
    %10197 = vmatpush2.msra.mxu0 0.0
    %10198 = vmatprep.subr.mxu0 0.0
    %10199 = vmatpush2.msra.mxu0 0.0
    %10200 = vmatprep.subr.mxu0 0.0
    %10201 = vmatpush2.msra.mxu0 0.0
    %10202 = vmatprep.subr.mxu0 0.0
    %10203 = vmatpush2.msra.mxu0 0.0
    %10204 = vmatprep.subr.mxu0 0.0
    %10205 = vmatpush2.msra.mxu0 0.0
    %10206 = vmatprep.subr.mxu0 0.0
    %10207 = vmatpush2.msra.mxu0 0.0
    %10208 = vmatprep.subr.mxu0 0.0
    %10209 = vmatpush2.msra.mxu0 0.0
    %10210 = vmatprep.subr.mxu0 0.0
    %10211 = vmatpush2.msra.mxu0 0.0
    %10212 = vmatprep.subr.mxu0 0.0
    %10213 = vmatpush2.msra.mxu0 0.0
    %10214 = vmatprep.subr.mxu0 0.0
    %10215 = vmatpush2.msra.mxu0 0.0
    %10216 = vmatprep.subr.mxu0 0.0
    %10217 = vmatpush2.msra.mxu0 0.0
    %10218 = vmatprep.subr.mxu0 0.0
    %10219 = vmatpush2.msra.mxu0 0.0
    %10220 = vmatprep.subr.mxu0 0.0
    %10221 = vmatpush2.msra.mxu0 0.0
    %10222 = vmatprep.subr.mxu0 0.0
    %10223 = vmatpush2.msra.mxu0 0.0
    %10224 = vmatprep.mubr.f32.mxu0 0.0
    %v10225 = vand.u32 %v10000, 4294901760
    %v10226 = vsub.f32 %v10000, %v10225
    %10227 = vmatmul.mubr.f32.gmra.mxu0 %v10226
    %v10228 = vpop.f32.mrf.mxu0
    %v10229 = vadd.f32 %v10155, %v10228
    %v10230 = vpop.f32.mrf.mxu0
    %10231 = vdwg.mxu0
    %10232 = vmatprep.subr.mxu0 0.0
    %10233 = vmatpush1.msra.mxu0 0.0
    %10234 = vmatprep.subr.mxu0 0.0
    %10235 = vmatpush1.msra.mxu0 0.0
    %10236 = vmatprep.subr.mxu0 0.0
    %10237 = vmatpush1.msra.mxu0 0.0
    %10238 = vmatprep.subr.mxu0 0.0
    %10239 = vmatpush1.msra.mxu0 0.0
    %10240 = vmatprep.subr.mxu0 0.0
    %10241 = vmatpush1.msra.mxu0 0.0
    %10242 = vmatprep.subr.mxu0 0.0
    %10243 = vmatpush1.msra.mxu0 0.0
    %10244 = vmatprep.subr.mxu0 0.0
    %10245 = vmatpush1.msra.mxu0 0.0
    %10246 = vmatprep.subr.mxu0 0.0
    %10247 = vmatpush1.msra.mxu0 0.0
    %10248 = vmatprep.subr.mxu0 0.0
    %10249 = vmatpush1.msra.mxu0 0.0
    %10250 = vmatprep.subr.mxu0 0.0
    %10251 = vmatpush1.msra.mxu0 0.0
    %10252 = vmatprep.subr.mxu0 0.0
    %10253 = vmatpush1.msra.mxu0 0.0
    %10254 = vmatprep.subr.mxu0 0.0
    %10255 = vmatpush1.msra.mxu0 0.0
    %10256 = vmatprep.subr.mxu0 0.0
    %10257 = vmatpush1.msra.mxu0 0.0
    %10258 = vmatprep.subr.mxu0 0.0
    %10259 = vmatpush1.msra.mxu0 0.0
    %10260 = vmatprep.subr.mxu0 0.0
    %10261 = vmatpush1.msra.mxu0 0.0
    %10262 = vmatprep.subr.mxu0 0.0
    %v10263 = vand.u32 %v10004, 4294901760
    %10264 = vmatpush1.msra.mxu0 %v10263
    %10265 = vmatprep.subr.mxu0 0.0
    %10266 = vmatpush2.msra.mxu0 0.0
    %10267 = vmatprep.subr.mxu0 0.0
    %10268 = vmatpush2.msra.mxu0 0.0
    %10269 = vmatprep.subr.mxu0 0.0
    %10270 = vmatpush2.msra.mxu0 0.0
    %10271 = vmatprep.subr.mxu0 0.0
    %10272 = vmatpush2.msra.mxu0 0.0
    %10273 = vmatprep.subr.mxu0 0.0
    %10274 = vmatpush2.msra.mxu0 0.0
    %10275 = vmatprep.subr.mxu0 0.0
    %10276 = vmatpush2.msra.mxu0 0.0
    %10277 = vmatprep.subr.mxu0 0.0
    %10278 = vmatpush2.msra.mxu0 0.0
    %10279 = vmatprep.subr.mxu0 0.0
    %10280 = vmatpush2.msra.mxu0 0.0
    %10281 = vmatprep.subr.mxu0 0.0
    %10282 = vmatpush2.msra.mxu0 0.0
    %10283 = vmatprep.subr.mxu0 0.0
    %10284 = vmatpush2.msra.mxu0 0.0
    %10285 = vmatprep.subr.mxu0 0.0
    %10286 = vmatpush2.msra.mxu0 0.0
    %10287 = vmatprep.subr.mxu0 0.0
    %10288 = vmatpush2.msra.mxu0 0.0
    %10289 = vmatprep.subr.mxu0 0.0
    %10290 = vmatpush2.msra.mxu0 0.0
    %10291 = vmatprep.subr.mxu0 0.0
    %10292 = vmatpush2.msra.mxu0 0.0
    %10293 = vmatprep.subr.mxu0 0.0
    %10294 = vmatpush2.msra.mxu0 0.0
    %10295 = vmatprep.subr.mxu0 0.0
    %10296 = vmatpush2.msra.mxu0 0.0
    %10297 = vmatprep.mubr.f32.mxu0 0.0
    %v10298 = vand.u32 %v10000, 4294901760
    %v10299 = vsub.f32 %v10000, %v10298
    %v10300 = vand.u32 %v10299, 4294901760
    %10301 = vmatmul.mubr.f32.gmra.mxu0 %v10300
    %v10302 = vpop.f32.mrf.mxu0
    %v10303 = vadd.f32 %v10229, %v10302
    %v10304 = vpop.f32.mrf.mxu0
    %10305 = vdwg.mxu0
    %10306 = vmatprep.subr.mxu0 0.0
    %10307 = vmatpush1.msra.mxu0 0.0
    %10308 = vmatprep.subr.mxu0 0.0
    %10309 = vmatpush1.msra.mxu0 0.0
    %10310 = vmatprep.subr.mxu0 0.0
    %10311 = vmatpush1.msra.mxu0 0.0
    %10312 = vmatprep.subr.mxu0 0.0
    %10313 = vmatpush1.msra.mxu0 0.0
    %10314 = vmatprep.subr.mxu0 0.0
    %10315 = vmatpush1.msra.mxu0 0.0
    %10316 = vmatprep.subr.mxu0 0.0
    %10317 = vmatpush1.msra.mxu0 0.0
    %10318 = vmatprep.subr.mxu0 0.0
    %10319 = vmatpush1.msra.mxu0 0.0
    %10320 = vmatprep.subr.mxu0 0.0
    %10321 = vmatpush1.msra.mxu0 0.0
    %10322 = vmatprep.subr.mxu0 0.0
    %10323 = vmatpush1.msra.mxu0 0.0
    %10324 = vmatprep.subr.mxu0 0.0
    %10325 = vmatpush1.msra.mxu0 0.0
    %10326 = vmatprep.subr.mxu0 0.0
    %10327 = vmatpush1.msra.mxu0 0.0
    %10328 = vmatprep.subr.mxu0 0.0
    %10329 = vmatpush1.msra.mxu0 0.0
    %10330 = vmatprep.subr.mxu0 0.0
    %10331 = vmatpush1.msra.mxu0 0.0
    %10332 = vmatprep.subr.mxu0 0.0
    %10333 = vmatpush1.msra.mxu0 0.0
    %10334 = vmatprep.subr.mxu0 0.0
    %10335 = vmatpush1.msra.mxu0 0.0
    %10336 = vmatprep.subr.mxu0 0.0
    %v10337 = vand.u32 %v10004, 4294901760
    %v10338 = vsub.f32 %v10004, %v10337
    %v10339 = vand.u32 %v10338, 4294901760
    %10340 = vmatpush1.msra.mxu0 %v10339
    %10341 = vmatprep.subr.mxu0 0.0
    %10342 = vmatpush2.msra.mxu0 0.0
    %10343 = vmatprep.subr.mxu0 0.0
    %10344 = vmatpush2.msra.mxu0 0.0
    %10345 = vmatprep.subr.mxu0 0.0
    %10346 = vmatpush2.msra.mxu0 0.0
    %10347 = vmatprep.subr.mxu0 0.0
    %10348 = vmatpush2.msra.mxu0 0.0
    %10349 = vmatprep.subr.mxu0 0.0
    %10350 = vmatpush2.msra.mxu0 0.0
    %10351 = vmatprep.subr.mxu0 0.0
    %10352 = vmatpush2.msra.mxu0 0.0
    %10353 = vmatprep.subr.mxu0 0.0
    %10354 = vmatpush2.msra.mxu0 0.0
    %10355 = vmatprep.subr.mxu0 0.0
    %10356 = vmatpush2.msra.mxu0 0.0
    %10357 = vmatprep.subr.mxu0 0.0
    %10358 = vmatpush2.msra.mxu0 0.0
    %10359 = vmatprep.subr.mxu0 0.0
    %10360 = vmatpush2.msra.mxu0 0.0
    %10361 = vmatprep.subr.mxu0 0.0
    %10362 = vmatpush2.msra.mxu0 0.0
    %10363 = vmatprep.subr.mxu0 0.0
    %10364 = vmatpush2.msra.mxu0 0.0
    %10365 = vmatprep.subr.mxu0 0.0
    %10366 = vmatpush2.msra.mxu0 0.0
    %10367 = vmatprep.subr.mxu0 0.0
    %10368 = vmatpush2.msra.mxu0 0.0
    %10369 = vmatprep.subr.mxu0 0.0
    %10370 = vmatpush2.msra.mxu0 0.0
    %10371 = vmatprep.subr.mxu0 0.0
    %10372 = vmatpush2.msra.mxu0 0.0
    %10373 = vmatprep.mubr.f32.mxu0 0.0
    %v10374 = vand.u32 %v10000, 4294901760
    %10375 = vmatmul.mubr.f32.gmra.mxu0 %v10374
    %v10376 = vpop.f32.mrf.mxu0
    %v10377 = vadd.f32 %v10303, %v10376
    %v10378 = vpop.f32.mrf.mxu0
    %10379 = vdwg.mxu0
    %10380 = vmatprep.subr.mxu0 0.0
    %10381 = vmatpush1.msra.mxu0 0.0
    %10382 = vmatprep.subr.mxu0 0.0
    %10383 = vmatpush1.msra.mxu0 0.0
    %10384 = vmatprep.subr.mxu0 0.0
    %10385 = vmatpush1.msra.mxu0 0.0
    %10386 = vmatprep.subr.mxu0 0.0
    %10387 = vmatpush1.msra.mxu0 0.0
    %10388 = vmatprep.subr.mxu0 0.0
    %10389 = vmatpush1.msra.mxu0 0.0
    %10390 = vmatprep.subr.mxu0 0.0
    %10391 = vmatpush1.msra.mxu0 0.0
    %10392 = vmatprep.subr.mxu0 0.0
    %10393 = vmatpush1.msra.mxu0 0.0
    %10394 = vmatprep.subr.mxu0 0.0
    %10395 = vmatpush1.msra.mxu0 0.0
    %10396 = vmatprep.subr.mxu0 0.0
    %10397 = vmatpush1.msra.mxu0 0.0
    %10398 = vmatprep.subr.mxu0 0.0
    %10399 = vmatpush1.msra.mxu0 0.0
    %10400 = vmatprep.subr.mxu0 0.0
    %10401 = vmatpush1.msra.mxu0 0.0
    %10402 = vmatprep.subr.mxu0 0.0
    %10403 = vmatpush1.msra.mxu0 0.0
    %10404 = vmatprep.subr.mxu0 0.0
    %10405 = vmatpush1.msra.mxu0 0.0
    %10406 = vmatprep.subr.mxu0 0.0
    %10407 = vmatpush1.msra.mxu0 0.0
    %10408 = vmatprep.subr.mxu0 0.0
    %10409 = vmatpush1.msra.mxu0 0.0
    %10410 = vmatprep.subr.mxu0 0.0
    %v10411 = vand.u32 %v10004, 4294901760
    %10412 = vmatpush1.msra.mxu0 %v10411
    %10413 = vmatprep.subr.mxu0 0.0
    %10414 = vmatpush2.msra.mxu0 0.0
    %10415 = vmatprep.subr.mxu0 0.0
    %10416 = vmatpush2.msra.mxu0 0.0
    %10417 = vmatprep.subr.mxu0 0.0
    %10418 = vmatpush2.msra.mxu0 0.0
    %10419 = vmatprep.subr.mxu0 0.0
    %10420 = vmatpush2.msra.mxu0 0.0
    %10421 = vmatprep.subr.mxu0 0.0
    %10422 = vmatpush2.msra.mxu0 0.0
    %10423 = vmatprep.subr.mxu0 0.0
    %10424 = vmatpush2.msra.mxu0 0.0
    %10425 = vmatprep.subr.mxu0 0.0
    %10426 = vmatpush2.msra.mxu0 0.0
    %10427 = vmatprep.subr.mxu0 0.0
    %10428 = vmatpush2.msra.mxu0 0.0
    %10429 = vmatprep.subr.mxu0 0.0
    %10430 = vmatpush2.msra.mxu0 0.0
    %10431 = vmatprep.subr.mxu0 0.0
    %10432 = vmatpush2.msra.mxu0 0.0
    %10433 = vmatprep.subr.mxu0 0.0
    %10434 = vmatpush2.msra.mxu0 0.0
    %10435 = vmatprep.subr.mxu0 0.0
    %10436 = vmatpush2.msra.mxu0 0.0
    %10437 = vmatprep.subr.mxu0 0.0
    %10438 = vmatpush2.msra.mxu0 0.0
    %10439 = vmatprep.subr.mxu0 0.0
    %10440 = vmatpush2.msra.mxu0 0.0
    %10441 = vmatprep.subr.mxu0 0.0
    %10442 = vmatpush2.msra.mxu0 0.0
    %10443 = vmatprep.subr.mxu0 0.0
    %10444 = vmatpush2.msra.mxu0 0.0
    %10445 = vmatprep.mubr.f32.mxu0 0.0
    %v10446 = vand.u32 %v10000, 4294901760
    %10447 = vmatmul.mubr.f32.gmra.mxu0 %v10446
    %v10448 = vpop.f32.mrf.mxu0
    %v10449 = vadd.f32 %v10377, %v10448
    %v10450 = vpop.f32.mrf.mxu0
    %10451 = vdwg.mxu0
    %v10452 = vadd.f32 %v9660, %v10449
    %s10453 = scalar_lea.vmem [#allocation22], 256
    %v10454 = vld [vmem:[%s10453] sm:$0xf]
    %v10455 = vld [vmem:[%s10453 + $0x4] sm:$0xf]
    %v10456 = vld [vmem:[%s10453 + $0x8] sm:$0xf]
    %v10457 = vld [vmem:[%s10453 + $0xc] sm:$0xf]
    %v10458 = vld [vmem:[%s10453 + $0x10] sm:$0xf]
    %v10459 = vld [vmem:[%s10453 + $0x14] sm:$0xf]
    %v10460 = vld [vmem:[%s10453 + $0x18] sm:$0xf]
    %v10461 = vld [vmem:[%s10453 + $0x1c] sm:$0xf]
    %v10462 = vld [vmem:[%s10453 + $0x20] sm:$0xf]
    %v10463 = vld [vmem:[%s10453 + $0x24] sm:$0xf]
    %v10464 = vld [vmem:[%s10453 + $0x28] sm:$0xf]
    %v10465 = vld [vmem:[%s10453 + $0x2c] sm:$0xf]
    %v10466 = vld [vmem:[%s10453 + $0x30] sm:$0xf]
    %v10467 = vld [vmem:[%s10453 + $0x34] sm:$0xf]
    %v10468 = vld [vmem:[%s10453 + $0x38] sm:$0xf]
    %v10469 = vld [vmem:[%s10453 + $0x3c] sm:$0xf]
    %v10470 = vld [vmem:[%s10453 + $0x40] sm:$0xf]
    %v10471 = vld [vmem:[%s10453 + $0x44] sm:$0xf]
    %v10472 = vld [vmem:[%s10453 + $0x48] sm:$0xf]
    %v10473 = vld [vmem:[%s10453 + $0x4c] sm:$0xf]
    %v10474 = vld [vmem:[%s10453 + $0x50] sm:$0xf]
    %v10475 = vld [vmem:[%s10453 + $0x54] sm:$0xf]
    %v10476 = vld [vmem:[%s10453 + $0x58] sm:$0xf]
    %v10477 = vld [vmem:[%s10453 + $0x5c] sm:$0xf]
    %v10478 = vld [vmem:[%s10453 + $0x60] sm:$0xf]
    %v10479 = vld [vmem:[%s10453 + $0x64] sm:$0xf]
    %v10480 = vld [vmem:[%s10453 + $0x68] sm:$0xf]
    %v10481 = vld [vmem:[%s10453 + $0x6c] sm:$0xf]
    %v10482 = vld [vmem:[%s10453 + $0x70] sm:$0xf]
    %v10483 = vld [vmem:[%s10453 + $0x74] sm:$0xf]
    %v10484 = vld [vmem:[%s10453 + $0x78] sm:$0xf]
    %v10485 = vld [vmem:[%s10453 + $0x7c] sm:$0xf]
    %v10486 = vld [vmem:[%s10453 + $0x80] sm:$0xf]
    %v10487 = vld [vmem:[%s10453 + $0x84] sm:$0xf]
    %v10488 = vld [vmem:[%s10453 + $0x88] sm:$0xf]
    %v10489 = vld [vmem:[%s10453 + $0x8c] sm:$0xf]
    %v10490 = vld [vmem:[%s10453 + $0x90] sm:$0xf]
    %v10491 = vld [vmem:[%s10453 + $0x94] sm:$0xf]
    %v10492 = vld [vmem:[%s10453 + $0x98] sm:$0xf]
    %v10493 = vld [vmem:[%s10453 + $0x9c] sm:$0xf]
    %v10494 = vld [vmem:[%s10453 + $0xa0] sm:$0xf]
    %v10495 = vld [vmem:[%s10453 + $0xa4] sm:$0xf]
    %v10496 = vld [vmem:[%s10453 + $0xa8] sm:$0xf]
    %v10497 = vld [vmem:[%s10453 + $0xac] sm:$0xf]
    %v10498 = vld [vmem:[%s10453 + $0xb0] sm:$0xf]
    %v10499 = vld [vmem:[%s10453 + $0xb4] sm:$0xf]
    %v10500 = vld [vmem:[%s10453 + $0xb8] sm:$0xf]
    %v10501 = vld [vmem:[%s10453 + $0xbc] sm:$0xf]
    %v10502 = vld [vmem:[%s10453 + $0xc0] sm:$0xf]
    %v10503 = vld [vmem:[%s10453 + $0xc4] sm:$0xf]
    %v10504 = vld [vmem:[%s10453 + $0xc8] sm:$0xf]
    %v10505 = vld [vmem:[%s10453 + $0xcc] sm:$0xf]
    %v10506 = vld [vmem:[%s10453 + $0xd0] sm:$0xf]
    %v10507 = vld [vmem:[%s10453 + $0xd4] sm:$0xf]
    %v10508 = vld [vmem:[%s10453 + $0xd8] sm:$0xf]
    %v10509 = vld [vmem:[%s10453 + $0xdc] sm:$0xf]
    %v10510 = vld [vmem:[%s10453 + $0xe0] sm:$0xf]
    %v10511 = vld [vmem:[%s10453 + $0xe4] sm:$0xf]
    %v10512 = vld [vmem:[%s10453 + $0xe8] sm:$0xf]
    %v10513 = vld [vmem:[%s10453 + $0xec] sm:$0xf]
    %v10514 = vld [vmem:[%s10453 + $0xf0] sm:$0xf]
    %v10515 = vld [vmem:[%s10453 + $0xf4] sm:$0xf]
    %v10516 = vld [vmem:[%s10453 + $0xf8] sm:$0xf]
    %v10517 = vld [vmem:[%s10453 + $0xfc] sm:$0xf]
    %v10582 = vunpack.c.l.b16 %v10454
    %v10583 = vunpack.c.l.b16 %v10455
    %v10584 = vunpack.c.l.b16 %v10456
    %v10585 = vunpack.c.l.b16 %v10457
    %v10586 = vunpack.c.l.b16 %v10458
    %v10587 = vunpack.c.l.b16 %v10459
    %v10588 = vunpack.c.l.b16 %v10460
    %v10589 = vunpack.c.l.b16 %v10461
    %v10590 = vunpack.c.l.b16 %v10462
    %v10591 = vunpack.c.l.b16 %v10463
    %v10592 = vunpack.c.l.b16 %v10464
    %v10593 = vunpack.c.l.b16 %v10465
    %v10594 = vunpack.c.l.b16 %v10466
    %v10595 = vunpack.c.l.b16 %v10467
    %v10596 = vunpack.c.l.b16 %v10468
    %v10597 = vunpack.c.l.b16 %v10469
    %v10598 = vunpack.c.l.b16 %v10470
    %v10599 = vunpack.c.l.b16 %v10471
    %v10600 = vunpack.c.l.b16 %v10472
    %v10601 = vunpack.c.l.b16 %v10473
    %v10602 = vunpack.c.l.b16 %v10474
    %v10603 = vunpack.c.l.b16 %v10475
    %v10604 = vunpack.c.l.b16 %v10476
    %v10605 = vunpack.c.l.b16 %v10477
    %v10606 = vunpack.c.l.b16 %v10478
    %v10607 = vunpack.c.l.b16 %v10479
    %v10608 = vunpack.c.l.b16 %v10480
    %v10609 = vunpack.c.l.b16 %v10481
    %v10610 = vunpack.c.l.b16 %v10482
    %v10611 = vunpack.c.l.b16 %v10483
    %v10612 = vunpack.c.l.b16 %v10484
    %v10613 = vunpack.c.l.b16 %v10485
    %v10614 = vunpack.c.l.b16 %v10486
    %v10615 = vunpack.c.l.b16 %v10487
    %v10616 = vunpack.c.l.b16 %v10488
    %v10617 = vunpack.c.l.b16 %v10489
    %v10618 = vunpack.c.l.b16 %v10490
    %v10619 = vunpack.c.l.b16 %v10491
    %v10620 = vunpack.c.l.b16 %v10492
    %v10621 = vunpack.c.l.b16 %v10493
    %v10622 = vunpack.c.l.b16 %v10494
    %v10623 = vunpack.c.l.b16 %v10495
    %v10624 = vunpack.c.l.b16 %v10496
    %v10625 = vunpack.c.l.b16 %v10497
    %v10626 = vunpack.c.l.b16 %v10498
    %v10627 = vunpack.c.l.b16 %v10499
    %v10628 = vunpack.c.l.b16 %v10500
    %v10629 = vunpack.c.l.b16 %v10501
    %v10630 = vunpack.c.l.b16 %v10502
    %v10631 = vunpack.c.l.b16 %v10503
    %v10632 = vunpack.c.l.b16 %v10504
    %v10633 = vunpack.c.l.b16 %v10505
    %v10634 = vunpack.c.l.b16 %v10506
    %v10635 = vunpack.c.l.b16 %v10507
    %v10636 = vunpack.c.l.b16 %v10508
    %v10637 = vunpack.c.l.b16 %v10509
    %v10638 = vunpack.c.l.b16 %v10510
    %v10639 = vunpack.c.l.b16 %v10511
    %v10640 = vunpack.c.l.b16 %v10512
    %v10641 = vunpack.c.l.b16 %v10513
    %v10642 = vunpack.c.l.b16 %v10514
    %v10643 = vunpack.c.l.b16 %v10515
    %v10644 = vunpack.c.l.b16 %v10516
    %v10645 = vunpack.c.l.b16 %v10517
    %v10646 = vpack.c.b16 %v10583, %v10582
    %v10647 = vpack.c.b16 %v10585, %v10584
    %v10648 = vpack.c.b16 %v10587, %v10586
    %v10649 = vpack.c.b16 %v10589, %v10588
    %v10650 = vpack.c.b16 %v10591, %v10590
    %v10651 = vpack.c.b16 %v10593, %v10592
    %v10652 = vpack.c.b16 %v10595, %v10594
    %v10653 = vpack.c.b16 %v10597, %v10596
    %v10654 = vpack.c.b16 %v10599, %v10598
    %v10655 = vpack.c.b16 %v10601, %v10600
    %v10656 = vpack.c.b16 %v10603, %v10602
    %v10657 = vpack.c.b16 %v10605, %v10604
    %v10658 = vpack.c.b16 %v10607, %v10606
    %v10659 = vpack.c.b16 %v10609, %v10608
    %v10660 = vpack.c.b16 %v10611, %v10610
    %v10661 = vpack.c.b16 %v10613, %v10612
    %v10662 = vpack.c.b16 %v10615, %v10614
    %v10663 = vpack.c.b16 %v10617, %v10616
    %v10664 = vpack.c.b16 %v10619, %v10618
    %v10665 = vpack.c.b16 %v10621, %v10620
    %v10666 = vpack.c.b16 %v10623, %v10622
    %v10667 = vpack.c.b16 %v10625, %v10624
    %v10668 = vpack.c.b16 %v10627, %v10626
    %v10669 = vpack.c.b16 %v10629, %v10628
    %v10670 = vpack.c.b16 %v10631, %v10630
    %v10671 = vpack.c.b16 %v10633, %v10632
    %v10672 = vpack.c.b16 %v10635, %v10634
    %v10673 = vpack.c.b16 %v10637, %v10636
    %v10674 = vpack.c.b16 %v10639, %v10638
    %v10675 = vpack.c.b16 %v10641, %v10640
    %v10676 = vpack.c.b16 %v10643, %v10642
    %v10677 = vpack.c.b16 %v10645, %v10644
    %10710 = vmatprep.subr.bf16.mxu0 0
    %10711 = vmatpush1.bf16.msra.mxu0 %v10653
    %10712 = vmatprep.subr.bf16.mxu0 0
    %10713 = vmatpush1.bf16.msra.mxu0 %v10652
    %10714 = vmatprep.subr.bf16.mxu0 0
    %10715 = vmatpush1.bf16.msra.mxu0 %v10651
    %10716 = vmatprep.subr.bf16.mxu0 0
    %10717 = vmatpush1.bf16.msra.mxu0 %v10650
    %10718 = vmatprep.subr.bf16.mxu0 0
    %10719 = vmatpush1.bf16.msra.mxu0 %v10649
    %10720 = vmatprep.subr.bf16.mxu0 0
    %10721 = vmatpush1.bf16.msra.mxu0 %v10648
    %10722 = vmatprep.subr.bf16.mxu0 0
    %10723 = vmatpush1.bf16.msra.mxu0 %v10647
    %10724 = vmatprep.subr.bf16.mxu0 0
    %10725 = vmatpush1.bf16.msra.mxu0 %v10646
    %10726 = vmatprep.subr.bf16.mxu0 0
    %10727 = vmatpush2.bf16.msra.mxu0 %v10661
    %10728 = vmatprep.subr.bf16.mxu0 0
    %10729 = vmatpush2.bf16.msra.mxu0 %v10660
    %10730 = vmatprep.subr.bf16.mxu0 0
    %10731 = vmatpush2.bf16.msra.mxu0 %v10659
    %10732 = vmatprep.subr.bf16.mxu0 0
    %10733 = vmatpush2.bf16.msra.mxu0 %v10658
    %10734 = vmatprep.subr.bf16.mxu0 0
    %10735 = vmatpush2.bf16.msra.mxu0 %v10657
    %10736 = vmatprep.subr.bf16.mxu0 0
    %10737 = vmatpush2.bf16.msra.mxu0 %v10656
    %10738 = vmatprep.subr.bf16.mxu0 0
    %10739 = vmatpush2.bf16.msra.mxu0 %v10655
    %10740 = vmatprep.subr.bf16.mxu0 0
    %10741 = vmatpush2.bf16.msra.mxu0 %v10654
    %10742 = vmatprep.mubr.bf16.mxu0 %v9657
    %10743 = vmatmul.mubr.bf16.gmra.mxu0 %v9656
    %v10744 = vpop.f32.mrf.mxu0
    %v10745 = vadd.f32 0.0, %v10744
    %v10746 = vpop.f32.mrf.mxu0
    %v10747 = vpop.f32.mrf.mxu0
    %v10748 = vpop.f32.mrf.mxu0
    %10749 = vdwg.mxu0
    %10750 = vmatprep.subr.bf16.mxu0 0
    %10751 = vmatpush1.bf16.msra.mxu0 %v10669
    %10752 = vmatprep.subr.bf16.mxu0 0
    %10753 = vmatpush1.bf16.msra.mxu0 %v10668
    %10754 = vmatprep.subr.bf16.mxu0 0
    %10755 = vmatpush1.bf16.msra.mxu0 %v10667
    %10756 = vmatprep.subr.bf16.mxu0 0
    %10757 = vmatpush1.bf16.msra.mxu0 %v10666
    %10758 = vmatprep.subr.bf16.mxu0 0
    %10759 = vmatpush1.bf16.msra.mxu0 %v10665
    %10760 = vmatprep.subr.bf16.mxu0 0
    %10761 = vmatpush1.bf16.msra.mxu0 %v10664
    %10762 = vmatprep.subr.bf16.mxu0 0
    %10763 = vmatpush1.bf16.msra.mxu0 %v10663
    %10764 = vmatprep.subr.bf16.mxu0 0
    %10765 = vmatpush1.bf16.msra.mxu0 %v10662
    %10766 = vmatprep.subr.bf16.mxu0 0
    %10767 = vmatpush2.bf16.msra.mxu0 %v10677
    %10768 = vmatprep.subr.bf16.mxu0 0
    %10769 = vmatpush2.bf16.msra.mxu0 %v10676
    %10770 = vmatprep.subr.bf16.mxu0 0
    %10771 = vmatpush2.bf16.msra.mxu0 %v10675
    %10772 = vmatprep.subr.bf16.mxu0 0
    %10773 = vmatpush2.bf16.msra.mxu0 %v10674
    %10774 = vmatprep.subr.bf16.mxu0 0
    %10775 = vmatpush2.bf16.msra.mxu0 %v10673
    %10776 = vmatprep.subr.bf16.mxu0 0
    %10777 = vmatpush2.bf16.msra.mxu0 %v10672
    %10778 = vmatprep.subr.bf16.mxu0 0
    %10779 = vmatpush2.bf16.msra.mxu0 %v10671
    %10780 = vmatprep.subr.bf16.mxu0 0
    %10781 = vmatpush2.bf16.msra.mxu0 %v10670
    %10782 = vmatprep.mubr.bf16.mxu0 %v9659
    %10783 = vmatmul.mubr.bf16.gmra.mxu0 %v9658
    %v10784 = vpop.f32.mrf.mxu0
    %v10785 = vadd.f32 %v10745, %v10784
    %v10786 = vpop.f32.mrf.mxu0
    %v10787 = vpop.f32.mrf.mxu0
    %v10788 = vpop.f32.mrf.mxu0
    %10789 = vdwg.mxu0
    %s10790 = scalar_lea.vmem %s17, 2
    %v10791 = vld [vmem:[%s10790] sm:$0x3]
    %v10793 = vsel %vm9998, %v10791, 0
    %v10796 = vsel %vm10002, %v10785, 0
    %10798 = vmatprep.subr.mxu0 0.0
    %10799 = vmatpush1.msra.mxu0 0.0
    %10800 = vmatprep.subr.mxu0 0.0
    %10801 = vmatpush1.msra.mxu0 0.0
    %10802 = vmatprep.subr.mxu0 0.0
    %10803 = vmatpush1.msra.mxu0 0.0
    %10804 = vmatprep.subr.mxu0 0.0
    %10805 = vmatpush1.msra.mxu0 0.0
    %10806 = vmatprep.subr.mxu0 0.0
    %10807 = vmatpush1.msra.mxu0 0.0
    %10808 = vmatprep.subr.mxu0 0.0
    %10809 = vmatpush1.msra.mxu0 0.0
    %10810 = vmatprep.subr.mxu0 0.0
    %10811 = vmatpush1.msra.mxu0 0.0
    %10812 = vmatprep.subr.mxu0 0.0
    %10813 = vmatpush1.msra.mxu0 0.0
    %10814 = vmatprep.subr.mxu0 0.0
    %10815 = vmatpush1.msra.mxu0 0.0
    %10816 = vmatprep.subr.mxu0 0.0
    %10817 = vmatpush1.msra.mxu0 0.0
    %10818 = vmatprep.subr.mxu0 0.0
    %10819 = vmatpush1.msra.mxu0 0.0
    %10820 = vmatprep.subr.mxu0 0.0
    %10821 = vmatpush1.msra.mxu0 0.0
    %10822 = vmatprep.subr.mxu0 0.0
    %10823 = vmatpush1.msra.mxu0 0.0
    %10824 = vmatprep.subr.mxu0 0.0
    %10825 = vmatpush1.msra.mxu0 0.0
    %10826 = vmatprep.subr.mxu0 0.0
    %10827 = vmatpush1.msra.mxu0 0.0
    %10828 = vmatprep.subr.mxu0 0.0
    %v10829 = vand.u32 %v10796, 4294901760
    %10830 = vmatpush1.msra.mxu0 %v10829
    %10831 = vmatprep.subr.mxu0 0.0
    %10832 = vmatpush2.msra.mxu0 0.0
    %10833 = vmatprep.subr.mxu0 0.0
    %10834 = vmatpush2.msra.mxu0 0.0
    %10835 = vmatprep.subr.mxu0 0.0
    %10836 = vmatpush2.msra.mxu0 0.0
    %10837 = vmatprep.subr.mxu0 0.0
    %10838 = vmatpush2.msra.mxu0 0.0
    %10839 = vmatprep.subr.mxu0 0.0
    %10840 = vmatpush2.msra.mxu0 0.0
    %10841 = vmatprep.subr.mxu0 0.0
    %10842 = vmatpush2.msra.mxu0 0.0
    %10843 = vmatprep.subr.mxu0 0.0
    %10844 = vmatpush2.msra.mxu0 0.0
    %10845 = vmatprep.subr.mxu0 0.0
    %10846 = vmatpush2.msra.mxu0 0.0
    %10847 = vmatprep.subr.mxu0 0.0
    %10848 = vmatpush2.msra.mxu0 0.0
    %10849 = vmatprep.subr.mxu0 0.0
    %10850 = vmatpush2.msra.mxu0 0.0
    %10851 = vmatprep.subr.mxu0 0.0
    %10852 = vmatpush2.msra.mxu0 0.0
    %10853 = vmatprep.subr.mxu0 0.0
    %10854 = vmatpush2.msra.mxu0 0.0
    %10855 = vmatprep.subr.mxu0 0.0
    %10856 = vmatpush2.msra.mxu0 0.0
    %10857 = vmatprep.subr.mxu0 0.0
    %10858 = vmatpush2.msra.mxu0 0.0
    %10859 = vmatprep.subr.mxu0 0.0
    %10860 = vmatpush2.msra.mxu0 0.0
    %10861 = vmatprep.subr.mxu0 0.0
    %10862 = vmatpush2.msra.mxu0 0.0
    %10863 = vmatprep.mubr.f32.mxu0 0.0
    %v10864 = vand.u32 %v10793, 4294901760
    %v10865 = vsub.f32 %v10793, %v10864
    %v10866 = vand.u32 %v10865, 4294901760
    %v10867 = vsub.f32 %v10865, %v10866
    %v10868 = vand.u32 %v10867, 4294901760
    %10869 = vmatmul.mubr.f32.gmra.mxu0 %v10868
    %v10870 = vpop.f32.mrf.mxu0
    %v10871 = vadd.f32 0.0, %v10870
    %v10872 = vpop.f32.mrf.mxu0
    %10873 = vdwg.mxu0
    %10874 = vmatprep.subr.mxu0 0.0
    %10875 = vmatpush1.msra.mxu0 0.0
    %10876 = vmatprep.subr.mxu0 0.0
    %10877 = vmatpush1.msra.mxu0 0.0
    %10878 = vmatprep.subr.mxu0 0.0
    %10879 = vmatpush1.msra.mxu0 0.0
    %10880 = vmatprep.subr.mxu0 0.0
    %10881 = vmatpush1.msra.mxu0 0.0
    %10882 = vmatprep.subr.mxu0 0.0
    %10883 = vmatpush1.msra.mxu0 0.0
    %10884 = vmatprep.subr.mxu0 0.0
    %10885 = vmatpush1.msra.mxu0 0.0
    %10886 = vmatprep.subr.mxu0 0.0
    %10887 = vmatpush1.msra.mxu0 0.0
    %10888 = vmatprep.subr.mxu0 0.0
    %10889 = vmatpush1.msra.mxu0 0.0
    %10890 = vmatprep.subr.mxu0 0.0
    %10891 = vmatpush1.msra.mxu0 0.0
    %10892 = vmatprep.subr.mxu0 0.0
    %10893 = vmatpush1.msra.mxu0 0.0
    %10894 = vmatprep.subr.mxu0 0.0
    %10895 = vmatpush1.msra.mxu0 0.0
    %10896 = vmatprep.subr.mxu0 0.0
    %10897 = vmatpush1.msra.mxu0 0.0
    %10898 = vmatprep.subr.mxu0 0.0
    %10899 = vmatpush1.msra.mxu0 0.0
    %10900 = vmatprep.subr.mxu0 0.0
    %10901 = vmatpush1.msra.mxu0 0.0
    %10902 = vmatprep.subr.mxu0 0.0
    %10903 = vmatpush1.msra.mxu0 0.0
    %10904 = vmatprep.subr.mxu0 0.0
    %v10905 = vand.u32 %v10796, 4294901760
    %v10906 = vsub.f32 %v10796, %v10905
    %v10907 = vand.u32 %v10906, 4294901760
    %v10908 = vsub.f32 %v10906, %v10907
    %v10909 = vand.u32 %v10908, 4294901760
    %10910 = vmatpush1.msra.mxu0 %v10909
    %10911 = vmatprep.subr.mxu0 0.0
    %10912 = vmatpush2.msra.mxu0 0.0
    %10913 = vmatprep.subr.mxu0 0.0
    %10914 = vmatpush2.msra.mxu0 0.0
    %10915 = vmatprep.subr.mxu0 0.0
    %10916 = vmatpush2.msra.mxu0 0.0
    %10917 = vmatprep.subr.mxu0 0.0
    %10918 = vmatpush2.msra.mxu0 0.0
    %10919 = vmatprep.subr.mxu0 0.0
    %10920 = vmatpush2.msra.mxu0 0.0
    %10921 = vmatprep.subr.mxu0 0.0
    %10922 = vmatpush2.msra.mxu0 0.0
    %10923 = vmatprep.subr.mxu0 0.0
    %10924 = vmatpush2.msra.mxu0 0.0
    %10925 = vmatprep.subr.mxu0 0.0
    %10926 = vmatpush2.msra.mxu0 0.0
    %10927 = vmatprep.subr.mxu0 0.0
    %10928 = vmatpush2.msra.mxu0 0.0
    %10929 = vmatprep.subr.mxu0 0.0
    %10930 = vmatpush2.msra.mxu0 0.0
    %10931 = vmatprep.subr.mxu0 0.0
    %10932 = vmatpush2.msra.mxu0 0.0
    %10933 = vmatprep.subr.mxu0 0.0
    %10934 = vmatpush2.msra.mxu0 0.0
    %10935 = vmatprep.subr.mxu0 0.0
    %10936 = vmatpush2.msra.mxu0 0.0
    %10937 = vmatprep.subr.mxu0 0.0
    %10938 = vmatpush2.msra.mxu0 0.0
    %10939 = vmatprep.subr.mxu0 0.0
    %10940 = vmatpush2.msra.mxu0 0.0
    %10941 = vmatprep.subr.mxu0 0.0
    %10942 = vmatpush2.msra.mxu0 0.0
    %10943 = vmatprep.mubr.f32.mxu0 0.0
    %v10944 = vand.u32 %v10793, 4294901760
    %10945 = vmatmul.mubr.f32.gmra.mxu0 %v10944
    %v10946 = vpop.f32.mrf.mxu0
    %v10947 = vadd.f32 %v10871, %v10946
    %v10948 = vpop.f32.mrf.mxu0
    %10949 = vdwg.mxu0
    %10950 = vmatprep.subr.mxu0 0.0
    %10951 = vmatpush1.msra.mxu0 0.0
    %10952 = vmatprep.subr.mxu0 0.0
    %10953 = vmatpush1.msra.mxu0 0.0
    %10954 = vmatprep.subr.mxu0 0.0
    %10955 = vmatpush1.msra.mxu0 0.0
    %10956 = vmatprep.subr.mxu0 0.0
    %10957 = vmatpush1.msra.mxu0 0.0
    %10958 = vmatprep.subr.mxu0 0.0
    %10959 = vmatpush1.msra.mxu0 0.0
    %10960 = vmatprep.subr.mxu0 0.0
    %10961 = vmatpush1.msra.mxu0 0.0
    %10962 = vmatprep.subr.mxu0 0.0
    %10963 = vmatpush1.msra.mxu0 0.0
    %10964 = vmatprep.subr.mxu0 0.0
    %10965 = vmatpush1.msra.mxu0 0.0
    %10966 = vmatprep.subr.mxu0 0.0
    %10967 = vmatpush1.msra.mxu0 0.0
    %10968 = vmatprep.subr.mxu0 0.0
    %10969 = vmatpush1.msra.mxu0 0.0
    %10970 = vmatprep.subr.mxu0 0.0
    %10971 = vmatpush1.msra.mxu0 0.0
    %10972 = vmatprep.subr.mxu0 0.0
    %10973 = vmatpush1.msra.mxu0 0.0
    %10974 = vmatprep.subr.mxu0 0.0
    %10975 = vmatpush1.msra.mxu0 0.0
    %10976 = vmatprep.subr.mxu0 0.0
    %10977 = vmatpush1.msra.mxu0 0.0
    %10978 = vmatprep.subr.mxu0 0.0
    %10979 = vmatpush1.msra.mxu0 0.0
    %10980 = vmatprep.subr.mxu0 0.0
    %v10981 = vand.u32 %v10796, 4294901760
    %v10982 = vsub.f32 %v10796, %v10981
    %10983 = vmatpush1.msra.mxu0 %v10982
    %10984 = vmatprep.subr.mxu0 0.0
    %10985 = vmatpush2.msra.mxu0 0.0
    %10986 = vmatprep.subr.mxu0 0.0
    %10987 = vmatpush2.msra.mxu0 0.0
    %10988 = vmatprep.subr.mxu0 0.0
    %10989 = vmatpush2.msra.mxu0 0.0
    %10990 = vmatprep.subr.mxu0 0.0
    %10991 = vmatpush2.msra.mxu0 0.0
    %10992 = vmatprep.subr.mxu0 0.0
    %10993 = vmatpush2.msra.mxu0 0.0
    %10994 = vmatprep.subr.mxu0 0.0
    %10995 = vmatpush2.msra.mxu0 0.0
    %10996 = vmatprep.subr.mxu0 0.0
    %10997 = vmatpush2.msra.mxu0 0.0
    %10998 = vmatprep.subr.mxu0 0.0
    %10999 = vmatpush2.msra.mxu0 0.0
    %11000 = vmatprep.subr.mxu0 0.0
    %11001 = vmatpush2.msra.mxu0 0.0
    %11002 = vmatprep.subr.mxu0 0.0
    %11003 = vmatpush2.msra.mxu0 0.0
    %11004 = vmatprep.subr.mxu0 0.0
    %11005 = vmatpush2.msra.mxu0 0.0
    %11006 = vmatprep.subr.mxu0 0.0
    %11007 = vmatpush2.msra.mxu0 0.0
    %11008 = vmatprep.subr.mxu0 0.0
    %11009 = vmatpush2.msra.mxu0 0.0
    %11010 = vmatprep.subr.mxu0 0.0
    %11011 = vmatpush2.msra.mxu0 0.0
    %11012 = vmatprep.subr.mxu0 0.0
    %11013 = vmatpush2.msra.mxu0 0.0
    %11014 = vmatprep.subr.mxu0 0.0
    %11015 = vmatpush2.msra.mxu0 0.0
    %11016 = vmatprep.mubr.f32.mxu0 0.0
    %v11017 = vand.u32 %v10793, 4294901760
    %v11018 = vsub.f32 %v10793, %v11017
    %11019 = vmatmul.mubr.f32.gmra.mxu0 %v11018
    %v11020 = vpop.f32.mrf.mxu0
    %v11021 = vadd.f32 %v10947, %v11020
    %v11022 = vpop.f32.mrf.mxu0
    %11023 = vdwg.mxu0
    %11024 = vmatprep.subr.mxu0 0.0
    %11025 = vmatpush1.msra.mxu0 0.0
    %11026 = vmatprep.subr.mxu0 0.0
    %11027 = vmatpush1.msra.mxu0 0.0
    %11028 = vmatprep.subr.mxu0 0.0
    %11029 = vmatpush1.msra.mxu0 0.0
    %11030 = vmatprep.subr.mxu0 0.0
    %11031 = vmatpush1.msra.mxu0 0.0
    %11032 = vmatprep.subr.mxu0 0.0
    %11033 = vmatpush1.msra.mxu0 0.0
    %11034 = vmatprep.subr.mxu0 0.0
    %11035 = vmatpush1.msra.mxu0 0.0
    %11036 = vmatprep.subr.mxu0 0.0
    %11037 = vmatpush1.msra.mxu0 0.0
    %11038 = vmatprep.subr.mxu0 0.0
    %11039 = vmatpush1.msra.mxu0 0.0
    %11040 = vmatprep.subr.mxu0 0.0
    %11041 = vmatpush1.msra.mxu0 0.0
    %11042 = vmatprep.subr.mxu0 0.0
    %11043 = vmatpush1.msra.mxu0 0.0
    %11044 = vmatprep.subr.mxu0 0.0
    %11045 = vmatpush1.msra.mxu0 0.0
    %11046 = vmatprep.subr.mxu0 0.0
    %11047 = vmatpush1.msra.mxu0 0.0
    %11048 = vmatprep.subr.mxu0 0.0
    %11049 = vmatpush1.msra.mxu0 0.0
    %11050 = vmatprep.subr.mxu0 0.0
    %11051 = vmatpush1.msra.mxu0 0.0
    %11052 = vmatprep.subr.mxu0 0.0
    %11053 = vmatpush1.msra.mxu0 0.0
    %11054 = vmatprep.subr.mxu0 0.0
    %v11055 = vand.u32 %v10796, 4294901760
    %11056 = vmatpush1.msra.mxu0 %v11055
    %11057 = vmatprep.subr.mxu0 0.0
    %11058 = vmatpush2.msra.mxu0 0.0
    %11059 = vmatprep.subr.mxu0 0.0
    %11060 = vmatpush2.msra.mxu0 0.0
    %11061 = vmatprep.subr.mxu0 0.0
    %11062 = vmatpush2.msra.mxu0 0.0
    %11063 = vmatprep.subr.mxu0 0.0
    %11064 = vmatpush2.msra.mxu0 0.0
    %11065 = vmatprep.subr.mxu0 0.0
    %11066 = vmatpush2.msra.mxu0 0.0
    %11067 = vmatprep.subr.mxu0 0.0
    %11068 = vmatpush2.msra.mxu0 0.0
    %11069 = vmatprep.subr.mxu0 0.0
    %11070 = vmatpush2.msra.mxu0 0.0
    %11071 = vmatprep.subr.mxu0 0.0
    %11072 = vmatpush2.msra.mxu0 0.0
    %11073 = vmatprep.subr.mxu0 0.0
    %11074 = vmatpush2.msra.mxu0 0.0
    %11075 = vmatprep.subr.mxu0 0.0
    %11076 = vmatpush2.msra.mxu0 0.0
    %11077 = vmatprep.subr.mxu0 0.0
    %11078 = vmatpush2.msra.mxu0 0.0
    %11079 = vmatprep.subr.mxu0 0.0
    %11080 = vmatpush2.msra.mxu0 0.0
    %11081 = vmatprep.subr.mxu0 0.0
    %11082 = vmatpush2.msra.mxu0 0.0
    %11083 = vmatprep.subr.mxu0 0.0
    %11084 = vmatpush2.msra.mxu0 0.0
    %11085 = vmatprep.subr.mxu0 0.0
    %11086 = vmatpush2.msra.mxu0 0.0
    %11087 = vmatprep.subr.mxu0 0.0
    %11088 = vmatpush2.msra.mxu0 0.0
    %11089 = vmatprep.mubr.f32.mxu0 0.0
    %v11090 = vand.u32 %v10793, 4294901760
    %v11091 = vsub.f32 %v10793, %v11090
    %v11092 = vand.u32 %v11091, 4294901760
    %11093 = vmatmul.mubr.f32.gmra.mxu0 %v11092
    %v11094 = vpop.f32.mrf.mxu0
    %v11095 = vadd.f32 %v11021, %v11094
    %v11096 = vpop.f32.mrf.mxu0
    %11097 = vdwg.mxu0
    %11098 = vmatprep.subr.mxu0 0.0
    %11099 = vmatpush1.msra.mxu0 0.0
    %11100 = vmatprep.subr.mxu0 0.0
    %11101 = vmatpush1.msra.mxu0 0.0
    %11102 = vmatprep.subr.mxu0 0.0
    %11103 = vmatpush1.msra.mxu0 0.0
    %11104 = vmatprep.subr.mxu0 0.0
    %11105 = vmatpush1.msra.mxu0 0.0
    %11106 = vmatprep.subr.mxu0 0.0
    %11107 = vmatpush1.msra.mxu0 0.0
    %11108 = vmatprep.subr.mxu0 0.0
    %11109 = vmatpush1.msra.mxu0 0.0
    %11110 = vmatprep.subr.mxu0 0.0
    %11111 = vmatpush1.msra.mxu0 0.0
    %11112 = vmatprep.subr.mxu0 0.0
    %11113 = vmatpush1.msra.mxu0 0.0
    %11114 = vmatprep.subr.mxu0 0.0
    %11115 = vmatpush1.msra.mxu0 0.0
    %11116 = vmatprep.subr.mxu0 0.0
    %11117 = vmatpush1.msra.mxu0 0.0
    %11118 = vmatprep.subr.mxu0 0.0
    %11119 = vmatpush1.msra.mxu0 0.0
    %11120 = vmatprep.subr.mxu0 0.0
    %11121 = vmatpush1.msra.mxu0 0.0
    %11122 = vmatprep.subr.mxu0 0.0
    %11123 = vmatpush1.msra.mxu0 0.0
    %11124 = vmatprep.subr.mxu0 0.0
    %11125 = vmatpush1.msra.mxu0 0.0
    %11126 = vmatprep.subr.mxu0 0.0
    %11127 = vmatpush1.msra.mxu0 0.0
    %11128 = vmatprep.subr.mxu0 0.0
    %v11129 = vand.u32 %v10796, 4294901760
    %v11130 = vsub.f32 %v10796, %v11129
    %v11131 = vand.u32 %v11130, 4294901760
    %11132 = vmatpush1.msra.mxu0 %v11131
    %11133 = vmatprep.subr.mxu0 0.0
    %11134 = vmatpush2.msra.mxu0 0.0
    %11135 = vmatprep.subr.mxu0 0.0
    %11136 = vmatpush2.msra.mxu0 0.0
    %11137 = vmatprep.subr.mxu0 0.0
    %11138 = vmatpush2.msra.mxu0 0.0
    %11139 = vmatprep.subr.mxu0 0.0
    %11140 = vmatpush2.msra.mxu0 0.0
    %11141 = vmatprep.subr.mxu0 0.0
    %11142 = vmatpush2.msra.mxu0 0.0
    %11143 = vmatprep.subr.mxu0 0.0
    %11144 = vmatpush2.msra.mxu0 0.0
    %11145 = vmatprep.subr.mxu0 0.0
    %11146 = vmatpush2.msra.mxu0 0.0
    %11147 = vmatprep.subr.mxu0 0.0
    %11148 = vmatpush2.msra.mxu0 0.0
    %11149 = vmatprep.subr.mxu0 0.0
    %11150 = vmatpush2.msra.mxu0 0.0
    %11151 = vmatprep.subr.mxu0 0.0
    %11152 = vmatpush2.msra.mxu0 0.0
    %11153 = vmatprep.subr.mxu0 0.0
    %11154 = vmatpush2.msra.mxu0 0.0
    %11155 = vmatprep.subr.mxu0 0.0
    %11156 = vmatpush2.msra.mxu0 0.0
    %11157 = vmatprep.subr.mxu0 0.0
    %11158 = vmatpush2.msra.mxu0 0.0
    %11159 = vmatprep.subr.mxu0 0.0
    %11160 = vmatpush2.msra.mxu0 0.0
    %11161 = vmatprep.subr.mxu0 0.0
    %11162 = vmatpush2.msra.mxu0 0.0
    %11163 = vmatprep.subr.mxu0 0.0
    %11164 = vmatpush2.msra.mxu0 0.0
    %11165 = vmatprep.mubr.f32.mxu0 0.0
    %v11166 = vand.u32 %v10793, 4294901760
    %11167 = vmatmul.mubr.f32.gmra.mxu0 %v11166
    %v11168 = vpop.f32.mrf.mxu0
    %v11169 = vadd.f32 %v11095, %v11168
    %v11170 = vpop.f32.mrf.mxu0
    %11171 = vdwg.mxu0
    %11172 = vmatprep.subr.mxu0 0.0
    %11173 = vmatpush1.msra.mxu0 0.0
    %11174 = vmatprep.subr.mxu0 0.0
    %11175 = vmatpush1.msra.mxu0 0.0
    %11176 = vmatprep.subr.mxu0 0.0
    %11177 = vmatpush1.msra.mxu0 0.0
    %11178 = vmatprep.subr.mxu0 0.0
    %11179 = vmatpush1.msra.mxu0 0.0
    %11180 = vmatprep.subr.mxu0 0.0
    %11181 = vmatpush1.msra.mxu0 0.0
    %11182 = vmatprep.subr.mxu0 0.0
    %11183 = vmatpush1.msra.mxu0 0.0
    %11184 = vmatprep.subr.mxu0 0.0
    %11185 = vmatpush1.msra.mxu0 0.0
    %11186 = vmatprep.subr.mxu0 0.0
    %11187 = vmatpush1.msra.mxu0 0.0
    %11188 = vmatprep.subr.mxu0 0.0
    %11189 = vmatpush1.msra.mxu0 0.0
    %11190 = vmatprep.subr.mxu0 0.0
    %11191 = vmatpush1.msra.mxu0 0.0
    %11192 = vmatprep.subr.mxu0 0.0
    %11193 = vmatpush1.msra.mxu0 0.0
    %11194 = vmatprep.subr.mxu0 0.0
    %11195 = vmatpush1.msra.mxu0 0.0
    %11196 = vmatprep.subr.mxu0 0.0
    %11197 = vmatpush1.msra.mxu0 0.0
    %11198 = vmatprep.subr.mxu0 0.0
    %11199 = vmatpush1.msra.mxu0 0.0
    %11200 = vmatprep.subr.mxu0 0.0
    %11201 = vmatpush1.msra.mxu0 0.0
    %11202 = vmatprep.subr.mxu0 0.0
    %v11203 = vand.u32 %v10796, 4294901760
    %11204 = vmatpush1.msra.mxu0 %v11203
    %11205 = vmatprep.subr.mxu0 0.0
    %11206 = vmatpush2.msra.mxu0 0.0
    %11207 = vmatprep.subr.mxu0 0.0
    %11208 = vmatpush2.msra.mxu0 0.0
    %11209 = vmatprep.subr.mxu0 0.0
    %11210 = vmatpush2.msra.mxu0 0.0
    %11211 = vmatprep.subr.mxu0 0.0
    %11212 = vmatpush2.msra.mxu0 0.0
    %11213 = vmatprep.subr.mxu0 0.0
    %11214 = vmatpush2.msra.mxu0 0.0
    %11215 = vmatprep.subr.mxu0 0.0
    %11216 = vmatpush2.msra.mxu0 0.0
    %11217 = vmatprep.subr.mxu0 0.0
    %11218 = vmatpush2.msra.mxu0 0.0
    %11219 = vmatprep.subr.mxu0 0.0
    %11220 = vmatpush2.msra.mxu0 0.0
    %11221 = vmatprep.subr.mxu0 0.0
    %11222 = vmatpush2.msra.mxu0 0.0
    %11223 = vmatprep.subr.mxu0 0.0
    %11224 = vmatpush2.msra.mxu0 0.0
    %11225 = vmatprep.subr.mxu0 0.0
    %11226 = vmatpush2.msra.mxu0 0.0
    %11227 = vmatprep.subr.mxu0 0.0
    %11228 = vmatpush2.msra.mxu0 0.0
    %11229 = vmatprep.subr.mxu0 0.0
    %11230 = vmatpush2.msra.mxu0 0.0
    %11231 = vmatprep.subr.mxu0 0.0
    %11232 = vmatpush2.msra.mxu0 0.0
    %11233 = vmatprep.subr.mxu0 0.0
    %11234 = vmatpush2.msra.mxu0 0.0
    %11235 = vmatprep.subr.mxu0 0.0
    %11236 = vmatpush2.msra.mxu0 0.0
    %11237 = vmatprep.mubr.f32.mxu0 0.0
    %v11238 = vand.u32 %v10793, 4294901760
    %11239 = vmatmul.mubr.f32.gmra.mxu0 %v11238
    %v11240 = vpop.f32.mrf.mxu0
    %v11241 = vadd.f32 %v11169, %v11240
    %v11242 = vpop.f32.mrf.mxu0
    %11243 = vdwg.mxu0
    %v11244 = vadd.f32 %v10452, %v11241
    %s11245 = scalar_lea.vmem [#allocation22], 512
    %v11246 = vld [vmem:[%s11245] sm:$0xf]
    %v11247 = vld [vmem:[%s11245 + $0x4] sm:$0xf]
    %v11248 = vld [vmem:[%s11245 + $0x8] sm:$0xf]
    %v11249 = vld [vmem:[%s11245 + $0xc] sm:$0xf]
    %v11250 = vld [vmem:[%s11245 + $0x10] sm:$0xf]
    %v11251 = vld [vmem:[%s11245 + $0x14] sm:$0xf]
    %v11252 = vld [vmem:[%s11245 + $0x18] sm:$0xf]
    %v11253 = vld [vmem:[%s11245 + $0x1c] sm:$0xf]
    %v11254 = vld [vmem:[%s11245 + $0x20] sm:$0xf]
    %v11255 = vld [vmem:[%s11245 + $0x24] sm:$0xf]
    %v11256 = vld [vmem:[%s11245 + $0x28] sm:$0xf]
    %v11257 = vld [vmem:[%s11245 + $0x2c] sm:$0xf]
    %v11258 = vld [vmem:[%s11245 + $0x30] sm:$0xf]
    %v11259 = vld [vmem:[%s11245 + $0x34] sm:$0xf]
    %v11260 = vld [vmem:[%s11245 + $0x38] sm:$0xf]
    %v11261 = vld [vmem:[%s11245 + $0x3c] sm:$0xf]
    %v11262 = vld [vmem:[%s11245 + $0x40] sm:$0xf]
    %v11263 = vld [vmem:[%s11245 + $0x44] sm:$0xf]
    %v11264 = vld [vmem:[%s11245 + $0x48] sm:$0xf]
    %v11265 = vld [vmem:[%s11245 + $0x4c] sm:$0xf]
    %v11266 = vld [vmem:[%s11245 + $0x50] sm:$0xf]
    %v11267 = vld [vmem:[%s11245 + $0x54] sm:$0xf]
    %v11268 = vld [vmem:[%s11245 + $0x58] sm:$0xf]
    %v11269 = vld [vmem:[%s11245 + $0x5c] sm:$0xf]
    %v11270 = vld [vmem:[%s11245 + $0x60] sm:$0xf]
    %v11271 = vld [vmem:[%s11245 + $0x64] sm:$0xf]
    %v11272 = vld [vmem:[%s11245 + $0x68] sm:$0xf]
    %v11273 = vld [vmem:[%s11245 + $0x6c] sm:$0xf]
    %v11274 = vld [vmem:[%s11245 + $0x70] sm:$0xf]
    %v11275 = vld [vmem:[%s11245 + $0x74] sm:$0xf]
    %v11276 = vld [vmem:[%s11245 + $0x78] sm:$0xf]
    %v11277 = vld [vmem:[%s11245 + $0x7c] sm:$0xf]
    %v11278 = vld [vmem:[%s11245 + $0x80] sm:$0xf]
    %v11279 = vld [vmem:[%s11245 + $0x84] sm:$0xf]
    %v11280 = vld [vmem:[%s11245 + $0x88] sm:$0xf]
    %v11281 = vld [vmem:[%s11245 + $0x8c] sm:$0xf]
    %v11282 = vld [vmem:[%s11245 + $0x90] sm:$0xf]
    %v11283 = vld [vmem:[%s11245 + $0x94] sm:$0xf]
    %v11284 = vld [vmem:[%s11245 + $0x98] sm:$0xf]
    %v11285 = vld [vmem:[%s11245 + $0x9c] sm:$0xf]
    %v11286 = vld [vmem:[%s11245 + $0xa0] sm:$0xf]
    %v11287 = vld [vmem:[%s11245 + $0xa4] sm:$0xf]
    %v11288 = vld [vmem:[%s11245 + $0xa8] sm:$0xf]
    %v11289 = vld [vmem:[%s11245 + $0xac] sm:$0xf]
    %v11290 = vld [vmem:[%s11245 + $0xb0] sm:$0xf]
    %v11291 = vld [vmem:[%s11245 + $0xb4] sm:$0xf]
    %v11292 = vld [vmem:[%s11245 + $0xb8] sm:$0xf]
    %v11293 = vld [vmem:[%s11245 + $0xbc] sm:$0xf]
    %v11294 = vld [vmem:[%s11245 + $0xc0] sm:$0xf]
    %v11295 = vld [vmem:[%s11245 + $0xc4] sm:$0xf]
    %v11296 = vld [vmem:[%s11245 + $0xc8] sm:$0xf]
    %v11297 = vld [vmem:[%s11245 + $0xcc] sm:$0xf]
    %v11298 = vld [vmem:[%s11245 + $0xd0] sm:$0xf]
    %v11299 = vld [vmem:[%s11245 + $0xd4] sm:$0xf]
    %v11300 = vld [vmem:[%s11245 + $0xd8] sm:$0xf]
    %v11301 = vld [vmem:[%s11245 + $0xdc] sm:$0xf]
    %v11302 = vld [vmem:[%s11245 + $0xe0] sm:$0xf]
    %v11303 = vld [vmem:[%s11245 + $0xe4] sm:$0xf]
    %v11304 = vld [vmem:[%s11245 + $0xe8] sm:$0xf]
    %v11305 = vld [vmem:[%s11245 + $0xec] sm:$0xf]
    %v11306 = vld [vmem:[%s11245 + $0xf0] sm:$0xf]
    %v11307 = vld [vmem:[%s11245 + $0xf4] sm:$0xf]
    %v11308 = vld [vmem:[%s11245 + $0xf8] sm:$0xf]
    %v11309 = vld [vmem:[%s11245 + $0xfc] sm:$0xf]
    %v11374 = vunpack.c.l.b16 %v11246
    %v11375 = vunpack.c.l.b16 %v11247
    %v11376 = vunpack.c.l.b16 %v11248
    %v11377 = vunpack.c.l.b16 %v11249
    %v11378 = vunpack.c.l.b16 %v11250
    %v11379 = vunpack.c.l.b16 %v11251
    %v11380 = vunpack.c.l.b16 %v11252
    %v11381 = vunpack.c.l.b16 %v11253
    %v11382 = vunpack.c.l.b16 %v11254
    %v11383 = vunpack.c.l.b16 %v11255
    %v11384 = vunpack.c.l.b16 %v11256
    %v11385 = vunpack.c.l.b16 %v11257
    %v11386 = vunpack.c.l.b16 %v11258
    %v11387 = vunpack.c.l.b16 %v11259
    %v11388 = vunpack.c.l.b16 %v11260
    %v11389 = vunpack.c.l.b16 %v11261
    %v11390 = vunpack.c.l.b16 %v11262
    %v11391 = vunpack.c.l.b16 %v11263
    %v11392 = vunpack.c.l.b16 %v11264
    %v11393 = vunpack.c.l.b16 %v11265
    %v11394 = vunpack.c.l.b16 %v11266
    %v11395 = vunpack.c.l.b16 %v11267
    %v11396 = vunpack.c.l.b16 %v11268
    %v11397 = vunpack.c.l.b16 %v11269
    %v11398 = vunpack.c.l.b16 %v11270
    %v11399 = vunpack.c.l.b16 %v11271
    %v11400 = vunpack.c.l.b16 %v11272
    %v11401 = vunpack.c.l.b16 %v11273
    %v11402 = vunpack.c.l.b16 %v11274
    %v11403 = vunpack.c.l.b16 %v11275
    %v11404 = vunpack.c.l.b16 %v11276
    %v11405 = vunpack.c.l.b16 %v11277
    %v11406 = vunpack.c.l.b16 %v11278
    %v11407 = vunpack.c.l.b16 %v11279
    %v11408 = vunpack.c.l.b16 %v11280
    %v11409 = vunpack.c.l.b16 %v11281
    %v11410 = vunpack.c.l.b16 %v11282
    %v11411 = vunpack.c.l.b16 %v11283
    %v11412 = vunpack.c.l.b16 %v11284
    %v11413 = vunpack.c.l.b16 %v11285
    %v11414 = vunpack.c.l.b16 %v11286
    %v11415 = vunpack.c.l.b16 %v11287
    %v11416 = vunpack.c.l.b16 %v11288
    %v11417 = vunpack.c.l.b16 %v11289
    %v11418 = vunpack.c.l.b16 %v11290
    %v11419 = vunpack.c.l.b16 %v11291
    %v11420 = vunpack.c.l.b16 %v11292
    %v11421 = vunpack.c.l.b16 %v11293
    %v11422 = vunpack.c.l.b16 %v11294
    %v11423 = vunpack.c.l.b16 %v11295
    %v11424 = vunpack.c.l.b16 %v11296
    %v11425 = vunpack.c.l.b16 %v11297
    %v11426 = vunpack.c.l.b16 %v11298
    %v11427 = vunpack.c.l.b16 %v11299
    %v11428 = vunpack.c.l.b16 %v11300
    %v11429 = vunpack.c.l.b16 %v11301
    %v11430 = vunpack.c.l.b16 %v11302
    %v11431 = vunpack.c.l.b16 %v11303
    %v11432 = vunpack.c.l.b16 %v11304
    %v11433 = vunpack.c.l.b16 %v11305
    %v11434 = vunpack.c.l.b16 %v11306
    %v11435 = vunpack.c.l.b16 %v11307
    %v11436 = vunpack.c.l.b16 %v11308
    %v11437 = vunpack.c.l.b16 %v11309
    %v11438 = vpack.c.b16 %v11375, %v11374
    %v11439 = vpack.c.b16 %v11377, %v11376
    %v11440 = vpack.c.b16 %v11379, %v11378
    %v11441 = vpack.c.b16 %v11381, %v11380
    %v11442 = vpack.c.b16 %v11383, %v11382
    %v11443 = vpack.c.b16 %v11385, %v11384
    %v11444 = vpack.c.b16 %v11387, %v11386
    %v11445 = vpack.c.b16 %v11389, %v11388
    %v11446 = vpack.c.b16 %v11391, %v11390
    %v11447 = vpack.c.b16 %v11393, %v11392
    %v11448 = vpack.c.b16 %v11395, %v11394
    %v11449 = vpack.c.b16 %v11397, %v11396
    %v11450 = vpack.c.b16 %v11399, %v11398
    %v11451 = vpack.c.b16 %v11401, %v11400
    %v11452 = vpack.c.b16 %v11403, %v11402
    %v11453 = vpack.c.b16 %v11405, %v11404
    %v11454 = vpack.c.b16 %v11407, %v11406
    %v11455 = vpack.c.b16 %v11409, %v11408
    %v11456 = vpack.c.b16 %v11411, %v11410
    %v11457 = vpack.c.b16 %v11413, %v11412
    %v11458 = vpack.c.b16 %v11415, %v11414
    %v11459 = vpack.c.b16 %v11417, %v11416
    %v11460 = vpack.c.b16 %v11419, %v11418
    %v11461 = vpack.c.b16 %v11421, %v11420
    %v11462 = vpack.c.b16 %v11423, %v11422
    %v11463 = vpack.c.b16 %v11425, %v11424
    %v11464 = vpack.c.b16 %v11427, %v11426
    %v11465 = vpack.c.b16 %v11429, %v11428
    %v11466 = vpack.c.b16 %v11431, %v11430
    %v11467 = vpack.c.b16 %v11433, %v11432
    %v11468 = vpack.c.b16 %v11435, %v11434
    %v11469 = vpack.c.b16 %v11437, %v11436
    %11502 = vmatprep.subr.bf16.mxu0 0
    %11503 = vmatpush1.bf16.msra.mxu0 %v11445
    %11504 = vmatprep.subr.bf16.mxu0 0
    %11505 = vmatpush1.bf16.msra.mxu0 %v11444
    %11506 = vmatprep.subr.bf16.mxu0 0
    %11507 = vmatpush1.bf16.msra.mxu0 %v11443
    %11508 = vmatprep.subr.bf16.mxu0 0
    %11509 = vmatpush1.bf16.msra.mxu0 %v11442
    %11510 = vmatprep.subr.bf16.mxu0 0
    %11511 = vmatpush1.bf16.msra.mxu0 %v11441
    %11512 = vmatprep.subr.bf16.mxu0 0
    %11513 = vmatpush1.bf16.msra.mxu0 %v11440
    %11514 = vmatprep.subr.bf16.mxu0 0
    %11515 = vmatpush1.bf16.msra.mxu0 %v11439
    %11516 = vmatprep.subr.bf16.mxu0 0
    %11517 = vmatpush1.bf16.msra.mxu0 %v11438
    %11518 = vmatprep.subr.bf16.mxu0 0
    %11519 = vmatpush2.bf16.msra.mxu0 %v11453
    %11520 = vmatprep.subr.bf16.mxu0 0
    %11521 = vmatpush2.bf16.msra.mxu0 %v11452
    %11522 = vmatprep.subr.bf16.mxu0 0
    %11523 = vmatpush2.bf16.msra.mxu0 %v11451
    %11524 = vmatprep.subr.bf16.mxu0 0
    %11525 = vmatpush2.bf16.msra.mxu0 %v11450
    %11526 = vmatprep.subr.bf16.mxu0 0
    %11527 = vmatpush2.bf16.msra.mxu0 %v11449
    %11528 = vmatprep.subr.bf16.mxu0 0
    %11529 = vmatpush2.bf16.msra.mxu0 %v11448
    %11530 = vmatprep.subr.bf16.mxu0 0
    %11531 = vmatpush2.bf16.msra.mxu0 %v11447
    %11532 = vmatprep.subr.bf16.mxu0 0
    %11533 = vmatpush2.bf16.msra.mxu0 %v11446
    %11534 = vmatprep.mubr.bf16.mxu0 %v9657
    %11535 = vmatmul.mubr.bf16.gmra.mxu0 %v9656
    %v11536 = vpop.f32.mrf.mxu0
    %v11537 = vadd.f32 0.0, %v11536
    %v11538 = vpop.f32.mrf.mxu0
    %v11539 = vpop.f32.mrf.mxu0
    %v11540 = vpop.f32.mrf.mxu0
    %11541 = vdwg.mxu0
    %11542 = vmatprep.subr.bf16.mxu0 0
    %11543 = vmatpush1.bf16.msra.mxu0 %v11461
    %11544 = vmatprep.subr.bf16.mxu0 0
    %11545 = vmatpush1.bf16.msra.mxu0 %v11460
    %11546 = vmatprep.subr.bf16.mxu0 0
    %11547 = vmatpush1.bf16.msra.mxu0 %v11459
    %11548 = vmatprep.subr.bf16.mxu0 0
    %11549 = vmatpush1.bf16.msra.mxu0 %v11458
    %11550 = vmatprep.subr.bf16.mxu0 0
    %11551 = vmatpush1.bf16.msra.mxu0 %v11457
    %11552 = vmatprep.subr.bf16.mxu0 0
    %11553 = vmatpush1.bf16.msra.mxu0 %v11456
    %11554 = vmatprep.subr.bf16.mxu0 0
    %11555 = vmatpush1.bf16.msra.mxu0 %v11455
    %11556 = vmatprep.subr.bf16.mxu0 0
    %11557 = vmatpush1.bf16.msra.mxu0 %v11454
    %11558 = vmatprep.subr.bf16.mxu0 0
    %11559 = vmatpush2.bf16.msra.mxu0 %v11469
    %11560 = vmatprep.subr.bf16.mxu0 0
    %11561 = vmatpush2.bf16.msra.mxu0 %v11468
    %11562 = vmatprep.subr.bf16.mxu0 0
    %11563 = vmatpush2.bf16.msra.mxu0 %v11467
    %11564 = vmatprep.subr.bf16.mxu0 0
    %11565 = vmatpush2.bf16.msra.mxu0 %v11466
    %11566 = vmatprep.subr.bf16.mxu0 0
    %11567 = vmatpush2.bf16.msra.mxu0 %v11465
    %11568 = vmatprep.subr.bf16.mxu0 0
    %11569 = vmatpush2.bf16.msra.mxu0 %v11464
    %11570 = vmatprep.subr.bf16.mxu0 0
    %11571 = vmatpush2.bf16.msra.mxu0 %v11463
    %11572 = vmatprep.subr.bf16.mxu0 0
    %11573 = vmatpush2.bf16.msra.mxu0 %v11462
    %11574 = vmatprep.mubr.bf16.mxu0 %v9659
    %11575 = vmatmul.mubr.bf16.gmra.mxu0 %v9658
    %v11576 = vpop.f32.mrf.mxu0
    %v11577 = vadd.f32 %v11537, %v11576
    %v11578 = vpop.f32.mrf.mxu0
    %v11579 = vpop.f32.mrf.mxu0
    %v11580 = vpop.f32.mrf.mxu0
    %11581 = vdwg.mxu0
    %v11582 = vadd.f32 %v11244, %v11577
    %v11583 = vmul.f32 %v11582, 0.2
    %v11584 = vmax.f32 %v11582, %v11583
    %v11585 = vld [vmem:[#allocation5] sm:$0x1]
    %v11587 = vsel %vm283, %v11585, 0
    %v11590 = vsel %vm283, %v11584, 0
    %11592 = vmatprep.subr.mxu0 0.0
    %11593 = vmatpush1.xpose.msra.mxu0 0.0
    %11594 = vmatprep.subr.mxu0 0.0
    %11595 = vmatpush1.xpose.msra.mxu0 0.0
    %11596 = vmatprep.subr.mxu0 0.0
    %11597 = vmatpush1.xpose.msra.mxu0 0.0
    %11598 = vmatprep.subr.mxu0 0.0
    %11599 = vmatpush1.xpose.msra.mxu0 0.0
    %11600 = vmatprep.subr.mxu0 0.0
    %11601 = vmatpush1.xpose.msra.mxu0 0.0
    %11602 = vmatprep.subr.mxu0 0.0
    %11603 = vmatpush1.xpose.msra.mxu0 0.0
    %11604 = vmatprep.subr.mxu0 0.0
    %11605 = vmatpush1.xpose.msra.mxu0 0.0
    %11606 = vmatprep.subr.mxu0 0.0
    %11607 = vmatpush1.xpose.msra.mxu0 0.0
    %11608 = vmatprep.subr.mxu0 0.0
    %11609 = vmatpush1.xpose.msra.mxu0 0.0
    %11610 = vmatprep.subr.mxu0 0.0
    %11611 = vmatpush1.xpose.msra.mxu0 0.0
    %11612 = vmatprep.subr.mxu0 0.0
    %11613 = vmatpush1.xpose.msra.mxu0 0.0
    %11614 = vmatprep.subr.mxu0 0.0
    %11615 = vmatpush1.xpose.msra.mxu0 0.0
    %11616 = vmatprep.subr.mxu0 0.0
    %11617 = vmatpush1.xpose.msra.mxu0 0.0
    %11618 = vmatprep.subr.mxu0 0.0
    %11619 = vmatpush1.xpose.msra.mxu0 0.0
    %11620 = vmatprep.subr.mxu0 0.0
    %11621 = vmatpush1.xpose.msra.mxu0 0.0
    %11622 = vmatprep.subr.mxu0 0.0
    %v11623 = vand.u32 %v11590, 4294901760
    %11624 = vmatpush1.xpose.msra.mxu0 %v11623
    %11625 = vmatprep.subr.mxu0 0.0
    %11626 = vmatpush2.xpose.msra.mxu0 0.0
    %11627 = vmatprep.subr.mxu0 0.0
    %11628 = vmatpush2.xpose.msra.mxu0 0.0
    %11629 = vmatprep.subr.mxu0 0.0
    %11630 = vmatpush2.xpose.msra.mxu0 0.0
    %11631 = vmatprep.subr.mxu0 0.0
    %11632 = vmatpush2.xpose.msra.mxu0 0.0
    %11633 = vmatprep.subr.mxu0 0.0
    %11634 = vmatpush2.xpose.msra.mxu0 0.0
    %11635 = vmatprep.subr.mxu0 0.0
    %11636 = vmatpush2.xpose.msra.mxu0 0.0
    %11637 = vmatprep.subr.mxu0 0.0
    %11638 = vmatpush2.xpose.msra.mxu0 0.0
    %11639 = vmatprep.subr.mxu0 0.0
    %11640 = vmatpush2.xpose.msra.mxu0 0.0
    %11641 = vmatprep.subr.mxu0 0.0
    %11642 = vmatpush2.xpose.msra.mxu0 0.0
    %11643 = vmatprep.subr.mxu0 0.0
    %11644 = vmatpush2.xpose.msra.mxu0 0.0
    %11645 = vmatprep.subr.mxu0 0.0
    %11646 = vmatpush2.xpose.msra.mxu0 0.0
    %11647 = vmatprep.subr.mxu0 0.0
    %11648 = vmatpush2.xpose.msra.mxu0 0.0
    %11649 = vmatprep.subr.mxu0 0.0
    %11650 = vmatpush2.xpose.msra.mxu0 0.0
    %11651 = vmatprep.subr.mxu0 0.0
    %11652 = vmatpush2.xpose.msra.mxu0 0.0
    %11653 = vmatprep.subr.mxu0 0.0
    %11654 = vmatpush2.xpose.msra.mxu0 0.0
    %11655 = vmatprep.subr.mxu0 0.0
    %11656 = vmatpush2.xpose.msra.mxu0 0.0
    %11657 = vmatprep.mubr.f32.mxu0 0.0
    %v11658 = vand.u32 %v11587, 4294901760
    %v11659 = vsub.f32 %v11587, %v11658
    %v11660 = vand.u32 %v11659, 4294901760
    %v11661 = vsub.f32 %v11659, %v11660
    %v11662 = vand.u32 %v11661, 4294901760
    %11663 = vmatmul.mubr.f32.gmra.mxu0 %v11662
    %v11664 = vpop.f32.mrf.mxu0
    %v11665 = vadd.f32 0.0, %v11664
    %v11666 = vpop.f32.mrf.mxu0
    %11667 = vdwg.mxu0
    %11668 = vmatprep.subr.mxu0 0.0
    %11669 = vmatpush1.xpose.msra.mxu0 0.0
    %11670 = vmatprep.subr.mxu0 0.0
    %11671 = vmatpush1.xpose.msra.mxu0 0.0
    %11672 = vmatprep.subr.mxu0 0.0
    %11673 = vmatpush1.xpose.msra.mxu0 0.0
    %11674 = vmatprep.subr.mxu0 0.0
    %11675 = vmatpush1.xpose.msra.mxu0 0.0
    %11676 = vmatprep.subr.mxu0 0.0
    %11677 = vmatpush1.xpose.msra.mxu0 0.0
    %11678 = vmatprep.subr.mxu0 0.0
    %11679 = vmatpush1.xpose.msra.mxu0 0.0
    %11680 = vmatprep.subr.mxu0 0.0
    %11681 = vmatpush1.xpose.msra.mxu0 0.0
    %11682 = vmatprep.subr.mxu0 0.0
    %11683 = vmatpush1.xpose.msra.mxu0 0.0
    %11684 = vmatprep.subr.mxu0 0.0
    %11685 = vmatpush1.xpose.msra.mxu0 0.0
    %11686 = vmatprep.subr.mxu0 0.0
    %11687 = vmatpush1.xpose.msra.mxu0 0.0
    %11688 = vmatprep.subr.mxu0 0.0
    %11689 = vmatpush1.xpose.msra.mxu0 0.0
    %11690 = vmatprep.subr.mxu0 0.0
    %11691 = vmatpush1.xpose.msra.mxu0 0.0
    %11692 = vmatprep.subr.mxu0 0.0
    %11693 = vmatpush1.xpose.msra.mxu0 0.0
    %11694 = vmatprep.subr.mxu0 0.0
    %11695 = vmatpush1.xpose.msra.mxu0 0.0
    %11696 = vmatprep.subr.mxu0 0.0
    %11697 = vmatpush1.xpose.msra.mxu0 0.0
    %11698 = vmatprep.subr.mxu0 0.0
    %v11699 = vand.u32 %v11590, 4294901760
    %v11700 = vsub.f32 %v11590, %v11699
    %v11701 = vand.u32 %v11700, 4294901760
    %v11702 = vsub.f32 %v11700, %v11701
    %v11703 = vand.u32 %v11702, 4294901760
    %11704 = vmatpush1.xpose.msra.mxu0 %v11703
    %11705 = vmatprep.subr.mxu0 0.0
    %11706 = vmatpush2.xpose.msra.mxu0 0.0
    %11707 = vmatprep.subr.mxu0 0.0
    %11708 = vmatpush2.xpose.msra.mxu0 0.0
    %11709 = vmatprep.subr.mxu0 0.0
    %11710 = vmatpush2.xpose.msra.mxu0 0.0
    %11711 = vmatprep.subr.mxu0 0.0
    %11712 = vmatpush2.xpose.msra.mxu0 0.0
    %11713 = vmatprep.subr.mxu0 0.0
    %11714 = vmatpush2.xpose.msra.mxu0 0.0
    %11715 = vmatprep.subr.mxu0 0.0
    %11716 = vmatpush2.xpose.msra.mxu0 0.0
    %11717 = vmatprep.subr.mxu0 0.0
    %11718 = vmatpush2.xpose.msra.mxu0 0.0
    %11719 = vmatprep.subr.mxu0 0.0
    %11720 = vmatpush2.xpose.msra.mxu0 0.0
    %11721 = vmatprep.subr.mxu0 0.0
    %11722 = vmatpush2.xpose.msra.mxu0 0.0
    %11723 = vmatprep.subr.mxu0 0.0
    %11724 = vmatpush2.xpose.msra.mxu0 0.0
    %11725 = vmatprep.subr.mxu0 0.0
    %11726 = vmatpush2.xpose.msra.mxu0 0.0
    %11727 = vmatprep.subr.mxu0 0.0
    %11728 = vmatpush2.xpose.msra.mxu0 0.0
    %11729 = vmatprep.subr.mxu0 0.0
    %11730 = vmatpush2.xpose.msra.mxu0 0.0
    %11731 = vmatprep.subr.mxu0 0.0
    %11732 = vmatpush2.xpose.msra.mxu0 0.0
    %11733 = vmatprep.subr.mxu0 0.0
    %11734 = vmatpush2.xpose.msra.mxu0 0.0
    %11735 = vmatprep.subr.mxu0 0.0
    %11736 = vmatpush2.xpose.msra.mxu0 0.0
    %11737 = vmatprep.mubr.f32.mxu0 0.0
    %v11738 = vand.u32 %v11587, 4294901760
    %11739 = vmatmul.mubr.f32.gmra.mxu0 %v11738
    %v11740 = vpop.f32.mrf.mxu0
    %v11741 = vadd.f32 %v11665, %v11740
    %v11742 = vpop.f32.mrf.mxu0
    %11743 = vdwg.mxu0
    %11744 = vmatprep.subr.mxu0 0.0
    %11745 = vmatpush1.xpose.msra.mxu0 0.0
    %11746 = vmatprep.subr.mxu0 0.0
    %11747 = vmatpush1.xpose.msra.mxu0 0.0
    %11748 = vmatprep.subr.mxu0 0.0
    %11749 = vmatpush1.xpose.msra.mxu0 0.0
    %11750 = vmatprep.subr.mxu0 0.0
    %11751 = vmatpush1.xpose.msra.mxu0 0.0
    %11752 = vmatprep.subr.mxu0 0.0
    %11753 = vmatpush1.xpose.msra.mxu0 0.0
    %11754 = vmatprep.subr.mxu0 0.0
    %11755 = vmatpush1.xpose.msra.mxu0 0.0
    %11756 = vmatprep.subr.mxu0 0.0
    %11757 = vmatpush1.xpose.msra.mxu0 0.0
    %11758 = vmatprep.subr.mxu0 0.0
    %11759 = vmatpush1.xpose.msra.mxu0 0.0
    %11760 = vmatprep.subr.mxu0 0.0
    %11761 = vmatpush1.xpose.msra.mxu0 0.0
    %11762 = vmatprep.subr.mxu0 0.0
    %11763 = vmatpush1.xpose.msra.mxu0 0.0
    %11764 = vmatprep.subr.mxu0 0.0
    %11765 = vmatpush1.xpose.msra.mxu0 0.0
    %11766 = vmatprep.subr.mxu0 0.0
    %11767 = vmatpush1.xpose.msra.mxu0 0.0
    %11768 = vmatprep.subr.mxu0 0.0
    %11769 = vmatpush1.xpose.msra.mxu0 0.0
    %11770 = vmatprep.subr.mxu0 0.0
    %11771 = vmatpush1.xpose.msra.mxu0 0.0
    %11772 = vmatprep.subr.mxu0 0.0
    %11773 = vmatpush1.xpose.msra.mxu0 0.0
    %11774 = vmatprep.subr.mxu0 0.0
    %v11775 = vand.u32 %v11590, 4294901760
    %v11776 = vsub.f32 %v11590, %v11775
    %11777 = vmatpush1.xpose.msra.mxu0 %v11776
    %11778 = vmatprep.subr.mxu0 0.0
    %11779 = vmatpush2.xpose.msra.mxu0 0.0
    %11780 = vmatprep.subr.mxu0 0.0
    %11781 = vmatpush2.xpose.msra.mxu0 0.0
    %11782 = vmatprep.subr.mxu0 0.0
    %11783 = vmatpush2.xpose.msra.mxu0 0.0
    %11784 = vmatprep.subr.mxu0 0.0
    %11785 = vmatpush2.xpose.msra.mxu0 0.0
    %11786 = vmatprep.subr.mxu0 0.0
    %11787 = vmatpush2.xpose.msra.mxu0 0.0
    %11788 = vmatprep.subr.mxu0 0.0
    %11789 = vmatpush2.xpose.msra.mxu0 0.0
    %11790 = vmatprep.subr.mxu0 0.0
    %11791 = vmatpush2.xpose.msra.mxu0 0.0
    %11792 = vmatprep.subr.mxu0 0.0
    %11793 = vmatpush2.xpose.msra.mxu0 0.0
    %11794 = vmatprep.subr.mxu0 0.0
    %11795 = vmatpush2.xpose.msra.mxu0 0.0
    %11796 = vmatprep.subr.mxu0 0.0
    %11797 = vmatpush2.xpose.msra.mxu0 0.0
    %11798 = vmatprep.subr.mxu0 0.0
    %11799 = vmatpush2.xpose.msra.mxu0 0.0
    %11800 = vmatprep.subr.mxu0 0.0
    %11801 = vmatpush2.xpose.msra.mxu0 0.0
    %11802 = vmatprep.subr.mxu0 0.0
    %11803 = vmatpush2.xpose.msra.mxu0 0.0
    %11804 = vmatprep.subr.mxu0 0.0
    %11805 = vmatpush2.xpose.msra.mxu0 0.0
    %11806 = vmatprep.subr.mxu0 0.0
    %11807 = vmatpush2.xpose.msra.mxu0 0.0
    %11808 = vmatprep.subr.mxu0 0.0
    %11809 = vmatpush2.xpose.msra.mxu0 0.0
    %11810 = vmatprep.mubr.f32.mxu0 0.0
    %v11811 = vand.u32 %v11587, 4294901760
    %v11812 = vsub.f32 %v11587, %v11811
    %11813 = vmatmul.mubr.f32.gmra.mxu0 %v11812
    %v11814 = vpop.f32.mrf.mxu0
    %v11815 = vadd.f32 %v11741, %v11814
    %v11816 = vpop.f32.mrf.mxu0
    %11817 = vdwg.mxu0
    %11818 = vmatprep.subr.mxu0 0.0
    %11819 = vmatpush1.xpose.msra.mxu0 0.0
    %11820 = vmatprep.subr.mxu0 0.0
    %11821 = vmatpush1.xpose.msra.mxu0 0.0
    %11822 = vmatprep.subr.mxu0 0.0
    %11823 = vmatpush1.xpose.msra.mxu0 0.0
    %11824 = vmatprep.subr.mxu0 0.0
    %11825 = vmatpush1.xpose.msra.mxu0 0.0
    %11826 = vmatprep.subr.mxu0 0.0
    %11827 = vmatpush1.xpose.msra.mxu0 0.0
    %11828 = vmatprep.subr.mxu0 0.0
    %11829 = vmatpush1.xpose.msra.mxu0 0.0
    %11830 = vmatprep.subr.mxu0 0.0
    %11831 = vmatpush1.xpose.msra.mxu0 0.0
    %11832 = vmatprep.subr.mxu0 0.0
    %11833 = vmatpush1.xpose.msra.mxu0 0.0
    %11834 = vmatprep.subr.mxu0 0.0
    %11835 = vmatpush1.xpose.msra.mxu0 0.0
    %11836 = vmatprep.subr.mxu0 0.0
    %11837 = vmatpush1.xpose.msra.mxu0 0.0
    %11838 = vmatprep.subr.mxu0 0.0
    %11839 = vmatpush1.xpose.msra.mxu0 0.0
    %11840 = vmatprep.subr.mxu0 0.0
    %11841 = vmatpush1.xpose.msra.mxu0 0.0
    %11842 = vmatprep.subr.mxu0 0.0
    %11843 = vmatpush1.xpose.msra.mxu0 0.0
    %11844 = vmatprep.subr.mxu0 0.0
    %11845 = vmatpush1.xpose.msra.mxu0 0.0
    %11846 = vmatprep.subr.mxu0 0.0
    %11847 = vmatpush1.xpose.msra.mxu0 0.0
    %11848 = vmatprep.subr.mxu0 0.0
    %v11849 = vand.u32 %v11590, 4294901760
    %11850 = vmatpush1.xpose.msra.mxu0 %v11849
    %11851 = vmatprep.subr.mxu0 0.0
    %11852 = vmatpush2.xpose.msra.mxu0 0.0
    %11853 = vmatprep.subr.mxu0 0.0
    %11854 = vmatpush2.xpose.msra.mxu0 0.0
    %11855 = vmatprep.subr.mxu0 0.0
    %11856 = vmatpush2.xpose.msra.mxu0 0.0
    %11857 = vmatprep.subr.mxu0 0.0
    %11858 = vmatpush2.xpose.msra.mxu0 0.0
    %11859 = vmatprep.subr.mxu0 0.0
    %11860 = vmatpush2.xpose.msra.mxu0 0.0
    %11861 = vmatprep.subr.mxu0 0.0
    %11862 = vmatpush2.xpose.msra.mxu0 0.0
    %11863 = vmatprep.subr.mxu0 0.0
    %11864 = vmatpush2.xpose.msra.mxu0 0.0
    %11865 = vmatprep.subr.mxu0 0.0
    %11866 = vmatpush2.xpose.msra.mxu0 0.0
    %11867 = vmatprep.subr.mxu0 0.0
    %11868 = vmatpush2.xpose.msra.mxu0 0.0
    %11869 = vmatprep.subr.mxu0 0.0
    %11870 = vmatpush2.xpose.msra.mxu0 0.0
    %11871 = vmatprep.subr.mxu0 0.0
    %11872 = vmatpush2.xpose.msra.mxu0 0.0
    %11873 = vmatprep.subr.mxu0 0.0
    %11874 = vmatpush2.xpose.msra.mxu0 0.0
    %11875 = vmatprep.subr.mxu0 0.0
    %11876 = vmatpush2.xpose.msra.mxu0 0.0
    %11877 = vmatprep.subr.mxu0 0.0
    %11878 = vmatpush2.xpose.msra.mxu0 0.0
    %11879 = vmatprep.subr.mxu0 0.0
    %11880 = vmatpush2.xpose.msra.mxu0 0.0
    %11881 = vmatprep.subr.mxu0 0.0
    %11882 = vmatpush2.xpose.msra.mxu0 0.0
    %11883 = vmatprep.mubr.f32.mxu0 0.0
    %v11884 = vand.u32 %v11587, 4294901760
    %v11885 = vsub.f32 %v11587, %v11884
    %v11886 = vand.u32 %v11885, 4294901760
    %11887 = vmatmul.mubr.f32.gmra.mxu0 %v11886
    %v11888 = vpop.f32.mrf.mxu0
    %v11889 = vadd.f32 %v11815, %v11888
    %v11890 = vpop.f32.mrf.mxu0
    %11891 = vdwg.mxu0
    %11892 = vmatprep.subr.mxu0 0.0
    %11893 = vmatpush1.xpose.msra.mxu0 0.0
    %11894 = vmatprep.subr.mxu0 0.0
    %11895 = vmatpush1.xpose.msra.mxu0 0.0
    %11896 = vmatprep.subr.mxu0 0.0
    %11897 = vmatpush1.xpose.msra.mxu0 0.0
    %11898 = vmatprep.subr.mxu0 0.0
    %11899 = vmatpush1.xpose.msra.mxu0 0.0
    %11900 = vmatprep.subr.mxu0 0.0
    %11901 = vmatpush1.xpose.msra.mxu0 0.0
    %11902 = vmatprep.subr.mxu0 0.0
    %11903 = vmatpush1.xpose.msra.mxu0 0.0
    %11904 = vmatprep.subr.mxu0 0.0
    %11905 = vmatpush1.xpose.msra.mxu0 0.0
    %11906 = vmatprep.subr.mxu0 0.0
    %11907 = vmatpush1.xpose.msra.mxu0 0.0
    %11908 = vmatprep.subr.mxu0 0.0
    %11909 = vmatpush1.xpose.msra.mxu0 0.0
    %11910 = vmatprep.subr.mxu0 0.0
    %11911 = vmatpush1.xpose.msra.mxu0 0.0
    %11912 = vmatprep.subr.mxu0 0.0
    %11913 = vmatpush1.xpose.msra.mxu0 0.0
    %11914 = vmatprep.subr.mxu0 0.0
    %11915 = vmatpush1.xpose.msra.mxu0 0.0
    %11916 = vmatprep.subr.mxu0 0.0
    %11917 = vmatpush1.xpose.msra.mxu0 0.0
    %11918 = vmatprep.subr.mxu0 0.0
    %11919 = vmatpush1.xpose.msra.mxu0 0.0
    %11920 = vmatprep.subr.mxu0 0.0
    %11921 = vmatpush1.xpose.msra.mxu0 0.0
    %11922 = vmatprep.subr.mxu0 0.0
    %v11923 = vand.u32 %v11590, 4294901760
    %v11924 = vsub.f32 %v11590, %v11923
    %v11925 = vand.u32 %v11924, 4294901760
    %11926 = vmatpush1.xpose.msra.mxu0 %v11925
    %11927 = vmatprep.subr.mxu0 0.0
    %11928 = vmatpush2.xpose.msra.mxu0 0.0
    %11929 = vmatprep.subr.mxu0 0.0
    %11930 = vmatpush2.xpose.msra.mxu0 0.0
    %11931 = vmatprep.subr.mxu0 0.0
    %11932 = vmatpush2.xpose.msra.mxu0 0.0
    %11933 = vmatprep.subr.mxu0 0.0
    %11934 = vmatpush2.xpose.msra.mxu0 0.0
    %11935 = vmatprep.subr.mxu0 0.0
    %11936 = vmatpush2.xpose.msra.mxu0 0.0
    %11937 = vmatprep.subr.mxu0 0.0
    %11938 = vmatpush2.xpose.msra.mxu0 0.0
    %11939 = vmatprep.subr.mxu0 0.0
    %11940 = vmatpush2.xpose.msra.mxu0 0.0
    %11941 = vmatprep.subr.mxu0 0.0
    %11942 = vmatpush2.xpose.msra.mxu0 0.0
    %11943 = vmatprep.subr.mxu0 0.0
    %11944 = vmatpush2.xpose.msra.mxu0 0.0
    %11945 = vmatprep.subr.mxu0 0.0
    %11946 = vmatpush2.xpose.msra.mxu0 0.0
    %11947 = vmatprep.subr.mxu0 0.0
    %11948 = vmatpush2.xpose.msra.mxu0 0.0
    %11949 = vmatprep.subr.mxu0 0.0
    %11950 = vmatpush2.xpose.msra.mxu0 0.0
    %11951 = vmatprep.subr.mxu0 0.0
    %11952 = vmatpush2.xpose.msra.mxu0 0.0
    %11953 = vmatprep.subr.mxu0 0.0
    %11954 = vmatpush2.xpose.msra.mxu0 0.0
    %11955 = vmatprep.subr.mxu0 0.0
    %11956 = vmatpush2.xpose.msra.mxu0 0.0
    %11957 = vmatprep.subr.mxu0 0.0
    %11958 = vmatpush2.xpose.msra.mxu0 0.0
    %11959 = vmatprep.mubr.f32.mxu0 0.0
    %v11960 = vand.u32 %v11587, 4294901760
    %11961 = vmatmul.mubr.f32.gmra.mxu0 %v11960
    %v11962 = vpop.f32.mrf.mxu0
    %v11963 = vadd.f32 %v11889, %v11962
    %v11964 = vpop.f32.mrf.mxu0
    %11965 = vdwg.mxu0
    %11966 = vmatprep.subr.mxu0 0.0
    %11967 = vmatpush1.xpose.msra.mxu0 0.0
    %11968 = vmatprep.subr.mxu0 0.0
    %11969 = vmatpush1.xpose.msra.mxu0 0.0
    %11970 = vmatprep.subr.mxu0 0.0
    %11971 = vmatpush1.xpose.msra.mxu0 0.0
    %11972 = vmatprep.subr.mxu0 0.0
    %11973 = vmatpush1.xpose.msra.mxu0 0.0
    %11974 = vmatprep.subr.mxu0 0.0
    %11975 = vmatpush1.xpose.msra.mxu0 0.0
    %11976 = vmatprep.subr.mxu0 0.0
    %11977 = vmatpush1.xpose.msra.mxu0 0.0
    %11978 = vmatprep.subr.mxu0 0.0
    %11979 = vmatpush1.xpose.msra.mxu0 0.0
    %11980 = vmatprep.subr.mxu0 0.0
    %11981 = vmatpush1.xpose.msra.mxu0 0.0
    %11982 = vmatprep.subr.mxu0 0.0
    %11983 = vmatpush1.xpose.msra.mxu0 0.0
    %11984 = vmatprep.subr.mxu0 0.0
    %11985 = vmatpush1.xpose.msra.mxu0 0.0
    %11986 = vmatprep.subr.mxu0 0.0
    %11987 = vmatpush1.xpose.msra.mxu0 0.0
    %11988 = vmatprep.subr.mxu0 0.0
    %11989 = vmatpush1.xpose.msra.mxu0 0.0
    %11990 = vmatprep.subr.mxu0 0.0
    %11991 = vmatpush1.xpose.msra.mxu0 0.0
    %11992 = vmatprep.subr.mxu0 0.0
    %11993 = vmatpush1.xpose.msra.mxu0 0.0
    %11994 = vmatprep.subr.mxu0 0.0
    %11995 = vmatpush1.xpose.msra.mxu0 0.0
    %11996 = vmatprep.subr.mxu0 0.0
    %v11997 = vand.u32 %v11590, 4294901760
    %11998 = vmatpush1.xpose.msra.mxu0 %v11997
    %11999 = vmatprep.subr.mxu0 0.0
    %12000 = vmatpush2.xpose.msra.mxu0 0.0
    %12001 = vmatprep.subr.mxu0 0.0
    %12002 = vmatpush2.xpose.msra.mxu0 0.0
    %12003 = vmatprep.subr.mxu0 0.0
    %12004 = vmatpush2.xpose.msra.mxu0 0.0
    %12005 = vmatprep.subr.mxu0 0.0
    %12006 = vmatpush2.xpose.msra.mxu0 0.0
    %12007 = vmatprep.subr.mxu0 0.0
    %12008 = vmatpush2.xpose.msra.mxu0 0.0
    %12009 = vmatprep.subr.mxu0 0.0
    %12010 = vmatpush2.xpose.msra.mxu0 0.0
    %12011 = vmatprep.subr.mxu0 0.0
    %12012 = vmatpush2.xpose.msra.mxu0 0.0
    %12013 = vmatprep.subr.mxu0 0.0
    %12014 = vmatpush2.xpose.msra.mxu0 0.0
    %12015 = vmatprep.subr.mxu0 0.0
    %12016 = vmatpush2.xpose.msra.mxu0 0.0
    %12017 = vmatprep.subr.mxu0 0.0
    %12018 = vmatpush2.xpose.msra.mxu0 0.0
    %12019 = vmatprep.subr.mxu0 0.0
    %12020 = vmatpush2.xpose.msra.mxu0 0.0
    %12021 = vmatprep.subr.mxu0 0.0
    %12022 = vmatpush2.xpose.msra.mxu0 0.0
    %12023 = vmatprep.subr.mxu0 0.0
    %12024 = vmatpush2.xpose.msra.mxu0 0.0
    %12025 = vmatprep.subr.mxu0 0.0
    %12026 = vmatpush2.xpose.msra.mxu0 0.0
    %12027 = vmatprep.subr.mxu0 0.0
    %12028 = vmatpush2.xpose.msra.mxu0 0.0
    %12029 = vmatprep.subr.mxu0 0.0
    %12030 = vmatpush2.xpose.msra.mxu0 0.0
    %12031 = vmatprep.mubr.f32.mxu0 0.0
    %v12032 = vand.u32 %v11587, 4294901760
    %12033 = vmatmul.mubr.f32.gmra.mxu0 %v12032
    %v12034 = vpop.f32.mrf.mxu0
    %v12035 = vadd.f32 %v11963, %v12034
    %v12036 = vpop.f32.mrf.mxu0
    %12037 = vdwg.mxu0
    %vm12038 = vcmask 8192
    %12039 = vst.msk [vmem:[#allocation23] sm:$0x1] %vm12038, %v12035
    // Predicated region
    $region126: #{forward.1} parent=1 // pred_check
      _
    $region127: #{forward.1} parent=1 // pred_check_branch
      %12041 = sbr.rel (0) target = $region129
    $region128: #{forward.1} parent=1 // pred_region
      %s12043 = ssub.s32 16, 16
      %12044 = vsyncadd [#allocation7], %s12043
      %s12046 = sshll.u32 [#allocation23], 4
      %s12047 = int_to_ptr.vmem [resolvable:$true] %s12046
      %12049 = dma.vmem_to_hbm [thread:$0]  %s12047, 16, %s20, [#allocation7]
    $region129: #{forward.1} parent=1 // pred_fallthru
      _
    // Predicated region
    $region130: #{forward.1} parent=1 // pred_check
      _
    $region131: #{forward.1} parent=1 // pred_check_branch
      %12051 = sbr.rel (0) target = $region133
    $region132: #{forward.1} parent=1 // pred_region
      %12052 = dma.done [#allocation7], 16
    $region133: #{forward.1} parent=1 // pred_fallthru
      _
    %12053 = vsyncpa [#allocation6], 1
    %12054 = vsyncpa [#allocation9], 1
    %12055 = vsyncpa [#allocation12], 1
    %12056 = vsyncpa [#allocation15], 1
    %12057 = vsyncpa [#allocation18], 1
    %12058 = vsyncpa [#allocation21], 1
    %12059 = vsyncpa [#allocation7], 1
  %12060 = vsyncmov [#allocation4]
  %s12061 = vpop.sfrf %12060
  %p12062 = scmp.eq.s32.totalorder %s12061, 0
  %p12063 = pneg %p12062
  %12065 = shalt.err (%p12063)
  %s12066 = scalar_lea.sflag [#allocation4], 1
  %12067 = vsyncmov %s12066
  %s12068 = vpop.sfrf %12067
  %p12069 = scmp.eq.s32.totalorder %s12068, 0
  %p12070 = pneg %p12069
  %12072 = shalt.err (%p12070)

</llo_original>
